<compile_context>
chip_gen: v5e
topology: v5e:2x2
jax: 0.10.0
libtpu: 0.0.40
codegen_flags: <defaults>
</compile_context>

<pallas_src>
import functools

import jax
import jax.numpy as jnp
from jax import lax
from jax.experimental import pallas as pl
from jax.experimental.pallas import tpu as pltpu


def _resblock_kernel(x_ref, mask_ref, w1_ref, b1_ref, w2_ref, b2_ref,
                     out_ref, mid_ref, xcat_ref, *, Wp, PAD, Lout):
    """B_tile images: conv1 -> (+bias) -> relu -> conv2 -> (+bias) -> +shortcut -> relu."""
    Ltot, C = x_ref.shape
    cdt = mid_ref.dtype

    # Re-zero only the scratch borders each step (interior is fully overwritten),
    # so the batch grid axis can safely stay "parallel" on multi-TC parts.
    zeros_pad = jnp.zeros((PAD, C), cdt)
    mid_ref[0:PAD, :] = zeros_pad
    mid_ref[Ltot - PAD:Ltot, :] = zeros_pad

    def conv3x3(src_ref, w_ref):
        # Build the dx-concatenated operand once per conv:
        #   xcat[j, 0:C]   = src[j-1]   (dx = -1)
        #   xcat[j, C:2C]  = src[j]     (dx =  0)
        #   xcat[j, 2C:3C] = src[j+1]   (dx = +1)
        # The +-1 row shifts go through the XLU (pltpu.roll) so every tap below
        # is an 8-aligned sublane slice; the wrapped rows land on zero pad rows.
        src = src_ref[...]
        xcat_ref[:, 0:C] = pltpu.roll(src, shift=1, axis=0)            # src[j-1]
        xcat_ref[:, C:2 * C] = src
        xcat_ref[:, 2 * C:3 * C] = pltpu.roll(src, shift=Ltot - 1, axis=0)  # == -1: src[j+1]
        acc = jnp.zeros((Lout, C), jnp.float32)
        for t, base in enumerate((PAD - Wp, PAD, PAD + Wp)):           # dy = -1, 0, +1
            acc = acc + jnp.dot(xcat_ref[base:base + Lout, :], w_ref[t],
                                preferred_element_type=jnp.float32)
        return acc

    # conv1 (BN1 scale folded into w1) -> +bias -> relu ; mask gap/pad rows so
    # conv2 sees clean zero borders around every image.
    h1 = jnp.maximum(conv3x3(x_ref, w1_ref) + b1_ref[...], 0.0)
    mid_ref[PAD:PAD + Lout, :] = (h1 * mask_ref[...]).astype(cdt)

    # conv2 (BN2 scale folded into w2) -> +bias -> + channel-zero-padded shortcut -> relu
    h2 = conv3x3(mid_ref, w2_ref) + b2_ref[...]
    sc = x_ref[PAD:PAD + Lout, :].astype(jnp.float32)
    out_ref[...] = jnp.maximum(h2 + sc, 0.0).astype(out_ref.dtype)


def _vmem_capacity_bytes():
    try:
        return int(pltpu.get_tpu_info().vmem_capacity_bytes)
    except Exception:
        return 64 << 20                     # conservative (v7x-sized) fallback


def _pick_batch_tile(N, LPimg, C, cbytes, vmem_bytes):
    """Largest batch tile whose per-step VMEM footprint fits a conservative budget."""
    Cl = max(C, 128)                        # lane padding of a C-wide VMEM block
    Cl3 = max(3 * C, 128)                   # lane padding of the xcat scratch
    per_img = LPimg * (
        2 * Cl * cbytes                     # x block (double-buffered)
        + Cl * cbytes                       # mid scratch
        + Cl3 * cbytes                      # xcat scratch
        + 2 * Cl * 4                        # out block (double-buffered, f32)
        + Cl * 4                            # validity mask (f32)
        + 4 * Cl * 4)                       # f32 compute temporaries (rolls/acc/h1/h2)
    weights = 2 * 2 * 3 * ((3 * C + 7) // 8 * 8) * Cl * cbytes   # 2 convs x <=2 buffers
    biases = 4 * 8 * 128 * 4
    budget = int(0.4 * vmem_bytes) - weights - biases
    b = max(1, budget // max(per_img, 1))
    if N > 1:                               # keep >= 2 grid steps so both v7x TCs get work
        b = min(b, pl.cdiv(N, 2))
    return int(max(1, min(b, N)))


def resblock2d_forward(x_nchw, params, *, planes):
    """Pallas implementation of ResBlock2D.forward (stride=1, dilation=(1,1), 3x3)."""
    N, Cin, H, W = x_nchw.shape
    C = planes
    Wp = 8 * ((W + 1 + 7) // 8)             # width + >=1 zero gap column, multiple of 8
    PAD = Wp + 8                            # >= Wp + 1 (max tap reach), multiple of 8
    LPimg = PAD + H * Wp + PAD              # rows per image (multiple of 8)

    compute_dtype = jnp.bfloat16 if C >= 128 else jnp.float32
    cbytes = 2 if compute_dtype == jnp.bfloat16 else 4

    vmem_phys = _vmem_capacity_bytes()
    vmem_limit = max(32 << 20, int(0.75 * vmem_phys))
    B_tile = _pick_batch_tile(N, LPimg, C, cbytes, vmem_phys)
    G = pl.cdiv(N, B_tile)                  # grid steps (N padded up, no divisor needed)
    N_pad = G * B_tile
    Ltot = B_tile * LPimg
    Lout = Ltot - 2 * PAD

    # ---------------- glue: layout conversion & parameter folding ----------------
    x_nhwc = jnp.transpose(x_nchw, (0, 2, 3, 1)).astype(jnp.float32)
    if N_pad != N:
        x_nhwc = jnp.pad(x_nhwc, ((0, N_pad - N), (0, 0), (0, 0), (0, 0)))
    # channel zero-pad (this *is* the default shortcut's F.pad); conv1 weights get
    # matching zero input-channel rows, so conv1's result is unchanged.
    x_cpad = jnp.pad(x_nhwc, ((0, 0), (0, 0), (0, 0), (0, C - Cin)))
    x_wpad = jnp.pad(x_cpad, ((0, 0), (0, 0), (0, Wp - W), (0, 0)))   # zero gap columns
    x_slab = jnp.pad(x_wpad.reshape(N_pad, H * Wp, C),
                     ((0, 0), (PAD, PAD), (0, 0))).reshape(N_pad * LPimg, C)
    x_slab = x_slab.astype(compute_dtype)

    # lane-dense pixel-validity mask over the per-step output rows
    loc = jnp.arange(LPimg)
    row_valid = ((loc >= PAD) & (loc < PAD + H * Wp)
                 & (((loc - PAD) % Wp) < W)).astype(jnp.float32)
    tile_valid = jnp.tile(row_valid, (B_tile,))[PAD:Ltot - PAD]
    mask = jnp.broadcast_to(tile_valid[:, None], (Lout, C)).astype(jnp.float32)

    def fold_bn(gamma, beta, mean, var, eps=1e-5):
        scale = gamma / jnp.sqrt(var + eps)
        bias = beta - mean * scale
        return scale.astype(jnp.float32), bias.reshape(1, C).astype(jnp.float32)

    def conv_taps(w_oihw, scale):           # torch (Cout, Cin, 3, 3) -> (3, 3C, Cout)
        cout, cin = w_oihw.shape[:2]
        w = w_oihw.astype(jnp.float32) * scale.reshape(cout, 1, 1, 1)   # fold BN scale
        w = jnp.pad(w, ((0, 0), (0, C - cin), (0, 0), (0, 0)))
        w = jnp.transpose(w, (2, 3, 1, 0))  # (ky, kx, cin, cout)
        return w.reshape(3, 3 * C, cout).astype(compute_dtype)          # k = kx*C + cin

    s1, b1 = fold_bn(*params["bn1"])
    s2, b2 = fold_bn(*params["bn2"])
    w1 = conv_taps(params["w1"], s1)
    w2 = conv_taps(params["w2"], s2)

    kernel = functools.partial(_resblock_kernel, Wp=Wp, PAD=PAD, Lout=Lout)

    def _call(single_buffer_consts):
        pm = {"pipeline_mode": pl.Buffered(1)} if single_buffer_consts else {}
        in_specs = [
            pl.BlockSpec((Ltot, C), lambda t: (t, 0)),                  # x slab tile
            pl.BlockSpec((Lout, C), lambda t: (0, 0), **pm),            # validity mask
            pl.BlockSpec((3, 3 * C, C), lambda t: (0, 0, 0), **pm),     # conv1 taps
            pl.BlockSpec((1, C), lambda t: (0, 0), **pm),               # bn1 bias
            pl.BlockSpec((3, 3 * C, C), lambda t: (0, 0, 0), **pm),     # conv2 taps
            pl.BlockSpec((1, C), lambda t: (0, 0), **pm),               # bn2 bias
        ]
        return pl.pallas_call(
            kernel,
            out_shape=jax.ShapeDtypeStruct((G * Lout, C), jnp.float32),
            grid=(G,),
            in_specs=in_specs,
            out_specs=pl.BlockSpec((Lout, C), lambda t: (t, 0)),        # interior rows only
            scratch_shapes=[pltpu.VMEM((Ltot, C), compute_dtype),       # mid activation
                            pltpu.VMEM((Ltot, 3 * C), compute_dtype)],  # dx-concat operand
            compiler_params=pltpu.CompilerParams(
                dimension_semantics=("parallel",),                      # batch tiles independent
                vmem_limit_bytes=vmem_limit),
        )(x_slab, mask, w1, b1, w2, b2)

    try:
        out_slab = _call(True)
    except Exception:
        # pl.Buffered(1) not accepted by this jax version -> default double buffering.
        out_slab = _call(False)

    out = out_slab.reshape(G, Lout, C)
    out = jnp.pad(out, ((0, 0), (PAD, PAD), (0, 0)))       # restore per-tile slab shape
    out = out.reshape(N_pad, LPimg, C)[:N, PAD:PAD + H * Wp, :]
    out = out.reshape(N, H, Wp, C)[:, :, :W, :]
    return jnp.transpose(out, (0, 3, 1, 2))                 # back to NCHW


# ---------------------------- pure-JAX reference ----------------------------
def resblock2d_reference(x, params, *, planes, eps=1e-5):
    def conv(x, w):
        return lax.conv_general_dilated(
            x, w, window_strides=(1, 1), padding=((1, 1), (1, 1)),
            dimension_numbers=("NCHW", "OIHW", "NCHW"))

    def bn(x, p):
        gamma, beta, mean, var = p
        inv = gamma / jnp.sqrt(var + eps)
        return (x - mean[None, :, None, None]) * inv[None, :, None, None] \
            + beta[None, :, None, None]

    out = jax.nn.relu(bn(conv(x, params["w1"]), params["bn1"]))
    out = bn(conv(out, params["w2"]), params["bn2"])
    sc = jnp.pad(x, ((0, 0), (0, planes - x.shape[1]), (0, 0), (0, 0)))
    return jax.nn.relu(out + sc)


if __name__ == "__main__":
    # small shapes consistent with ResBlock2D(in_planes=4, planes=8), stride=1
    N, Cin, H, W = 2, 4, 16, 16
    planes = 8

    key = jax.random.PRNGKey(0)
    ks = jax.random.split(key, 11)
    params = {
        "w1": jax.random.normal(ks[0], (planes, Cin, 3, 3), jnp.float32) * 0.1,
        "w2": jax.random.normal(ks[1], (planes, planes, 3, 3), jnp.float32) * 0.1,
        "bn1": (
            jax.random.uniform(ks[2], (planes,), jnp.float32, 0.5, 1.5),   # gamma
            jax.random.normal(ks[3], (planes,), jnp.float32) * 0.1,        # beta
            jax.random.normal(ks[4], (planes,), jnp.float32) * 0.1,        # running mean
            jax.random.uniform(ks[5], (planes,), jnp.float32, 0.5, 1.5),   # running var
        ),
        "bn2": (
            jax.random.uniform(ks[6], (planes,), jnp.float32, 0.5, 1.5),
            jax.random.normal(ks[7], (planes,), jnp.float32) * 0.1,
            jax.random.normal(ks[8], (planes,), jnp.float32) * 0.1,
            jax.random.uniform(ks[9], (planes,), jnp.float32, 0.5, 1.5),
        ),
    }
    x = jax.random.normal(ks[10], (N, Cin, H, W), jnp.float32)

    out = resblock2d_forward(x, params, planes=planes)
    out = jax.block_until_ready(out)

    ref = resblock2d_reference(x, params, planes=planes)
    assert out.shape == (N, planes, H, W), out.shape
    assert jnp.allclose(out, ref, rtol=1e-4, atol=1e-4), \
        float(jnp.max(jnp.abs(out - ref)))

    print("KERNEL_OK")
</pallas_src>

<mosaic_0001>
module attributes {stable_mosaic.version = 11 : i64} {
  func.func @_resblock_kernel(%arg0: i32, %arg1: memref<448x8xf32, #tpu.memory_space<vmem>>, %arg2: memref<384x8xf32, #tpu.memory_space<vmem>>, %arg3: memref<3x24x8xf32, #tpu.memory_space<vmem>>, %arg4: memref<1x8xf32, #tpu.memory_space<vmem>>, %arg5: memref<3x24x8xf32, #tpu.memory_space<vmem>>, %arg6: memref<1x8xf32, #tpu.memory_space<vmem>>, %arg7: memref<384x8xf32, #tpu.memory_space<vmem>>, %arg8: memref<448x8xf32, #tpu.memory_space<vmem>>, %arg9: memref<448x24xf32, #tpu.memory_space<vmem>>) attributes {dimension_semantics = [#tpu.dimension_semantics<parallel>], iteration_bounds = array<i64: 2>, scalar_prefetch = 0 : i64, scratch_operands = 2 : i64, tpu.core_type = #tpu.core_type<tc>, window_params = [{transform_indices = @transform_0, window_bounds = array<i64: 448, 8>}, {pipeline_mode = #tpu.pipeline_mode<synchronous>, transform_indices = @transform_1, window_bounds = array<i64: 384, 8>}, {pipeline_mode = #tpu.pipeline_mode<synchronous>, transform_indices = @transform_2, window_bounds = array<i64: 3, 24, 8>}, {pipeline_mode = #tpu.pipeline_mode<synchronous>, transform_indices = @transform_3, window_bounds = array<i64: 1, 8>}, {pipeline_mode = #tpu.pipeline_mode<synchronous>, transform_indices = @transform_4, window_bounds = array<i64: 3, 24, 8>}, {pipeline_mode = #tpu.pipeline_mode<synchronous>, transform_indices = @transform_5, window_bounds = array<i64: 1, 8>}, {transform_indices = @transform_6, window_bounds = array<i64: 384, 8>}]} {
    %cst = arith.constant 0.000000e+00 : f32
    %0 = vector.broadcast %cst : f32 to vector<32x8xf32>
    %c0 = arith.constant 0 : index
    %c0_0 = arith.constant 0 : index
    %1 = vector.load %arg8[%c0, %c0_0] : memref<448x8xf32, #tpu.memory_space<vmem>>, vector<32x8xf32>
    tpu.vector_store %arg8[%c0, %c0_0], %0 {strides = array<i32>} : memref<448x8xf32, #tpu.memory_space<vmem>>, vector<32x8xf32>,
    %c416 = arith.constant 416 : index
    %c0_1 = arith.constant 0 : index
    %2 = vector.load %arg8[%c416, %c0_1] : memref<448x8xf32, #tpu.memory_space<vmem>>, vector<32x8xf32>
    tpu.vector_store %arg8[%c416, %c0_1], %0 {strides = array<i32>} : memref<448x8xf32, #tpu.memory_space<vmem>>, vector<32x8xf32>,
    %c0_2 = arith.constant 0 : index
    %c0_3 = arith.constant 0 : index
    %3 = vector.load %arg1[%c0_2, %c0_3] : memref<448x8xf32, #tpu.memory_space<vmem>>, vector<448x8xf32>
    %c1_i32 = arith.constant 1 : i32
    %4 = tpu.dynamic_rotate %3 by %c1_i32 dim 0 : vector<448x8xf32>, i32 -> vector<448x8xf32>
    %c0_4 = arith.constant 0 : index
    %c0_5 = arith.constant 0 : index
    %5 = vector.load %arg9[%c0_4, %c0_5] : memref<448x24xf32, #tpu.memory_space<vmem>>, vector<448x8xf32>
    tpu.vector_store %arg9[%c0_4, %c0_5], %4 {strides = array<i32>} : memref<448x24xf32, #tpu.memory_space<vmem>>, vector<448x8xf32>,
    %c0_6 = arith.constant 0 : index
    %c8 = arith.constant 8 : index
    %6 = vector.load %arg9[%c0_6, %c8] : memref<448x24xf32, #tpu.memory_space<vmem>>, vector<448x8xf32>
    tpu.vector_store %arg9[%c0_6, %c8], %3 {strides = array<i32>} : memref<448x24xf32, #tpu.memory_space<vmem>>, vector<448x8xf32>,
    %c447_i32 = arith.constant 447 : i32
    %7 = tpu.dynamic_rotate %3 by %c447_i32 dim 0 : vector<448x8xf32>, i32 -> vector<448x8xf32>
    %c0_7 = arith.constant 0 : index
    %c16 = arith.constant 16 : index
    %8 = vector.load %arg9[%c0_7, %c16] : memref<448x24xf32, #tpu.memory_space<vmem>>, vector<448x8xf32>
    tpu.vector_store %arg9[%c0_7, %c16], %7 {strides = array<i32>} : memref<448x24xf32, #tpu.memory_space<vmem>>, vector<448x8xf32>,
    %cst_8 = arith.constant 0.000000e+00 : f32
    %9 = vector.broadcast %cst_8 : f32 to vector<384x8xf32>
    %c8_9 = arith.constant 8 : index
    %c0_10 = arith.constant 0 : index
    %10 = vector.load %arg9[%c8_9, %c0_10] : memref<448x24xf32, #tpu.memory_space<vmem>>, vector<384x24xf32>
    %c0_11 = arith.constant 0 : index
    %c0_12 = arith.constant 0 : index
    %c0_13 = arith.constant 0 : index
    %11 = vector.load %arg3[%c0_11, %c0_12, %c0_13] : memref<3x24x8xf32, #tpu.memory_space<vmem>>, vector<1x24x8xf32>
    %12 = vector.shape_cast %11 : vector<1x24x8xf32> to vector<24x8xf32>
    %cst_14 = arith.constant dense<0.000000e+00> : vector<384x8xf32>
    %13 = tpu.matmul %10, %12, %cst_14 {dimension_numbers = #tpu.dot_dimension_numbers<[1], [0], [0], [1], [0, 0, 1, 1], [], []>} : vector<384x24xf32>, vector<24x8xf32>, vector<384x8xf32> -> vector<384x8xf32>
    %14 = arith.addf %9, %13 : vector<384x8xf32>
    %c32 = arith.constant 32 : index
    %c0_15 = arith.constant 0 : index
    %15 = vector.load %arg9[%c32, %c0_15] : memref<448x24xf32, #tpu.memory_space<vmem>>, vector<384x24xf32>
    %c1 = arith.constant 1 : index
    %c0_16 = arith.constant 0 : index
    %c0_17 = arith.constant 0 : index
    %16 = vector.load %arg3[%c1, %c0_16, %c0_17] : memref<3x24x8xf32, #tpu.memory_space<vmem>>, vector<1x24x8xf32>
    %17 = vector.shape_cast %16 : vector<1x24x8xf32> to vector<24x8xf32>
    %cst_18 = arith.constant dense<0.000000e+00> : vector<384x8xf32>
    %18 = tpu.matmul %15, %17, %cst_18 {dimension_numbers = #tpu.dot_dimension_numbers<[1], [0], [0], [1], [0, 0, 1, 1], [], []>} : vector<384x24xf32>, vector<24x8xf32>, vector<384x8xf32> -> vector<384x8xf32>
    %19 = arith.addf %14, %18 : vector<384x8xf32>
    %c56 = arith.constant 56 : index
    %c0_19 = arith.constant 0 : index
    %20 = vector.load %arg9[%c56, %c0_19] : memref<448x24xf32, #tpu.memory_space<vmem>>, vector<384x24xf32>
    %c2 = arith.constant 2 : index
    %c0_20 = arith.constant 0 : index
    %c0_21 = arith.constant 0 : index
    %21 = vector.load %arg3[%c2, %c0_20, %c0_21] : memref<3x24x8xf32, #tpu.memory_space<vmem>>, vector<1x24x8xf32>
    %22 = vector.shape_cast %21 : vector<1x24x8xf32> to vector<24x8xf32>
    %cst_22 = arith.constant dense<0.000000e+00> : vector<384x8xf32>
    %23 = tpu.matmul %20, %22, %cst_22 {dimension_numbers = #tpu.dot_dimension_numbers<[1], [0], [0], [1], [0, 0, 1, 1], [], []>} : vector<384x24xf32>, vector<24x8xf32>, vector<384x8xf32> -> vector<384x8xf32>
    %24 = arith.addf %19, %23 : vector<384x8xf32>
    %c0_23 = arith.constant 0 : index
    %c0_24 = arith.constant 0 : index
    %25 = vector.load %arg4[%c0_23, %c0_24] : memref<1x8xf32, #tpu.memory_space<vmem>>, vector<1x8xf32>
    %26 = vector.broadcast %25 : vector<1x8xf32> to vector<384x8xf32>
    %27 = arith.addf %24, %26 : vector<384x8xf32>
    %cst_25 = arith.constant 0.000000e+00 : f32
    %28 = vector.broadcast %cst_25 : f32 to vector<384x8xf32>
    %29 = arith.maximumf %27, %28 : vector<384x8xf32>
    %c0_26 = arith.constant 0 : index
    %c0_27 = arith.constant 0 : index
    %30 = vector.load %arg2[%c0_26, %c0_27] : memref<384x8xf32, #tpu.memory_space<vmem>>, vector<384x8xf32>
    %31 = arith.mulf %29, %30 : vector<384x8xf32>
    %c32_28 = arith.constant 32 : index
    %c0_29 = arith.constant 0 : index
    %32 = vector.load %arg8[%c32_28, %c0_29] : memref<448x8xf32, #tpu.memory_space<vmem>>, vector<384x8xf32>
    tpu.vector_store %arg8[%c32_28, %c0_29], %31 {strides = array<i32>} : memref<448x8xf32, #tpu.memory_space<vmem>>, vector<384x8xf32>,
    %c0_30 = arith.constant 0 : index
    %c0_31 = arith.constant 0 : index
    %33 = vector.load %arg8[%c0_30, %c0_31] : memref<448x8xf32, #tpu.memory_space<vmem>>, vector<448x8xf32>
    %c1_i32_32 = arith.constant 1 : i32
    %34 = tpu.dynamic_rotate %33 by %c1_i32_32 dim 0 : vector<448x8xf32>, i32 -> vector<448x8xf32>
    %c0_33 = arith.constant 0 : index
    %c0_34 = arith.constant 0 : index
    %35 = vector.load %arg9[%c0_33, %c0_34] : memref<448x24xf32, #tpu.memory_space<vmem>>, vector<448x8xf32>
    tpu.vector_store %arg9[%c0_33, %c0_34], %34 {strides = array<i32>} : memref<448x24xf32, #tpu.memory_space<vmem>>, vector<448x8xf32>,
    %c0_35 = arith.constant 0 : index
    %c8_36 = arith.constant 8 : index
    %36 = vector.load %arg9[%c0_35, %c8_36] : memref<448x24xf32, #tpu.memory_space<vmem>>, vector<448x8xf32>
    tpu.vector_store %arg9[%c0_35, %c8_36], %33 {strides = array<i32>} : memref<448x24xf32, #tpu.memory_space<vmem>>, vector<448x8xf32>,
    %c447_i32_37 = arith.constant 447 : i32
    %37 = tpu.dynamic_rotate %33 by %c447_i32_37 dim 0 : vector<448x8xf32>, i32 -> vector<448x8xf32>
    %c0_38 = arith.constant 0 : index
    %c16_39 = arith.constant 16 : index
    %38 = vector.load %arg9[%c0_38, %c16_39] : memref<448x24xf32, #tpu.memory_space<vmem>>, vector<448x8xf32>
    tpu.vector_store %arg9[%c0_38, %c16_39], %37 {strides = array<i32>} : memref<448x24xf32, #tpu.memory_space<vmem>>, vector<448x8xf32>,
    %cst_40 = arith.constant 0.000000e+00 : f32
    %39 = vector.broadcast %cst_40 : f32 to vector<384x8xf32>
    %c8_41 = arith.constant 8 : index
    %c0_42 = arith.constant 0 : index
    %40 = vector.load %arg9[%c8_41, %c0_42] : memref<448x24xf32, #tpu.memory_space<vmem>>, vector<384x24xf32>
    %c0_43 = arith.constant 0 : index
    %c0_44 = arith.constant 0 : index
    %c0_45 = arith.constant 0 : index
    %41 = vector.load %arg5[%c0_43, %c0_44, %c0_45] : memref<3x24x8xf32, #tpu.memory_space<vmem>>, vector<1x24x8xf32>
    %42 = vector.shape_cast %41 : vector<1x24x8xf32> to vector<24x8xf32>
    %cst_46 = arith.constant dense<0.000000e+00> : vector<384x8xf32>
    %43 = tpu.matmul %40, %42, %cst_46 {dimension_numbers = #tpu.dot_dimension_numbers<[1], [0], [0], [1], [0, 0, 1, 1], [], []>} : vector<384x24xf32>, vector<24x8xf32>, vector<384x8xf32> -> vector<384x8xf32>
    %44 = arith.addf %39, %43 : vector<384x8xf32>
    %c32_47 = arith.constant 32 : index
    %c0_48 = arith.constant 0 : index
    %45 = vector.load %arg9[%c32_47, %c0_48] : memref<448x24xf32, #tpu.memory_space<vmem>>, vector<384x24xf32>
    %c1_49 = arith.constant 1 : index
    %c0_50 = arith.constant 0 : index
    %c0_51 = arith.constant 0 : index
    %46 = vector.load %arg5[%c1_49, %c0_50, %c0_51] : memref<3x24x8xf32, #tpu.memory_space<vmem>>, vector<1x24x8xf32>
    %47 = vector.shape_cast %46 : vector<1x24x8xf32> to vector<24x8xf32>
    %cst_52 = arith.constant dense<0.000000e+00> : vector<384x8xf32>
    %48 = tpu.matmul %45, %47, %cst_52 {dimension_numbers = #tpu.dot_dimension_numbers<[1], [0], [0], [1], [0, 0, 1, 1], [], []>} : vector<384x24xf32>, vector<24x8xf32>, vector<384x8xf32> -> vector<384x8xf32>
    %49 = arith.addf %44, %48 : vector<384x8xf32>
    %c56_53 = arith.constant 56 : index
    %c0_54 = arith.constant 0 : index
    %50 = vector.load %arg9[%c56_53, %c0_54] : memref<448x24xf32, #tpu.memory_space<vmem>>, vector<384x24xf32>
    %c2_55 = arith.constant 2 : index
    %c0_56 = arith.constant 0 : index
    %c0_57 = arith.constant 0 : index
    %51 = vector.load %arg5[%c2_55, %c0_56, %c0_57] : memref<3x24x8xf32, #tpu.memory_space<vmem>>, vector<1x24x8xf32>
    %52 = vector.shape_cast %51 : vector<1x24x8xf32> to vector<24x8xf32>
    %cst_58 = arith.constant dense<0.000000e+00> : vector<384x8xf32>
    %53 = tpu.matmul %50, %52, %cst_58 {dimension_numbers = #tpu.dot_dimension_numbers<[1], [0], [0], [1], [0, 0, 1, 1], [], []>} : vector<384x24xf32>, vector<24x8xf32>, vector<384x8xf32> -> vector<384x8xf32>
    %54 = arith.addf %49, %53 : vector<384x8xf32>
    %c0_59 = arith.constant 0 : index
    %c0_60 = arith.constant 0 : index
    %55 = vector.load %arg6[%c0_59, %c0_60] : memref<1x8xf32, #tpu.memory_space<vmem>>, vector<1x8xf32>
    %56 = vector.broadcast %55 : vector<1x8xf32> to vector<384x8xf32>
    %57 = arith.addf %54, %56 : vector<384x8xf32>
    %c32_61 = arith.constant 32 : index
    %c0_62 = arith.constant 0 : index
    %58 = vector.load %arg1[%c32_61, %c0_62] : memref<448x8xf32, #tpu.memory_space<vmem>>, vector<384x8xf32>
    %59 = arith.addf %57, %58 : vector<384x8xf32>
    %cst_63 = arith.constant 0.000000e+00 : f32
    %60 = vector.broadcast %cst_63 : f32 to vector<384x8xf32>
    %61 = arith.maximumf %59, %60 : vector<384x8xf32>
    %c0_64 = arith.constant 0 : index
    %c0_65 = arith.constant 0 : index
    %62 = vector.load %arg7[%c0_64, %c0_65] : memref<384x8xf32, #tpu.memory_space<vmem>>, vector<384x8xf32>
    tpu.vector_store %arg7[%c0_64, %c0_65], %61 {strides = array<i32>} : memref<384x8xf32, #tpu.memory_space<vmem>>, vector<384x8xf32>,
    return
  }
  func.func @transform_0(%arg0: i32) -> (i32, i32) {
    %c0_i32 = arith.constant 0 : i32
    %c0_i32_0 = arith.constant 0 : i32
    return %arg0, %c0_i32 : i32, i32
  }
  func.func @transform_1(%arg0: i32) -> (i32, i32) {
    %c0_i32 = arith.constant 0 : i32
    %c0_i32_0 = arith.constant 0 : i32
    %c0_i32_1 = arith.constant 0 : i32
    return %c0_i32, %c0_i32_0 : i32, i32
  }
  func.func @transform_2(%arg0: i32) -> (i32, i32, i32) {
    %c0_i32 = arith.constant 0 : i32
    %c0_i32_0 = arith.constant 0 : i32
    %c0_i32_1 = arith.constant 0 : i32
    %c0_i32_2 = arith.constant 0 : i32
    return %c0_i32, %c0_i32_0, %c0_i32_1 : i32, i32, i32
  }
  func.func @transform_3(%arg0: i32) -> (i32, i32) {
    %c0_i32 = arith.constant 0 : i32
    %c0_i32_0 = arith.constant 0 : i32
    %c0_i32_1 = arith.constant 0 : i32
    return %c0_i32, %c0_i32_0 : i32, i32
  }
  func.func @transform_4(%arg0: i32) -> (i32, i32, i32) {
    %c0_i32 = arith.constant 0 : i32
    %c0_i32_0 = arith.constant 0 : i32
    %c0_i32_1 = arith.constant 0 : i32
    %c0_i32_2 = arith.constant 0 : i32
    return %c0_i32, %c0_i32_0, %c0_i32_1 : i32, i32, i32
  }
  func.func @transform_5(%arg0: i32) -> (i32, i32) {
    %c0_i32 = arith.constant 0 : i32
    %c0_i32_0 = arith.constant 0 : i32
    %c0_i32_1 = arith.constant 0 : i32
    return %c0_i32, %c0_i32_0 : i32, i32
  }
  func.func @transform_6(%arg0: i32) -> (i32, i32) {
    %c0_i32 = arith.constant 0 : i32
    %c0_i32_0 = arith.constant 0 : i32
    return %arg0, %c0_i32 : i32, i32
  }
}

module attributes {stable_mosaic.version = 11 : i64} {
  func.func @_resblock_kernel(%arg0: i32, %arg1: memref<448x8xf32, #tpu.memory_space<vmem>>, %arg2: memref<384x8xf32, #tpu.memory_space<vmem>>, %arg3: memref<3x24x8xf32, #tpu.memory_space<vmem>>, %arg4: memref<1x8xf32, #tpu.memory_space<vmem>>, %arg5: memref<3x24x8xf32, #tpu.memory_space<vmem>>, %arg6: memref<1x8xf32, #tpu.memory_space<vmem>>, %arg7: memref<384x8xf32, #tpu.memory_space<vmem>>, %arg8: memref<448x8xf32, #tpu.memory_space<vmem>>, %arg9: memref<448x24xf32, #tpu.memory_space<vmem>>) attributes {dimension_semantics = [#tpu.dimension_semantics<parallel>], iteration_bounds = array<i64: 2>, scalar_prefetch = 0 : i64, scratch_operands = 2 : i64, tpu.core_type = #tpu.core_type<tc>, window_params = [{transform_indices = @transform_0, window_bounds = array<i64: 448, 8>}, {pipeline_mode = #tpu.pipeline_mode<synchronous>, transform_indices = @transform_1, window_bounds = array<i64: 384, 8>}, {pipeline_mode = #tpu.pipeline_mode<synchronous>, transform_indices = @transform_2, window_bounds = array<i64: 3, 24, 8>}, {pipeline_mode = #tpu.pipeline_mode<synchronous>, transform_indices = @transform_3, window_bounds = array<i64: 1, 8>}, {pipeline_mode = #tpu.pipeline_mode<synchronous>, transform_indices = @transform_4, window_bounds = array<i64: 3, 24, 8>}, {pipeline_mode = #tpu.pipeline_mode<synchronous>, transform_indices = @transform_5, window_bounds = array<i64: 1, 8>}, {transform_indices = @transform_6, window_bounds = array<i64: 384, 8>}]} {
    %cst = arith.constant 0.000000e+00 : f32
    %0 = vector.broadcast %cst : f32 to vector<32x8xf32>
    %c0 = arith.constant 0 : index
    %c0_0 = arith.constant 0 : index
    %1 = vector.load %arg8[%c0, %c0_0] : memref<448x8xf32, #tpu.memory_space<vmem>>, vector<32x8xf32>
    tpu.vector_store %arg8[%c0, %c0_0], %0 {strides = array<i32>} : memref<448x8xf32, #tpu.memory_space<vmem>>, vector<32x8xf32>,
    %c416 = arith.constant 416 : index
    %c0_1 = arith.constant 0 : index
    %2 = vector.load %arg8[%c416, %c0_1] : memref<448x8xf32, #tpu.memory_space<vmem>>, vector<32x8xf32>
    tpu.vector_store %arg8[%c416, %c0_1], %0 {strides = array<i32>} : memref<448x8xf32, #tpu.memory_space<vmem>>, vector<32x8xf32>,
    %c0_2 = arith.constant 0 : index
    %c0_3 = arith.constant 0 : index
    %3 = vector.load %arg1[%c0_2, %c0_3] : memref<448x8xf32, #tpu.memory_space<vmem>>, vector<448x8xf32>
    %c1_i32 = arith.constant 1 : i32
    %4 = tpu.dynamic_rotate %3 by %c1_i32 dim 0 : vector<448x8xf32>, i32 -> vector<448x8xf32>
    %c0_4 = arith.constant 0 : index
    %c0_5 = arith.constant 0 : index
    %5 = vector.load %arg9[%c0_4, %c0_5] : memref<448x24xf32, #tpu.memory_space<vmem>>, vector<448x8xf32>
    tpu.vector_store %arg9[%c0_4, %c0_5], %4 {strides = array<i32>} : memref<448x24xf32, #tpu.memory_space<vmem>>, vector<448x8xf32>,
    %c0_6 = arith.constant 0 : index
    %c8 = arith.constant 8 : index
    %6 = vector.load %arg9[%c0_6, %c8] : memref<448x24xf32, #tpu.memory_space<vmem>>, vector<448x8xf32>
    tpu.vector_store %arg9[%c0_6, %c8], %3 {strides = array<i32>} : memref<448x24xf32, #tpu.memory_space<vmem>>, vector<448x8xf32>,
    %c447_i32 = arith.constant 447 : i32
    %7 = tpu.dynamic_rotate %3 by %c447_i32 dim 0 : vector<448x8xf32>, i32 -> vector<448x8xf32>
    %c0_7 = arith.constant 0 : index
    %c16 = arith.constant 16 : index
    %8 = vector.load %arg9[%c0_7, %c16] : memref<448x24xf32, #tpu.memory_space<vmem>>, vector<448x8xf32>
    tpu.vector_store %arg9[%c0_7, %c16], %7 {strides = array<i32>} : memref<448x24xf32, #tpu.memory_space<vmem>>, vector<448x8xf32>,
    %cst_8 = arith.constant 0.000000e+00 : f32
    %9 = vector.broadcast %cst_8 : f32 to vector<384x8xf32>
    %c8_9 = arith.constant 8 : index
    %c0_10 = arith.constant 0 : index
    %10 = vector.load %arg9[%c8_9, %c0_10] : memref<448x24xf32, #tpu.memory_space<vmem>>, vector<384x24xf32>
    %c0_11 = arith.constant 0 : index
    %c0_12 = arith.constant 0 : index
    %c0_13 = arith.constant 0 : index
    %11 = vector.load %arg3[%c0_11, %c0_12, %c0_13] : memref<3x24x8xf32, #tpu.memory_space<vmem>>, vector<1x24x8xf32>
    %12 = vector.shape_cast %11 : vector<1x24x8xf32> to vector<24x8xf32>
    %cst_14 = arith.constant dense<0.000000e+00> : vector<384x8xf32>
    %13 = tpu.matmul %10, %12, %cst_14 {dimension_numbers = #tpu.dot_dimension_numbers<[1], [0], [0], [1], [0, 0, 1, 1], [], []>} : vector<384x24xf32>, vector<24x8xf32>, vector<384x8xf32> -> vector<384x8xf32>
    %14 = arith.addf %9, %13 : vector<384x8xf32>
    %c32 = arith.constant 32 : index
    %c0_15 = arith.constant 0 : index
    %15 = vector.load %arg9[%c32, %c0_15] : memref<448x24xf32, #tpu.memory_space<vmem>>, vector<384x24xf32>
    %c1 = arith.constant 1 : index
    %c0_16 = arith.constant 0 : index
    %c0_17 = arith.constant 0 : index
    %16 = vector.load %arg3[%c1, %c0_16, %c0_17] : memref<3x24x8xf32, #tpu.memory_space<vmem>>, vector<1x24x8xf32>
    %17 = vector.shape_cast %16 : vector<1x24x8xf32> to vector<24x8xf32>
    %cst_18 = arith.constant dense<0.000000e+00> : vector<384x8xf32>
    %18 = tpu.matmul %15, %17, %cst_18 {dimension_numbers = #tpu.dot_dimension_numbers<[1], [0], [0], [1], [0, 0, 1, 1], [], []>} : vector<384x24xf32>, vector<24x8xf32>, vector<384x8xf32> -> vector<384x8xf32>
    %19 = arith.addf %14, %18 : vector<384x8xf32>
    %c56 = arith.constant 56 : index
    %c0_19 = arith.constant 0 : index
    %20 = vector.load %arg9[%c56, %c0_19] : memref<448x24xf32, #tpu.memory_space<vmem>>, vector<384x24xf32>
    %c2 = arith.constant 2 : index
    %c0_20 = arith.constant 0 : index
    %c0_21 = arith.constant 0 : index
    %21 = vector.load %arg3[%c2, %c0_20, %c0_21] : memref<3x24x8xf32, #tpu.memory_space<vmem>>, vector<1x24x8xf32>
    %22 = vector.shape_cast %21 : vector<1x24x8xf32> to vector<24x8xf32>
    %cst_22 = arith.constant dense<0.000000e+00> : vector<384x8xf32>
    %23 = tpu.matmul %20, %22, %cst_22 {dimension_numbers = #tpu.dot_dimension_numbers<[1], [0], [0], [1], [0, 0, 1, 1], [], []>} : vector<384x24xf32>, vector<24x8xf32>, vector<384x8xf32> -> vector<384x8xf32>
    %24 = arith.addf %19, %23 : vector<384x8xf32>
    %c0_23 = arith.constant 0 : index
    %c0_24 = arith.constant 0 : index
    %25 = vector.load %arg4[%c0_23, %c0_24] : memref<1x8xf32, #tpu.memory_space<vmem>>, vector<1x8xf32>
    %26 = vector.broadcast %25 : vector<1x8xf32> to vector<384x8xf32>
    %27 = arith.addf %24, %26 : vector<384x8xf32>
    %cst_25 = arith.constant 0.000000e+00 : f32
    %28 = vector.broadcast %cst_25 : f32 to vector<384x8xf32>
    %29 = arith.maximumf %27, %28 : vector<384x8xf32>
    %c0_26 = arith.constant 0 : index
    %c0_27 = arith.constant 0 : index
    %30 = vector.load %arg2[%c0_26, %c0_27] : memref<384x8xf32, #tpu.memory_space<vmem>>, vector<384x8xf32>
    %31 = arith.mulf %29, %30 : vector<384x8xf32>
    %c32_28 = arith.constant 32 : index
    %c0_29 = arith.constant 0 : index
    %32 = vector.load %arg8[%c32_28, %c0_29] : memref<448x8xf32, #tpu.memory_space<vmem>>, vector<384x8xf32>
    tpu.vector_store %arg8[%c32_28, %c0_29], %31 {strides = array<i32>} : memref<448x8xf32, #tpu.memory_space<vmem>>, vector<384x8xf32>,
    %c0_30 = arith.constant 0 : index
    %c0_31 = arith.constant 0 : index
    %33 = vector.load %arg8[%c0_30, %c0_31] : memref<448x8xf32, #tpu.memory_space<vmem>>, vector<448x8xf32>
    %c1_i32_32 = arith.constant 1 : i32
    %34 = tpu.dynamic_rotate %33 by %c1_i32_32 dim 0 : vector<448x8xf32>, i32 -> vector<448x8xf32>
    %c0_33 = arith.constant 0 : index
    %c0_34 = arith.constant 0 : index
    %35 = vector.load %arg9[%c0_33, %c0_34] : memref<448x24xf32, #tpu.memory_space<vmem>>, vector<448x8xf32>
    tpu.vector_store %arg9[%c0_33, %c0_34], %34 {strides = array<i32>} : memref<448x24xf32, #tpu.memory_space<vmem>>, vector<448x8xf32>,
    %c0_35 = arith.constant 0 : index
    %c8_36 = arith.constant 8 : index
    %36 = vector.load %arg9[%c0_35, %c8_36] : memref<448x24xf32, #tpu.memory_space<vmem>>, vector<448x8xf32>
    tpu.vector_store %arg9[%c0_35, %c8_36], %33 {strides = array<i32>} : memref<448x24xf32, #tpu.memory_space<vmem>>, vector<448x8xf32>,
    %c447_i32_37 = arith.constant 447 : i32
    %37 = tpu.dynamic_rotate %33 by %c447_i32_37 dim 0 : vector<448x8xf32>, i32 -> vector<448x8xf32>
    %c0_38 = arith.constant 0 : index
    %c16_39 = arith.constant 16 : index
    %38 = vector.load %arg9[%c0_38, %c16_39] : memref<448x24xf32, #tpu.memory_space<vmem>>, vector<448x8xf32>
    tpu.vector_store %arg9[%c0_38, %c16_39], %37 {strides = array<i32>} : memref<448x24xf32, #tpu.memory_space<vmem>>, vector<448x8xf32>,
    %cst_40 = arith.constant 0.000000e+00 : f32
    %39 = vector.broadcast %cst_40 : f32 to vector<384x8xf32>
    %c8_41 = arith.constant 8 : index
    %c0_42 = arith.constant 0 : index
    %40 = vector.load %arg9[%c8_41, %c0_42] : memref<448x24xf32, #tpu.memory_space<vmem>>, vector<384x24xf32>
    %c0_43 = arith.constant 0 : index
    %c0_44 = arith.constant 0 : index
    %c0_45 = arith.constant 0 : index
    %41 = vector.load %arg5[%c0_43, %c0_44, %c0_45] : memref<3x24x8xf32, #tpu.memory_space<vmem>>, vector<1x24x8xf32>
    %42 = vector.shape_cast %41 : vector<1x24x8xf32> to vector<24x8xf32>
    %cst_46 = arith.constant dense<0.000000e+00> : vector<384x8xf32>
    %43 = tpu.matmul %40, %42, %cst_46 {dimension_numbers = #tpu.dot_dimension_numbers<[1], [0], [0], [1], [0, 0, 1, 1], [], []>} : vector<384x24xf32>, vector<24x8xf32>, vector<384x8xf32> -> vector<384x8xf32>
    %44 = arith.addf %39, %43 : vector<384x8xf32>
    %c32_47 = arith.constant 32 : index
    %c0_48 = arith.constant 0 : index
    %45 = vector.load %arg9[%c32_47, %c0_48] : memref<448x24xf32, #tpu.memory_space<vmem>>, vector<384x24xf32>
    %c1_49 = arith.constant 1 : index
    %c0_50 = arith.constant 0 : index
    %c0_51 = arith.constant 0 : index
    %46 = vector.load %arg5[%c1_49, %c0_50, %c0_51] : memref<3x24x8xf32, #tpu.memory_space<vmem>>, vector<1x24x8xf32>
    %47 = vector.shape_cast %46 : vector<1x24x8xf32> to vector<24x8xf32>
    %cst_52 = arith.constant dense<0.000000e+00> : vector<384x8xf32>
    %48 = tpu.matmul %45, %47, %cst_52 {dimension_numbers = #tpu.dot_dimension_numbers<[1], [0], [0], [1], [0, 0, 1, 1], [], []>} : vector<384x24xf32>, vector<24x8xf32>, vector<384x8xf32> -> vector<384x8xf32>
    %49 = arith.addf %44, %48 : vector<384x8xf32>
    %c56_53 = arith.constant 56 : index
    %c0_54 = arith.constant 0 : index
    %50 = vector.load %arg9[%c56_53, %c0_54] : memref<448x24xf32, #tpu.memory_space<vmem>>, vector<384x24xf32>
    %c2_55 = arith.constant 2 : index
    %c0_56 = arith.constant 0 : index
    %c0_57 = arith.constant 0 : index
    %51 = vector.load %arg5[%c2_55, %c0_56, %c0_57] : memref<3x24x8xf32, #tpu.memory_space<vmem>>, vector<1x24x8xf32>
    %52 = vector.shape_cast %51 : vector<1x24x8xf32> to vector<24x8xf32>
    %cst_58 = arith.constant dense<0.000000e+00> : vector<384x8xf32>
    %53 = tpu.matmul %50, %52, %cst_58 {dimension_numbers = #tpu.dot_dimension_numbers<[1], [0], [0], [1], [0, 0, 1, 1], [], []>} : vector<384x24xf32>, vector<24x8xf32>, vector<384x8xf32> -> vector<384x8xf32>
    %54 = arith.addf %49, %53 : vector<384x8xf32>
    %c0_59 = arith.constant 0 : index
    %c0_60 = arith.constant 0 : index
    %55 = vector.load %arg6[%c0_59, %c0_60] : memref<1x8xf32, #tpu.memory_space<vmem>>, vector<1x8xf32>
    %56 = vector.broadcast %55 : vector<1x8xf32> to vector<384x8xf32>
    %57 = arith.addf %54, %56 : vector<384x8xf32>
    %c32_61 = arith.constant 32 : index
    %c0_62 = arith.constant 0 : index
    %58 = vector.load %arg1[%c32_61, %c0_62] : memref<448x8xf32, #tpu.memory_space<vmem>>, vector<384x8xf32>
    %59 = arith.addf %57, %58 : vector<384x8xf32>
    %cst_63 = arith.constant 0.000000e+00 : f32
    %60 = vector.broadcast %cst_63 : f32 to vector<384x8xf32>
    %61 = arith.maximumf %59, %60 : vector<384x8xf32>
    %c0_64 = arith.constant 0 : index
    %c0_65 = arith.constant 0 : index
    %62 = vector.load %arg7[%c0_64, %c0_65] : memref<384x8xf32, #tpu.memory_space<vmem>>, vector<384x8xf32>
    tpu.vector_store %arg7[%c0_64, %c0_65], %61 {strides = array<i32>} : memref<384x8xf32, #tpu.memory_space<vmem>>, vector<384x8xf32>,
    return
  }
  func.func @transform_0(%arg0: i32) -> (i32, i32) {
    %c0_i32 = arith.constant 0 : i32
    %c0_i32_0 = arith.constant 0 : i32
    return %arg0, %c0_i32 : i32, i32
  }
  func.func @transform_1(%arg0: i32) -> (i32, i32) {
    %c0_i32 = arith.constant 0 : i32
    %c0_i32_0 = arith.constant 0 : i32
    %c0_i32_1 = arith.constant 0 : i32
    return %c0_i32, %c0_i32_0 : i32, i32
  }
  func.func @transform_2(%arg0: i32) -> (i32, i32, i32) {
    %c0_i32 = arith.constant 0 : i32
    %c0_i32_0 = arith.constant 0 : i32
    %c0_i32_1 = arith.constant 0 : i32
    %c0_i32_2 = arith.constant 0 : i32
    return %c0_i32, %c0_i32_0, %c0_i32_1 : i32, i32, i32
  }
  func.func @transform_3(%arg0: i32) -> (i32, i32) {
    %c0_i32 = arith.constant 0 : i32
    %c0_i32_0 = arith.constant 0 : i32
    %c0_i32_1 = arith.constant 0 : i32
    return %c0_i32, %c0_i32_0 : i32, i32
  }
  func.func @transform_4(%arg0: i32) -> (i32, i32, i32) {
    %c0_i32 = arith.constant 0 : i32
    %c0_i32_0 = arith.constant 0 : i32
    %c0_i32_1 = arith.constant 0 : i32
    %c0_i32_2 = arith.constant 0 : i32
    return %c0_i32, %c0_i32_0, %c0_i32_1 : i32, i32, i32
  }
  func.func @transform_5(%arg0: i32) -> (i32, i32) {
    %c0_i32 = arith.constant 0 : i32
    %c0_i32_0 = arith.constant 0 : i32
    %c0_i32_1 = arith.constant 0 : i32
    return %c0_i32, %c0_i32_0 : i32, i32
  }
  func.func @transform_6(%arg0: i32) -> (i32, i32) {
    %c0_i32 = arith.constant 0 : i32
    %c0_i32_0 = arith.constant 0 : i32
    return %arg0, %c0_i32 : i32, i32
  }
}

</mosaic_0001>

<llo_original>
// kernel: tpu_custom_call.1
$region0: #{tpu_custom_call.1}
  #allocation0 [shape = 'u32[]', space=smem, size = 0x4, offset = 0x4, fixed_abs, tag = 'smem constant byte address 0x4 - core index']
  #allocation1 [shape = 'u32[72,128]{1,0:T(1,128)}', space=vmem, size = 0x9000, scoped, tag = 'internal scratch']
  #allocation2 [shape = 'f32[448,8]{1,0:T(8,128)}', space=vmem, size = 0x38000, scoped, tag = 'scratch operand']
  #allocation3 [shape = 'f32[448,24]{1,0:T(8,128)}', space=vmem, size = 0x38000, scoped, tag = 'scratch operand']
  %s0 = inlined_call_operand.vmem [shape: f32[896,8], index: 0, kind: input, shape index: {}]
  %s1 = inlined_call_operand.vmem [shape: f32[384,8], index: 1, kind: input, shape index: {}]
  %s2 = inlined_call_operand.vmem [shape: f32[3,24,8], index: 2, kind: input, shape index: {}]
  %s3 = inlined_call_operand.vmem [shape: f32[1,8], index: 3, kind: input, shape index: {}]
  %s4 = inlined_call_operand.vmem [shape: f32[3,24,8], index: 4, kind: input, shape index: {}]
  %s5 = inlined_call_operand.vmem [shape: f32[1,8], index: 5, kind: input, shape index: {}]
  %s6 = inlined_call_operand.vmem [shape: f32[768,8], index: 6, kind: output, shape index: {}]
  %s7 = sld [smem:[#allocation0]]
  $region57: #{tpu_custom_call.1} parent=0
    _
  %s9 = ssub.s32 1, %s7
  %s10 = scalar_select 0, %s9, %s7
  loop: start=0, step=1, limit=4
  $region2: #{tpu_custom_call.1} parent=0 // loop_pre_header
    _
  $region3: #{tpu_custom_call.1} parent=0 // loop_header
    %s12 = sphi 0, %s16
    %p13 = scmp.ge.s32.totalorder %s12, 4
    %s22 = sphi 0, %s24
    %s25 = sphi 0, %s22
    %s26 = sphi 0, %s25
    %s42 = sphi 0, %s26
    %s46 = sphi 0, %s46
    %s48 = sphi 0, %s46
    %s49 = sphi 0, %s48
    %s63 = sphi 0, %s49
    %s67 = sphi 0, %s67
    %s69 = sphi 0, %s67
    %s70 = sphi 0, %s69
    %s84 = sphi 0, %s70
    %s88 = sphi 0, %s88
    %s90 = sphi 0, %s88
    %s91 = sphi 0, %s90
    %s105 = sphi 0, %s91
    %s109 = sphi 0, %s109
    %s111 = sphi 0, %s109
    %s112 = sphi 0, %s111
    %s126 = sphi 0, %s112
    %s130 = sphi 0, %s130
    %s132 = sphi 0, %s130
    %s133 = sphi 0, %s132
    %s147 = sphi 0, %s133
    %s153 = sphi 0, %s155
    %s156 = sphi 0, %s153
    %s157 = sphi 0, %s156
    %s173 = sphi 0, %s157
  $region4: #{tpu_custom_call.1} parent=0 // loop_header_branch
    %15 = sbr.rel (%p13) target = $region8
  $region5: #{tpu_custom_call.1} parent=0 // loop_body
    %s17 = ssub.s32 %s12, 1
    %s18 = ssub.s32 %s12, 2
    %s19 = sadd.s32 %s12, 1
    %s20 = ssub.s32 %s12, %s19
    %p21 = scmp.eq.s32.totalorder %s20, 0
    %s23 = sadd.s32 %s22, 1
    %s24 = scalar_select %p21, %s22, %s23
    %p27 = pneg %p21
    %p28 = scmp.eq.s32.totalorder %s12, 1
    %p29 = por %p27, %p28
    %p30 = scmp.ne.s32.totalorder %s22, %s25
    %p31 = scmp.eq.s32.totalorder %s12, 0
    %p32 = por %p30, %p31
    %p33 = scmp.ne.s32.totalorder %s22, %s25
    %p34 = scmp.eq.s32.totalorder %s17, 1
    %p35 = por %p33, %p34
    %p36 = scmp.ne.s32.totalorder %s25, %s26
    %p37 = scmp.eq.s32.totalorder %s17, 0
    %p38 = por %p36, %p37
    %p39 = scmp.ne.s32.totalorder %s25, %s26
    %p40 = scmp.eq.s32.totalorder %s18, 1
    %p41 = por %p39, %p40
    %p43 = scmp.ne.s32.totalorder %s26, %s42
    %p44 = scmp.eq.s32.totalorder %s18, 0
    %p45 = por %p43, %p44
    %s47 = sadd.s32 %s46, 1
    %p50 = scmp.eq.s32.totalorder %s12, 1
    %p51 = scmp.ne.s32.totalorder %s46, %s48
    %p52 = scmp.eq.s32.totalorder %s12, 0
    %p53 = por %p51, %p52
    %p54 = scmp.ne.s32.totalorder %s46, %s48
    %p55 = scmp.eq.s32.totalorder %s17, 1
    %p56 = por %p54, %p55
    %p57 = scmp.ne.s32.totalorder %s48, %s49
    %p58 = scmp.eq.s32.totalorder %s17, 0
    %p59 = por %p57, %p58
    %p60 = scmp.ne.s32.totalorder %s48, %s49
    %p61 = scmp.eq.s32.totalorder %s18, 1
    %p62 = por %p60, %p61
    %p64 = scmp.ne.s32.totalorder %s49, %s63
    %p65 = scmp.eq.s32.totalorder %s18, 0
    %p66 = por %p64, %p65
    %s68 = sadd.s32 %s67, 1
    %p71 = scmp.eq.s32.totalorder %s12, 1
    %p72 = scmp.ne.s32.totalorder %s67, %s69
    %p73 = scmp.eq.s32.totalorder %s12, 0
    %p74 = por %p72, %p73
    %p75 = scmp.ne.s32.totalorder %s67, %s69
    %p76 = scmp.eq.s32.totalorder %s17, 1
    %p77 = por %p75, %p76
    %p78 = scmp.ne.s32.totalorder %s69, %s70
    %p79 = scmp.eq.s32.totalorder %s17, 0
    %p80 = por %p78, %p79
    %p81 = scmp.ne.s32.totalorder %s69, %s70
    %p82 = scmp.eq.s32.totalorder %s18, 1
    %p83 = por %p81, %p82
    %p85 = scmp.ne.s32.totalorder %s70, %s84
    %p86 = scmp.eq.s32.totalorder %s18, 0
    %p87 = por %p85, %p86
    %s89 = sadd.s32 %s88, 1
    %p92 = scmp.eq.s32.totalorder %s12, 1
    %p93 = scmp.ne.s32.totalorder %s88, %s90
    %p94 = scmp.eq.s32.totalorder %s12, 0
    %p95 = por %p93, %p94
    %p96 = scmp.ne.s32.totalorder %s88, %s90
    %p97 = scmp.eq.s32.totalorder %s17, 1
    %p98 = por %p96, %p97
    %p99 = scmp.ne.s32.totalorder %s90, %s91
    %p100 = scmp.eq.s32.totalorder %s17, 0
    %p101 = por %p99, %p100
    %p102 = scmp.ne.s32.totalorder %s90, %s91
    %p103 = scmp.eq.s32.totalorder %s18, 1
    %p104 = por %p102, %p103
    %p106 = scmp.ne.s32.totalorder %s91, %s105
    %p107 = scmp.eq.s32.totalorder %s18, 0
    %p108 = por %p106, %p107
    %s110 = sadd.s32 %s109, 1
    %p113 = scmp.eq.s32.totalorder %s12, 1
    %p114 = scmp.ne.s32.totalorder %s109, %s111
    %p115 = scmp.eq.s32.totalorder %s12, 0
    %p116 = por %p114, %p115
    %p117 = scmp.ne.s32.totalorder %s109, %s111
    %p118 = scmp.eq.s32.totalorder %s17, 1
    %p119 = por %p117, %p118
    %p120 = scmp.ne.s32.totalorder %s111, %s112
    %p121 = scmp.eq.s32.totalorder %s17, 0
    %p122 = por %p120, %p121
    %p123 = scmp.ne.s32.totalorder %s111, %s112
    %p124 = scmp.eq.s32.totalorder %s18, 1
    %p125 = por %p123, %p124
    %p127 = scmp.ne.s32.totalorder %s112, %s126
    %p128 = scmp.eq.s32.totalorder %s18, 0
    %p129 = por %p127, %p128
    %s131 = sadd.s32 %s130, 1
    %p134 = scmp.eq.s32.totalorder %s12, 1
    %p135 = scmp.ne.s32.totalorder %s130, %s132
    %p136 = scmp.eq.s32.totalorder %s12, 0
    %p137 = por %p135, %p136
    %p138 = scmp.ne.s32.totalorder %s130, %s132
    %p139 = scmp.eq.s32.totalorder %s17, 1
    %p140 = por %p138, %p139
    %p141 = scmp.ne.s32.totalorder %s132, %s133
    %p142 = scmp.eq.s32.totalorder %s17, 0
    %p143 = por %p141, %p142
    %p144 = scmp.ne.s32.totalorder %s132, %s133
    %p145 = scmp.eq.s32.totalorder %s18, 1
    %p146 = por %p144, %p145
    %p148 = scmp.ne.s32.totalorder %s133, %s147
    %p149 = scmp.eq.s32.totalorder %s18, 0
    %p150 = por %p148, %p149
    %s151 = ssub.s32 %s12, %s19
    %p152 = scmp.eq.s32.totalorder %s151, 0
    %s154 = sadd.s32 %s153, 1
    %s155 = scalar_select %p152, %s153, %s154
    %p158 = pneg %p152
    %p159 = scmp.eq.s32.totalorder %s12, 1
    %p160 = por %p158, %p159
    %p161 = scmp.ne.s32.totalorder %s153, %s156
    %p162 = scmp.eq.s32.totalorder %s12, 0
    %p163 = por %p161, %p162
    %p164 = scmp.ne.s32.totalorder %s153, %s156
    %p165 = scmp.eq.s32.totalorder %s17, 1
    %p166 = por %p164, %p165
    %p167 = scmp.ne.s32.totalorder %s156, %s157
    %p168 = scmp.eq.s32.totalorder %s17, 0
    %p169 = por %p167, %p168
    %p170 = scmp.ne.s32.totalorder %s156, %s157
    %p171 = scmp.eq.s32.totalorder %s18, 1
    %p172 = por %p170, %p171
    %p174 = scmp.ne.s32.totalorder %s157, %s173
    %p175 = scmp.eq.s32.totalorder %s18, 0
    %p176 = por %p174, %p175
    %p177 = scmp.le.s32.totalorder 1, %s12
    %p178 = scmp.lt.s32.totalorder %s12, 3
    %p179 = pnand %p177, %p178
    %p180 = pneg %p179
    // Predicated region
    $region9: #{tpu_custom_call.1} parent=5 // pred_check
      _
    $region10: #{tpu_custom_call.1} parent=5 // pred_check_branch
      %182 = sbr.rel (%p179) target = $region12
    $region11: #{tpu_custom_call.1} parent=5 // pred_region
      %s183 = ssub.s32 %s12, 1
      // Predicated region
      $region13: #{tpu_custom_call.1} parent=11 // pred_check
        %p184 = pneg %p59
      $region14: #{tpu_custom_call.1} parent=11 // pred_check_branch
        %186 = sbr.rel (%p184) target = $region16
      $region15: #{tpu_custom_call.1} parent=11 // pred_region
        _
      $region16: #{tpu_custom_call.1} parent=11 // pred_fallthru
        _
      // Predicated region
      $region17: #{tpu_custom_call.1} parent=11 // pred_check
        %p187 = pneg %p80
      $region18: #{tpu_custom_call.1} parent=11 // pred_check_branch
        %189 = sbr.rel (%p187) target = $region20
      $region19: #{tpu_custom_call.1} parent=11 // pred_region
        _
      $region20: #{tpu_custom_call.1} parent=11 // pred_fallthru
        _
      // Predicated region
      $region21: #{tpu_custom_call.1} parent=11 // pred_check
        %p190 = pneg %p101
      $region22: #{tpu_custom_call.1} parent=11 // pred_check_branch
        %192 = sbr.rel (%p190) target = $region24
      $region23: #{tpu_custom_call.1} parent=11 // pred_region
        _
      $region24: #{tpu_custom_call.1} parent=11 // pred_fallthru
        _
      // Predicated region
      $region25: #{tpu_custom_call.1} parent=11 // pred_check
        %p193 = pneg %p122
      $region26: #{tpu_custom_call.1} parent=11 // pred_check_branch
        %195 = sbr.rel (%p193) target = $region28
      $region27: #{tpu_custom_call.1} parent=11 // pred_region
        _
      $region28: #{tpu_custom_call.1} parent=11 // pred_fallthru
        _
      // Predicated region
      $region29: #{tpu_custom_call.1} parent=11 // pred_check
        %p196 = pneg %p143
      $region30: #{tpu_custom_call.1} parent=11 // pred_check_branch
        %198 = sbr.rel (%p196) target = $region32
      $region31: #{tpu_custom_call.1} parent=11 // pred_region
        _
      $region32: #{tpu_custom_call.1} parent=11 // pred_fallthru
        _
    $region12: #{tpu_custom_call.1} parent=5 // pred_fallthru
      _
    %p199 = scmp.lt.s32.totalorder %s12, 2
    // Predicated region
    $region33: #{tpu_custom_call.1} parent=5 // pred_check
      %p200 = pneg %p199
    $region34: #{tpu_custom_call.1} parent=5 // pred_check_branch
      %202 = sbr.rel (%p200) target = $region36
    $region35: #{tpu_custom_call.1} parent=5 // pred_region
      // Predicated region
      $region37: #{tpu_custom_call.1} parent=35 // pred_check
        %p203 = pneg %p32
      $region38: #{tpu_custom_call.1} parent=35 // pred_check_branch
        %205 = sbr.rel (%p203) target = $region40
      $region39: #{tpu_custom_call.1} parent=35 // pred_region
        %s206 = smul.u32 56, %s12
        %p207 = scmp.lt.s32.totalorder %s206, 111
        %s208 = scalar_select %p207, %s206, 111
        %s209 = smul.addr %s208, 8
        %s210 = scalar_lea.vmem %s0, %s209
        %s211 = smul.u32 56, %s12
      $region40: #{tpu_custom_call.1} parent=35 // pred_fallthru
        _
    $region36: #{tpu_custom_call.1} parent=5 // pred_fallthru
      _
    %p212 = scmp.le.s32.totalorder 1, %s12
    %p213 = scmp.lt.s32.totalorder %s12, 3
    %p214 = pnand %p212, %p213
    %p215 = pneg %p214
    // Predicated region
    $region41: #{tpu_custom_call.1} parent=5 // pred_check
      _
    $region42: #{tpu_custom_call.1} parent=5 // pred_check_branch
      %217 = sbr.rel (%p214) target = $region44
    $region43: #{tpu_custom_call.1} parent=5 // pred_region
      %s218 = ssub.s32 %s12, 1
      %s219 = smul.u32 56, %s17
      %p220 = scmp.lt.s32.totalorder %s219, 111
      %s221 = scalar_select %p220, %s219, 111
      %s222 = smul.addr %s221, 8
      %s223 = scalar_lea.vmem %s0, %s222
      %p224 = pneg %p38
      %p225 = pneg %p35
      %p226 = pneg %p59
      %p227 = pneg %p56
      %p228 = pneg %p80
      %p229 = pneg %p77
      %p230 = pneg %p101
      %p231 = pneg %p98
      %p232 = pneg %p122
      %p233 = pneg %p119
      %p234 = pneg %p143
      %p235 = pneg %p140
      %p236 = pneg %p169
      %p237 = pneg %p166
      %s238 = smul.u32 48, %s17
      %p239 = scmp.lt.s32.totalorder %s238, 95
      %s240 = scalar_select %p239, %s238, 95
      %s241 = smul.addr %s240, 8
      %s242 = scalar_lea.vmem %s6, %s241
      %s243 = smul.u32 56, %s17
      %p244 = scmp.lt.s32.totalorder %s243, 111
      %s245 = scalar_select %p244, %s243, 111
      %s246 = smul.addr %s245, 8
      %s247 = scalar_lea.vmem %s0, %s246
      %s248 = smul.u32 56, %s17
      %s249 = smul.u32 48, %s17
      %p250 = scmp.lt.s32.totalorder %s249, 95
      %s251 = scalar_select %p250, %s249, 95
      %s252 = smul.addr %s251, 8
      %s253 = scalar_lea.vmem %s6, %s252
      %s254 = smul.u32 48, %s17
      %vm255 = vcmask 64512
      %256 = vst.msk [vmem:[#allocation2] sm:$0xff] %vm255, 0.0
      %257 = vst.msk [vmem:[#allocation2 + $0x8] sm:$0xff] %vm255, 0.0
      %258 = vst.msk [vmem:[#allocation2 + $0x10] sm:$0xff] %vm255, 0.0
      %259 = vst.msk [vmem:[#allocation2 + $0x18] sm:$0xff] %vm255, 0.0
      %260 = vst.msk [vmem:[#allocation2 + $0x1a0] sm:$0xff] %vm255, 0.0
      %261 = vst.msk [vmem:[#allocation2 + $0x1a8] sm:$0xff] %vm255, 0.0
      %262 = vst.msk [vmem:[#allocation2 + $0x1b0] sm:$0xff] %vm255, 0.0
      %263 = vst.msk [vmem:[#allocation2 + $0x1b8] sm:$0xff] %vm255, 0.0
      %v264 = vld [vmem:[%s247] sm:$0xff]
      %v265 = vld [vmem:[%s247 + $0x8] sm:$0xff]
      %v266 = vld [vmem:[%s247 + $0x10] sm:$0xff]
      %v267 = vld [vmem:[%s247 + $0x18] sm:$0xff]
      %v268 = vld [vmem:[%s247 + $0x20] sm:$0xff]
      %v269 = vld [vmem:[%s247 + $0x28] sm:$0xff]
      %v270 = vld [vmem:[%s247 + $0x30] sm:$0xff]
      %v271 = vld [vmem:[%s247 + $0x38] sm:$0xff]
      %v272 = vld [vmem:[%s247 + $0x40] sm:$0xff]
      %v273 = vld [vmem:[%s247 + $0x48] sm:$0xff]
      %v274 = vld [vmem:[%s247 + $0x50] sm:$0xff]
      %v275 = vld [vmem:[%s247 + $0x58] sm:$0xff]
      %v276 = vld [vmem:[%s247 + $0x60] sm:$0xff]
      %v277 = vld [vmem:[%s247 + $0x68] sm:$0xff]
      %v278 = vld [vmem:[%s247 + $0x70] sm:$0xff]
      %v279 = vld [vmem:[%s247 + $0x78] sm:$0xff]
      %v280 = vld [vmem:[%s247 + $0x80] sm:$0xff]
      %v281 = vld [vmem:[%s247 + $0x88] sm:$0xff]
      %v282 = vld [vmem:[%s247 + $0x90] sm:$0xff]
      %v283 = vld [vmem:[%s247 + $0x98] sm:$0xff]
      %v284 = vld [vmem:[%s247 + $0xa0] sm:$0xff]
      %v285 = vld [vmem:[%s247 + $0xa8] sm:$0xff]
      %v286 = vld [vmem:[%s247 + $0xb0] sm:$0xff]
      %v287 = vld [vmem:[%s247 + $0xb8] sm:$0xff]
      %v288 = vld [vmem:[%s247 + $0xc0] sm:$0xff]
      %v289 = vld [vmem:[%s247 + $0xc8] sm:$0xff]
      %v290 = vld [vmem:[%s247 + $0xd0] sm:$0xff]
      %v291 = vld [vmem:[%s247 + $0xd8] sm:$0xff]
      %v292 = vld [vmem:[%s247 + $0xe0] sm:$0xff]
      %v293 = vld [vmem:[%s247 + $0xe8] sm:$0xff]
      %v294 = vld [vmem:[%s247 + $0xf0] sm:$0xff]
      %v295 = vld [vmem:[%s247 + $0xf8] sm:$0xff]
      %v296 = vld [vmem:[%s247 + $0x100] sm:$0xff]
      %v297 = vld [vmem:[%s247 + $0x108] sm:$0xff]
      %v298 = vld [vmem:[%s247 + $0x110] sm:$0xff]
      %v299 = vld [vmem:[%s247 + $0x118] sm:$0xff]
      %v300 = vld [vmem:[%s247 + $0x120] sm:$0xff]
      %v301 = vld [vmem:[%s247 + $0x128] sm:$0xff]
      %v302 = vld [vmem:[%s247 + $0x130] sm:$0xff]
      %v303 = vld [vmem:[%s247 + $0x138] sm:$0xff]
      %v304 = vld [vmem:[%s247 + $0x140] sm:$0xff]
      %v305 = vld [vmem:[%s247 + $0x148] sm:$0xff]
      %v306 = vld [vmem:[%s247 + $0x150] sm:$0xff]
      %v307 = vld [vmem:[%s247 + $0x158] sm:$0xff]
      %v308 = vld [vmem:[%s247 + $0x160] sm:$0xff]
      %v309 = vld [vmem:[%s247 + $0x168] sm:$0xff]
      %v310 = vld [vmem:[%s247 + $0x170] sm:$0xff]
      %v311 = vld [vmem:[%s247 + $0x178] sm:$0xff]
      %v312 = vld [vmem:[%s247 + $0x180] sm:$0xff]
      %v313 = vld [vmem:[%s247 + $0x188] sm:$0xff]
      %v314 = vld [vmem:[%s247 + $0x190] sm:$0xff]
      %v315 = vld [vmem:[%s247 + $0x198] sm:$0xff]
      %v316 = vld [vmem:[%s247 + $0x1a0] sm:$0xff]
      %v317 = vld [vmem:[%s247 + $0x1a8] sm:$0xff]
      %v318 = vld [vmem:[%s247 + $0x1b0] sm:$0xff]
      %v319 = vld [vmem:[%s247 + $0x1b8] sm:$0xff]
      %v320 = vrot.slane %v264, 7
      %v321 = vrot.slane %v265, 7
      %v322 = vrot.slane %v266, 7
      %v323 = vrot.slane %v267, 7
      %v324 = vrot.slane %v268, 7
      %v325 = vrot.slane %v269, 7
      %v326 = vrot.slane %v270, 7
      %v327 = vrot.slane %v271, 7
      %v328 = vrot.slane %v272, 7
      %v329 = vrot.slane %v273, 7
      %v330 = vrot.slane %v274, 7
      %v331 = vrot.slane %v275, 7
      %v332 = vrot.slane %v276, 7
      %v333 = vrot.slane %v277, 7
      %v334 = vrot.slane %v278, 7
      %v335 = vrot.slane %v279, 7
      %v336 = vrot.slane %v280, 7
      %v337 = vrot.slane %v281, 7
      %v338 = vrot.slane %v282, 7
      %v339 = vrot.slane %v283, 7
      %v340 = vrot.slane %v284, 7
      %v341 = vrot.slane %v285, 7
      %v342 = vrot.slane %v286, 7
      %v343 = vrot.slane %v287, 7
      %v344 = vrot.slane %v288, 7
      %v345 = vrot.slane %v289, 7
      %v346 = vrot.slane %v290, 7
      %v347 = vrot.slane %v291, 7
      %v348 = vrot.slane %v292, 7
      %v349 = vrot.slane %v293, 7
      %v350 = vrot.slane %v294, 7
      %v351 = vrot.slane %v295, 7
      %v352 = vrot.slane %v296, 7
      %v353 = vrot.slane %v297, 7
      %v354 = vrot.slane %v298, 7
      %v355 = vrot.slane %v299, 7
      %v356 = vrot.slane %v300, 7
      %v357 = vrot.slane %v301, 7
      %v358 = vrot.slane %v302, 7
      %v359 = vrot.slane %v303, 7
      %v360 = vrot.slane %v304, 7
      %v361 = vrot.slane %v305, 7
      %v362 = vrot.slane %v306, 7
      %v363 = vrot.slane %v307, 7
      %v364 = vrot.slane %v308, 7
      %v365 = vrot.slane %v309, 7
      %v366 = vrot.slane %v310, 7
      %v367 = vrot.slane %v311, 7
      %v368 = vrot.slane %v312, 7
      %v369 = vrot.slane %v313, 7
      %v370 = vrot.slane %v314, 7
      %v371 = vrot.slane %v315, 7
      %v372 = vrot.slane %v316, 7
      %v373 = vrot.slane %v317, 7
      %v374 = vrot.slane %v318, 7
      %v375 = vrot.slane %v319, 7
      %v376 = vlaneseq
      %v377 = vshrl.u32 %v376, 7
      %vm378 = vcmp.lt.s32.totalorder %v377, 1
      %v379 = vsel %vm378, %v374, %v375
      %v380 = vsel %vm378, %v373, %v374
      %v381 = vsel %vm378, %v372, %v373
      %v382 = vsel %vm378, %v371, %v372
      %v383 = vsel %vm378, %v370, %v371
      %v384 = vsel %vm378, %v369, %v370
      %v385 = vsel %vm378, %v368, %v369
      %v386 = vsel %vm378, %v367, %v368
      %v387 = vsel %vm378, %v366, %v367
      %v388 = vsel %vm378, %v365, %v366
      %v389 = vsel %vm378, %v364, %v365
      %v390 = vsel %vm378, %v363, %v364
      %v391 = vsel %vm378, %v362, %v363
      %v392 = vsel %vm378, %v361, %v362
      %v393 = vsel %vm378, %v360, %v361
      %v394 = vsel %vm378, %v359, %v360
      %v395 = vsel %vm378, %v358, %v359
      %v396 = vsel %vm378, %v357, %v358
      %v397 = vsel %vm378, %v356, %v357
      %v398 = vsel %vm378, %v355, %v356
      %v399 = vsel %vm378, %v354, %v355
      %v400 = vsel %vm378, %v353, %v354
      %v401 = vsel %vm378, %v352, %v353
      %v402 = vsel %vm378, %v351, %v352
      %v403 = vsel %vm378, %v350, %v351
      %v404 = vsel %vm378, %v349, %v350
      %v405 = vsel %vm378, %v348, %v349
      %v406 = vsel %vm378, %v347, %v348
      %v407 = vsel %vm378, %v346, %v347
      %v408 = vsel %vm378, %v345, %v346
      %v409 = vsel %vm378, %v344, %v345
      %v410 = vsel %vm378, %v343, %v344
      %v411 = vsel %vm378, %v342, %v343
      %v412 = vsel %vm378, %v341, %v342
      %v413 = vsel %vm378, %v340, %v341
      %v414 = vsel %vm378, %v339, %v340
      %v415 = vsel %vm378, %v338, %v339
      %v416 = vsel %vm378, %v337, %v338
      %v417 = vsel %vm378, %v336, %v337
      %v418 = vsel %vm378, %v335, %v336
      %v419 = vsel %vm378, %v334, %v335
      %v420 = vsel %vm378, %v333, %v334
      %v421 = vsel %vm378, %v332, %v333
      %v422 = vsel %vm378, %v331, %v332
      %v423 = vsel %vm378, %v330, %v331
      %v424 = vsel %vm378, %v329, %v330
      %v425 = vsel %vm378, %v328, %v329
      %v426 = vsel %vm378, %v327, %v328
      %v427 = vsel %vm378, %v326, %v327
      %v428 = vsel %vm378, %v325, %v326
      %v429 = vsel %vm378, %v324, %v325
      %v430 = vsel %vm378, %v323, %v324
      %v431 = vsel %vm378, %v322, %v323
      %v432 = vsel %vm378, %v321, %v322
      %v433 = vsel %vm378, %v320, %v321
      %v434 = vsel %vm378, %v375, %v320
      %435 = vst.msk [vmem:[#allocation3] sm:$0xff] %vm255, %v434
      %436 = vst.msk [vmem:[#allocation3 + $0x8] sm:$0xff] %vm255, %v433
      %437 = vst.msk [vmem:[#allocation3 + $0x10] sm:$0xff] %vm255, %v432
      %438 = vst.msk [vmem:[#allocation3 + $0x18] sm:$0xff] %vm255, %v431
      %439 = vst.msk [vmem:[#allocation3 + $0x20] sm:$0xff] %vm255, %v430
      %440 = vst.msk [vmem:[#allocation3 + $0x28] sm:$0xff] %vm255, %v429
      %441 = vst.msk [vmem:[#allocation3 + $0x30] sm:$0xff] %vm255, %v428
      %442 = vst.msk [vmem:[#allocation3 + $0x38] sm:$0xff] %vm255, %v427
      %443 = vst.msk [vmem:[#allocation3 + $0x40] sm:$0xff] %vm255, %v426
      %444 = vst.msk [vmem:[#allocation3 + $0x48] sm:$0xff] %vm255, %v425
      %445 = vst.msk [vmem:[#allocation3 + $0x50] sm:$0xff] %vm255, %v424
      %446 = vst.msk [vmem:[#allocation3 + $0x58] sm:$0xff] %vm255, %v423
      %447 = vst.msk [vmem:[#allocation3 + $0x60] sm:$0xff] %vm255, %v422
      %448 = vst.msk [vmem:[#allocation3 + $0x68] sm:$0xff] %vm255, %v421
      %449 = vst.msk [vmem:[#allocation3 + $0x70] sm:$0xff] %vm255, %v420
      %450 = vst.msk [vmem:[#allocation3 + $0x78] sm:$0xff] %vm255, %v419
      %451 = vst.msk [vmem:[#allocation3 + $0x80] sm:$0xff] %vm255, %v418
      %452 = vst.msk [vmem:[#allocation3 + $0x88] sm:$0xff] %vm255, %v417
      %453 = vst.msk [vmem:[#allocation3 + $0x90] sm:$0xff] %vm255, %v416
      %454 = vst.msk [vmem:[#allocation3 + $0x98] sm:$0xff] %vm255, %v415
      %455 = vst.msk [vmem:[#allocation3 + $0xa0] sm:$0xff] %vm255, %v414
      %456 = vst.msk [vmem:[#allocation3 + $0xa8] sm:$0xff] %vm255, %v413
      %457 = vst.msk [vmem:[#allocation3 + $0xb0] sm:$0xff] %vm255, %v412
      %458 = vst.msk [vmem:[#allocation3 + $0xb8] sm:$0xff] %vm255, %v411
      %459 = vst.msk [vmem:[#allocation3 + $0xc0] sm:$0xff] %vm255, %v410
      %460 = vst.msk [vmem:[#allocation3 + $0xc8] sm:$0xff] %vm255, %v409
      %461 = vst.msk [vmem:[#allocation3 + $0xd0] sm:$0xff] %vm255, %v408
      %462 = vst.msk [vmem:[#allocation3 + $0xd8] sm:$0xff] %vm255, %v407
      %463 = vst.msk [vmem:[#allocation3 + $0xe0] sm:$0xff] %vm255, %v406
      %464 = vst.msk [vmem:[#allocation3 + $0xe8] sm:$0xff] %vm255, %v405
      %465 = vst.msk [vmem:[#allocation3 + $0xf0] sm:$0xff] %vm255, %v404
      %466 = vst.msk [vmem:[#allocation3 + $0xf8] sm:$0xff] %vm255, %v403
      %467 = vst.msk [vmem:[#allocation3 + $0x100] sm:$0xff] %vm255, %v402
      %468 = vst.msk [vmem:[#allocation3 + $0x108] sm:$0xff] %vm255, %v401
      %469 = vst.msk [vmem:[#allocation3 + $0x110] sm:$0xff] %vm255, %v400
      %470 = vst.msk [vmem:[#allocation3 + $0x118] sm:$0xff] %vm255, %v399
      %471 = vst.msk [vmem:[#allocation3 + $0x120] sm:$0xff] %vm255, %v398
      %472 = vst.msk [vmem:[#allocation3 + $0x128] sm:$0xff] %vm255, %v397
      %473 = vst.msk [vmem:[#allocation3 + $0x130] sm:$0xff] %vm255, %v396
      %474 = vst.msk [vmem:[#allocation3 + $0x138] sm:$0xff] %vm255, %v395
      %475 = vst.msk [vmem:[#allocation3 + $0x140] sm:$0xff] %vm255, %v394
      %476 = vst.msk [vmem:[#allocation3 + $0x148] sm:$0xff] %vm255, %v393
      %477 = vst.msk [vmem:[#allocation3 + $0x150] sm:$0xff] %vm255, %v392
      %478 = vst.msk [vmem:[#allocation3 + $0x158] sm:$0xff] %vm255, %v391
      %479 = vst.msk [vmem:[#allocation3 + $0x160] sm:$0xff] %vm255, %v390
      %480 = vst.msk [vmem:[#allocation3 + $0x168] sm:$0xff] %vm255, %v389
      %481 = vst.msk [vmem:[#allocation3 + $0x170] sm:$0xff] %vm255, %v388
      %482 = vst.msk [vmem:[#allocation3 + $0x178] sm:$0xff] %vm255, %v387
      %483 = vst.msk [vmem:[#allocation3 + $0x180] sm:$0xff] %vm255, %v386
      %484 = vst.msk [vmem:[#allocation3 + $0x188] sm:$0xff] %vm255, %v385
      %485 = vst.msk [vmem:[#allocation3 + $0x190] sm:$0xff] %vm255, %v384
      %486 = vst.msk [vmem:[#allocation3 + $0x198] sm:$0xff] %vm255, %v383
      %487 = vst.msk [vmem:[#allocation3 + $0x1a0] sm:$0xff] %vm255, %v382
      %488 = vst.msk [vmem:[#allocation3 + $0x1a8] sm:$0xff] %vm255, %v381
      %489 = vst.msk [vmem:[#allocation3 + $0x1b0] sm:$0xff] %vm255, %v380
      %490 = vst.msk [vmem:[#allocation3 + $0x1b8] sm:$0xff] %vm255, %v379
      %547 = vrot.lane.b32.xlu0 %v264, 8
      %v548 = vpop.permute.xlu0 %547
      %549 = vrot.lane.b32.xlu0 %v265, 8
      %v550 = vpop.permute.xlu0 %549
      %551 = vrot.lane.b32.xlu0 %v266, 8
      %v552 = vpop.permute.xlu0 %551
      %553 = vrot.lane.b32.xlu0 %v267, 8
      %v554 = vpop.permute.xlu0 %553
      %555 = vrot.lane.b32.xlu0 %v268, 8
      %v556 = vpop.permute.xlu0 %555
      %557 = vrot.lane.b32.xlu0 %v269, 8
      %v558 = vpop.permute.xlu0 %557
      %559 = vrot.lane.b32.xlu0 %v270, 8
      %v560 = vpop.permute.xlu0 %559
      %561 = vrot.lane.b32.xlu0 %v271, 8
      %v562 = vpop.permute.xlu0 %561
      %563 = vrot.lane.b32.xlu0 %v272, 8
      %v564 = vpop.permute.xlu0 %563
      %565 = vrot.lane.b32.xlu0 %v273, 8
      %v566 = vpop.permute.xlu0 %565
      %567 = vrot.lane.b32.xlu0 %v274, 8
      %v568 = vpop.permute.xlu0 %567
      %569 = vrot.lane.b32.xlu0 %v275, 8
      %v570 = vpop.permute.xlu0 %569
      %571 = vrot.lane.b32.xlu0 %v276, 8
      %v572 = vpop.permute.xlu0 %571
      %573 = vrot.lane.b32.xlu0 %v277, 8
      %v574 = vpop.permute.xlu0 %573
      %575 = vrot.lane.b32.xlu0 %v278, 8
      %v576 = vpop.permute.xlu0 %575
      %577 = vrot.lane.b32.xlu0 %v279, 8
      %v578 = vpop.permute.xlu0 %577
      %579 = vrot.lane.b32.xlu0 %v280, 8
      %v580 = vpop.permute.xlu0 %579
      %581 = vrot.lane.b32.xlu0 %v281, 8
      %v582 = vpop.permute.xlu0 %581
      %583 = vrot.lane.b32.xlu0 %v282, 8
      %v584 = vpop.permute.xlu0 %583
      %585 = vrot.lane.b32.xlu0 %v283, 8
      %v586 = vpop.permute.xlu0 %585
      %587 = vrot.lane.b32.xlu0 %v284, 8
      %v588 = vpop.permute.xlu0 %587
      %589 = vrot.lane.b32.xlu0 %v285, 8
      %v590 = vpop.permute.xlu0 %589
      %591 = vrot.lane.b32.xlu0 %v286, 8
      %v592 = vpop.permute.xlu0 %591
      %593 = vrot.lane.b32.xlu0 %v287, 8
      %v594 = vpop.permute.xlu0 %593
      %595 = vrot.lane.b32.xlu0 %v288, 8
      %v596 = vpop.permute.xlu0 %595
      %597 = vrot.lane.b32.xlu0 %v289, 8
      %v598 = vpop.permute.xlu0 %597
      %599 = vrot.lane.b32.xlu0 %v290, 8
      %v600 = vpop.permute.xlu0 %599
      %601 = vrot.lane.b32.xlu0 %v291, 8
      %v602 = vpop.permute.xlu0 %601
      %603 = vrot.lane.b32.xlu0 %v292, 8
      %v604 = vpop.permute.xlu0 %603
      %605 = vrot.lane.b32.xlu0 %v293, 8
      %v606 = vpop.permute.xlu0 %605
      %607 = vrot.lane.b32.xlu0 %v294, 8
      %v608 = vpop.permute.xlu0 %607
      %609 = vrot.lane.b32.xlu0 %v295, 8
      %v610 = vpop.permute.xlu0 %609
      %611 = vrot.lane.b32.xlu0 %v296, 8
      %v612 = vpop.permute.xlu0 %611
      %613 = vrot.lane.b32.xlu0 %v297, 8
      %v614 = vpop.permute.xlu0 %613
      %615 = vrot.lane.b32.xlu0 %v298, 8
      %v616 = vpop.permute.xlu0 %615
      %617 = vrot.lane.b32.xlu0 %v299, 8
      %v618 = vpop.permute.xlu0 %617
      %619 = vrot.lane.b32.xlu0 %v300, 8
      %v620 = vpop.permute.xlu0 %619
      %621 = vrot.lane.b32.xlu0 %v301, 8
      %v622 = vpop.permute.xlu0 %621
      %623 = vrot.lane.b32.xlu0 %v302, 8
      %v624 = vpop.permute.xlu0 %623
      %625 = vrot.lane.b32.xlu0 %v303, 8
      %v626 = vpop.permute.xlu0 %625
      %627 = vrot.lane.b32.xlu0 %v304, 8
      %v628 = vpop.permute.xlu0 %627
      %629 = vrot.lane.b32.xlu0 %v305, 8
      %v630 = vpop.permute.xlu0 %629
      %631 = vrot.lane.b32.xlu0 %v306, 8
      %v632 = vpop.permute.xlu0 %631
      %633 = vrot.lane.b32.xlu0 %v307, 8
      %v634 = vpop.permute.xlu0 %633
      %635 = vrot.lane.b32.xlu0 %v308, 8
      %v636 = vpop.permute.xlu0 %635
      %637 = vrot.lane.b32.xlu0 %v309, 8
      %v638 = vpop.permute.xlu0 %637
      %639 = vrot.lane.b32.xlu0 %v310, 8
      %v640 = vpop.permute.xlu0 %639
      %641 = vrot.lane.b32.xlu0 %v311, 8
      %v642 = vpop.permute.xlu0 %641
      %643 = vrot.lane.b32.xlu0 %v312, 8
      %v644 = vpop.permute.xlu0 %643
      %645 = vrot.lane.b32.xlu0 %v313, 8
      %v646 = vpop.permute.xlu0 %645
      %647 = vrot.lane.b32.xlu0 %v314, 8
      %v648 = vpop.permute.xlu0 %647
      %649 = vrot.lane.b32.xlu0 %v315, 8
      %v650 = vpop.permute.xlu0 %649
      %651 = vrot.lane.b32.xlu0 %v316, 8
      %v652 = vpop.permute.xlu0 %651
      %653 = vrot.lane.b32.xlu0 %v317, 8
      %v654 = vpop.permute.xlu0 %653
      %655 = vrot.lane.b32.xlu0 %v318, 8
      %v656 = vpop.permute.xlu0 %655
      %657 = vrot.lane.b32.xlu0 %v319, 8
      %v658 = vpop.permute.xlu0 %657
      %vm715 = vcmask 130112
      %716 = vst.msk [vmem:[#allocation3] sm:$0xff] %vm715, %v548
      %717 = vst.msk [vmem:[#allocation3 + $0x8] sm:$0xff] %vm715, %v550
      %718 = vst.msk [vmem:[#allocation3 + $0x10] sm:$0xff] %vm715, %v552
      %719 = vst.msk [vmem:[#allocation3 + $0x18] sm:$0xff] %vm715, %v554
      %720 = vst.msk [vmem:[#allocation3 + $0x20] sm:$0xff] %vm715, %v556
      %721 = vst.msk [vmem:[#allocation3 + $0x28] sm:$0xff] %vm715, %v558
      %722 = vst.msk [vmem:[#allocation3 + $0x30] sm:$0xff] %vm715, %v560
      %723 = vst.msk [vmem:[#allocation3 + $0x38] sm:$0xff] %vm715, %v562
      %724 = vst.msk [vmem:[#allocation3 + $0x40] sm:$0xff] %vm715, %v564
      %725 = vst.msk [vmem:[#allocation3 + $0x48] sm:$0xff] %vm715, %v566
      %726 = vst.msk [vmem:[#allocation3 + $0x50] sm:$0xff] %vm715, %v568
      %727 = vst.msk [vmem:[#allocation3 + $0x58] sm:$0xff] %vm715, %v570
      %728 = vst.msk [vmem:[#allocation3 + $0x60] sm:$0xff] %vm715, %v572
      %729 = vst.msk [vmem:[#allocation3 + $0x68] sm:$0xff] %vm715, %v574
      %730 = vst.msk [vmem:[#allocation3 + $0x70] sm:$0xff] %vm715, %v576
      %731 = vst.msk [vmem:[#allocation3 + $0x78] sm:$0xff] %vm715, %v578
      %732 = vst.msk [vmem:[#allocation3 + $0x80] sm:$0xff] %vm715, %v580
      %733 = vst.msk [vmem:[#allocation3 + $0x88] sm:$0xff] %vm715, %v582
      %734 = vst.msk [vmem:[#allocation3 + $0x90] sm:$0xff] %vm715, %v584
      %735 = vst.msk [vmem:[#allocation3 + $0x98] sm:$0xff] %vm715, %v586
      %736 = vst.msk [vmem:[#allocation3 + $0xa0] sm:$0xff] %vm715, %v588
      %737 = vst.msk [vmem:[#allocation3 + $0xa8] sm:$0xff] %vm715, %v590
      %738 = vst.msk [vmem:[#allocation3 + $0xb0] sm:$0xff] %vm715, %v592
      %739 = vst.msk [vmem:[#allocation3 + $0xb8] sm:$0xff] %vm715, %v594
      %740 = vst.msk [vmem:[#allocation3 + $0xc0] sm:$0xff] %vm715, %v596
      %741 = vst.msk [vmem:[#allocation3 + $0xc8] sm:$0xff] %vm715, %v598
      %742 = vst.msk [vmem:[#allocation3 + $0xd0] sm:$0xff] %vm715, %v600
      %743 = vst.msk [vmem:[#allocation3 + $0xd8] sm:$0xff] %vm715, %v602
      %744 = vst.msk [vmem:[#allocation3 + $0xe0] sm:$0xff] %vm715, %v604
      %745 = vst.msk [vmem:[#allocation3 + $0xe8] sm:$0xff] %vm715, %v606
      %746 = vst.msk [vmem:[#allocation3 + $0xf0] sm:$0xff] %vm715, %v608
      %747 = vst.msk [vmem:[#allocation3 + $0xf8] sm:$0xff] %vm715, %v610
      %748 = vst.msk [vmem:[#allocation3 + $0x100] sm:$0xff] %vm715, %v612
      %749 = vst.msk [vmem:[#allocation3 + $0x108] sm:$0xff] %vm715, %v614
      %750 = vst.msk [vmem:[#allocation3 + $0x110] sm:$0xff] %vm715, %v616
      %751 = vst.msk [vmem:[#allocation3 + $0x118] sm:$0xff] %vm715, %v618
      %752 = vst.msk [vmem:[#allocation3 + $0x120] sm:$0xff] %vm715, %v620
      %753 = vst.msk [vmem:[#allocation3 + $0x128] sm:$0xff] %vm715, %v622
      %754 = vst.msk [vmem:[#allocation3 + $0x130] sm:$0xff] %vm715, %v624
      %755 = vst.msk [vmem:[#allocation3 + $0x138] sm:$0xff] %vm715, %v626
      %756 = vst.msk [vmem:[#allocation3 + $0x140] sm:$0xff] %vm715, %v628
      %757 = vst.msk [vmem:[#allocation3 + $0x148] sm:$0xff] %vm715, %v630
      %758 = vst.msk [vmem:[#allocation3 + $0x150] sm:$0xff] %vm715, %v632
      %759 = vst.msk [vmem:[#allocation3 + $0x158] sm:$0xff] %vm715, %v634
      %760 = vst.msk [vmem:[#allocation3 + $0x160] sm:$0xff] %vm715, %v636
      %761 = vst.msk [vmem:[#allocation3 + $0x168] sm:$0xff] %vm715, %v638
      %762 = vst.msk [vmem:[#allocation3 + $0x170] sm:$0xff] %vm715, %v640
      %763 = vst.msk [vmem:[#allocation3 + $0x178] sm:$0xff] %vm715, %v642
      %764 = vst.msk [vmem:[#allocation3 + $0x180] sm:$0xff] %vm715, %v644
      %765 = vst.msk [vmem:[#allocation3 + $0x188] sm:$0xff] %vm715, %v646
      %766 = vst.msk [vmem:[#allocation3 + $0x190] sm:$0xff] %vm715, %v648
      %767 = vst.msk [vmem:[#allocation3 + $0x198] sm:$0xff] %vm715, %v650
      %768 = vst.msk [vmem:[#allocation3 + $0x1a0] sm:$0xff] %vm715, %v652
      %769 = vst.msk [vmem:[#allocation3 + $0x1a8] sm:$0xff] %vm715, %v654
      %770 = vst.msk [vmem:[#allocation3 + $0x1b0] sm:$0xff] %vm715, %v656
      %771 = vst.msk [vmem:[#allocation3 + $0x1b8] sm:$0xff] %vm715, %v658
      %v772 = vrot.slane %v264, 1
      %v773 = vrot.slane %v265, 1
      %v774 = vrot.slane %v266, 1
      %v775 = vrot.slane %v267, 1
      %v776 = vrot.slane %v268, 1
      %v777 = vrot.slane %v269, 1
      %v778 = vrot.slane %v270, 1
      %v779 = vrot.slane %v271, 1
      %v780 = vrot.slane %v272, 1
      %v781 = vrot.slane %v273, 1
      %v782 = vrot.slane %v274, 1
      %v783 = vrot.slane %v275, 1
      %v784 = vrot.slane %v276, 1
      %v785 = vrot.slane %v277, 1
      %v786 = vrot.slane %v278, 1
      %v787 = vrot.slane %v279, 1
      %v788 = vrot.slane %v280, 1
      %v789 = vrot.slane %v281, 1
      %v790 = vrot.slane %v282, 1
      %v791 = vrot.slane %v283, 1
      %v792 = vrot.slane %v284, 1
      %v793 = vrot.slane %v285, 1
      %v794 = vrot.slane %v286, 1
      %v795 = vrot.slane %v287, 1
      %v796 = vrot.slane %v288, 1
      %v797 = vrot.slane %v289, 1
      %v798 = vrot.slane %v290, 1
      %v799 = vrot.slane %v291, 1
      %v800 = vrot.slane %v292, 1
      %v801 = vrot.slane %v293, 1
      %v802 = vrot.slane %v294, 1
      %v803 = vrot.slane %v295, 1
      %v804 = vrot.slane %v296, 1
      %v805 = vrot.slane %v297, 1
      %v806 = vrot.slane %v298, 1
      %v807 = vrot.slane %v299, 1
      %v808 = vrot.slane %v300, 1
      %v809 = vrot.slane %v301, 1
      %v810 = vrot.slane %v302, 1
      %v811 = vrot.slane %v303, 1
      %v812 = vrot.slane %v304, 1
      %v813 = vrot.slane %v305, 1
      %v814 = vrot.slane %v306, 1
      %v815 = vrot.slane %v307, 1
      %v816 = vrot.slane %v308, 1
      %v817 = vrot.slane %v309, 1
      %v818 = vrot.slane %v310, 1
      %v819 = vrot.slane %v311, 1
      %v820 = vrot.slane %v312, 1
      %v821 = vrot.slane %v313, 1
      %v822 = vrot.slane %v314, 1
      %v823 = vrot.slane %v315, 1
      %v824 = vrot.slane %v316, 1
      %v825 = vrot.slane %v317, 1
      %v826 = vrot.slane %v318, 1
      %v827 = vrot.slane %v319, 1
      %vm828 = vcmp.lt.s32.totalorder %v377, 7
      %v829 = vsel %vm828, %v826, %v827
      %v830 = vsel %vm828, %v825, %v826
      %v831 = vsel %vm828, %v824, %v825
      %v832 = vsel %vm828, %v823, %v824
      %v833 = vsel %vm828, %v822, %v823
      %v834 = vsel %vm828, %v821, %v822
      %v835 = vsel %vm828, %v820, %v821
      %v836 = vsel %vm828, %v819, %v820
      %v837 = vsel %vm828, %v818, %v819
      %v838 = vsel %vm828, %v817, %v818
      %v839 = vsel %vm828, %v816, %v817
      %v840 = vsel %vm828, %v815, %v816
      %v841 = vsel %vm828, %v814, %v815
      %v842 = vsel %vm828, %v813, %v814
      %v843 = vsel %vm828, %v812, %v813
      %v844 = vsel %vm828, %v811, %v812
      %v845 = vsel %vm828, %v810, %v811
      %v846 = vsel %vm828, %v809, %v810
      %v847 = vsel %vm828, %v808, %v809
      %v848 = vsel %vm828, %v807, %v808
      %v849 = vsel %vm828, %v806, %v807
      %v850 = vsel %vm828, %v805, %v806
      %v851 = vsel %vm828, %v804, %v805
      %v852 = vsel %vm828, %v803, %v804
      %v853 = vsel %vm828, %v802, %v803
      %v854 = vsel %vm828, %v801, %v802
      %v855 = vsel %vm828, %v800, %v801
      %v856 = vsel %vm828, %v799, %v800
      %v857 = vsel %vm828, %v798, %v799
      %v858 = vsel %vm828, %v797, %v798
      %v859 = vsel %vm828, %v796, %v797
      %v860 = vsel %vm828, %v795, %v796
      %v861 = vsel %vm828, %v794, %v795
      %v862 = vsel %vm828, %v793, %v794
      %v863 = vsel %vm828, %v792, %v793
      %v864 = vsel %vm828, %v791, %v792
      %v865 = vsel %vm828, %v790, %v791
      %v866 = vsel %vm828, %v789, %v790
      %v867 = vsel %vm828, %v788, %v789
      %v868 = vsel %vm828, %v787, %v788
      %v869 = vsel %vm828, %v786, %v787
      %v870 = vsel %vm828, %v785, %v786
      %v871 = vsel %vm828, %v784, %v785
      %v872 = vsel %vm828, %v783, %v784
      %v873 = vsel %vm828, %v782, %v783
      %v874 = vsel %vm828, %v781, %v782
      %v875 = vsel %vm828, %v780, %v781
      %v876 = vsel %vm828, %v779, %v780
      %v877 = vsel %vm828, %v778, %v779
      %v878 = vsel %vm828, %v777, %v778
      %v879 = vsel %vm828, %v776, %v777
      %v880 = vsel %vm828, %v775, %v776
      %v881 = vsel %vm828, %v774, %v775
      %v882 = vsel %vm828, %v773, %v774
      %v883 = vsel %vm828, %v772, %v773
      %v884 = vsel %vm828, %v827, %v772
      %941 = vrot.lane.b32.xlu0 %v883, 16
      %v942 = vpop.permute.xlu0 %941
      %943 = vrot.lane.b32.xlu0 %v882, 16
      %v944 = vpop.permute.xlu0 %943
      %945 = vrot.lane.b32.xlu0 %v881, 16
      %v946 = vpop.permute.xlu0 %945
      %947 = vrot.lane.b32.xlu0 %v880, 16
      %v948 = vpop.permute.xlu0 %947
      %949 = vrot.lane.b32.xlu0 %v879, 16
      %v950 = vpop.permute.xlu0 %949
      %951 = vrot.lane.b32.xlu0 %v878, 16
      %v952 = vpop.permute.xlu0 %951
      %953 = vrot.lane.b32.xlu0 %v877, 16
      %v954 = vpop.permute.xlu0 %953
      %955 = vrot.lane.b32.xlu0 %v876, 16
      %v956 = vpop.permute.xlu0 %955
      %957 = vrot.lane.b32.xlu0 %v875, 16
      %v958 = vpop.permute.xlu0 %957
      %959 = vrot.lane.b32.xlu0 %v874, 16
      %v960 = vpop.permute.xlu0 %959
      %961 = vrot.lane.b32.xlu0 %v873, 16
      %v962 = vpop.permute.xlu0 %961
      %963 = vrot.lane.b32.xlu0 %v872, 16
      %v964 = vpop.permute.xlu0 %963
      %965 = vrot.lane.b32.xlu0 %v871, 16
      %v966 = vpop.permute.xlu0 %965
      %967 = vrot.lane.b32.xlu0 %v870, 16
      %v968 = vpop.permute.xlu0 %967
      %969 = vrot.lane.b32.xlu0 %v869, 16
      %v970 = vpop.permute.xlu0 %969
      %971 = vrot.lane.b32.xlu0 %v868, 16
      %v972 = vpop.permute.xlu0 %971
      %973 = vrot.lane.b32.xlu0 %v867, 16
      %v974 = vpop.permute.xlu0 %973
      %975 = vrot.lane.b32.xlu0 %v866, 16
      %v976 = vpop.permute.xlu0 %975
      %977 = vrot.lane.b32.xlu0 %v865, 16
      %v978 = vpop.permute.xlu0 %977
      %979 = vrot.lane.b32.xlu0 %v864, 16
      %v980 = vpop.permute.xlu0 %979
      %981 = vrot.lane.b32.xlu0 %v863, 16
      %v982 = vpop.permute.xlu0 %981
      %983 = vrot.lane.b32.xlu0 %v862, 16
      %v984 = vpop.permute.xlu0 %983
      %985 = vrot.lane.b32.xlu0 %v861, 16
      %v986 = vpop.permute.xlu0 %985
      %987 = vrot.lane.b32.xlu0 %v860, 16
      %v988 = vpop.permute.xlu0 %987
      %989 = vrot.lane.b32.xlu0 %v859, 16
      %v990 = vpop.permute.xlu0 %989
      %991 = vrot.lane.b32.xlu0 %v858, 16
      %v992 = vpop.permute.xlu0 %991
      %993 = vrot.lane.b32.xlu0 %v857, 16
      %v994 = vpop.permute.xlu0 %993
      %995 = vrot.lane.b32.xlu0 %v856, 16
      %v996 = vpop.permute.xlu0 %995
      %997 = vrot.lane.b32.xlu0 %v855, 16
      %v998 = vpop.permute.xlu0 %997
      %999 = vrot.lane.b32.xlu0 %v854, 16
      %v1000 = vpop.permute.xlu0 %999
      %1001 = vrot.lane.b32.xlu0 %v853, 16
      %v1002 = vpop.permute.xlu0 %1001
      %1003 = vrot.lane.b32.xlu0 %v852, 16
      %v1004 = vpop.permute.xlu0 %1003
      %1005 = vrot.lane.b32.xlu0 %v851, 16
      %v1006 = vpop.permute.xlu0 %1005
      %1007 = vrot.lane.b32.xlu0 %v850, 16
      %v1008 = vpop.permute.xlu0 %1007
      %1009 = vrot.lane.b32.xlu0 %v849, 16
      %v1010 = vpop.permute.xlu0 %1009
      %1011 = vrot.lane.b32.xlu0 %v848, 16
      %v1012 = vpop.permute.xlu0 %1011
      %1013 = vrot.lane.b32.xlu0 %v847, 16
      %v1014 = vpop.permute.xlu0 %1013
      %1015 = vrot.lane.b32.xlu0 %v846, 16
      %v1016 = vpop.permute.xlu0 %1015
      %1017 = vrot.lane.b32.xlu0 %v845, 16
      %v1018 = vpop.permute.xlu0 %1017
      %1019 = vrot.lane.b32.xlu0 %v844, 16
      %v1020 = vpop.permute.xlu0 %1019
      %1021 = vrot.lane.b32.xlu0 %v843, 16
      %v1022 = vpop.permute.xlu0 %1021
      %1023 = vrot.lane.b32.xlu0 %v842, 16
      %v1024 = vpop.permute.xlu0 %1023
      %1025 = vrot.lane.b32.xlu0 %v841, 16
      %v1026 = vpop.permute.xlu0 %1025
      %1027 = vrot.lane.b32.xlu0 %v840, 16
      %v1028 = vpop.permute.xlu0 %1027
      %1029 = vrot.lane.b32.xlu0 %v839, 16
      %v1030 = vpop.permute.xlu0 %1029
      %1031 = vrot.lane.b32.xlu0 %v838, 16
      %v1032 = vpop.permute.xlu0 %1031
      %1033 = vrot.lane.b32.xlu0 %v837, 16
      %v1034 = vpop.permute.xlu0 %1033
      %1035 = vrot.lane.b32.xlu0 %v836, 16
      %v1036 = vpop.permute.xlu0 %1035
      %1037 = vrot.lane.b32.xlu0 %v835, 16
      %v1038 = vpop.permute.xlu0 %1037
      %1039 = vrot.lane.b32.xlu0 %v834, 16
      %v1040 = vpop.permute.xlu0 %1039
      %1041 = vrot.lane.b32.xlu0 %v833, 16
      %v1042 = vpop.permute.xlu0 %1041
      %1043 = vrot.lane.b32.xlu0 %v832, 16
      %v1044 = vpop.permute.xlu0 %1043
      %1045 = vrot.lane.b32.xlu0 %v831, 16
      %v1046 = vpop.permute.xlu0 %1045
      %1047 = vrot.lane.b32.xlu0 %v830, 16
      %v1048 = vpop.permute.xlu0 %1047
      %1049 = vrot.lane.b32.xlu0 %v829, 16
      %v1050 = vpop.permute.xlu0 %1049
      %1051 = vrot.lane.b32.xlu0 %v884, 16
      %v1052 = vpop.permute.xlu0 %1051
      %vm1109 = vcmask 195712
      %1110 = vst.msk [vmem:[#allocation3] sm:$0xff] %vm1109, %v942
      %1111 = vst.msk [vmem:[#allocation3 + $0x8] sm:$0xff] %vm1109, %v944
      %1112 = vst.msk [vmem:[#allocation3 + $0x10] sm:$0xff] %vm1109, %v946
      %1113 = vst.msk [vmem:[#allocation3 + $0x18] sm:$0xff] %vm1109, %v948
      %1114 = vst.msk [vmem:[#allocation3 + $0x20] sm:$0xff] %vm1109, %v950
      %1115 = vst.msk [vmem:[#allocation3 + $0x28] sm:$0xff] %vm1109, %v952
      %1116 = vst.msk [vmem:[#allocation3 + $0x30] sm:$0xff] %vm1109, %v954
      %1117 = vst.msk [vmem:[#allocation3 + $0x38] sm:$0xff] %vm1109, %v956
      %1118 = vst.msk [vmem:[#allocation3 + $0x40] sm:$0xff] %vm1109, %v958
      %1119 = vst.msk [vmem:[#allocation3 + $0x48] sm:$0xff] %vm1109, %v960
      %1120 = vst.msk [vmem:[#allocation3 + $0x50] sm:$0xff] %vm1109, %v962
      %1121 = vst.msk [vmem:[#allocation3 + $0x58] sm:$0xff] %vm1109, %v964
      %1122 = vst.msk [vmem:[#allocation3 + $0x60] sm:$0xff] %vm1109, %v966
      %1123 = vst.msk [vmem:[#allocation3 + $0x68] sm:$0xff] %vm1109, %v968
      %1124 = vst.msk [vmem:[#allocation3 + $0x70] sm:$0xff] %vm1109, %v970
      %1125 = vst.msk [vmem:[#allocation3 + $0x78] sm:$0xff] %vm1109, %v972
      %1126 = vst.msk [vmem:[#allocation3 + $0x80] sm:$0xff] %vm1109, %v974
      %1127 = vst.msk [vmem:[#allocation3 + $0x88] sm:$0xff] %vm1109, %v976
      %1128 = vst.msk [vmem:[#allocation3 + $0x90] sm:$0xff] %vm1109, %v978
      %1129 = vst.msk [vmem:[#allocation3 + $0x98] sm:$0xff] %vm1109, %v980
      %1130 = vst.msk [vmem:[#allocation3 + $0xa0] sm:$0xff] %vm1109, %v982
      %1131 = vst.msk [vmem:[#allocation3 + $0xa8] sm:$0xff] %vm1109, %v984
      %1132 = vst.msk [vmem:[#allocation3 + $0xb0] sm:$0xff] %vm1109, %v986
      %1133 = vst.msk [vmem:[#allocation3 + $0xb8] sm:$0xff] %vm1109, %v988
      %1134 = vst.msk [vmem:[#allocation3 + $0xc0] sm:$0xff] %vm1109, %v990
      %1135 = vst.msk [vmem:[#allocation3 + $0xc8] sm:$0xff] %vm1109, %v992
      %1136 = vst.msk [vmem:[#allocation3 + $0xd0] sm:$0xff] %vm1109, %v994
      %1137 = vst.msk [vmem:[#allocation3 + $0xd8] sm:$0xff] %vm1109, %v996
      %1138 = vst.msk [vmem:[#allocation3 + $0xe0] sm:$0xff] %vm1109, %v998
      %1139 = vst.msk [vmem:[#allocation3 + $0xe8] sm:$0xff] %vm1109, %v1000
      %1140 = vst.msk [vmem:[#allocation3 + $0xf0] sm:$0xff] %vm1109, %v1002
      %1141 = vst.msk [vmem:[#allocation3 + $0xf8] sm:$0xff] %vm1109, %v1004
      %1142 = vst.msk [vmem:[#allocation3 + $0x100] sm:$0xff] %vm1109, %v1006
      %1143 = vst.msk [vmem:[#allocation3 + $0x108] sm:$0xff] %vm1109, %v1008
      %1144 = vst.msk [vmem:[#allocation3 + $0x110] sm:$0xff] %vm1109, %v1010
      %1145 = vst.msk [vmem:[#allocation3 + $0x118] sm:$0xff] %vm1109, %v1012
      %1146 = vst.msk [vmem:[#allocation3 + $0x120] sm:$0xff] %vm1109, %v1014
      %1147 = vst.msk [vmem:[#allocation3 + $0x128] sm:$0xff] %vm1109, %v1016
      %1148 = vst.msk [vmem:[#allocation3 + $0x130] sm:$0xff] %vm1109, %v1018
      %1149 = vst.msk [vmem:[#allocation3 + $0x138] sm:$0xff] %vm1109, %v1020
      %1150 = vst.msk [vmem:[#allocation3 + $0x140] sm:$0xff] %vm1109, %v1022
      %1151 = vst.msk [vmem:[#allocation3 + $0x148] sm:$0xff] %vm1109, %v1024
      %1152 = vst.msk [vmem:[#allocation3 + $0x150] sm:$0xff] %vm1109, %v1026
      %1153 = vst.msk [vmem:[#allocation3 + $0x158] sm:$0xff] %vm1109, %v1028
      %1154 = vst.msk [vmem:[#allocation3 + $0x160] sm:$0xff] %vm1109, %v1030
      %1155 = vst.msk [vmem:[#allocation3 + $0x168] sm:$0xff] %vm1109, %v1032
      %1156 = vst.msk [vmem:[#allocation3 + $0x170] sm:$0xff] %vm1109, %v1034
      %1157 = vst.msk [vmem:[#allocation3 + $0x178] sm:$0xff] %vm1109, %v1036
      %1158 = vst.msk [vmem:[#allocation3 + $0x180] sm:$0xff] %vm1109, %v1038
      %1159 = vst.msk [vmem:[#allocation3 + $0x188] sm:$0xff] %vm1109, %v1040
      %1160 = vst.msk [vmem:[#allocation3 + $0x190] sm:$0xff] %vm1109, %v1042
      %1161 = vst.msk [vmem:[#allocation3 + $0x198] sm:$0xff] %vm1109, %v1044
      %1162 = vst.msk [vmem:[#allocation3 + $0x1a0] sm:$0xff] %vm1109, %v1046
      %1163 = vst.msk [vmem:[#allocation3 + $0x1a8] sm:$0xff] %vm1109, %v1048
      %1164 = vst.msk [vmem:[#allocation3 + $0x1b0] sm:$0xff] %vm1109, %v1050
      %1165 = vst.msk [vmem:[#allocation3 + $0x1b8] sm:$0xff] %vm1109, %v1052
      %v1166 = vld [vmem:[#allocation3 + $0x8] sm:$0xff]
      %v1167 = vld [vmem:[#allocation3 + $0x10] sm:$0xff]
      %v1168 = vld [vmem:[#allocation3 + $0x18] sm:$0xff]
      %v1169 = vld [vmem:[#allocation3 + $0x20] sm:$0xff]
      %v1170 = vld [vmem:[#allocation3 + $0x28] sm:$0xff]
      %v1171 = vld [vmem:[#allocation3 + $0x30] sm:$0xff]
      %v1172 = vld [vmem:[#allocation3 + $0x38] sm:$0xff]
      %v1173 = vld [vmem:[#allocation3 + $0x40] sm:$0xff]
      %v1174 = vld [vmem:[#allocation3 + $0x48] sm:$0xff]
      %v1175 = vld [vmem:[#allocation3 + $0x50] sm:$0xff]
      %v1176 = vld [vmem:[#allocation3 + $0x58] sm:$0xff]
      %v1177 = vld [vmem:[#allocation3 + $0x60] sm:$0xff]
      %v1178 = vld [vmem:[#allocation3 + $0x68] sm:$0xff]
      %v1179 = vld [vmem:[#allocation3 + $0x70] sm:$0xff]
      %v1180 = vld [vmem:[#allocation3 + $0x78] sm:$0xff]
      %v1181 = vld [vmem:[#allocation3 + $0x80] sm:$0xff]
      %v1182 = vld [vmem:[#allocation3 + $0x88] sm:$0xff]
      %v1183 = vld [vmem:[#allocation3 + $0x90] sm:$0xff]
      %v1184 = vld [vmem:[#allocation3 + $0x98] sm:$0xff]
      %v1185 = vld [vmem:[#allocation3 + $0xa0] sm:$0xff]
      %v1186 = vld [vmem:[#allocation3 + $0xa8] sm:$0xff]
      %v1187 = vld [vmem:[#allocation3 + $0xb0] sm:$0xff]
      %v1188 = vld [vmem:[#allocation3 + $0xb8] sm:$0xff]
      %v1189 = vld [vmem:[#allocation3 + $0xc0] sm:$0xff]
      %v1190 = vld [vmem:[#allocation3 + $0xc8] sm:$0xff]
      %v1191 = vld [vmem:[#allocation3 + $0xd0] sm:$0xff]
      %v1192 = vld [vmem:[#allocation3 + $0xd8] sm:$0xff]
      %v1193 = vld [vmem:[#allocation3 + $0xe0] sm:$0xff]
      %v1194 = vld [vmem:[#allocation3 + $0xe8] sm:$0xff]
      %v1195 = vld [vmem:[#allocation3 + $0xf0] sm:$0xff]
      %v1196 = vld [vmem:[#allocation3 + $0xf8] sm:$0xff]
      %v1197 = vld [vmem:[#allocation3 + $0x100] sm:$0xff]
      %v1198 = vld [vmem:[#allocation3 + $0x108] sm:$0xff]
      %v1199 = vld [vmem:[#allocation3 + $0x110] sm:$0xff]
      %v1200 = vld [vmem:[#allocation3 + $0x118] sm:$0xff]
      %v1201 = vld [vmem:[#allocation3 + $0x120] sm:$0xff]
      %v1202 = vld [vmem:[#allocation3 + $0x128] sm:$0xff]
      %v1203 = vld [vmem:[#allocation3 + $0x130] sm:$0xff]
      %v1204 = vld [vmem:[#allocation3 + $0x138] sm:$0xff]
      %v1205 = vld [vmem:[#allocation3 + $0x140] sm:$0xff]
      %v1206 = vld [vmem:[#allocation3 + $0x148] sm:$0xff]
      %v1207 = vld [vmem:[#allocation3 + $0x150] sm:$0xff]
      %v1208 = vld [vmem:[#allocation3 + $0x158] sm:$0xff]
      %v1209 = vld [vmem:[#allocation3 + $0x160] sm:$0xff]
      %v1210 = vld [vmem:[#allocation3 + $0x168] sm:$0xff]
      %v1211 = vld [vmem:[#allocation3 + $0x170] sm:$0xff]
      %v1212 = vld [vmem:[#allocation3 + $0x178] sm:$0xff]
      %v1213 = vld [vmem:[#allocation3 + $0x180] sm:$0xff]
      %v1214 = vld [vmem:[%s2] sm:$0xff]
      %v1215 = vld [vmem:[%s2 + $0x8] sm:$0xff]
      %v1216 = vld [vmem:[%s2 + $0x10] sm:$0xff]
      %v1217 = vld [vmem:[#allocation3 + $0x188] sm:$0xff]
      %v1218 = vld [vmem:[#allocation3 + $0x190] sm:$0xff]
      %v1219 = vld [vmem:[#allocation3 + $0x198] sm:$0xff]
      %s1220 = scalar_lea.vmem %s2, 24
      %v1221 = vld [vmem:[%s1220] sm:$0xff]
      %v1222 = vld [vmem:[%s1220 + $0x8] sm:$0xff]
      %v1223 = vld [vmem:[%s1220 + $0x10] sm:$0xff]
      %vm1224 = vcmask 195584
      %v1226 = vsel %vm1224, %v1169, 0
      %v1229 = vsel %vm1224, %v1170, 0
      %v1232 = vsel %vm1224, %v1171, 0
      %v1235 = vsel %vm1224, %v1172, 0
      %v1238 = vsel %vm1224, %v1173, 0
      %v1241 = vsel %vm1224, %v1174, 0
      %v1244 = vsel %vm1224, %v1175, 0
      %v1247 = vsel %vm1224, %v1176, 0
      %v1250 = vsel %vm1224, %v1177, 0
      %v1253 = vsel %vm1224, %v1178, 0
      %v1256 = vsel %vm1224, %v1179, 0
      %v1259 = vsel %vm1224, %v1180, 0
      %v1262 = vsel %vm1224, %v1181, 0
      %v1265 = vsel %vm1224, %v1182, 0
      %v1268 = vsel %vm1224, %v1183, 0
      %v1271 = vsel %vm1224, %v1184, 0
      %v1274 = vsel %vm1224, %v1185, 0
      %v1277 = vsel %vm1224, %v1186, 0
      %v1280 = vsel %vm1224, %v1187, 0
      %v1283 = vsel %vm1224, %v1188, 0
      %v1286 = vsel %vm1224, %v1189, 0
      %v1289 = vsel %vm1224, %v1190, 0
      %v1292 = vsel %vm1224, %v1191, 0
      %v1295 = vsel %vm1224, %v1192, 0
      %v1298 = vsel %vm1224, %v1193, 0
      %v1301 = vsel %vm1224, %v1194, 0
      %v1304 = vsel %vm1224, %v1195, 0
      %v1307 = vsel %vm1224, %v1196, 0
      %v1310 = vsel %vm1224, %v1197, 0
      %v1313 = vsel %vm1224, %v1198, 0
      %v1316 = vsel %vm1224, %v1199, 0
      %v1319 = vsel %vm1224, %v1200, 0
      %v1322 = vsel %vm1224, %v1201, 0
      %v1325 = vsel %vm1224, %v1202, 0
      %v1328 = vsel %vm1224, %v1203, 0
      %v1331 = vsel %vm1224, %v1204, 0
      %v1334 = vsel %vm1224, %v1205, 0
      %v1337 = vsel %vm1224, %v1206, 0
      %v1340 = vsel %vm1224, %v1207, 0
      %v1343 = vsel %vm1224, %v1208, 0
      %v1346 = vsel %vm1224, %v1209, 0
      %v1349 = vsel %vm1224, %v1210, 0
      %v1352 = vsel %vm1224, %v1211, 0
      %v1355 = vsel %vm1224, %v1212, 0
      %v1358 = vsel %vm1224, %v1213, 0
      %v1361 = vsel %vm1224, %v1217, 0
      %v1364 = vsel %vm1224, %v1218, 0
      %v1367 = vsel %vm1224, %v1219, 0
      %1369 = vmatpush.msra.mxu0 0.0
      %1370 = vmatpush.msra.mxu0 0.0
      %1371 = vmatpush.msra.mxu0 0.0
      %1372 = vmatpush.msra.mxu0 0.0
      %1373 = vmatpush.msra.mxu0 0.0
      %1374 = vmatpush.msra.mxu0 0.0
      %1375 = vmatpush.msra.mxu0 0.0
      %1376 = vmatpush.msra.mxu0 0.0
      %1377 = vmatpush.msra.mxu0 0.0
      %1378 = vmatpush.msra.mxu0 0.0
      %1379 = vmatpush.msra.mxu0 0.0
      %1380 = vmatpush.msra.mxu0 0.0
      %1381 = vmatpush.msra.mxu0 0.0
      %1382 = vmatpush.msra.mxu0 %v1223
      %1383 = vmatpush.msra.mxu0 %v1222
      %1384 = vmatpush.msra.mxu0 %v1221
      %1385 = vmatmul.f32.gmra.mxu0 %v1226
      %v1386 = vpop.f32.mrf.mxu0
      %v1387 = vadd.f32 0.0, %v1386
      %1388 = vmatmul.f32.gmra.mxu0 %v1229
      %v1389 = vpop.f32.mrf.mxu0
      %v1390 = vadd.f32 0.0, %v1389
      %1391 = vmatmul.f32.gmra.mxu0 %v1232
      %v1392 = vpop.f32.mrf.mxu0
      %v1393 = vadd.f32 0.0, %v1392
      %1394 = vmatmul.f32.gmra.mxu0 %v1235
      %v1395 = vpop.f32.mrf.mxu0
      %v1396 = vadd.f32 0.0, %v1395
      %1397 = vmatmul.f32.gmra.mxu0 %v1238
      %v1398 = vpop.f32.mrf.mxu0
      %v1399 = vadd.f32 0.0, %v1398
      %1400 = vmatmul.f32.gmra.mxu0 %v1241
      %v1401 = vpop.f32.mrf.mxu0
      %v1402 = vadd.f32 0.0, %v1401
      %1403 = vmatmul.f32.gmra.mxu0 %v1244
      %v1404 = vpop.f32.mrf.mxu0
      %v1405 = vadd.f32 0.0, %v1404
      %1406 = vmatmul.f32.gmra.mxu0 %v1247
      %v1407 = vpop.f32.mrf.mxu0
      %v1408 = vadd.f32 0.0, %v1407
      %1409 = vmatmul.f32.gmra.mxu0 %v1250
      %v1410 = vpop.f32.mrf.mxu0
      %v1411 = vadd.f32 0.0, %v1410
      %1412 = vmatmul.f32.gmra.mxu0 %v1253
      %v1413 = vpop.f32.mrf.mxu0
      %v1414 = vadd.f32 0.0, %v1413
      %1415 = vmatmul.f32.gmra.mxu0 %v1256
      %v1416 = vpop.f32.mrf.mxu0
      %v1417 = vadd.f32 0.0, %v1416
      %1418 = vmatmul.f32.gmra.mxu0 %v1259
      %v1419 = vpop.f32.mrf.mxu0
      %v1420 = vadd.f32 0.0, %v1419
      %1421 = vmatmul.f32.gmra.mxu0 %v1262
      %v1422 = vpop.f32.mrf.mxu0
      %v1423 = vadd.f32 0.0, %v1422
      %1424 = vmatmul.f32.gmra.mxu0 %v1265
      %v1425 = vpop.f32.mrf.mxu0
      %v1426 = vadd.f32 0.0, %v1425
      %1427 = vmatmul.f32.gmra.mxu0 %v1268
      %v1428 = vpop.f32.mrf.mxu0
      %v1429 = vadd.f32 0.0, %v1428
      %1430 = vmatmul.f32.gmra.mxu0 %v1271
      %v1431 = vpop.f32.mrf.mxu0
      %v1432 = vadd.f32 0.0, %v1431
      %1433 = vmatmul.f32.gmra.mxu0 %v1274
      %v1434 = vpop.f32.mrf.mxu0
      %v1435 = vadd.f32 0.0, %v1434
      %1436 = vmatmul.f32.gmra.mxu0 %v1277
      %v1437 = vpop.f32.mrf.mxu0
      %v1438 = vadd.f32 0.0, %v1437
      %1439 = vmatmul.f32.gmra.mxu0 %v1280
      %v1440 = vpop.f32.mrf.mxu0
      %v1441 = vadd.f32 0.0, %v1440
      %1442 = vmatmul.f32.gmra.mxu0 %v1283
      %v1443 = vpop.f32.mrf.mxu0
      %v1444 = vadd.f32 0.0, %v1443
      %1445 = vmatmul.f32.gmra.mxu0 %v1286
      %v1446 = vpop.f32.mrf.mxu0
      %v1447 = vadd.f32 0.0, %v1446
      %1448 = vmatmul.f32.gmra.mxu0 %v1289
      %v1449 = vpop.f32.mrf.mxu0
      %v1450 = vadd.f32 0.0, %v1449
      %1451 = vmatmul.f32.gmra.mxu0 %v1292
      %v1452 = vpop.f32.mrf.mxu0
      %v1453 = vadd.f32 0.0, %v1452
      %1454 = vmatmul.f32.gmra.mxu0 %v1295
      %v1455 = vpop.f32.mrf.mxu0
      %v1456 = vadd.f32 0.0, %v1455
      %1457 = vmatmul.f32.gmra.mxu0 %v1298
      %v1458 = vpop.f32.mrf.mxu0
      %v1459 = vadd.f32 0.0, %v1458
      %1460 = vmatmul.f32.gmra.mxu0 %v1301
      %v1461 = vpop.f32.mrf.mxu0
      %v1462 = vadd.f32 0.0, %v1461
      %1463 = vmatmul.f32.gmra.mxu0 %v1304
      %v1464 = vpop.f32.mrf.mxu0
      %v1465 = vadd.f32 0.0, %v1464
      %1466 = vmatmul.f32.gmra.mxu0 %v1307
      %v1467 = vpop.f32.mrf.mxu0
      %v1468 = vadd.f32 0.0, %v1467
      %1469 = vmatmul.f32.gmra.mxu0 %v1310
      %v1470 = vpop.f32.mrf.mxu0
      %v1471 = vadd.f32 0.0, %v1470
      %1472 = vmatmul.f32.gmra.mxu0 %v1313
      %v1473 = vpop.f32.mrf.mxu0
      %v1474 = vadd.f32 0.0, %v1473
      %1475 = vmatmul.f32.gmra.mxu0 %v1316
      %v1476 = vpop.f32.mrf.mxu0
      %v1477 = vadd.f32 0.0, %v1476
      %1478 = vmatmul.f32.gmra.mxu0 %v1319
      %v1479 = vpop.f32.mrf.mxu0
      %v1480 = vadd.f32 0.0, %v1479
      %1481 = vmatmul.f32.gmra.mxu0 %v1322
      %v1482 = vpop.f32.mrf.mxu0
      %v1483 = vadd.f32 0.0, %v1482
      %1484 = vmatmul.f32.gmra.mxu0 %v1325
      %v1485 = vpop.f32.mrf.mxu0
      %v1486 = vadd.f32 0.0, %v1485
      %1487 = vmatmul.f32.gmra.mxu0 %v1328
      %v1488 = vpop.f32.mrf.mxu0
      %v1489 = vadd.f32 0.0, %v1488
      %1490 = vmatmul.f32.gmra.mxu0 %v1331
      %v1491 = vpop.f32.mrf.mxu0
      %v1492 = vadd.f32 0.0, %v1491
      %1493 = vmatmul.f32.gmra.mxu0 %v1334
      %v1494 = vpop.f32.mrf.mxu0
      %v1495 = vadd.f32 0.0, %v1494
      %1496 = vmatmul.f32.gmra.mxu0 %v1337
      %v1497 = vpop.f32.mrf.mxu0
      %v1498 = vadd.f32 0.0, %v1497
      %1499 = vmatmul.f32.gmra.mxu0 %v1340
      %v1500 = vpop.f32.mrf.mxu0
      %v1501 = vadd.f32 0.0, %v1500
      %1502 = vmatmul.f32.gmra.mxu0 %v1343
      %v1503 = vpop.f32.mrf.mxu0
      %v1504 = vadd.f32 0.0, %v1503
      %1505 = vmatmul.f32.gmra.mxu0 %v1346
      %v1506 = vpop.f32.mrf.mxu0
      %v1507 = vadd.f32 0.0, %v1506
      %1508 = vmatmul.f32.gmra.mxu0 %v1349
      %v1509 = vpop.f32.mrf.mxu0
      %v1510 = vadd.f32 0.0, %v1509
      %1511 = vmatmul.f32.gmra.mxu0 %v1352
      %v1512 = vpop.f32.mrf.mxu0
      %v1513 = vadd.f32 0.0, %v1512
      %1514 = vmatmul.f32.gmra.mxu0 %v1355
      %v1515 = vpop.f32.mrf.mxu0
      %v1516 = vadd.f32 0.0, %v1515
      %1517 = vmatmul.f32.gmra.mxu0 %v1358
      %v1518 = vpop.f32.mrf.mxu0
      %v1519 = vadd.f32 0.0, %v1518
      %1520 = vmatmul.f32.gmra.mxu0 %v1361
      %v1521 = vpop.f32.mrf.mxu0
      %v1522 = vadd.f32 0.0, %v1521
      %1523 = vmatmul.f32.gmra.mxu0 %v1364
      %v1524 = vpop.f32.mrf.mxu0
      %v1525 = vadd.f32 0.0, %v1524
      %1526 = vmatmul.f32.gmra.mxu0 %v1367
      %v1527 = vpop.f32.mrf.mxu0
      %v1528 = vadd.f32 0.0, %v1527
      %1529 = vdwg.mxu0
      %v1531 = vsel %vm1224, %v1166, 0
      %v1534 = vsel %vm1224, %v1167, 0
      %v1537 = vsel %vm1224, %v1168, 0
      %1539 = vmatpush.msra.mxu0 0.0
      %1540 = vmatpush.msra.mxu0 0.0
      %1541 = vmatpush.msra.mxu0 0.0
      %1542 = vmatpush.msra.mxu0 0.0
      %1543 = vmatpush.msra.mxu0 0.0
      %1544 = vmatpush.msra.mxu0 0.0
      %1545 = vmatpush.msra.mxu0 0.0
      %1546 = vmatpush.msra.mxu0 0.0
      %1547 = vmatpush.msra.mxu0 0.0
      %1548 = vmatpush.msra.mxu0 0.0
      %1549 = vmatpush.msra.mxu0 0.0
      %1550 = vmatpush.msra.mxu0 0.0
      %1551 = vmatpush.msra.mxu0 0.0
      %1552 = vmatpush.msra.mxu0 %v1216
      %1553 = vmatpush.msra.mxu0 %v1215
      %1554 = vmatpush.msra.mxu0 %v1214
      %1555 = vmatmul.f32.gmra.mxu0 %v1531
      %v1556 = vpop.f32.mrf.mxu0
      %v1557 = vadd.f32 %v1387, %v1556
      %1558 = vmatmul.f32.gmra.mxu0 %v1534
      %v1559 = vpop.f32.mrf.mxu0
      %v1560 = vadd.f32 %v1390, %v1559
      %1561 = vmatmul.f32.gmra.mxu0 %v1537
      %v1562 = vpop.f32.mrf.mxu0
      %v1563 = vadd.f32 %v1393, %v1562
      %1564 = vmatmul.f32.gmra.mxu0 %v1226
      %v1565 = vpop.f32.mrf.mxu0
      %v1566 = vadd.f32 %v1396, %v1565
      %1567 = vmatmul.f32.gmra.mxu0 %v1229
      %v1568 = vpop.f32.mrf.mxu0
      %v1569 = vadd.f32 %v1399, %v1568
      %1570 = vmatmul.f32.gmra.mxu0 %v1232
      %v1571 = vpop.f32.mrf.mxu0
      %v1572 = vadd.f32 %v1402, %v1571
      %1573 = vmatmul.f32.gmra.mxu0 %v1235
      %v1574 = vpop.f32.mrf.mxu0
      %v1575 = vadd.f32 %v1405, %v1574
      %1576 = vmatmul.f32.gmra.mxu0 %v1238
      %v1577 = vpop.f32.mrf.mxu0
      %v1578 = vadd.f32 %v1408, %v1577
      %1579 = vmatmul.f32.gmra.mxu0 %v1241
      %v1580 = vpop.f32.mrf.mxu0
      %v1581 = vadd.f32 %v1411, %v1580
      %1582 = vmatmul.f32.gmra.mxu0 %v1244
      %v1583 = vpop.f32.mrf.mxu0
      %v1584 = vadd.f32 %v1414, %v1583
      %1585 = vmatmul.f32.gmra.mxu0 %v1247
      %v1586 = vpop.f32.mrf.mxu0
      %v1587 = vadd.f32 %v1417, %v1586
      %1588 = vmatmul.f32.gmra.mxu0 %v1250
      %v1589 = vpop.f32.mrf.mxu0
      %v1590 = vadd.f32 %v1420, %v1589
      %1591 = vmatmul.f32.gmra.mxu0 %v1253
      %v1592 = vpop.f32.mrf.mxu0
      %v1593 = vadd.f32 %v1423, %v1592
      %1594 = vmatmul.f32.gmra.mxu0 %v1256
      %v1595 = vpop.f32.mrf.mxu0
      %v1596 = vadd.f32 %v1426, %v1595
      %1597 = vmatmul.f32.gmra.mxu0 %v1259
      %v1598 = vpop.f32.mrf.mxu0
      %v1599 = vadd.f32 %v1429, %v1598
      %1600 = vmatmul.f32.gmra.mxu0 %v1262
      %v1601 = vpop.f32.mrf.mxu0
      %v1602 = vadd.f32 %v1432, %v1601
      %1603 = vmatmul.f32.gmra.mxu0 %v1265
      %v1604 = vpop.f32.mrf.mxu0
      %v1605 = vadd.f32 %v1435, %v1604
      %1606 = vmatmul.f32.gmra.mxu0 %v1268
      %v1607 = vpop.f32.mrf.mxu0
      %v1608 = vadd.f32 %v1438, %v1607
      %1609 = vmatmul.f32.gmra.mxu0 %v1271
      %v1610 = vpop.f32.mrf.mxu0
      %v1611 = vadd.f32 %v1441, %v1610
      %1612 = vmatmul.f32.gmra.mxu0 %v1274
      %v1613 = vpop.f32.mrf.mxu0
      %v1614 = vadd.f32 %v1444, %v1613
      %1615 = vmatmul.f32.gmra.mxu0 %v1277
      %v1616 = vpop.f32.mrf.mxu0
      %v1617 = vadd.f32 %v1447, %v1616
      %1618 = vmatmul.f32.gmra.mxu0 %v1280
      %v1619 = vpop.f32.mrf.mxu0
      %v1620 = vadd.f32 %v1450, %v1619
      %1621 = vmatmul.f32.gmra.mxu0 %v1283
      %v1622 = vpop.f32.mrf.mxu0
      %v1623 = vadd.f32 %v1453, %v1622
      %1624 = vmatmul.f32.gmra.mxu0 %v1286
      %v1625 = vpop.f32.mrf.mxu0
      %v1626 = vadd.f32 %v1456, %v1625
      %1627 = vmatmul.f32.gmra.mxu0 %v1289
      %v1628 = vpop.f32.mrf.mxu0
      %v1629 = vadd.f32 %v1459, %v1628
      %1630 = vmatmul.f32.gmra.mxu0 %v1292
      %v1631 = vpop.f32.mrf.mxu0
      %v1632 = vadd.f32 %v1462, %v1631
      %1633 = vmatmul.f32.gmra.mxu0 %v1295
      %v1634 = vpop.f32.mrf.mxu0
      %v1635 = vadd.f32 %v1465, %v1634
      %1636 = vmatmul.f32.gmra.mxu0 %v1298
      %v1637 = vpop.f32.mrf.mxu0
      %v1638 = vadd.f32 %v1468, %v1637
      %1639 = vmatmul.f32.gmra.mxu0 %v1301
      %v1640 = vpop.f32.mrf.mxu0
      %v1641 = vadd.f32 %v1471, %v1640
      %1642 = vmatmul.f32.gmra.mxu0 %v1304
      %v1643 = vpop.f32.mrf.mxu0
      %v1644 = vadd.f32 %v1474, %v1643
      %1645 = vmatmul.f32.gmra.mxu0 %v1307
      %v1646 = vpop.f32.mrf.mxu0
      %v1647 = vadd.f32 %v1477, %v1646
      %1648 = vmatmul.f32.gmra.mxu0 %v1310
      %v1649 = vpop.f32.mrf.mxu0
      %v1650 = vadd.f32 %v1480, %v1649
      %1651 = vmatmul.f32.gmra.mxu0 %v1313
      %v1652 = vpop.f32.mrf.mxu0
      %v1653 = vadd.f32 %v1483, %v1652
      %1654 = vmatmul.f32.gmra.mxu0 %v1316
      %v1655 = vpop.f32.mrf.mxu0
      %v1656 = vadd.f32 %v1486, %v1655
      %1657 = vmatmul.f32.gmra.mxu0 %v1319
      %v1658 = vpop.f32.mrf.mxu0
      %v1659 = vadd.f32 %v1489, %v1658
      %1660 = vmatmul.f32.gmra.mxu0 %v1322
      %v1661 = vpop.f32.mrf.mxu0
      %v1662 = vadd.f32 %v1492, %v1661
      %1663 = vmatmul.f32.gmra.mxu0 %v1325
      %v1664 = vpop.f32.mrf.mxu0
      %v1665 = vadd.f32 %v1495, %v1664
      %1666 = vmatmul.f32.gmra.mxu0 %v1328
      %v1667 = vpop.f32.mrf.mxu0
      %v1668 = vadd.f32 %v1498, %v1667
      %1669 = vmatmul.f32.gmra.mxu0 %v1331
      %v1670 = vpop.f32.mrf.mxu0
      %v1671 = vadd.f32 %v1501, %v1670
      %1672 = vmatmul.f32.gmra.mxu0 %v1334
      %v1673 = vpop.f32.mrf.mxu0
      %v1674 = vadd.f32 %v1504, %v1673
      %1675 = vmatmul.f32.gmra.mxu0 %v1337
      %v1676 = vpop.f32.mrf.mxu0
      %v1677 = vadd.f32 %v1507, %v1676
      %1678 = vmatmul.f32.gmra.mxu0 %v1340
      %v1679 = vpop.f32.mrf.mxu0
      %v1680 = vadd.f32 %v1510, %v1679
      %1681 = vmatmul.f32.gmra.mxu0 %v1343
      %v1682 = vpop.f32.mrf.mxu0
      %v1683 = vadd.f32 %v1513, %v1682
      %1684 = vmatmul.f32.gmra.mxu0 %v1346
      %v1685 = vpop.f32.mrf.mxu0
      %v1686 = vadd.f32 %v1516, %v1685
      %1687 = vmatmul.f32.gmra.mxu0 %v1349
      %v1688 = vpop.f32.mrf.mxu0
      %v1689 = vadd.f32 %v1519, %v1688
      %1690 = vmatmul.f32.gmra.mxu0 %v1352
      %v1691 = vpop.f32.mrf.mxu0
      %v1692 = vadd.f32 %v1522, %v1691
      %1693 = vmatmul.f32.gmra.mxu0 %v1355
      %v1694 = vpop.f32.mrf.mxu0
      %v1695 = vadd.f32 %v1525, %v1694
      %1696 = vmatmul.f32.gmra.mxu0 %v1358
      %v1697 = vpop.f32.mrf.mxu0
      %v1698 = vadd.f32 %v1528, %v1697
      %1699 = vdwg.mxu0
      %v1700 = vld [vmem:[#allocation3 + $0x38] sm:$0xff]
      %v1701 = vld [vmem:[#allocation3 + $0x40] sm:$0xff]
      %v1702 = vld [vmem:[#allocation3 + $0x48] sm:$0xff]
      %v1703 = vld [vmem:[#allocation3 + $0x50] sm:$0xff]
      %v1704 = vld [vmem:[#allocation3 + $0x58] sm:$0xff]
      %v1705 = vld [vmem:[#allocation3 + $0x60] sm:$0xff]
      %v1706 = vld [vmem:[#allocation3 + $0x68] sm:$0xff]
      %v1707 = vld [vmem:[#allocation3 + $0x70] sm:$0xff]
      %v1708 = vld [vmem:[#allocation3 + $0x78] sm:$0xff]
      %v1709 = vld [vmem:[#allocation3 + $0x80] sm:$0xff]
      %v1710 = vld [vmem:[#allocation3 + $0x88] sm:$0xff]
      %v1711 = vld [vmem:[#allocation3 + $0x90] sm:$0xff]
      %v1712 = vld [vmem:[#allocation3 + $0x98] sm:$0xff]
      %v1713 = vld [vmem:[#allocation3 + $0xa0] sm:$0xff]
      %v1714 = vld [vmem:[#allocation3 + $0xa8] sm:$0xff]
      %v1715 = vld [vmem:[#allocation3 + $0xb0] sm:$0xff]
      %v1716 = vld [vmem:[#allocation3 + $0xb8] sm:$0xff]
      %v1717 = vld [vmem:[#allocation3 + $0xc0] sm:$0xff]
      %v1718 = vld [vmem:[#allocation3 + $0xc8] sm:$0xff]
      %v1719 = vld [vmem:[#allocation3 + $0xd0] sm:$0xff]
      %v1720 = vld [vmem:[#allocation3 + $0xd8] sm:$0xff]
      %v1721 = vld [vmem:[#allocation3 + $0xe0] sm:$0xff]
      %v1722 = vld [vmem:[#allocation3 + $0xe8] sm:$0xff]
      %v1723 = vld [vmem:[#allocation3 + $0xf0] sm:$0xff]
      %v1724 = vld [vmem:[#allocation3 + $0xf8] sm:$0xff]
      %v1725 = vld [vmem:[#allocation3 + $0x100] sm:$0xff]
      %v1726 = vld [vmem:[#allocation3 + $0x108] sm:$0xff]
      %v1727 = vld [vmem:[#allocation3 + $0x110] sm:$0xff]
      %v1728 = vld [vmem:[#allocation3 + $0x118] sm:$0xff]
      %v1729 = vld [vmem:[#allocation3 + $0x120] sm:$0xff]
      %v1730 = vld [vmem:[#allocation3 + $0x128] sm:$0xff]
      %v1731 = vld [vmem:[#allocation3 + $0x130] sm:$0xff]
      %v1732 = vld [vmem:[#allocation3 + $0x138] sm:$0xff]
      %v1733 = vld [vmem:[#allocation3 + $0x140] sm:$0xff]
      %v1734 = vld [vmem:[#allocation3 + $0x148] sm:$0xff]
      %v1735 = vld [vmem:[#allocation3 + $0x150] sm:$0xff]
      %v1736 = vld [vmem:[#allocation3 + $0x158] sm:$0xff]
      %v1737 = vld [vmem:[#allocation3 + $0x160] sm:$0xff]
      %v1738 = vld [vmem:[#allocation3 + $0x168] sm:$0xff]
      %v1739 = vld [vmem:[#allocation3 + $0x170] sm:$0xff]
      %v1740 = vld [vmem:[#allocation3 + $0x178] sm:$0xff]
      %v1741 = vld [vmem:[#allocation3 + $0x180] sm:$0xff]
      %v1742 = vld [vmem:[#allocation3 + $0x188] sm:$0xff]
      %v1743 = vld [vmem:[#allocation3 + $0x190] sm:$0xff]
      %v1744 = vld [vmem:[#allocation3 + $0x198] sm:$0xff]
      %v1745 = vld [vmem:[#allocation3 + $0x1a0] sm:$0xff]
      %v1746 = vld [vmem:[#allocation3 + $0x1a8] sm:$0xff]
      %v1747 = vld [vmem:[#allocation3 + $0x1b0] sm:$0xff]
      %s1748 = scalar_lea.vmem %s2, 48
      %v1749 = vld [vmem:[%s1748] sm:$0xff]
      %v1750 = vld [vmem:[%s1748 + $0x8] sm:$0xff]
      %v1751 = vld [vmem:[%s1748 + $0x10] sm:$0xff]
      %v1753 = vsel %vm1224, %v1700, 0
      %v1756 = vsel %vm1224, %v1701, 0
      %v1759 = vsel %vm1224, %v1702, 0
      %v1762 = vsel %vm1224, %v1703, 0
      %v1765 = vsel %vm1224, %v1704, 0
      %v1768 = vsel %vm1224, %v1705, 0
      %v1771 = vsel %vm1224, %v1706, 0
      %v1774 = vsel %vm1224, %v1707, 0
      %v1777 = vsel %vm1224, %v1708, 0
      %v1780 = vsel %vm1224, %v1709, 0
      %v1783 = vsel %vm1224, %v1710, 0
      %v1786 = vsel %vm1224, %v1711, 0
      %v1789 = vsel %vm1224, %v1712, 0
      %v1792 = vsel %vm1224, %v1713, 0
      %v1795 = vsel %vm1224, %v1714, 0
      %v1798 = vsel %vm1224, %v1715, 0
      %v1801 = vsel %vm1224, %v1716, 0
      %v1804 = vsel %vm1224, %v1717, 0
      %v1807 = vsel %vm1224, %v1718, 0
      %v1810 = vsel %vm1224, %v1719, 0
      %v1813 = vsel %vm1224, %v1720, 0
      %v1816 = vsel %vm1224, %v1721, 0
      %v1819 = vsel %vm1224, %v1722, 0
      %v1822 = vsel %vm1224, %v1723, 0
      %v1825 = vsel %vm1224, %v1724, 0
      %v1828 = vsel %vm1224, %v1725, 0
      %v1831 = vsel %vm1224, %v1726, 0
      %v1834 = vsel %vm1224, %v1727, 0
      %v1837 = vsel %vm1224, %v1728, 0
      %v1840 = vsel %vm1224, %v1729, 0
      %v1843 = vsel %vm1224, %v1730, 0
      %v1846 = vsel %vm1224, %v1731, 0
      %v1849 = vsel %vm1224, %v1732, 0
      %v1852 = vsel %vm1224, %v1733, 0
      %v1855 = vsel %vm1224, %v1734, 0
      %v1858 = vsel %vm1224, %v1735, 0
      %v1861 = vsel %vm1224, %v1736, 0
      %v1864 = vsel %vm1224, %v1737, 0
      %v1867 = vsel %vm1224, %v1738, 0
      %v1870 = vsel %vm1224, %v1739, 0
      %v1873 = vsel %vm1224, %v1740, 0
      %v1876 = vsel %vm1224, %v1741, 0
      %v1879 = vsel %vm1224, %v1742, 0
      %v1882 = vsel %vm1224, %v1743, 0
      %v1885 = vsel %vm1224, %v1744, 0
      %v1888 = vsel %vm1224, %v1745, 0
      %v1891 = vsel %vm1224, %v1746, 0
      %v1894 = vsel %vm1224, %v1747, 0
      %1896 = vmatpush.msra.mxu0 0.0
      %1897 = vmatpush.msra.mxu0 0.0
      %1898 = vmatpush.msra.mxu0 0.0
      %1899 = vmatpush.msra.mxu0 0.0
      %1900 = vmatpush.msra.mxu0 0.0
      %1901 = vmatpush.msra.mxu0 0.0
      %1902 = vmatpush.msra.mxu0 0.0
      %1903 = vmatpush.msra.mxu0 0.0
      %1904 = vmatpush.msra.mxu0 0.0
      %1905 = vmatpush.msra.mxu0 0.0
      %1906 = vmatpush.msra.mxu0 0.0
      %1907 = vmatpush.msra.mxu0 0.0
      %1908 = vmatpush.msra.mxu0 0.0
      %1909 = vmatpush.msra.mxu0 %v1751
      %1910 = vmatpush.msra.mxu0 %v1750
      %1911 = vmatpush.msra.mxu0 %v1749
      %1912 = vmatmul.f32.gmra.mxu0 %v1753
      %v1913 = vpop.f32.mrf.mxu0
      %v1914 = vadd.f32 0.0, %v1913
      %1915 = vmatmul.f32.gmra.mxu0 %v1756
      %v1916 = vpop.f32.mrf.mxu0
      %v1917 = vadd.f32 0.0, %v1916
      %1918 = vmatmul.f32.gmra.mxu0 %v1759
      %v1919 = vpop.f32.mrf.mxu0
      %v1920 = vadd.f32 0.0, %v1919
      %1921 = vmatmul.f32.gmra.mxu0 %v1762
      %v1922 = vpop.f32.mrf.mxu0
      %v1923 = vadd.f32 0.0, %v1922
      %1924 = vmatmul.f32.gmra.mxu0 %v1765
      %v1925 = vpop.f32.mrf.mxu0
      %v1926 = vadd.f32 0.0, %v1925
      %1927 = vmatmul.f32.gmra.mxu0 %v1768
      %v1928 = vpop.f32.mrf.mxu0
      %v1929 = vadd.f32 0.0, %v1928
      %1930 = vmatmul.f32.gmra.mxu0 %v1771
      %v1931 = vpop.f32.mrf.mxu0
      %v1932 = vadd.f32 0.0, %v1931
      %1933 = vmatmul.f32.gmra.mxu0 %v1774
      %v1934 = vpop.f32.mrf.mxu0
      %v1935 = vadd.f32 0.0, %v1934
      %1936 = vmatmul.f32.gmra.mxu0 %v1777
      %v1937 = vpop.f32.mrf.mxu0
      %v1938 = vadd.f32 0.0, %v1937
      %1939 = vmatmul.f32.gmra.mxu0 %v1780
      %v1940 = vpop.f32.mrf.mxu0
      %v1941 = vadd.f32 0.0, %v1940
      %1942 = vmatmul.f32.gmra.mxu0 %v1783
      %v1943 = vpop.f32.mrf.mxu0
      %v1944 = vadd.f32 0.0, %v1943
      %1945 = vmatmul.f32.gmra.mxu0 %v1786
      %v1946 = vpop.f32.mrf.mxu0
      %v1947 = vadd.f32 0.0, %v1946
      %1948 = vmatmul.f32.gmra.mxu0 %v1789
      %v1949 = vpop.f32.mrf.mxu0
      %v1950 = vadd.f32 0.0, %v1949
      %1951 = vmatmul.f32.gmra.mxu0 %v1792
      %v1952 = vpop.f32.mrf.mxu0
      %v1953 = vadd.f32 0.0, %v1952
      %1954 = vmatmul.f32.gmra.mxu0 %v1795
      %v1955 = vpop.f32.mrf.mxu0
      %v1956 = vadd.f32 0.0, %v1955
      %1957 = vmatmul.f32.gmra.mxu0 %v1798
      %v1958 = vpop.f32.mrf.mxu0
      %v1959 = vadd.f32 0.0, %v1958
      %1960 = vmatmul.f32.gmra.mxu0 %v1801
      %v1961 = vpop.f32.mrf.mxu0
      %v1962 = vadd.f32 0.0, %v1961
      %1963 = vmatmul.f32.gmra.mxu0 %v1804
      %v1964 = vpop.f32.mrf.mxu0
      %v1965 = vadd.f32 0.0, %v1964
      %1966 = vmatmul.f32.gmra.mxu0 %v1807
      %v1967 = vpop.f32.mrf.mxu0
      %v1968 = vadd.f32 0.0, %v1967
      %1969 = vmatmul.f32.gmra.mxu0 %v1810
      %v1970 = vpop.f32.mrf.mxu0
      %v1971 = vadd.f32 0.0, %v1970
      %1972 = vmatmul.f32.gmra.mxu0 %v1813
      %v1973 = vpop.f32.mrf.mxu0
      %v1974 = vadd.f32 0.0, %v1973
      %1975 = vmatmul.f32.gmra.mxu0 %v1816
      %v1976 = vpop.f32.mrf.mxu0
      %v1977 = vadd.f32 0.0, %v1976
      %1978 = vmatmul.f32.gmra.mxu0 %v1819
      %v1979 = vpop.f32.mrf.mxu0
      %v1980 = vadd.f32 0.0, %v1979
      %1981 = vmatmul.f32.gmra.mxu0 %v1822
      %v1982 = vpop.f32.mrf.mxu0
      %v1983 = vadd.f32 0.0, %v1982
      %1984 = vmatmul.f32.gmra.mxu0 %v1825
      %v1985 = vpop.f32.mrf.mxu0
      %v1986 = vadd.f32 0.0, %v1985
      %1987 = vmatmul.f32.gmra.mxu0 %v1828
      %v1988 = vpop.f32.mrf.mxu0
      %v1989 = vadd.f32 0.0, %v1988
      %1990 = vmatmul.f32.gmra.mxu0 %v1831
      %v1991 = vpop.f32.mrf.mxu0
      %v1992 = vadd.f32 0.0, %v1991
      %1993 = vmatmul.f32.gmra.mxu0 %v1834
      %v1994 = vpop.f32.mrf.mxu0
      %v1995 = vadd.f32 0.0, %v1994
      %1996 = vmatmul.f32.gmra.mxu0 %v1837
      %v1997 = vpop.f32.mrf.mxu0
      %v1998 = vadd.f32 0.0, %v1997
      %1999 = vmatmul.f32.gmra.mxu0 %v1840
      %v2000 = vpop.f32.mrf.mxu0
      %v2001 = vadd.f32 0.0, %v2000
      %2002 = vmatmul.f32.gmra.mxu0 %v1843
      %v2003 = vpop.f32.mrf.mxu0
      %v2004 = vadd.f32 0.0, %v2003
      %2005 = vmatmul.f32.gmra.mxu0 %v1846
      %v2006 = vpop.f32.mrf.mxu0
      %v2007 = vadd.f32 0.0, %v2006
      %2008 = vmatmul.f32.gmra.mxu0 %v1849
      %v2009 = vpop.f32.mrf.mxu0
      %v2010 = vadd.f32 0.0, %v2009
      %2011 = vmatmul.f32.gmra.mxu0 %v1852
      %v2012 = vpop.f32.mrf.mxu0
      %v2013 = vadd.f32 0.0, %v2012
      %2014 = vmatmul.f32.gmra.mxu0 %v1855
      %v2015 = vpop.f32.mrf.mxu0
      %v2016 = vadd.f32 0.0, %v2015
      %2017 = vmatmul.f32.gmra.mxu0 %v1858
      %v2018 = vpop.f32.mrf.mxu0
      %v2019 = vadd.f32 0.0, %v2018
      %2020 = vmatmul.f32.gmra.mxu0 %v1861
      %v2021 = vpop.f32.mrf.mxu0
      %v2022 = vadd.f32 0.0, %v2021
      %2023 = vmatmul.f32.gmra.mxu0 %v1864
      %v2024 = vpop.f32.mrf.mxu0
      %v2025 = vadd.f32 0.0, %v2024
      %2026 = vmatmul.f32.gmra.mxu0 %v1867
      %v2027 = vpop.f32.mrf.mxu0
      %v2028 = vadd.f32 0.0, %v2027
      %2029 = vmatmul.f32.gmra.mxu0 %v1870
      %v2030 = vpop.f32.mrf.mxu0
      %v2031 = vadd.f32 0.0, %v2030
      %2032 = vmatmul.f32.gmra.mxu0 %v1873
      %v2033 = vpop.f32.mrf.mxu0
      %v2034 = vadd.f32 0.0, %v2033
      %2035 = vmatmul.f32.gmra.mxu0 %v1876
      %v2036 = vpop.f32.mrf.mxu0
      %v2037 = vadd.f32 0.0, %v2036
      %2038 = vmatmul.f32.gmra.mxu0 %v1879
      %v2039 = vpop.f32.mrf.mxu0
      %v2040 = vadd.f32 0.0, %v2039
      %2041 = vmatmul.f32.gmra.mxu0 %v1882
      %v2042 = vpop.f32.mrf.mxu0
      %v2043 = vadd.f32 0.0, %v2042
      %2044 = vmatmul.f32.gmra.mxu0 %v1885
      %v2045 = vpop.f32.mrf.mxu0
      %v2046 = vadd.f32 0.0, %v2045
      %2047 = vmatmul.f32.gmra.mxu0 %v1888
      %v2048 = vpop.f32.mrf.mxu0
      %v2049 = vadd.f32 0.0, %v2048
      %2050 = vmatmul.f32.gmra.mxu0 %v1891
      %v2051 = vpop.f32.mrf.mxu0
      %v2052 = vadd.f32 0.0, %v2051
      %2053 = vmatmul.f32.gmra.mxu0 %v1894
      %v2054 = vpop.f32.mrf.mxu0
      %v2055 = vadd.f32 0.0, %v2054
      %2056 = vdwg.mxu0
      %v2057 = vadd.f32 %v1557, %v1914
      %v2058 = vadd.f32 %v1560, %v1917
      %v2059 = vadd.f32 %v1563, %v1920
      %v2060 = vadd.f32 %v1566, %v1923
      %v2061 = vadd.f32 %v1569, %v1926
      %v2062 = vadd.f32 %v1572, %v1929
      %v2063 = vadd.f32 %v1575, %v1932
      %v2064 = vadd.f32 %v1578, %v1935
      %v2065 = vadd.f32 %v1581, %v1938
      %v2066 = vadd.f32 %v1584, %v1941
      %v2067 = vadd.f32 %v1587, %v1944
      %v2068 = vadd.f32 %v1590, %v1947
      %v2069 = vadd.f32 %v1593, %v1950
      %v2070 = vadd.f32 %v1596, %v1953
      %v2071 = vadd.f32 %v1599, %v1956
      %v2072 = vadd.f32 %v1602, %v1959
      %v2073 = vadd.f32 %v1605, %v1962
      %v2074 = vadd.f32 %v1608, %v1965
      %v2075 = vadd.f32 %v1611, %v1968
      %v2076 = vadd.f32 %v1614, %v1971
      %v2077 = vadd.f32 %v1617, %v1974
      %v2078 = vadd.f32 %v1620, %v1977
      %v2079 = vadd.f32 %v1623, %v1980
      %v2080 = vadd.f32 %v1626, %v1983
      %v2081 = vadd.f32 %v1629, %v1986
      %v2082 = vadd.f32 %v1632, %v1989
      %v2083 = vadd.f32 %v1635, %v1992
      %v2084 = vadd.f32 %v1638, %v1995
      %v2085 = vadd.f32 %v1641, %v1998
      %v2086 = vadd.f32 %v1644, %v2001
      %v2087 = vadd.f32 %v1647, %v2004
      %v2088 = vadd.f32 %v1650, %v2007
      %v2089 = vadd.f32 %v1653, %v2010
      %v2090 = vadd.f32 %v1656, %v2013
      %v2091 = vadd.f32 %v1659, %v2016
      %v2092 = vadd.f32 %v1662, %v2019
      %v2093 = vadd.f32 %v1665, %v2022
      %v2094 = vadd.f32 %v1668, %v2025
      %v2095 = vadd.f32 %v1671, %v2028
      %v2096 = vadd.f32 %v1674, %v2031
      %v2097 = vadd.f32 %v1677, %v2034
      %v2098 = vadd.f32 %v1680, %v2037
      %v2099 = vadd.f32 %v1683, %v2040
      %v2100 = vadd.f32 %v1686, %v2043
      %v2101 = vadd.f32 %v1689, %v2046
      %v2102 = vadd.f32 %v1692, %v2049
      %v2103 = vadd.f32 %v1695, %v2052
      %v2104 = vadd.f32 %v1698, %v2055
      %v2105 = vld [vmem:[%s3] sm:$0x1]
      %v2107 = vperm.slane %v2105, 0
      %v2109 = vadd.f32 %v2057, %v2107
      %v2110 = vadd.f32 %v2058, %v2107
      %v2111 = vadd.f32 %v2059, %v2107
      %v2112 = vadd.f32 %v2060, %v2107
      %v2113 = vadd.f32 %v2061, %v2107
      %v2114 = vadd.f32 %v2062, %v2107
      %v2115 = vadd.f32 %v2063, %v2107
      %v2116 = vadd.f32 %v2064, %v2107
      %v2117 = vadd.f32 %v2065, %v2107
      %v2118 = vadd.f32 %v2066, %v2107
      %v2119 = vadd.f32 %v2067, %v2107
      %v2120 = vadd.f32 %v2068, %v2107
      %v2121 = vadd.f32 %v2069, %v2107
      %v2122 = vadd.f32 %v2070, %v2107
      %v2123 = vadd.f32 %v2071, %v2107
      %v2124 = vadd.f32 %v2072, %v2107
      %v2125 = vadd.f32 %v2073, %v2107
      %v2126 = vadd.f32 %v2074, %v2107
      %v2127 = vadd.f32 %v2075, %v2107
      %v2128 = vadd.f32 %v2076, %v2107
      %v2129 = vadd.f32 %v2077, %v2107
      %v2130 = vadd.f32 %v2078, %v2107
      %v2131 = vadd.f32 %v2079, %v2107
      %v2132 = vadd.f32 %v2080, %v2107
      %v2133 = vadd.f32 %v2081, %v2107
      %v2134 = vadd.f32 %v2082, %v2107
      %v2135 = vadd.f32 %v2083, %v2107
      %v2136 = vadd.f32 %v2084, %v2107
      %v2137 = vadd.f32 %v2085, %v2107
      %v2138 = vadd.f32 %v2086, %v2107
      %v2139 = vadd.f32 %v2087, %v2107
      %v2140 = vadd.f32 %v2088, %v2107
      %v2141 = vadd.f32 %v2089, %v2107
      %v2142 = vadd.f32 %v2090, %v2107
      %v2143 = vadd.f32 %v2091, %v2107
      %v2144 = vadd.f32 %v2092, %v2107
      %v2145 = vadd.f32 %v2093, %v2107
      %v2146 = vadd.f32 %v2094, %v2107
      %v2147 = vadd.f32 %v2095, %v2107
      %v2148 = vadd.f32 %v2096, %v2107
      %v2149 = vadd.f32 %v2097, %v2107
      %v2150 = vadd.f32 %v2098, %v2107
      %v2151 = vadd.f32 %v2099, %v2107
      %v2152 = vadd.f32 %v2100, %v2107
      %v2153 = vadd.f32 %v2101, %v2107
      %v2154 = vadd.f32 %v2102, %v2107
      %v2155 = vadd.f32 %v2103, %v2107
      %v2156 = vadd.f32 %v2104, %v2107
      %v2157 = vmax.f32 %v2109, 0.0
      %v2158 = vmax.f32 %v2110, 0.0
      %v2159 = vmax.f32 %v2111, 0.0
      %v2160 = vmax.f32 %v2112, 0.0
      %v2161 = vmax.f32 %v2113, 0.0
      %v2162 = vmax.f32 %v2114, 0.0
      %v2163 = vmax.f32 %v2115, 0.0
      %v2164 = vmax.f32 %v2116, 0.0
      %v2165 = vmax.f32 %v2117, 0.0
      %v2166 = vmax.f32 %v2118, 0.0
      %v2167 = vmax.f32 %v2119, 0.0
      %v2168 = vmax.f32 %v2120, 0.0
      %v2169 = vmax.f32 %v2121, 0.0
      %v2170 = vmax.f32 %v2122, 0.0
      %v2171 = vmax.f32 %v2123, 0.0
      %v2172 = vmax.f32 %v2124, 0.0
      %v2173 = vmax.f32 %v2125, 0.0
      %v2174 = vmax.f32 %v2126, 0.0
      %v2175 = vmax.f32 %v2127, 0.0
      %v2176 = vmax.f32 %v2128, 0.0
      %v2177 = vmax.f32 %v2129, 0.0
      %v2178 = vmax.f32 %v2130, 0.0
      %v2179 = vmax.f32 %v2131, 0.0
      %v2180 = vmax.f32 %v2132, 0.0
      %v2181 = vmax.f32 %v2133, 0.0
      %v2182 = vmax.f32 %v2134, 0.0
      %v2183 = vmax.f32 %v2135, 0.0
      %v2184 = vmax.f32 %v2136, 0.0
      %v2185 = vmax.f32 %v2137, 0.0
      %v2186 = vmax.f32 %v2138, 0.0
      %v2187 = vmax.f32 %v2139, 0.0
      %v2188 = vmax.f32 %v2140, 0.0
      %v2189 = vmax.f32 %v2141, 0.0
      %v2190 = vmax.f32 %v2142, 0.0
      %v2191 = vmax.f32 %v2143, 0.0
      %v2192 = vmax.f32 %v2144, 0.0
      %v2193 = vmax.f32 %v2145, 0.0
      %v2194 = vmax.f32 %v2146, 0.0
      %v2195 = vmax.f32 %v2147, 0.0
      %v2196 = vmax.f32 %v2148, 0.0
      %v2197 = vmax.f32 %v2149, 0.0
      %v2198 = vmax.f32 %v2150, 0.0
      %v2199 = vmax.f32 %v2151, 0.0
      %v2200 = vmax.f32 %v2152, 0.0
      %v2201 = vmax.f32 %v2153, 0.0
      %v2202 = vmax.f32 %v2154, 0.0
      %v2203 = vmax.f32 %v2155, 0.0
      %v2204 = vmax.f32 %v2156, 0.0
      %v2205 = vld [vmem:[%s1] sm:$0xff]
      %v2206 = vld [vmem:[%s1 + $0x8] sm:$0xff]
      %v2207 = vld [vmem:[%s1 + $0x10] sm:$0xff]
      %v2208 = vld [vmem:[%s1 + $0x18] sm:$0xff]
      %v2209 = vld [vmem:[%s1 + $0x20] sm:$0xff]
      %v2210 = vld [vmem:[%s1 + $0x28] sm:$0xff]
      %v2211 = vld [vmem:[%s1 + $0x30] sm:$0xff]
      %v2212 = vld [vmem:[%s1 + $0x38] sm:$0xff]
      %v2213 = vld [vmem:[%s1 + $0x40] sm:$0xff]
      %v2214 = vld [vmem:[%s1 + $0x48] sm:$0xff]
      %v2215 = vld [vmem:[%s1 + $0x50] sm:$0xff]
      %v2216 = vld [vmem:[%s1 + $0x58] sm:$0xff]
      %v2217 = vld [vmem:[%s1 + $0x60] sm:$0xff]
      %v2218 = vld [vmem:[%s1 + $0x68] sm:$0xff]
      %v2219 = vld [vmem:[%s1 + $0x70] sm:$0xff]
      %v2220 = vld [vmem:[%s1 + $0x78] sm:$0xff]
      %v2221 = vld [vmem:[%s1 + $0x80] sm:$0xff]
      %v2222 = vld [vmem:[%s1 + $0x88] sm:$0xff]
      %v2223 = vld [vmem:[%s1 + $0x90] sm:$0xff]
      %v2224 = vld [vmem:[%s1 + $0x98] sm:$0xff]
      %v2225 = vld [vmem:[%s1 + $0xa0] sm:$0xff]
      %v2226 = vld [vmem:[%s1 + $0xa8] sm:$0xff]
      %v2227 = vld [vmem:[%s1 + $0xb0] sm:$0xff]
      %v2228 = vld [vmem:[%s1 + $0xb8] sm:$0xff]
      %v2229 = vld [vmem:[%s1 + $0xc0] sm:$0xff]
      %v2230 = vld [vmem:[%s1 + $0xc8] sm:$0xff]
      %v2231 = vld [vmem:[%s1 + $0xd0] sm:$0xff]
      %v2232 = vld [vmem:[%s1 + $0xd8] sm:$0xff]
      %v2233 = vld [vmem:[%s1 + $0xe0] sm:$0xff]
      %v2234 = vld [vmem:[%s1 + $0xe8] sm:$0xff]
      %v2235 = vld [vmem:[%s1 + $0xf0] sm:$0xff]
      %v2236 = vld [vmem:[%s1 + $0xf8] sm:$0xff]
      %v2237 = vld [vmem:[%s1 + $0x100] sm:$0xff]
      %v2238 = vld [vmem:[%s1 + $0x108] sm:$0xff]
      %v2239 = vld [vmem:[%s1 + $0x110] sm:$0xff]
      %v2240 = vld [vmem:[%s1 + $0x118] sm:$0xff]
      %v2241 = vld [vmem:[%s1 + $0x120] sm:$0xff]
      %v2242 = vld [vmem:[%s1 + $0x128] sm:$0xff]
      %v2243 = vld [vmem:[%s1 + $0x130] sm:$0xff]
      %v2244 = vld [vmem:[%s1 + $0x138] sm:$0xff]
      %v2245 = vld [vmem:[%s1 + $0x140] sm:$0xff]
      %v2246 = vld [vmem:[%s1 + $0x148] sm:$0xff]
      %v2247 = vld [vmem:[%s1 + $0x150] sm:$0xff]
      %v2248 = vld [vmem:[%s1 + $0x158] sm:$0xff]
      %v2249 = vld [vmem:[%s1 + $0x160] sm:$0xff]
      %v2250 = vld [vmem:[%s1 + $0x168] sm:$0xff]
      %v2251 = vld [vmem:[%s1 + $0x170] sm:$0xff]
      %v2252 = vld [vmem:[%s1 + $0x178] sm:$0xff]
      %v2253 = vmul.f32 %v2157, %v2205
      %v2254 = vmul.f32 %v2158, %v2206
      %v2255 = vmul.f32 %v2159, %v2207
      %v2256 = vmul.f32 %v2160, %v2208
      %v2257 = vmul.f32 %v2161, %v2209
      %v2258 = vmul.f32 %v2162, %v2210
      %v2259 = vmul.f32 %v2163, %v2211
      %v2260 = vmul.f32 %v2164, %v2212
      %v2261 = vmul.f32 %v2165, %v2213
      %v2262 = vmul.f32 %v2166, %v2214
      %v2263 = vmul.f32 %v2167, %v2215
      %v2264 = vmul.f32 %v2168, %v2216
      %v2265 = vmul.f32 %v2169, %v2217
      %v2266 = vmul.f32 %v2170, %v2218
      %v2267 = vmul.f32 %v2171, %v2219
      %v2268 = vmul.f32 %v2172, %v2220
      %v2269 = vmul.f32 %v2173, %v2221
      %v2270 = vmul.f32 %v2174, %v2222
      %v2271 = vmul.f32 %v2175, %v2223
      %v2272 = vmul.f32 %v2176, %v2224
      %v2273 = vmul.f32 %v2177, %v2225
      %v2274 = vmul.f32 %v2178, %v2226
      %v2275 = vmul.f32 %v2179, %v2227
      %v2276 = vmul.f32 %v2180, %v2228
      %v2277 = vmul.f32 %v2181, %v2229
      %v2278 = vmul.f32 %v2182, %v2230
      %v2279 = vmul.f32 %v2183, %v2231
      %v2280 = vmul.f32 %v2184, %v2232
      %v2281 = vmul.f32 %v2185, %v2233
      %v2282 = vmul.f32 %v2186, %v2234
      %v2283 = vmul.f32 %v2187, %v2235
      %v2284 = vmul.f32 %v2188, %v2236
      %v2285 = vmul.f32 %v2189, %v2237
      %v2286 = vmul.f32 %v2190, %v2238
      %v2287 = vmul.f32 %v2191, %v2239
      %v2288 = vmul.f32 %v2192, %v2240
      %v2289 = vmul.f32 %v2193, %v2241
      %v2290 = vmul.f32 %v2194, %v2242
      %v2291 = vmul.f32 %v2195, %v2243
      %v2292 = vmul.f32 %v2196, %v2244
      %v2293 = vmul.f32 %v2197, %v2245
      %v2294 = vmul.f32 %v2198, %v2246
      %v2295 = vmul.f32 %v2199, %v2247
      %v2296 = vmul.f32 %v2200, %v2248
      %v2297 = vmul.f32 %v2201, %v2249
      %v2298 = vmul.f32 %v2202, %v2250
      %v2299 = vmul.f32 %v2203, %v2251
      %v2300 = vmul.f32 %v2204, %v2252
      %2301 = vst.msk [vmem:[#allocation2 + $0x20] sm:$0xff] %vm255, %v2253
      %2302 = vst.msk [vmem:[#allocation2 + $0x28] sm:$0xff] %vm255, %v2254
      %2303 = vst.msk [vmem:[#allocation2 + $0x30] sm:$0xff] %vm255, %v2255
      %2304 = vst.msk [vmem:[#allocation2 + $0x38] sm:$0xff] %vm255, %v2256
      %2305 = vst.msk [vmem:[#allocation2 + $0x40] sm:$0xff] %vm255, %v2257
      %2306 = vst.msk [vmem:[#allocation2 + $0x48] sm:$0xff] %vm255, %v2258
      %2307 = vst.msk [vmem:[#allocation2 + $0x50] sm:$0xff] %vm255, %v2259
      %2308 = vst.msk [vmem:[#allocation2 + $0x58] sm:$0xff] %vm255, %v2260
      %2309 = vst.msk [vmem:[#allocation2 + $0x60] sm:$0xff] %vm255, %v2261
      %2310 = vst.msk [vmem:[#allocation2 + $0x68] sm:$0xff] %vm255, %v2262
      %2311 = vst.msk [vmem:[#allocation2 + $0x70] sm:$0xff] %vm255, %v2263
      %2312 = vst.msk [vmem:[#allocation2 + $0x78] sm:$0xff] %vm255, %v2264
      %2313 = vst.msk [vmem:[#allocation2 + $0x80] sm:$0xff] %vm255, %v2265
      %2314 = vst.msk [vmem:[#allocation2 + $0x88] sm:$0xff] %vm255, %v2266
      %2315 = vst.msk [vmem:[#allocation2 + $0x90] sm:$0xff] %vm255, %v2267
      %2316 = vst.msk [vmem:[#allocation2 + $0x98] sm:$0xff] %vm255, %v2268
      %2317 = vst.msk [vmem:[#allocation2 + $0xa0] sm:$0xff] %vm255, %v2269
      %2318 = vst.msk [vmem:[#allocation2 + $0xa8] sm:$0xff] %vm255, %v2270
      %2319 = vst.msk [vmem:[#allocation2 + $0xb0] sm:$0xff] %vm255, %v2271
      %2320 = vst.msk [vmem:[#allocation2 + $0xb8] sm:$0xff] %vm255, %v2272
      %2321 = vst.msk [vmem:[#allocation2 + $0xc0] sm:$0xff] %vm255, %v2273
      %2322 = vst.msk [vmem:[#allocation2 + $0xc8] sm:$0xff] %vm255, %v2274
      %2323 = vst.msk [vmem:[#allocation2 + $0xd0] sm:$0xff] %vm255, %v2275
      %2324 = vst.msk [vmem:[#allocation2 + $0xd8] sm:$0xff] %vm255, %v2276
      %2325 = vst.msk [vmem:[#allocation2 + $0xe0] sm:$0xff] %vm255, %v2277
      %2326 = vst.msk [vmem:[#allocation2 + $0xe8] sm:$0xff] %vm255, %v2278
      %2327 = vst.msk [vmem:[#allocation2 + $0xf0] sm:$0xff] %vm255, %v2279
      %2328 = vst.msk [vmem:[#allocation2 + $0xf8] sm:$0xff] %vm255, %v2280
      %2329 = vst.msk [vmem:[#allocation2 + $0x100] sm:$0xff] %vm255, %v2281
      %2330 = vst.msk [vmem:[#allocation2 + $0x108] sm:$0xff] %vm255, %v2282
      %2331 = vst.msk [vmem:[#allocation2 + $0x110] sm:$0xff] %vm255, %v2283
      %2332 = vst.msk [vmem:[#allocation2 + $0x118] sm:$0xff] %vm255, %v2284
      %2333 = vst.msk [vmem:[#allocation2 + $0x120] sm:$0xff] %vm255, %v2285
      %2334 = vst.msk [vmem:[#allocation2 + $0x128] sm:$0xff] %vm255, %v2286
      %2335 = vst.msk [vmem:[#allocation2 + $0x130] sm:$0xff] %vm255, %v2287
      %2336 = vst.msk [vmem:[#allocation2 + $0x138] sm:$0xff] %vm255, %v2288
      %2337 = vst.msk [vmem:[#allocation2 + $0x140] sm:$0xff] %vm255, %v2289
      %2338 = vst.msk [vmem:[#allocation2 + $0x148] sm:$0xff] %vm255, %v2290
      %2339 = vst.msk [vmem:[#allocation2 + $0x150] sm:$0xff] %vm255, %v2291
      %2340 = vst.msk [vmem:[#allocation2 + $0x158] sm:$0xff] %vm255, %v2292
      %2341 = vst.msk [vmem:[#allocation2 + $0x160] sm:$0xff] %vm255, %v2293
      %2342 = vst.msk [vmem:[#allocation2 + $0x168] sm:$0xff] %vm255, %v2294
      %2343 = vst.msk [vmem:[#allocation2 + $0x170] sm:$0xff] %vm255, %v2295
      %2344 = vst.msk [vmem:[#allocation2 + $0x178] sm:$0xff] %vm255, %v2296
      %2345 = vst.msk [vmem:[#allocation2 + $0x180] sm:$0xff] %vm255, %v2297
      %2346 = vst.msk [vmem:[#allocation2 + $0x188] sm:$0xff] %vm255, %v2298
      %2347 = vst.msk [vmem:[#allocation2 + $0x190] sm:$0xff] %vm255, %v2299
      %2348 = vst.msk [vmem:[#allocation2 + $0x198] sm:$0xff] %vm255, %v2300
      %v2349 = vld [vmem:[#allocation2] sm:$0xff]
      %v2350 = vld [vmem:[#allocation2 + $0x8] sm:$0xff]
      %v2351 = vld [vmem:[#allocation2 + $0x10] sm:$0xff]
      %v2352 = vld [vmem:[#allocation2 + $0x18] sm:$0xff]
      %v2353 = vld [vmem:[#allocation2 + $0x20] sm:$0xff]
      %v2354 = vld [vmem:[#allocation2 + $0x28] sm:$0xff]
      %v2355 = vld [vmem:[#allocation2 + $0x30] sm:$0xff]
      %v2356 = vld [vmem:[#allocation2 + $0x38] sm:$0xff]
      %v2357 = vld [vmem:[#allocation2 + $0x40] sm:$0xff]
      %v2358 = vld [vmem:[#allocation2 + $0x48] sm:$0xff]
      %v2359 = vld [vmem:[#allocation2 + $0x50] sm:$0xff]
      %v2360 = vld [vmem:[#allocation2 + $0x58] sm:$0xff]
      %v2361 = vld [vmem:[#allocation2 + $0x60] sm:$0xff]
      %v2362 = vld [vmem:[#allocation2 + $0x68] sm:$0xff]
      %v2363 = vld [vmem:[#allocation2 + $0x70] sm:$0xff]
      %v2364 = vld [vmem:[#allocation2 + $0x78] sm:$0xff]
      %v2365 = vld [vmem:[#allocation2 + $0x80] sm:$0xff]
      %v2366 = vld [vmem:[#allocation2 + $0x88] sm:$0xff]
      %v2367 = vld [vmem:[#allocation2 + $0x90] sm:$0xff]
      %v2368 = vld [vmem:[#allocation2 + $0x98] sm:$0xff]
      %v2369 = vld [vmem:[#allocation2 + $0xa0] sm:$0xff]
      %v2370 = vld [vmem:[#allocation2 + $0xa8] sm:$0xff]
      %v2371 = vld [vmem:[#allocation2 + $0xb0] sm:$0xff]
      %v2372 = vld [vmem:[#allocation2 + $0xb8] sm:$0xff]
      %v2373 = vld [vmem:[#allocation2 + $0xc0] sm:$0xff]
      %v2374 = vld [vmem:[#allocation2 + $0xc8] sm:$0xff]
      %v2375 = vld [vmem:[#allocation2 + $0xd0] sm:$0xff]
      %v2376 = vld [vmem:[#allocation2 + $0xd8] sm:$0xff]
      %v2377 = vld [vmem:[#allocation2 + $0xe0] sm:$0xff]
      %v2378 = vld [vmem:[#allocation2 + $0xe8] sm:$0xff]
      %v2379 = vld [vmem:[#allocation2 + $0xf0] sm:$0xff]
      %v2380 = vld [vmem:[#allocation2 + $0xf8] sm:$0xff]
      %v2381 = vld [vmem:[#allocation2 + $0x100] sm:$0xff]
      %v2382 = vld [vmem:[#allocation2 + $0x108] sm:$0xff]
      %v2383 = vld [vmem:[#allocation2 + $0x110] sm:$0xff]
      %v2384 = vld [vmem:[#allocation2 + $0x118] sm:$0xff]
      %v2385 = vld [vmem:[#allocation2 + $0x120] sm:$0xff]
      %v2386 = vld [vmem:[#allocation2 + $0x128] sm:$0xff]
      %v2387 = vld [vmem:[#allocation2 + $0x130] sm:$0xff]
      %v2388 = vld [vmem:[#allocation2 + $0x138] sm:$0xff]
      %v2389 = vld [vmem:[#allocation2 + $0x140] sm:$0xff]
      %v2390 = vld [vmem:[#allocation2 + $0x148] sm:$0xff]
      %v2391 = vld [vmem:[#allocation2 + $0x150] sm:$0xff]
      %v2392 = vld [vmem:[#allocation2 + $0x158] sm:$0xff]
      %v2393 = vld [vmem:[#allocation2 + $0x160] sm:$0xff]
      %v2394 = vld [vmem:[#allocation2 + $0x168] sm:$0xff]
      %v2395 = vld [vmem:[#allocation2 + $0x170] sm:$0xff]
      %v2396 = vld [vmem:[#allocation2 + $0x178] sm:$0xff]
      %v2397 = vld [vmem:[#allocation2 + $0x180] sm:$0xff]
      %v2398 = vld [vmem:[#allocation2 + $0x188] sm:$0xff]
      %v2399 = vld [vmem:[#allocation2 + $0x190] sm:$0xff]
      %v2400 = vld [vmem:[#allocation2 + $0x198] sm:$0xff]
      %v2401 = vld [vmem:[#allocation2 + $0x1a0] sm:$0xff]
      %v2402 = vld [vmem:[#allocation2 + $0x1a8] sm:$0xff]
      %v2403 = vld [vmem:[#allocation2 + $0x1b0] sm:$0xff]
      %v2404 = vld [vmem:[#allocation2 + $0x1b8] sm:$0xff]
      %v2405 = vrot.slane %v2349, 7
      %v2406 = vrot.slane %v2350, 7
      %v2407 = vrot.slane %v2351, 7
      %v2408 = vrot.slane %v2352, 7
      %v2409 = vrot.slane %v2353, 7
      %v2410 = vrot.slane %v2354, 7
      %v2411 = vrot.slane %v2355, 7
      %v2412 = vrot.slane %v2356, 7
      %v2413 = vrot.slane %v2357, 7
      %v2414 = vrot.slane %v2358, 7
      %v2415 = vrot.slane %v2359, 7
      %v2416 = vrot.slane %v2360, 7
      %v2417 = vrot.slane %v2361, 7
      %v2418 = vrot.slane %v2362, 7
      %v2419 = vrot.slane %v2363, 7
      %v2420 = vrot.slane %v2364, 7
      %v2421 = vrot.slane %v2365, 7
      %v2422 = vrot.slane %v2366, 7
      %v2423 = vrot.slane %v2367, 7
      %v2424 = vrot.slane %v2368, 7
      %v2425 = vrot.slane %v2369, 7
      %v2426 = vrot.slane %v2370, 7
      %v2427 = vrot.slane %v2371, 7
      %v2428 = vrot.slane %v2372, 7
      %v2429 = vrot.slane %v2373, 7
      %v2430 = vrot.slane %v2374, 7
      %v2431 = vrot.slane %v2375, 7
      %v2432 = vrot.slane %v2376, 7
      %v2433 = vrot.slane %v2377, 7
      %v2434 = vrot.slane %v2378, 7
      %v2435 = vrot.slane %v2379, 7
      %v2436 = vrot.slane %v2380, 7
      %v2437 = vrot.slane %v2381, 7
      %v2438 = vrot.slane %v2382, 7
      %v2439 = vrot.slane %v2383, 7
      %v2440 = vrot.slane %v2384, 7
      %v2441 = vrot.slane %v2385, 7
      %v2442 = vrot.slane %v2386, 7
      %v2443 = vrot.slane %v2387, 7
      %v2444 = vrot.slane %v2388, 7
      %v2445 = vrot.slane %v2389, 7
      %v2446 = vrot.slane %v2390, 7
      %v2447 = vrot.slane %v2391, 7
      %v2448 = vrot.slane %v2392, 7
      %v2449 = vrot.slane %v2393, 7
      %v2450 = vrot.slane %v2394, 7
      %v2451 = vrot.slane %v2395, 7
      %v2452 = vrot.slane %v2396, 7
      %v2453 = vrot.slane %v2397, 7
      %v2454 = vrot.slane %v2398, 7
      %v2455 = vrot.slane %v2399, 7
      %v2456 = vrot.slane %v2400, 7
      %v2457 = vrot.slane %v2401, 7
      %v2458 = vrot.slane %v2402, 7
      %v2459 = vrot.slane %v2403, 7
      %v2460 = vrot.slane %v2404, 7
      %v2461 = vsel %vm378, %v2459, %v2460
      %v2462 = vsel %vm378, %v2458, %v2459
      %v2463 = vsel %vm378, %v2457, %v2458
      %v2464 = vsel %vm378, %v2456, %v2457
      %v2465 = vsel %vm378, %v2455, %v2456
      %v2466 = vsel %vm378, %v2454, %v2455
      %v2467 = vsel %vm378, %v2453, %v2454
      %v2468 = vsel %vm378, %v2452, %v2453
      %v2469 = vsel %vm378, %v2451, %v2452
      %v2470 = vsel %vm378, %v2450, %v2451
      %v2471 = vsel %vm378, %v2449, %v2450
      %v2472 = vsel %vm378, %v2448, %v2449
      %v2473 = vsel %vm378, %v2447, %v2448
      %v2474 = vsel %vm378, %v2446, %v2447
      %v2475 = vsel %vm378, %v2445, %v2446
      %v2476 = vsel %vm378, %v2444, %v2445
      %v2477 = vsel %vm378, %v2443, %v2444
      %v2478 = vsel %vm378, %v2442, %v2443
      %v2479 = vsel %vm378, %v2441, %v2442
      %v2480 = vsel %vm378, %v2440, %v2441
      %v2481 = vsel %vm378, %v2439, %v2440
      %v2482 = vsel %vm378, %v2438, %v2439
      %v2483 = vsel %vm378, %v2437, %v2438
      %v2484 = vsel %vm378, %v2436, %v2437
      %v2485 = vsel %vm378, %v2435, %v2436
      %v2486 = vsel %vm378, %v2434, %v2435
      %v2487 = vsel %vm378, %v2433, %v2434
      %v2488 = vsel %vm378, %v2432, %v2433
      %v2489 = vsel %vm378, %v2431, %v2432
      %v2490 = vsel %vm378, %v2430, %v2431
      %v2491 = vsel %vm378, %v2429, %v2430
      %v2492 = vsel %vm378, %v2428, %v2429
      %v2493 = vsel %vm378, %v2427, %v2428
      %v2494 = vsel %vm378, %v2426, %v2427
      %v2495 = vsel %vm378, %v2425, %v2426
      %v2496 = vsel %vm378, %v2424, %v2425
      %v2497 = vsel %vm378, %v2423, %v2424
      %v2498 = vsel %vm378, %v2422, %v2423
      %v2499 = vsel %vm378, %v2421, %v2422
      %v2500 = vsel %vm378, %v2420, %v2421
      %v2501 = vsel %vm378, %v2419, %v2420
      %v2502 = vsel %vm378, %v2418, %v2419
      %v2503 = vsel %vm378, %v2417, %v2418
      %v2504 = vsel %vm378, %v2416, %v2417
      %v2505 = vsel %vm378, %v2415, %v2416
      %v2506 = vsel %vm378, %v2414, %v2415
      %v2507 = vsel %vm378, %v2413, %v2414
      %v2508 = vsel %vm378, %v2412, %v2413
      %v2509 = vsel %vm378, %v2411, %v2412
      %v2510 = vsel %vm378, %v2410, %v2411
      %v2511 = vsel %vm378, %v2409, %v2410
      %v2512 = vsel %vm378, %v2408, %v2409
      %v2513 = vsel %vm378, %v2407, %v2408
      %v2514 = vsel %vm378, %v2406, %v2407
      %v2515 = vsel %vm378, %v2405, %v2406
      %v2516 = vsel %vm378, %v2460, %v2405
      %2517 = vst.msk [vmem:[#allocation3] sm:$0xff] %vm255, %v2516
      %2518 = vst.msk [vmem:[#allocation3 + $0x8] sm:$0xff] %vm255, %v2515
      %2519 = vst.msk [vmem:[#allocation3 + $0x10] sm:$0xff] %vm255, %v2514
      %2520 = vst.msk [vmem:[#allocation3 + $0x18] sm:$0xff] %vm255, %v2513
      %2521 = vst.msk [vmem:[#allocation3 + $0x20] sm:$0xff] %vm255, %v2512
      %2522 = vst.msk [vmem:[#allocation3 + $0x28] sm:$0xff] %vm255, %v2511
      %2523 = vst.msk [vmem:[#allocation3 + $0x30] sm:$0xff] %vm255, %v2510
      %2524 = vst.msk [vmem:[#allocation3 + $0x38] sm:$0xff] %vm255, %v2509
      %2525 = vst.msk [vmem:[#allocation3 + $0x40] sm:$0xff] %vm255, %v2508
      %2526 = vst.msk [vmem:[#allocation3 + $0x48] sm:$0xff] %vm255, %v2507
      %2527 = vst.msk [vmem:[#allocation3 + $0x50] sm:$0xff] %vm255, %v2506
      %2528 = vst.msk [vmem:[#allocation3 + $0x58] sm:$0xff] %vm255, %v2505
      %2529 = vst.msk [vmem:[#allocation3 + $0x60] sm:$0xff] %vm255, %v2504
      %2530 = vst.msk [vmem:[#allocation3 + $0x68] sm:$0xff] %vm255, %v2503
      %2531 = vst.msk [vmem:[#allocation3 + $0x70] sm:$0xff] %vm255, %v2502
      %2532 = vst.msk [vmem:[#allocation3 + $0x78] sm:$0xff] %vm255, %v2501
      %2533 = vst.msk [vmem:[#allocation3 + $0x80] sm:$0xff] %vm255, %v2500
      %2534 = vst.msk [vmem:[#allocation3 + $0x88] sm:$0xff] %vm255, %v2499
      %2535 = vst.msk [vmem:[#allocation3 + $0x90] sm:$0xff] %vm255, %v2498
      %2536 = vst.msk [vmem:[#allocation3 + $0x98] sm:$0xff] %vm255, %v2497
      %2537 = vst.msk [vmem:[#allocation3 + $0xa0] sm:$0xff] %vm255, %v2496
      %2538 = vst.msk [vmem:[#allocation3 + $0xa8] sm:$0xff] %vm255, %v2495
      %2539 = vst.msk [vmem:[#allocation3 + $0xb0] sm:$0xff] %vm255, %v2494
      %2540 = vst.msk [vmem:[#allocation3 + $0xb8] sm:$0xff] %vm255, %v2493
      %2541 = vst.msk [vmem:[#allocation3 + $0xc0] sm:$0xff] %vm255, %v2492
      %2542 = vst.msk [vmem:[#allocation3 + $0xc8] sm:$0xff] %vm255, %v2491
      %2543 = vst.msk [vmem:[#allocation3 + $0xd0] sm:$0xff] %vm255, %v2490
      %2544 = vst.msk [vmem:[#allocation3 + $0xd8] sm:$0xff] %vm255, %v2489
      %2545 = vst.msk [vmem:[#allocation3 + $0xe0] sm:$0xff] %vm255, %v2488
      %2546 = vst.msk [vmem:[#allocation3 + $0xe8] sm:$0xff] %vm255, %v2487
      %2547 = vst.msk [vmem:[#allocation3 + $0xf0] sm:$0xff] %vm255, %v2486
      %2548 = vst.msk [vmem:[#allocation3 + $0xf8] sm:$0xff] %vm255, %v2485
      %2549 = vst.msk [vmem:[#allocation3 + $0x100] sm:$0xff] %vm255, %v2484
      %2550 = vst.msk [vmem:[#allocation3 + $0x108] sm:$0xff] %vm255, %v2483
      %2551 = vst.msk [vmem:[#allocation3 + $0x110] sm:$0xff] %vm255, %v2482
      %2552 = vst.msk [vmem:[#allocation3 + $0x118] sm:$0xff] %vm255, %v2481
      %2553 = vst.msk [vmem:[#allocation3 + $0x120] sm:$0xff] %vm255, %v2480
      %2554 = vst.msk [vmem:[#allocation3 + $0x128] sm:$0xff] %vm255, %v2479
      %2555 = vst.msk [vmem:[#allocation3 + $0x130] sm:$0xff] %vm255, %v2478
      %2556 = vst.msk [vmem:[#allocation3 + $0x138] sm:$0xff] %vm255, %v2477
      %2557 = vst.msk [vmem:[#allocation3 + $0x140] sm:$0xff] %vm255, %v2476
      %2558 = vst.msk [vmem:[#allocation3 + $0x148] sm:$0xff] %vm255, %v2475
      %2559 = vst.msk [vmem:[#allocation3 + $0x150] sm:$0xff] %vm255, %v2474
      %2560 = vst.msk [vmem:[#allocation3 + $0x158] sm:$0xff] %vm255, %v2473
      %2561 = vst.msk [vmem:[#allocation3 + $0x160] sm:$0xff] %vm255, %v2472
      %2562 = vst.msk [vmem:[#allocation3 + $0x168] sm:$0xff] %vm255, %v2471
      %2563 = vst.msk [vmem:[#allocation3 + $0x170] sm:$0xff] %vm255, %v2470
      %2564 = vst.msk [vmem:[#allocation3 + $0x178] sm:$0xff] %vm255, %v2469
      %2565 = vst.msk [vmem:[#allocation3 + $0x180] sm:$0xff] %vm255, %v2468
      %2566 = vst.msk [vmem:[#allocation3 + $0x188] sm:$0xff] %vm255, %v2467
      %2567 = vst.msk [vmem:[#allocation3 + $0x190] sm:$0xff] %vm255, %v2466
      %2568 = vst.msk [vmem:[#allocation3 + $0x198] sm:$0xff] %vm255, %v2465
      %2569 = vst.msk [vmem:[#allocation3 + $0x1a0] sm:$0xff] %vm255, %v2464
      %2570 = vst.msk [vmem:[#allocation3 + $0x1a8] sm:$0xff] %vm255, %v2463
      %2571 = vst.msk [vmem:[#allocation3 + $0x1b0] sm:$0xff] %vm255, %v2462
      %2572 = vst.msk [vmem:[#allocation3 + $0x1b8] sm:$0xff] %vm255, %v2461
      %2629 = vrot.lane.b32.xlu0 %v2349, 8
      %v2630 = vpop.permute.xlu0 %2629
      %2631 = vrot.lane.b32.xlu0 %v2350, 8
      %v2632 = vpop.permute.xlu0 %2631
      %2633 = vrot.lane.b32.xlu0 %v2351, 8
      %v2634 = vpop.permute.xlu0 %2633
      %2635 = vrot.lane.b32.xlu0 %v2352, 8
      %v2636 = vpop.permute.xlu0 %2635
      %2637 = vrot.lane.b32.xlu0 %v2353, 8
      %v2638 = vpop.permute.xlu0 %2637
      %2639 = vrot.lane.b32.xlu0 %v2354, 8
      %v2640 = vpop.permute.xlu0 %2639
      %2641 = vrot.lane.b32.xlu0 %v2355, 8
      %v2642 = vpop.permute.xlu0 %2641
      %2643 = vrot.lane.b32.xlu0 %v2356, 8
      %v2644 = vpop.permute.xlu0 %2643
      %2645 = vrot.lane.b32.xlu0 %v2357, 8
      %v2646 = vpop.permute.xlu0 %2645
      %2647 = vrot.lane.b32.xlu0 %v2358, 8
      %v2648 = vpop.permute.xlu0 %2647
      %2649 = vrot.lane.b32.xlu0 %v2359, 8
      %v2650 = vpop.permute.xlu0 %2649
      %2651 = vrot.lane.b32.xlu0 %v2360, 8
      %v2652 = vpop.permute.xlu0 %2651
      %2653 = vrot.lane.b32.xlu0 %v2361, 8
      %v2654 = vpop.permute.xlu0 %2653
      %2655 = vrot.lane.b32.xlu0 %v2362, 8
      %v2656 = vpop.permute.xlu0 %2655
      %2657 = vrot.lane.b32.xlu0 %v2363, 8
      %v2658 = vpop.permute.xlu0 %2657
      %2659 = vrot.lane.b32.xlu0 %v2364, 8
      %v2660 = vpop.permute.xlu0 %2659
      %2661 = vrot.lane.b32.xlu0 %v2365, 8
      %v2662 = vpop.permute.xlu0 %2661
      %2663 = vrot.lane.b32.xlu0 %v2366, 8
      %v2664 = vpop.permute.xlu0 %2663
      %2665 = vrot.lane.b32.xlu0 %v2367, 8
      %v2666 = vpop.permute.xlu0 %2665
      %2667 = vrot.lane.b32.xlu0 %v2368, 8
      %v2668 = vpop.permute.xlu0 %2667
      %2669 = vrot.lane.b32.xlu0 %v2369, 8
      %v2670 = vpop.permute.xlu0 %2669
      %2671 = vrot.lane.b32.xlu0 %v2370, 8
      %v2672 = vpop.permute.xlu0 %2671
      %2673 = vrot.lane.b32.xlu0 %v2371, 8
      %v2674 = vpop.permute.xlu0 %2673
      %2675 = vrot.lane.b32.xlu0 %v2372, 8
      %v2676 = vpop.permute.xlu0 %2675
      %2677 = vrot.lane.b32.xlu0 %v2373, 8
      %v2678 = vpop.permute.xlu0 %2677
      %2679 = vrot.lane.b32.xlu0 %v2374, 8
      %v2680 = vpop.permute.xlu0 %2679
      %2681 = vrot.lane.b32.xlu0 %v2375, 8
      %v2682 = vpop.permute.xlu0 %2681
      %2683 = vrot.lane.b32.xlu0 %v2376, 8
      %v2684 = vpop.permute.xlu0 %2683
      %2685 = vrot.lane.b32.xlu0 %v2377, 8
      %v2686 = vpop.permute.xlu0 %2685
      %2687 = vrot.lane.b32.xlu0 %v2378, 8
      %v2688 = vpop.permute.xlu0 %2687
      %2689 = vrot.lane.b32.xlu0 %v2379, 8
      %v2690 = vpop.permute.xlu0 %2689
      %2691 = vrot.lane.b32.xlu0 %v2380, 8
      %v2692 = vpop.permute.xlu0 %2691
      %2693 = vrot.lane.b32.xlu0 %v2381, 8
      %v2694 = vpop.permute.xlu0 %2693
      %2695 = vrot.lane.b32.xlu0 %v2382, 8
      %v2696 = vpop.permute.xlu0 %2695
      %2697 = vrot.lane.b32.xlu0 %v2383, 8
      %v2698 = vpop.permute.xlu0 %2697
      %2699 = vrot.lane.b32.xlu0 %v2384, 8
      %v2700 = vpop.permute.xlu0 %2699
      %2701 = vrot.lane.b32.xlu0 %v2385, 8
      %v2702 = vpop.permute.xlu0 %2701
      %2703 = vrot.lane.b32.xlu0 %v2386, 8
      %v2704 = vpop.permute.xlu0 %2703
      %2705 = vrot.lane.b32.xlu0 %v2387, 8
      %v2706 = vpop.permute.xlu0 %2705
      %2707 = vrot.lane.b32.xlu0 %v2388, 8
      %v2708 = vpop.permute.xlu0 %2707
      %2709 = vrot.lane.b32.xlu0 %v2389, 8
      %v2710 = vpop.permute.xlu0 %2709
      %2711 = vrot.lane.b32.xlu0 %v2390, 8
      %v2712 = vpop.permute.xlu0 %2711
      %2713 = vrot.lane.b32.xlu0 %v2391, 8
      %v2714 = vpop.permute.xlu0 %2713
      %2715 = vrot.lane.b32.xlu0 %v2392, 8
      %v2716 = vpop.permute.xlu0 %2715
      %2717 = vrot.lane.b32.xlu0 %v2393, 8
      %v2718 = vpop.permute.xlu0 %2717
      %2719 = vrot.lane.b32.xlu0 %v2394, 8
      %v2720 = vpop.permute.xlu0 %2719
      %2721 = vrot.lane.b32.xlu0 %v2395, 8
      %v2722 = vpop.permute.xlu0 %2721
      %2723 = vrot.lane.b32.xlu0 %v2396, 8
      %v2724 = vpop.permute.xlu0 %2723
      %2725 = vrot.lane.b32.xlu0 %v2397, 8
      %v2726 = vpop.permute.xlu0 %2725
      %2727 = vrot.lane.b32.xlu0 %v2398, 8
      %v2728 = vpop.permute.xlu0 %2727
      %2729 = vrot.lane.b32.xlu0 %v2399, 8
      %v2730 = vpop.permute.xlu0 %2729
      %2731 = vrot.lane.b32.xlu0 %v2400, 8
      %v2732 = vpop.permute.xlu0 %2731
      %2733 = vrot.lane.b32.xlu0 %v2401, 8
      %v2734 = vpop.permute.xlu0 %2733
      %2735 = vrot.lane.b32.xlu0 %v2402, 8
      %v2736 = vpop.permute.xlu0 %2735
      %2737 = vrot.lane.b32.xlu0 %v2403, 8
      %v2738 = vpop.permute.xlu0 %2737
      %2739 = vrot.lane.b32.xlu0 %v2404, 8
      %v2740 = vpop.permute.xlu0 %2739
      %2797 = vst.msk [vmem:[#allocation3] sm:$0xff] %vm715, %v2630
      %2798 = vst.msk [vmem:[#allocation3 + $0x8] sm:$0xff] %vm715, %v2632
      %2799 = vst.msk [vmem:[#allocation3 + $0x10] sm:$0xff] %vm715, %v2634
      %2800 = vst.msk [vmem:[#allocation3 + $0x18] sm:$0xff] %vm715, %v2636
      %2801 = vst.msk [vmem:[#allocation3 + $0x20] sm:$0xff] %vm715, %v2638
      %2802 = vst.msk [vmem:[#allocation3 + $0x28] sm:$0xff] %vm715, %v2640
      %2803 = vst.msk [vmem:[#allocation3 + $0x30] sm:$0xff] %vm715, %v2642
      %2804 = vst.msk [vmem:[#allocation3 + $0x38] sm:$0xff] %vm715, %v2644
      %2805 = vst.msk [vmem:[#allocation3 + $0x40] sm:$0xff] %vm715, %v2646
      %2806 = vst.msk [vmem:[#allocation3 + $0x48] sm:$0xff] %vm715, %v2648
      %2807 = vst.msk [vmem:[#allocation3 + $0x50] sm:$0xff] %vm715, %v2650
      %2808 = vst.msk [vmem:[#allocation3 + $0x58] sm:$0xff] %vm715, %v2652
      %2809 = vst.msk [vmem:[#allocation3 + $0x60] sm:$0xff] %vm715, %v2654
      %2810 = vst.msk [vmem:[#allocation3 + $0x68] sm:$0xff] %vm715, %v2656
      %2811 = vst.msk [vmem:[#allocation3 + $0x70] sm:$0xff] %vm715, %v2658
      %2812 = vst.msk [vmem:[#allocation3 + $0x78] sm:$0xff] %vm715, %v2660
      %2813 = vst.msk [vmem:[#allocation3 + $0x80] sm:$0xff] %vm715, %v2662
      %2814 = vst.msk [vmem:[#allocation3 + $0x88] sm:$0xff] %vm715, %v2664
      %2815 = vst.msk [vmem:[#allocation3 + $0x90] sm:$0xff] %vm715, %v2666
      %2816 = vst.msk [vmem:[#allocation3 + $0x98] sm:$0xff] %vm715, %v2668
      %2817 = vst.msk [vmem:[#allocation3 + $0xa0] sm:$0xff] %vm715, %v2670
      %2818 = vst.msk [vmem:[#allocation3 + $0xa8] sm:$0xff] %vm715, %v2672
      %2819 = vst.msk [vmem:[#allocation3 + $0xb0] sm:$0xff] %vm715, %v2674
      %2820 = vst.msk [vmem:[#allocation3 + $0xb8] sm:$0xff] %vm715, %v2676
      %2821 = vst.msk [vmem:[#allocation3 + $0xc0] sm:$0xff] %vm715, %v2678
      %2822 = vst.msk [vmem:[#allocation3 + $0xc8] sm:$0xff] %vm715, %v2680
      %2823 = vst.msk [vmem:[#allocation3 + $0xd0] sm:$0xff] %vm715, %v2682
      %2824 = vst.msk [vmem:[#allocation3 + $0xd8] sm:$0xff] %vm715, %v2684
      %2825 = vst.msk [vmem:[#allocation3 + $0xe0] sm:$0xff] %vm715, %v2686
      %2826 = vst.msk [vmem:[#allocation3 + $0xe8] sm:$0xff] %vm715, %v2688
      %2827 = vst.msk [vmem:[#allocation3 + $0xf0] sm:$0xff] %vm715, %v2690
      %2828 = vst.msk [vmem:[#allocation3 + $0xf8] sm:$0xff] %vm715, %v2692
      %2829 = vst.msk [vmem:[#allocation3 + $0x100] sm:$0xff] %vm715, %v2694
      %2830 = vst.msk [vmem:[#allocation3 + $0x108] sm:$0xff] %vm715, %v2696
      %2831 = vst.msk [vmem:[#allocation3 + $0x110] sm:$0xff] %vm715, %v2698
      %2832 = vst.msk [vmem:[#allocation3 + $0x118] sm:$0xff] %vm715, %v2700
      %2833 = vst.msk [vmem:[#allocation3 + $0x120] sm:$0xff] %vm715, %v2702
      %2834 = vst.msk [vmem:[#allocation3 + $0x128] sm:$0xff] %vm715, %v2704
      %2835 = vst.msk [vmem:[#allocation3 + $0x130] sm:$0xff] %vm715, %v2706
      %2836 = vst.msk [vmem:[#allocation3 + $0x138] sm:$0xff] %vm715, %v2708
      %2837 = vst.msk [vmem:[#allocation3 + $0x140] sm:$0xff] %vm715, %v2710
      %2838 = vst.msk [vmem:[#allocation3 + $0x148] sm:$0xff] %vm715, %v2712
      %2839 = vst.msk [vmem:[#allocation3 + $0x150] sm:$0xff] %vm715, %v2714
      %2840 = vst.msk [vmem:[#allocation3 + $0x158] sm:$0xff] %vm715, %v2716
      %2841 = vst.msk [vmem:[#allocation3 + $0x160] sm:$0xff] %vm715, %v2718
      %2842 = vst.msk [vmem:[#allocation3 + $0x168] sm:$0xff] %vm715, %v2720
      %2843 = vst.msk [vmem:[#allocation3 + $0x170] sm:$0xff] %vm715, %v2722
      %2844 = vst.msk [vmem:[#allocation3 + $0x178] sm:$0xff] %vm715, %v2724
      %2845 = vst.msk [vmem:[#allocation3 + $0x180] sm:$0xff] %vm715, %v2726
      %2846 = vst.msk [vmem:[#allocation3 + $0x188] sm:$0xff] %vm715, %v2728
      %2847 = vst.msk [vmem:[#allocation3 + $0x190] sm:$0xff] %vm715, %v2730
      %2848 = vst.msk [vmem:[#allocation3 + $0x198] sm:$0xff] %vm715, %v2732
      %2849 = vst.msk [vmem:[#allocation3 + $0x1a0] sm:$0xff] %vm715, %v2734
      %2850 = vst.msk [vmem:[#allocation3 + $0x1a8] sm:$0xff] %vm715, %v2736
      %2851 = vst.msk [vmem:[#allocation3 + $0x1b0] sm:$0xff] %vm715, %v2738
      %2852 = vst.msk [vmem:[#allocation3 + $0x1b8] sm:$0xff] %vm715, %v2740
      %v2853 = vrot.slane %v2349, 1
      %v2854 = vrot.slane %v2350, 1
      %v2855 = vrot.slane %v2351, 1
      %v2856 = vrot.slane %v2352, 1
      %v2857 = vrot.slane %v2353, 1
      %v2858 = vrot.slane %v2354, 1
      %v2859 = vrot.slane %v2355, 1
      %v2860 = vrot.slane %v2356, 1
      %v2861 = vrot.slane %v2357, 1
      %v2862 = vrot.slane %v2358, 1
      %v2863 = vrot.slane %v2359, 1
      %v2864 = vrot.slane %v2360, 1
      %v2865 = vrot.slane %v2361, 1
      %v2866 = vrot.slane %v2362, 1
      %v2867 = vrot.slane %v2363, 1
      %v2868 = vrot.slane %v2364, 1
      %v2869 = vrot.slane %v2365, 1
      %v2870 = vrot.slane %v2366, 1
      %v2871 = vrot.slane %v2367, 1
      %v2872 = vrot.slane %v2368, 1
      %v2873 = vrot.slane %v2369, 1
      %v2874 = vrot.slane %v2370, 1
      %v2875 = vrot.slane %v2371, 1
      %v2876 = vrot.slane %v2372, 1
      %v2877 = vrot.slane %v2373, 1
      %v2878 = vrot.slane %v2374, 1
      %v2879 = vrot.slane %v2375, 1
      %v2880 = vrot.slane %v2376, 1
      %v2881 = vrot.slane %v2377, 1
      %v2882 = vrot.slane %v2378, 1
      %v2883 = vrot.slane %v2379, 1
      %v2884 = vrot.slane %v2380, 1
      %v2885 = vrot.slane %v2381, 1
      %v2886 = vrot.slane %v2382, 1
      %v2887 = vrot.slane %v2383, 1
      %v2888 = vrot.slane %v2384, 1
      %v2889 = vrot.slane %v2385, 1
      %v2890 = vrot.slane %v2386, 1
      %v2891 = vrot.slane %v2387, 1
      %v2892 = vrot.slane %v2388, 1
      %v2893 = vrot.slane %v2389, 1
      %v2894 = vrot.slane %v2390, 1
      %v2895 = vrot.slane %v2391, 1
      %v2896 = vrot.slane %v2392, 1
      %v2897 = vrot.slane %v2393, 1
      %v2898 = vrot.slane %v2394, 1
      %v2899 = vrot.slane %v2395, 1
      %v2900 = vrot.slane %v2396, 1
      %v2901 = vrot.slane %v2397, 1
      %v2902 = vrot.slane %v2398, 1
      %v2903 = vrot.slane %v2399, 1
      %v2904 = vrot.slane %v2400, 1
      %v2905 = vrot.slane %v2401, 1
      %v2906 = vrot.slane %v2402, 1
      %v2907 = vrot.slane %v2403, 1
      %v2908 = vrot.slane %v2404, 1
      %v2909 = vsel %vm828, %v2907, %v2908
      %v2910 = vsel %vm828, %v2906, %v2907
      %v2911 = vsel %vm828, %v2905, %v2906
      %v2912 = vsel %vm828, %v2904, %v2905
      %v2913 = vsel %vm828, %v2903, %v2904
      %v2914 = vsel %vm828, %v2902, %v2903
      %v2915 = vsel %vm828, %v2901, %v2902
      %v2916 = vsel %vm828, %v2900, %v2901
      %v2917 = vsel %vm828, %v2899, %v2900
      %v2918 = vsel %vm828, %v2898, %v2899
      %v2919 = vsel %vm828, %v2897, %v2898
      %v2920 = vsel %vm828, %v2896, %v2897
      %v2921 = vsel %vm828, %v2895, %v2896
      %v2922 = vsel %vm828, %v2894, %v2895
      %v2923 = vsel %vm828, %v2893, %v2894
      %v2924 = vsel %vm828, %v2892, %v2893
      %v2925 = vsel %vm828, %v2891, %v2892
      %v2926 = vsel %vm828, %v2890, %v2891
      %v2927 = vsel %vm828, %v2889, %v2890
      %v2928 = vsel %vm828, %v2888, %v2889
      %v2929 = vsel %vm828, %v2887, %v2888
      %v2930 = vsel %vm828, %v2886, %v2887
      %v2931 = vsel %vm828, %v2885, %v2886
      %v2932 = vsel %vm828, %v2884, %v2885
      %v2933 = vsel %vm828, %v2883, %v2884
      %v2934 = vsel %vm828, %v2882, %v2883
      %v2935 = vsel %vm828, %v2881, %v2882
      %v2936 = vsel %vm828, %v2880, %v2881
      %v2937 = vsel %vm828, %v2879, %v2880
      %v2938 = vsel %vm828, %v2878, %v2879
      %v2939 = vsel %vm828, %v2877, %v2878
      %v2940 = vsel %vm828, %v2876, %v2877
      %v2941 = vsel %vm828, %v2875, %v2876
      %v2942 = vsel %vm828, %v2874, %v2875
      %v2943 = vsel %vm828, %v2873, %v2874
      %v2944 = vsel %vm828, %v2872, %v2873
      %v2945 = vsel %vm828, %v2871, %v2872
      %v2946 = vsel %vm828, %v2870, %v2871
      %v2947 = vsel %vm828, %v2869, %v2870
      %v2948 = vsel %vm828, %v2868, %v2869
      %v2949 = vsel %vm828, %v2867, %v2868
      %v2950 = vsel %vm828, %v2866, %v2867
      %v2951 = vsel %vm828, %v2865, %v2866
      %v2952 = vsel %vm828, %v2864, %v2865
      %v2953 = vsel %vm828, %v2863, %v2864
      %v2954 = vsel %vm828, %v2862, %v2863
      %v2955 = vsel %vm828, %v2861, %v2862
      %v2956 = vsel %vm828, %v2860, %v2861
      %v2957 = vsel %vm828, %v2859, %v2860
      %v2958 = vsel %vm828, %v2858, %v2859
      %v2959 = vsel %vm828, %v2857, %v2858
      %v2960 = vsel %vm828, %v2856, %v2857
      %v2961 = vsel %vm828, %v2855, %v2856
      %v2962 = vsel %vm828, %v2854, %v2855
      %v2963 = vsel %vm828, %v2853, %v2854
      %v2964 = vsel %vm828, %v2908, %v2853
      %3021 = vrot.lane.b32.xlu0 %v2963, 16
      %v3022 = vpop.permute.xlu0 %3021
      %3023 = vrot.lane.b32.xlu0 %v2962, 16
      %v3024 = vpop.permute.xlu0 %3023
      %3025 = vrot.lane.b32.xlu0 %v2961, 16
      %v3026 = vpop.permute.xlu0 %3025
      %3027 = vrot.lane.b32.xlu0 %v2960, 16
      %v3028 = vpop.permute.xlu0 %3027
      %3029 = vrot.lane.b32.xlu0 %v2959, 16
      %v3030 = vpop.permute.xlu0 %3029
      %3031 = vrot.lane.b32.xlu0 %v2958, 16
      %v3032 = vpop.permute.xlu0 %3031
      %3033 = vrot.lane.b32.xlu0 %v2957, 16
      %v3034 = vpop.permute.xlu0 %3033
      %3035 = vrot.lane.b32.xlu0 %v2956, 16
      %v3036 = vpop.permute.xlu0 %3035
      %3037 = vrot.lane.b32.xlu0 %v2955, 16
      %v3038 = vpop.permute.xlu0 %3037
      %3039 = vrot.lane.b32.xlu0 %v2954, 16
      %v3040 = vpop.permute.xlu0 %3039
      %3041 = vrot.lane.b32.xlu0 %v2953, 16
      %v3042 = vpop.permute.xlu0 %3041
      %3043 = vrot.lane.b32.xlu0 %v2952, 16
      %v3044 = vpop.permute.xlu0 %3043
      %3045 = vrot.lane.b32.xlu0 %v2951, 16
      %v3046 = vpop.permute.xlu0 %3045
      %3047 = vrot.lane.b32.xlu0 %v2950, 16
      %v3048 = vpop.permute.xlu0 %3047
      %3049 = vrot.lane.b32.xlu0 %v2949, 16
      %v3050 = vpop.permute.xlu0 %3049
      %3051 = vrot.lane.b32.xlu0 %v2948, 16
      %v3052 = vpop.permute.xlu0 %3051
      %3053 = vrot.lane.b32.xlu0 %v2947, 16
      %v3054 = vpop.permute.xlu0 %3053
      %3055 = vrot.lane.b32.xlu0 %v2946, 16
      %v3056 = vpop.permute.xlu0 %3055
      %3057 = vrot.lane.b32.xlu0 %v2945, 16
      %v3058 = vpop.permute.xlu0 %3057
      %3059 = vrot.lane.b32.xlu0 %v2944, 16
      %v3060 = vpop.permute.xlu0 %3059
      %3061 = vrot.lane.b32.xlu0 %v2943, 16
      %v3062 = vpop.permute.xlu0 %3061
      %3063 = vrot.lane.b32.xlu0 %v2942, 16
      %v3064 = vpop.permute.xlu0 %3063
      %3065 = vrot.lane.b32.xlu0 %v2941, 16
      %v3066 = vpop.permute.xlu0 %3065
      %3067 = vrot.lane.b32.xlu0 %v2940, 16
      %v3068 = vpop.permute.xlu0 %3067
      %3069 = vrot.lane.b32.xlu0 %v2939, 16
      %v3070 = vpop.permute.xlu0 %3069
      %3071 = vrot.lane.b32.xlu0 %v2938, 16
      %v3072 = vpop.permute.xlu0 %3071
      %3073 = vrot.lane.b32.xlu0 %v2937, 16
      %v3074 = vpop.permute.xlu0 %3073
      %3075 = vrot.lane.b32.xlu0 %v2936, 16
      %v3076 = vpop.permute.xlu0 %3075
      %3077 = vrot.lane.b32.xlu0 %v2935, 16
      %v3078 = vpop.permute.xlu0 %3077
      %3079 = vrot.lane.b32.xlu0 %v2934, 16
      %v3080 = vpop.permute.xlu0 %3079
      %3081 = vrot.lane.b32.xlu0 %v2933, 16
      %v3082 = vpop.permute.xlu0 %3081
      %3083 = vrot.lane.b32.xlu0 %v2932, 16
      %v3084 = vpop.permute.xlu0 %3083
      %3085 = vrot.lane.b32.xlu0 %v2931, 16
      %v3086 = vpop.permute.xlu0 %3085
      %3087 = vrot.lane.b32.xlu0 %v2930, 16
      %v3088 = vpop.permute.xlu0 %3087
      %3089 = vrot.lane.b32.xlu0 %v2929, 16
      %v3090 = vpop.permute.xlu0 %3089
      %3091 = vrot.lane.b32.xlu0 %v2928, 16
      %v3092 = vpop.permute.xlu0 %3091
      %3093 = vrot.lane.b32.xlu0 %v2927, 16
      %v3094 = vpop.permute.xlu0 %3093
      %3095 = vrot.lane.b32.xlu0 %v2926, 16
      %v3096 = vpop.permute.xlu0 %3095
      %3097 = vrot.lane.b32.xlu0 %v2925, 16
      %v3098 = vpop.permute.xlu0 %3097
      %3099 = vrot.lane.b32.xlu0 %v2924, 16
      %v3100 = vpop.permute.xlu0 %3099
      %3101 = vrot.lane.b32.xlu0 %v2923, 16
      %v3102 = vpop.permute.xlu0 %3101
      %3103 = vrot.lane.b32.xlu0 %v2922, 16
      %v3104 = vpop.permute.xlu0 %3103
      %3105 = vrot.lane.b32.xlu0 %v2921, 16
      %v3106 = vpop.permute.xlu0 %3105
      %3107 = vrot.lane.b32.xlu0 %v2920, 16
      %v3108 = vpop.permute.xlu0 %3107
      %3109 = vrot.lane.b32.xlu0 %v2919, 16
      %v3110 = vpop.permute.xlu0 %3109
      %3111 = vrot.lane.b32.xlu0 %v2918, 16
      %v3112 = vpop.permute.xlu0 %3111
      %3113 = vrot.lane.b32.xlu0 %v2917, 16
      %v3114 = vpop.permute.xlu0 %3113
      %3115 = vrot.lane.b32.xlu0 %v2916, 16
      %v3116 = vpop.permute.xlu0 %3115
      %3117 = vrot.lane.b32.xlu0 %v2915, 16
      %v3118 = vpop.permute.xlu0 %3117
      %3119 = vrot.lane.b32.xlu0 %v2914, 16
      %v3120 = vpop.permute.xlu0 %3119
      %3121 = vrot.lane.b32.xlu0 %v2913, 16
      %v3122 = vpop.permute.xlu0 %3121
      %3123 = vrot.lane.b32.xlu0 %v2912, 16
      %v3124 = vpop.permute.xlu0 %3123
      %3125 = vrot.lane.b32.xlu0 %v2911, 16
      %v3126 = vpop.permute.xlu0 %3125
      %3127 = vrot.lane.b32.xlu0 %v2910, 16
      %v3128 = vpop.permute.xlu0 %3127
      %3129 = vrot.lane.b32.xlu0 %v2909, 16
      %v3130 = vpop.permute.xlu0 %3129
      %3131 = vrot.lane.b32.xlu0 %v2964, 16
      %v3132 = vpop.permute.xlu0 %3131
      %3189 = vst.msk [vmem:[#allocation3] sm:$0xff] %vm1109, %v3022
      %3190 = vst.msk [vmem:[#allocation3 + $0x8] sm:$0xff] %vm1109, %v3024
      %3191 = vst.msk [vmem:[#allocation3 + $0x10] sm:$0xff] %vm1109, %v3026
      %3192 = vst.msk [vmem:[#allocation3 + $0x18] sm:$0xff] %vm1109, %v3028
      %3193 = vst.msk [vmem:[#allocation3 + $0x20] sm:$0xff] %vm1109, %v3030
      %3194 = vst.msk [vmem:[#allocation3 + $0x28] sm:$0xff] %vm1109, %v3032
      %3195 = vst.msk [vmem:[#allocation3 + $0x30] sm:$0xff] %vm1109, %v3034
      %3196 = vst.msk [vmem:[#allocation3 + $0x38] sm:$0xff] %vm1109, %v3036
      %3197 = vst.msk [vmem:[#allocation3 + $0x40] sm:$0xff] %vm1109, %v3038
      %3198 = vst.msk [vmem:[#allocation3 + $0x48] sm:$0xff] %vm1109, %v3040
      %3199 = vst.msk [vmem:[#allocation3 + $0x50] sm:$0xff] %vm1109, %v3042
      %3200 = vst.msk [vmem:[#allocation3 + $0x58] sm:$0xff] %vm1109, %v3044
      %3201 = vst.msk [vmem:[#allocation3 + $0x60] sm:$0xff] %vm1109, %v3046
      %3202 = vst.msk [vmem:[#allocation3 + $0x68] sm:$0xff] %vm1109, %v3048
      %3203 = vst.msk [vmem:[#allocation3 + $0x70] sm:$0xff] %vm1109, %v3050
      %3204 = vst.msk [vmem:[#allocation3 + $0x78] sm:$0xff] %vm1109, %v3052
      %3205 = vst.msk [vmem:[#allocation3 + $0x80] sm:$0xff] %vm1109, %v3054
      %3206 = vst.msk [vmem:[#allocation3 + $0x88] sm:$0xff] %vm1109, %v3056
      %3207 = vst.msk [vmem:[#allocation3 + $0x90] sm:$0xff] %vm1109, %v3058
      %3208 = vst.msk [vmem:[#allocation3 + $0x98] sm:$0xff] %vm1109, %v3060
      %3209 = vst.msk [vmem:[#allocation3 + $0xa0] sm:$0xff] %vm1109, %v3062
      %3210 = vst.msk [vmem:[#allocation3 + $0xa8] sm:$0xff] %vm1109, %v3064
      %3211 = vst.msk [vmem:[#allocation3 + $0xb0] sm:$0xff] %vm1109, %v3066
      %3212 = vst.msk [vmem:[#allocation3 + $0xb8] sm:$0xff] %vm1109, %v3068
      %3213 = vst.msk [vmem:[#allocation3 + $0xc0] sm:$0xff] %vm1109, %v3070
      %3214 = vst.msk [vmem:[#allocation3 + $0xc8] sm:$0xff] %vm1109, %v3072
      %3215 = vst.msk [vmem:[#allocation3 + $0xd0] sm:$0xff] %vm1109, %v3074
      %3216 = vst.msk [vmem:[#allocation3 + $0xd8] sm:$0xff] %vm1109, %v3076
      %3217 = vst.msk [vmem:[#allocation3 + $0xe0] sm:$0xff] %vm1109, %v3078
      %3218 = vst.msk [vmem:[#allocation3 + $0xe8] sm:$0xff] %vm1109, %v3080
      %3219 = vst.msk [vmem:[#allocation3 + $0xf0] sm:$0xff] %vm1109, %v3082
      %3220 = vst.msk [vmem:[#allocation3 + $0xf8] sm:$0xff] %vm1109, %v3084
      %3221 = vst.msk [vmem:[#allocation3 + $0x100] sm:$0xff] %vm1109, %v3086
      %3222 = vst.msk [vmem:[#allocation3 + $0x108] sm:$0xff] %vm1109, %v3088
      %3223 = vst.msk [vmem:[#allocation3 + $0x110] sm:$0xff] %vm1109, %v3090
      %3224 = vst.msk [vmem:[#allocation3 + $0x118] sm:$0xff] %vm1109, %v3092
      %3225 = vst.msk [vmem:[#allocation3 + $0x120] sm:$0xff] %vm1109, %v3094
      %3226 = vst.msk [vmem:[#allocation3 + $0x128] sm:$0xff] %vm1109, %v3096
      %3227 = vst.msk [vmem:[#allocation3 + $0x130] sm:$0xff] %vm1109, %v3098
      %3228 = vst.msk [vmem:[#allocation3 + $0x138] sm:$0xff] %vm1109, %v3100
      %3229 = vst.msk [vmem:[#allocation3 + $0x140] sm:$0xff] %vm1109, %v3102
      %3230 = vst.msk [vmem:[#allocation3 + $0x148] sm:$0xff] %vm1109, %v3104
      %3231 = vst.msk [vmem:[#allocation3 + $0x150] sm:$0xff] %vm1109, %v3106
      %3232 = vst.msk [vmem:[#allocation3 + $0x158] sm:$0xff] %vm1109, %v3108
      %3233 = vst.msk [vmem:[#allocation3 + $0x160] sm:$0xff] %vm1109, %v3110
      %3234 = vst.msk [vmem:[#allocation3 + $0x168] sm:$0xff] %vm1109, %v3112
      %3235 = vst.msk [vmem:[#allocation3 + $0x170] sm:$0xff] %vm1109, %v3114
      %3236 = vst.msk [vmem:[#allocation3 + $0x178] sm:$0xff] %vm1109, %v3116
      %3237 = vst.msk [vmem:[#allocation3 + $0x180] sm:$0xff] %vm1109, %v3118
      %3238 = vst.msk [vmem:[#allocation3 + $0x188] sm:$0xff] %vm1109, %v3120
      %3239 = vst.msk [vmem:[#allocation3 + $0x190] sm:$0xff] %vm1109, %v3122
      %3240 = vst.msk [vmem:[#allocation3 + $0x198] sm:$0xff] %vm1109, %v3124
      %3241 = vst.msk [vmem:[#allocation3 + $0x1a0] sm:$0xff] %vm1109, %v3126
      %3242 = vst.msk [vmem:[#allocation3 + $0x1a8] sm:$0xff] %vm1109, %v3128
      %3243 = vst.msk [vmem:[#allocation3 + $0x1b0] sm:$0xff] %vm1109, %v3130
      %3244 = vst.msk [vmem:[#allocation3 + $0x1b8] sm:$0xff] %vm1109, %v3132
      %v3245 = vld [vmem:[#allocation3 + $0x8] sm:$0xff]
      %v3246 = vld [vmem:[#allocation3 + $0x10] sm:$0xff]
      %v3247 = vld [vmem:[#allocation3 + $0x18] sm:$0xff]
      %v3248 = vld [vmem:[#allocation3 + $0x20] sm:$0xff]
      %v3249 = vld [vmem:[#allocation3 + $0x28] sm:$0xff]
      %v3250 = vld [vmem:[#allocation3 + $0x30] sm:$0xff]
      %v3251 = vld [vmem:[#allocation3 + $0x38] sm:$0xff]
      %v3252 = vld [vmem:[#allocation3 + $0x40] sm:$0xff]
      %v3253 = vld [vmem:[#allocation3 + $0x48] sm:$0xff]
      %v3254 = vld [vmem:[#allocation3 + $0x50] sm:$0xff]
      %v3255 = vld [vmem:[#allocation3 + $0x58] sm:$0xff]
      %v3256 = vld [vmem:[#allocation3 + $0x60] sm:$0xff]
      %v3257 = vld [vmem:[#allocation3 + $0x68] sm:$0xff]
      %v3258 = vld [vmem:[#allocation3 + $0x70] sm:$0xff]
      %v3259 = vld [vmem:[#allocation3 + $0x78] sm:$0xff]
      %v3260 = vld [vmem:[#allocation3 + $0x80] sm:$0xff]
      %v3261 = vld [vmem:[#allocation3 + $0x88] sm:$0xff]
      %v3262 = vld [vmem:[#allocation3 + $0x90] sm:$0xff]
      %v3263 = vld [vmem:[#allocation3 + $0x98] sm:$0xff]
      %v3264 = vld [vmem:[#allocation3 + $0xa0] sm:$0xff]
      %v3265 = vld [vmem:[#allocation3 + $0xa8] sm:$0xff]
      %v3266 = vld [vmem:[#allocation3 + $0xb0] sm:$0xff]
      %v3267 = vld [vmem:[#allocation3 + $0xb8] sm:$0xff]
      %v3268 = vld [vmem:[#allocation3 + $0xc0] sm:$0xff]
      %v3269 = vld [vmem:[#allocation3 + $0xc8] sm:$0xff]
      %v3270 = vld [vmem:[#allocation3 + $0xd0] sm:$0xff]
      %v3271 = vld [vmem:[#allocation3 + $0xd8] sm:$0xff]
      %v3272 = vld [vmem:[#allocation3 + $0xe0] sm:$0xff]
      %v3273 = vld [vmem:[#allocation3 + $0xe8] sm:$0xff]
      %v3274 = vld [vmem:[#allocation3 + $0xf0] sm:$0xff]
      %v3275 = vld [vmem:[#allocation3 + $0xf8] sm:$0xff]
      %v3276 = vld [vmem:[#allocation3 + $0x100] sm:$0xff]
      %v3277 = vld [vmem:[#allocation3 + $0x108] sm:$0xff]
      %v3278 = vld [vmem:[#allocation3 + $0x110] sm:$0xff]
      %v3279 = vld [vmem:[#allocation3 + $0x118] sm:$0xff]
      %v3280 = vld [vmem:[#allocation3 + $0x120] sm:$0xff]
      %v3281 = vld [vmem:[#allocation3 + $0x128] sm:$0xff]
      %v3282 = vld [vmem:[#allocation3 + $0x130] sm:$0xff]
      %v3283 = vld [vmem:[#allocation3 + $0x138] sm:$0xff]
      %v3284 = vld [vmem:[#allocation3 + $0x140] sm:$0xff]
      %v3285 = vld [vmem:[#allocation3 + $0x148] sm:$0xff]
      %v3286 = vld [vmem:[#allocation3 + $0x150] sm:$0xff]
      %v3287 = vld [vmem:[#allocation3 + $0x158] sm:$0xff]
      %v3288 = vld [vmem:[#allocation3 + $0x160] sm:$0xff]
      %v3289 = vld [vmem:[#allocation3 + $0x168] sm:$0xff]
      %v3290 = vld [vmem:[#allocation3 + $0x170] sm:$0xff]
      %v3291 = vld [vmem:[#allocation3 + $0x178] sm:$0xff]
      %v3292 = vld [vmem:[#allocation3 + $0x180] sm:$0xff]
      %v3293 = vld [vmem:[%s4] sm:$0xff]
      %v3294 = vld [vmem:[%s4 + $0x8] sm:$0xff]
      %v3295 = vld [vmem:[%s4 + $0x10] sm:$0xff]
      %v3296 = vld [vmem:[#allocation3 + $0x188] sm:$0xff]
      %v3297 = vld [vmem:[#allocation3 + $0x190] sm:$0xff]
      %v3298 = vld [vmem:[#allocation3 + $0x198] sm:$0xff]
      %s3299 = scalar_lea.vmem %s4, 24
      %v3300 = vld [vmem:[%s3299] sm:$0xff]
      %v3301 = vld [vmem:[%s3299 + $0x8] sm:$0xff]
      %v3302 = vld [vmem:[%s3299 + $0x10] sm:$0xff]
      %v3304 = vsel %vm1224, %v3248, 0
      %v3307 = vsel %vm1224, %v3249, 0
      %v3310 = vsel %vm1224, %v3250, 0
      %v3313 = vsel %vm1224, %v3251, 0
      %v3316 = vsel %vm1224, %v3252, 0
      %v3319 = vsel %vm1224, %v3253, 0
      %v3322 = vsel %vm1224, %v3254, 0
      %v3325 = vsel %vm1224, %v3255, 0
      %v3328 = vsel %vm1224, %v3256, 0
      %v3331 = vsel %vm1224, %v3257, 0
      %v3334 = vsel %vm1224, %v3258, 0
      %v3337 = vsel %vm1224, %v3259, 0
      %v3340 = vsel %vm1224, %v3260, 0
      %v3343 = vsel %vm1224, %v3261, 0
      %v3346 = vsel %vm1224, %v3262, 0
      %v3349 = vsel %vm1224, %v3263, 0
      %v3352 = vsel %vm1224, %v3264, 0
      %v3355 = vsel %vm1224, %v3265, 0
      %v3358 = vsel %vm1224, %v3266, 0
      %v3361 = vsel %vm1224, %v3267, 0
      %v3364 = vsel %vm1224, %v3268, 0
      %v3367 = vsel %vm1224, %v3269, 0
      %v3370 = vsel %vm1224, %v3270, 0
      %v3373 = vsel %vm1224, %v3271, 0
      %v3376 = vsel %vm1224, %v3272, 0
      %v3379 = vsel %vm1224, %v3273, 0
      %v3382 = vsel %vm1224, %v3274, 0
      %v3385 = vsel %vm1224, %v3275, 0
      %v3388 = vsel %vm1224, %v3276, 0
      %v3391 = vsel %vm1224, %v3277, 0
      %v3394 = vsel %vm1224, %v3278, 0
      %v3397 = vsel %vm1224, %v3279, 0
      %v3400 = vsel %vm1224, %v3280, 0
      %v3403 = vsel %vm1224, %v3281, 0
      %v3406 = vsel %vm1224, %v3282, 0
      %v3409 = vsel %vm1224, %v3283, 0
      %v3412 = vsel %vm1224, %v3284, 0
      %v3415 = vsel %vm1224, %v3285, 0
      %v3418 = vsel %vm1224, %v3286, 0
      %v3421 = vsel %vm1224, %v3287, 0
      %v3424 = vsel %vm1224, %v3288, 0
      %v3427 = vsel %vm1224, %v3289, 0
      %v3430 = vsel %vm1224, %v3290, 0
      %v3433 = vsel %vm1224, %v3291, 0
      %v3436 = vsel %vm1224, %v3292, 0
      %v3439 = vsel %vm1224, %v3296, 0
      %v3442 = vsel %vm1224, %v3297, 0
      %v3445 = vsel %vm1224, %v3298, 0
      %3447 = vmatpush.msra.mxu0 0.0
      %3448 = vmatpush.msra.mxu0 0.0
      %3449 = vmatpush.msra.mxu0 0.0
      %3450 = vmatpush.msra.mxu0 0.0
      %3451 = vmatpush.msra.mxu0 0.0
      %3452 = vmatpush.msra.mxu0 0.0
      %3453 = vmatpush.msra.mxu0 0.0
      %3454 = vmatpush.msra.mxu0 0.0
      %3455 = vmatpush.msra.mxu0 0.0
      %3456 = vmatpush.msra.mxu0 0.0
      %3457 = vmatpush.msra.mxu0 0.0
      %3458 = vmatpush.msra.mxu0 0.0
      %3459 = vmatpush.msra.mxu0 0.0
      %3460 = vmatpush.msra.mxu0 %v3302
      %3461 = vmatpush.msra.mxu0 %v3301
      %3462 = vmatpush.msra.mxu0 %v3300
      %3463 = vmatmul.f32.gmra.mxu0 %v3304
      %v3464 = vpop.f32.mrf.mxu0
      %v3465 = vadd.f32 0.0, %v3464
      %3466 = vmatmul.f32.gmra.mxu0 %v3307
      %v3467 = vpop.f32.mrf.mxu0
      %v3468 = vadd.f32 0.0, %v3467
      %3469 = vmatmul.f32.gmra.mxu0 %v3310
      %v3470 = vpop.f32.mrf.mxu0
      %v3471 = vadd.f32 0.0, %v3470
      %3472 = vmatmul.f32.gmra.mxu0 %v3313
      %v3473 = vpop.f32.mrf.mxu0
      %v3474 = vadd.f32 0.0, %v3473
      %3475 = vmatmul.f32.gmra.mxu0 %v3316
      %v3476 = vpop.f32.mrf.mxu0
      %v3477 = vadd.f32 0.0, %v3476
      %3478 = vmatmul.f32.gmra.mxu0 %v3319
      %v3479 = vpop.f32.mrf.mxu0
      %v3480 = vadd.f32 0.0, %v3479
      %3481 = vmatmul.f32.gmra.mxu0 %v3322
      %v3482 = vpop.f32.mrf.mxu0
      %v3483 = vadd.f32 0.0, %v3482
      %3484 = vmatmul.f32.gmra.mxu0 %v3325
      %v3485 = vpop.f32.mrf.mxu0
      %v3486 = vadd.f32 0.0, %v3485
      %3487 = vmatmul.f32.gmra.mxu0 %v3328
      %v3488 = vpop.f32.mrf.mxu0
      %v3489 = vadd.f32 0.0, %v3488
      %3490 = vmatmul.f32.gmra.mxu0 %v3331
      %v3491 = vpop.f32.mrf.mxu0
      %v3492 = vadd.f32 0.0, %v3491
      %3493 = vmatmul.f32.gmra.mxu0 %v3334
      %v3494 = vpop.f32.mrf.mxu0
      %v3495 = vadd.f32 0.0, %v3494
      %3496 = vmatmul.f32.gmra.mxu0 %v3337
      %v3497 = vpop.f32.mrf.mxu0
      %v3498 = vadd.f32 0.0, %v3497
      %3499 = vmatmul.f32.gmra.mxu0 %v3340
      %v3500 = vpop.f32.mrf.mxu0
      %v3501 = vadd.f32 0.0, %v3500
      %3502 = vmatmul.f32.gmra.mxu0 %v3343
      %v3503 = vpop.f32.mrf.mxu0
      %v3504 = vadd.f32 0.0, %v3503
      %3505 = vmatmul.f32.gmra.mxu0 %v3346
      %v3506 = vpop.f32.mrf.mxu0
      %v3507 = vadd.f32 0.0, %v3506
      %3508 = vmatmul.f32.gmra.mxu0 %v3349
      %v3509 = vpop.f32.mrf.mxu0
      %v3510 = vadd.f32 0.0, %v3509
      %3511 = vmatmul.f32.gmra.mxu0 %v3352
      %v3512 = vpop.f32.mrf.mxu0
      %v3513 = vadd.f32 0.0, %v3512
      %3514 = vmatmul.f32.gmra.mxu0 %v3355
      %v3515 = vpop.f32.mrf.mxu0
      %v3516 = vadd.f32 0.0, %v3515
      %3517 = vmatmul.f32.gmra.mxu0 %v3358
      %v3518 = vpop.f32.mrf.mxu0
      %v3519 = vadd.f32 0.0, %v3518
      %3520 = vmatmul.f32.gmra.mxu0 %v3361
      %v3521 = vpop.f32.mrf.mxu0
      %v3522 = vadd.f32 0.0, %v3521
      %3523 = vmatmul.f32.gmra.mxu0 %v3364
      %v3524 = vpop.f32.mrf.mxu0
      %v3525 = vadd.f32 0.0, %v3524
      %3526 = vmatmul.f32.gmra.mxu0 %v3367
      %v3527 = vpop.f32.mrf.mxu0
      %v3528 = vadd.f32 0.0, %v3527
      %3529 = vmatmul.f32.gmra.mxu0 %v3370
      %v3530 = vpop.f32.mrf.mxu0
      %v3531 = vadd.f32 0.0, %v3530
      %3532 = vmatmul.f32.gmra.mxu0 %v3373
      %v3533 = vpop.f32.mrf.mxu0
      %v3534 = vadd.f32 0.0, %v3533
      %3535 = vmatmul.f32.gmra.mxu0 %v3376
      %v3536 = vpop.f32.mrf.mxu0
      %v3537 = vadd.f32 0.0, %v3536
      %3538 = vmatmul.f32.gmra.mxu0 %v3379
      %v3539 = vpop.f32.mrf.mxu0
      %v3540 = vadd.f32 0.0, %v3539
      %3541 = vmatmul.f32.gmra.mxu0 %v3382
      %v3542 = vpop.f32.mrf.mxu0
      %v3543 = vadd.f32 0.0, %v3542
      %3544 = vmatmul.f32.gmra.mxu0 %v3385
      %v3545 = vpop.f32.mrf.mxu0
      %v3546 = vadd.f32 0.0, %v3545
      %3547 = vmatmul.f32.gmra.mxu0 %v3388
      %v3548 = vpop.f32.mrf.mxu0
      %v3549 = vadd.f32 0.0, %v3548
      %3550 = vmatmul.f32.gmra.mxu0 %v3391
      %v3551 = vpop.f32.mrf.mxu0
      %v3552 = vadd.f32 0.0, %v3551
      %3553 = vmatmul.f32.gmra.mxu0 %v3394
      %v3554 = vpop.f32.mrf.mxu0
      %v3555 = vadd.f32 0.0, %v3554
      %3556 = vmatmul.f32.gmra.mxu0 %v3397
      %v3557 = vpop.f32.mrf.mxu0
      %v3558 = vadd.f32 0.0, %v3557
      %3559 = vmatmul.f32.gmra.mxu0 %v3400
      %v3560 = vpop.f32.mrf.mxu0
      %v3561 = vadd.f32 0.0, %v3560
      %3562 = vmatmul.f32.gmra.mxu0 %v3403
      %v3563 = vpop.f32.mrf.mxu0
      %v3564 = vadd.f32 0.0, %v3563
      %3565 = vmatmul.f32.gmra.mxu0 %v3406
      %v3566 = vpop.f32.mrf.mxu0
      %v3567 = vadd.f32 0.0, %v3566
      %3568 = vmatmul.f32.gmra.mxu0 %v3409
      %v3569 = vpop.f32.mrf.mxu0
      %v3570 = vadd.f32 0.0, %v3569
      %3571 = vmatmul.f32.gmra.mxu0 %v3412
      %v3572 = vpop.f32.mrf.mxu0
      %v3573 = vadd.f32 0.0, %v3572
      %3574 = vmatmul.f32.gmra.mxu0 %v3415
      %v3575 = vpop.f32.mrf.mxu0
      %v3576 = vadd.f32 0.0, %v3575
      %3577 = vmatmul.f32.gmra.mxu0 %v3418
      %v3578 = vpop.f32.mrf.mxu0
      %v3579 = vadd.f32 0.0, %v3578
      %3580 = vmatmul.f32.gmra.mxu0 %v3421
      %v3581 = vpop.f32.mrf.mxu0
      %v3582 = vadd.f32 0.0, %v3581
      %3583 = vmatmul.f32.gmra.mxu0 %v3424
      %v3584 = vpop.f32.mrf.mxu0
      %v3585 = vadd.f32 0.0, %v3584
      %3586 = vmatmul.f32.gmra.mxu0 %v3427
      %v3587 = vpop.f32.mrf.mxu0
      %v3588 = vadd.f32 0.0, %v3587
      %3589 = vmatmul.f32.gmra.mxu0 %v3430
      %v3590 = vpop.f32.mrf.mxu0
      %v3591 = vadd.f32 0.0, %v3590
      %3592 = vmatmul.f32.gmra.mxu0 %v3433
      %v3593 = vpop.f32.mrf.mxu0
      %v3594 = vadd.f32 0.0, %v3593
      %3595 = vmatmul.f32.gmra.mxu0 %v3436
      %v3596 = vpop.f32.mrf.mxu0
      %v3597 = vadd.f32 0.0, %v3596
      %3598 = vmatmul.f32.gmra.mxu0 %v3439
      %v3599 = vpop.f32.mrf.mxu0
      %v3600 = vadd.f32 0.0, %v3599
      %3601 = vmatmul.f32.gmra.mxu0 %v3442
      %v3602 = vpop.f32.mrf.mxu0
      %v3603 = vadd.f32 0.0, %v3602
      %3604 = vmatmul.f32.gmra.mxu0 %v3445
      %v3605 = vpop.f32.mrf.mxu0
      %v3606 = vadd.f32 0.0, %v3605
      %3607 = vdwg.mxu0
      %v3609 = vsel %vm1224, %v3245, 0
      %v3612 = vsel %vm1224, %v3246, 0
      %v3615 = vsel %vm1224, %v3247, 0
      %3617 = vmatpush.msra.mxu0 0.0
      %3618 = vmatpush.msra.mxu0 0.0
      %3619 = vmatpush.msra.mxu0 0.0
      %3620 = vmatpush.msra.mxu0 0.0
      %3621 = vmatpush.msra.mxu0 0.0
      %3622 = vmatpush.msra.mxu0 0.0
      %3623 = vmatpush.msra.mxu0 0.0
      %3624 = vmatpush.msra.mxu0 0.0
      %3625 = vmatpush.msra.mxu0 0.0
      %3626 = vmatpush.msra.mxu0 0.0
      %3627 = vmatpush.msra.mxu0 0.0
      %3628 = vmatpush.msra.mxu0 0.0
      %3629 = vmatpush.msra.mxu0 0.0
      %3630 = vmatpush.msra.mxu0 %v3295
      %3631 = vmatpush.msra.mxu0 %v3294
      %3632 = vmatpush.msra.mxu0 %v3293
      %3633 = vmatmul.f32.gmra.mxu0 %v3609
      %v3634 = vpop.f32.mrf.mxu0
      %v3635 = vadd.f32 %v3465, %v3634
      %3636 = vmatmul.f32.gmra.mxu0 %v3612
      %v3637 = vpop.f32.mrf.mxu0
      %v3638 = vadd.f32 %v3468, %v3637
      %3639 = vmatmul.f32.gmra.mxu0 %v3615
      %v3640 = vpop.f32.mrf.mxu0
      %v3641 = vadd.f32 %v3471, %v3640
      %3642 = vmatmul.f32.gmra.mxu0 %v3304
      %v3643 = vpop.f32.mrf.mxu0
      %v3644 = vadd.f32 %v3474, %v3643
      %3645 = vmatmul.f32.gmra.mxu0 %v3307
      %v3646 = vpop.f32.mrf.mxu0
      %v3647 = vadd.f32 %v3477, %v3646
      %3648 = vmatmul.f32.gmra.mxu0 %v3310
      %v3649 = vpop.f32.mrf.mxu0
      %v3650 = vadd.f32 %v3480, %v3649
      %3651 = vmatmul.f32.gmra.mxu0 %v3313
      %v3652 = vpop.f32.mrf.mxu0
      %v3653 = vadd.f32 %v3483, %v3652
      %3654 = vmatmul.f32.gmra.mxu0 %v3316
      %v3655 = vpop.f32.mrf.mxu0
      %v3656 = vadd.f32 %v3486, %v3655
      %3657 = vmatmul.f32.gmra.mxu0 %v3319
      %v3658 = vpop.f32.mrf.mxu0
      %v3659 = vadd.f32 %v3489, %v3658
      %3660 = vmatmul.f32.gmra.mxu0 %v3322
      %v3661 = vpop.f32.mrf.mxu0
      %v3662 = vadd.f32 %v3492, %v3661
      %3663 = vmatmul.f32.gmra.mxu0 %v3325
      %v3664 = vpop.f32.mrf.mxu0
      %v3665 = vadd.f32 %v3495, %v3664
      %3666 = vmatmul.f32.gmra.mxu0 %v3328
      %v3667 = vpop.f32.mrf.mxu0
      %v3668 = vadd.f32 %v3498, %v3667
      %3669 = vmatmul.f32.gmra.mxu0 %v3331
      %v3670 = vpop.f32.mrf.mxu0
      %v3671 = vadd.f32 %v3501, %v3670
      %3672 = vmatmul.f32.gmra.mxu0 %v3334
      %v3673 = vpop.f32.mrf.mxu0
      %v3674 = vadd.f32 %v3504, %v3673
      %3675 = vmatmul.f32.gmra.mxu0 %v3337
      %v3676 = vpop.f32.mrf.mxu0
      %v3677 = vadd.f32 %v3507, %v3676
      %3678 = vmatmul.f32.gmra.mxu0 %v3340
      %v3679 = vpop.f32.mrf.mxu0
      %v3680 = vadd.f32 %v3510, %v3679
      %3681 = vmatmul.f32.gmra.mxu0 %v3343
      %v3682 = vpop.f32.mrf.mxu0
      %v3683 = vadd.f32 %v3513, %v3682
      %3684 = vmatmul.f32.gmra.mxu0 %v3346
      %v3685 = vpop.f32.mrf.mxu0
      %v3686 = vadd.f32 %v3516, %v3685
      %3687 = vmatmul.f32.gmra.mxu0 %v3349
      %v3688 = vpop.f32.mrf.mxu0
      %v3689 = vadd.f32 %v3519, %v3688
      %3690 = vmatmul.f32.gmra.mxu0 %v3352
      %v3691 = vpop.f32.mrf.mxu0
      %v3692 = vadd.f32 %v3522, %v3691
      %3693 = vmatmul.f32.gmra.mxu0 %v3355
      %v3694 = vpop.f32.mrf.mxu0
      %v3695 = vadd.f32 %v3525, %v3694
      %3696 = vmatmul.f32.gmra.mxu0 %v3358
      %v3697 = vpop.f32.mrf.mxu0
      %v3698 = vadd.f32 %v3528, %v3697
      %3699 = vmatmul.f32.gmra.mxu0 %v3361
      %v3700 = vpop.f32.mrf.mxu0
      %v3701 = vadd.f32 %v3531, %v3700
      %3702 = vmatmul.f32.gmra.mxu0 %v3364
      %v3703 = vpop.f32.mrf.mxu0
      %v3704 = vadd.f32 %v3534, %v3703
      %3705 = vmatmul.f32.gmra.mxu0 %v3367
      %v3706 = vpop.f32.mrf.mxu0
      %v3707 = vadd.f32 %v3537, %v3706
      %3708 = vmatmul.f32.gmra.mxu0 %v3370
      %v3709 = vpop.f32.mrf.mxu0
      %v3710 = vadd.f32 %v3540, %v3709
      %3711 = vmatmul.f32.gmra.mxu0 %v3373
      %v3712 = vpop.f32.mrf.mxu0
      %v3713 = vadd.f32 %v3543, %v3712
      %3714 = vmatmul.f32.gmra.mxu0 %v3376
      %v3715 = vpop.f32.mrf.mxu0
      %v3716 = vadd.f32 %v3546, %v3715
      %3717 = vmatmul.f32.gmra.mxu0 %v3379
      %v3718 = vpop.f32.mrf.mxu0
      %v3719 = vadd.f32 %v3549, %v3718
      %3720 = vmatmul.f32.gmra.mxu0 %v3382
      %v3721 = vpop.f32.mrf.mxu0
      %v3722 = vadd.f32 %v3552, %v3721
      %3723 = vmatmul.f32.gmra.mxu0 %v3385
      %v3724 = vpop.f32.mrf.mxu0
      %v3725 = vadd.f32 %v3555, %v3724
      %3726 = vmatmul.f32.gmra.mxu0 %v3388
      %v3727 = vpop.f32.mrf.mxu0
      %v3728 = vadd.f32 %v3558, %v3727
      %3729 = vmatmul.f32.gmra.mxu0 %v3391
      %v3730 = vpop.f32.mrf.mxu0
      %v3731 = vadd.f32 %v3561, %v3730
      %3732 = vmatmul.f32.gmra.mxu0 %v3394
      %v3733 = vpop.f32.mrf.mxu0
      %v3734 = vadd.f32 %v3564, %v3733
      %3735 = vmatmul.f32.gmra.mxu0 %v3397
      %v3736 = vpop.f32.mrf.mxu0
      %v3737 = vadd.f32 %v3567, %v3736
      %3738 = vmatmul.f32.gmra.mxu0 %v3400
      %v3739 = vpop.f32.mrf.mxu0
      %v3740 = vadd.f32 %v3570, %v3739
      %3741 = vmatmul.f32.gmra.mxu0 %v3403
      %v3742 = vpop.f32.mrf.mxu0
      %v3743 = vadd.f32 %v3573, %v3742
      %3744 = vmatmul.f32.gmra.mxu0 %v3406
      %v3745 = vpop.f32.mrf.mxu0
      %v3746 = vadd.f32 %v3576, %v3745
      %3747 = vmatmul.f32.gmra.mxu0 %v3409
      %v3748 = vpop.f32.mrf.mxu0
      %v3749 = vadd.f32 %v3579, %v3748
      %3750 = vmatmul.f32.gmra.mxu0 %v3412
      %v3751 = vpop.f32.mrf.mxu0
      %v3752 = vadd.f32 %v3582, %v3751
      %3753 = vmatmul.f32.gmra.mxu0 %v3415
      %v3754 = vpop.f32.mrf.mxu0
      %v3755 = vadd.f32 %v3585, %v3754
      %3756 = vmatmul.f32.gmra.mxu0 %v3418
      %v3757 = vpop.f32.mrf.mxu0
      %v3758 = vadd.f32 %v3588, %v3757
      %3759 = vmatmul.f32.gmra.mxu0 %v3421
      %v3760 = vpop.f32.mrf.mxu0
      %v3761 = vadd.f32 %v3591, %v3760
      %3762 = vmatmul.f32.gmra.mxu0 %v3424
      %v3763 = vpop.f32.mrf.mxu0
      %v3764 = vadd.f32 %v3594, %v3763
      %3765 = vmatmul.f32.gmra.mxu0 %v3427
      %v3766 = vpop.f32.mrf.mxu0
      %v3767 = vadd.f32 %v3597, %v3766
      %3768 = vmatmul.f32.gmra.mxu0 %v3430
      %v3769 = vpop.f32.mrf.mxu0
      %v3770 = vadd.f32 %v3600, %v3769
      %3771 = vmatmul.f32.gmra.mxu0 %v3433
      %v3772 = vpop.f32.mrf.mxu0
      %v3773 = vadd.f32 %v3603, %v3772
      %3774 = vmatmul.f32.gmra.mxu0 %v3436
      %v3775 = vpop.f32.mrf.mxu0
      %v3776 = vadd.f32 %v3606, %v3775
      %3777 = vdwg.mxu0
      %v3778 = vld [vmem:[#allocation3 + $0x38] sm:$0xff]
      %v3779 = vld [vmem:[#allocation3 + $0x40] sm:$0xff]
      %v3780 = vld [vmem:[#allocation3 + $0x48] sm:$0xff]
      %v3781 = vld [vmem:[#allocation3 + $0x50] sm:$0xff]
      %v3782 = vld [vmem:[#allocation3 + $0x58] sm:$0xff]
      %v3783 = vld [vmem:[#allocation3 + $0x60] sm:$0xff]
      %v3784 = vld [vmem:[#allocation3 + $0x68] sm:$0xff]
      %v3785 = vld [vmem:[#allocation3 + $0x70] sm:$0xff]
      %v3786 = vld [vmem:[#allocation3 + $0x78] sm:$0xff]
      %v3787 = vld [vmem:[#allocation3 + $0x80] sm:$0xff]
      %v3788 = vld [vmem:[#allocation3 + $0x88] sm:$0xff]
      %v3789 = vld [vmem:[#allocation3 + $0x90] sm:$0xff]
      %v3790 = vld [vmem:[#allocation3 + $0x98] sm:$0xff]
      %v3791 = vld [vmem:[#allocation3 + $0xa0] sm:$0xff]
      %v3792 = vld [vmem:[#allocation3 + $0xa8] sm:$0xff]
      %v3793 = vld [vmem:[#allocation3 + $0xb0] sm:$0xff]
      %v3794 = vld [vmem:[#allocation3 + $0xb8] sm:$0xff]
      %v3795 = vld [vmem:[#allocation3 + $0xc0] sm:$0xff]
      %v3796 = vld [vmem:[#allocation3 + $0xc8] sm:$0xff]
      %v3797 = vld [vmem:[#allocation3 + $0xd0] sm:$0xff]
      %v3798 = vld [vmem:[#allocation3 + $0xd8] sm:$0xff]
      %v3799 = vld [vmem:[#allocation3 + $0xe0] sm:$0xff]
      %v3800 = vld [vmem:[#allocation3 + $0xe8] sm:$0xff]
      %v3801 = vld [vmem:[#allocation3 + $0xf0] sm:$0xff]
      %v3802 = vld [vmem:[#allocation3 + $0xf8] sm:$0xff]
      %v3803 = vld [vmem:[#allocation3 + $0x100] sm:$0xff]
      %v3804 = vld [vmem:[#allocation3 + $0x108] sm:$0xff]
      %v3805 = vld [vmem:[#allocation3 + $0x110] sm:$0xff]
      %v3806 = vld [vmem:[#allocation3 + $0x118] sm:$0xff]
      %v3807 = vld [vmem:[#allocation3 + $0x120] sm:$0xff]
      %v3808 = vld [vmem:[#allocation3 + $0x128] sm:$0xff]
      %v3809 = vld [vmem:[#allocation3 + $0x130] sm:$0xff]
      %v3810 = vld [vmem:[#allocation3 + $0x138] sm:$0xff]
      %v3811 = vld [vmem:[#allocation3 + $0x140] sm:$0xff]
      %v3812 = vld [vmem:[#allocation3 + $0x148] sm:$0xff]
      %v3813 = vld [vmem:[#allocation3 + $0x150] sm:$0xff]
      %v3814 = vld [vmem:[#allocation3 + $0x158] sm:$0xff]
      %v3815 = vld [vmem:[#allocation3 + $0x160] sm:$0xff]
      %v3816 = vld [vmem:[#allocation3 + $0x168] sm:$0xff]
      %v3817 = vld [vmem:[#allocation3 + $0x170] sm:$0xff]
      %v3818 = vld [vmem:[#allocation3 + $0x178] sm:$0xff]
      %v3819 = vld [vmem:[#allocation3 + $0x180] sm:$0xff]
      %v3820 = vld [vmem:[#allocation3 + $0x188] sm:$0xff]
      %v3821 = vld [vmem:[#allocation3 + $0x190] sm:$0xff]
      %v3822 = vld [vmem:[#allocation3 + $0x198] sm:$0xff]
      %v3823 = vld [vmem:[#allocation3 + $0x1a0] sm:$0xff]
      %v3824 = vld [vmem:[#allocation3 + $0x1a8] sm:$0xff]
      %v3825 = vld [vmem:[#allocation3 + $0x1b0] sm:$0xff]
      %s3826 = scalar_lea.vmem %s4, 48
      %v3827 = vld [vmem:[%s3826] sm:$0xff]
      %v3828 = vld [vmem:[%s3826 + $0x8] sm:$0xff]
      %v3829 = vld [vmem:[%s3826 + $0x10] sm:$0xff]
      %v3831 = vsel %vm1224, %v3778, 0
      %v3834 = vsel %vm1224, %v3779, 0
      %v3837 = vsel %vm1224, %v3780, 0
      %v3840 = vsel %vm1224, %v3781, 0
      %v3843 = vsel %vm1224, %v3782, 0
      %v3846 = vsel %vm1224, %v3783, 0
      %v3849 = vsel %vm1224, %v3784, 0
      %v3852 = vsel %vm1224, %v3785, 0
      %v3855 = vsel %vm1224, %v3786, 0
      %v3858 = vsel %vm1224, %v3787, 0
      %v3861 = vsel %vm1224, %v3788, 0
      %v3864 = vsel %vm1224, %v3789, 0
      %v3867 = vsel %vm1224, %v3790, 0
      %v3870 = vsel %vm1224, %v3791, 0
      %v3873 = vsel %vm1224, %v3792, 0
      %v3876 = vsel %vm1224, %v3793, 0
      %v3879 = vsel %vm1224, %v3794, 0
      %v3882 = vsel %vm1224, %v3795, 0
      %v3885 = vsel %vm1224, %v3796, 0
      %v3888 = vsel %vm1224, %v3797, 0
      %v3891 = vsel %vm1224, %v3798, 0
      %v3894 = vsel %vm1224, %v3799, 0
      %v3897 = vsel %vm1224, %v3800, 0
      %v3900 = vsel %vm1224, %v3801, 0
      %v3903 = vsel %vm1224, %v3802, 0
      %v3906 = vsel %vm1224, %v3803, 0
      %v3909 = vsel %vm1224, %v3804, 0
      %v3912 = vsel %vm1224, %v3805, 0
      %v3915 = vsel %vm1224, %v3806, 0
      %v3918 = vsel %vm1224, %v3807, 0
      %v3921 = vsel %vm1224, %v3808, 0
      %v3924 = vsel %vm1224, %v3809, 0
      %v3927 = vsel %vm1224, %v3810, 0
      %v3930 = vsel %vm1224, %v3811, 0
      %v3933 = vsel %vm1224, %v3812, 0
      %v3936 = vsel %vm1224, %v3813, 0
      %v3939 = vsel %vm1224, %v3814, 0
      %v3942 = vsel %vm1224, %v3815, 0
      %v3945 = vsel %vm1224, %v3816, 0
      %v3948 = vsel %vm1224, %v3817, 0
      %v3951 = vsel %vm1224, %v3818, 0
      %v3954 = vsel %vm1224, %v3819, 0
      %v3957 = vsel %vm1224, %v3820, 0
      %v3960 = vsel %vm1224, %v3821, 0
      %v3963 = vsel %vm1224, %v3822, 0
      %v3966 = vsel %vm1224, %v3823, 0
      %v3969 = vsel %vm1224, %v3824, 0
      %v3972 = vsel %vm1224, %v3825, 0
      %3974 = vmatpush.msra.mxu0 0.0
      %3975 = vmatpush.msra.mxu0 0.0
      %3976 = vmatpush.msra.mxu0 0.0
      %3977 = vmatpush.msra.mxu0 0.0
      %3978 = vmatpush.msra.mxu0 0.0
      %3979 = vmatpush.msra.mxu0 0.0
      %3980 = vmatpush.msra.mxu0 0.0
      %3981 = vmatpush.msra.mxu0 0.0
      %3982 = vmatpush.msra.mxu0 0.0
      %3983 = vmatpush.msra.mxu0 0.0
      %3984 = vmatpush.msra.mxu0 0.0
      %3985 = vmatpush.msra.mxu0 0.0
      %3986 = vmatpush.msra.mxu0 0.0
      %3987 = vmatpush.msra.mxu0 %v3829
      %3988 = vmatpush.msra.mxu0 %v3828
      %3989 = vmatpush.msra.mxu0 %v3827
      %3990 = vmatmul.f32.gmra.mxu0 %v3831
      %v3991 = vpop.f32.mrf.mxu0
      %v3992 = vadd.f32 0.0, %v3991
      %3993 = vmatmul.f32.gmra.mxu0 %v3834
      %v3994 = vpop.f32.mrf.mxu0
      %v3995 = vadd.f32 0.0, %v3994
      %3996 = vmatmul.f32.gmra.mxu0 %v3837
      %v3997 = vpop.f32.mrf.mxu0
      %v3998 = vadd.f32 0.0, %v3997
      %3999 = vmatmul.f32.gmra.mxu0 %v3840
      %v4000 = vpop.f32.mrf.mxu0
      %v4001 = vadd.f32 0.0, %v4000
      %4002 = vmatmul.f32.gmra.mxu0 %v3843
      %v4003 = vpop.f32.mrf.mxu0
      %v4004 = vadd.f32 0.0, %v4003
      %4005 = vmatmul.f32.gmra.mxu0 %v3846
      %v4006 = vpop.f32.mrf.mxu0
      %v4007 = vadd.f32 0.0, %v4006
      %4008 = vmatmul.f32.gmra.mxu0 %v3849
      %v4009 = vpop.f32.mrf.mxu0
      %v4010 = vadd.f32 0.0, %v4009
      %4011 = vmatmul.f32.gmra.mxu0 %v3852
      %v4012 = vpop.f32.mrf.mxu0
      %v4013 = vadd.f32 0.0, %v4012
      %4014 = vmatmul.f32.gmra.mxu0 %v3855
      %v4015 = vpop.f32.mrf.mxu0
      %v4016 = vadd.f32 0.0, %v4015
      %4017 = vmatmul.f32.gmra.mxu0 %v3858
      %v4018 = vpop.f32.mrf.mxu0
      %v4019 = vadd.f32 0.0, %v4018
      %4020 = vmatmul.f32.gmra.mxu0 %v3861
      %v4021 = vpop.f32.mrf.mxu0
      %v4022 = vadd.f32 0.0, %v4021
      %4023 = vmatmul.f32.gmra.mxu0 %v3864
      %v4024 = vpop.f32.mrf.mxu0
      %v4025 = vadd.f32 0.0, %v4024
      %4026 = vmatmul.f32.gmra.mxu0 %v3867
      %v4027 = vpop.f32.mrf.mxu0
      %v4028 = vadd.f32 0.0, %v4027
      %4029 = vmatmul.f32.gmra.mxu0 %v3870
      %v4030 = vpop.f32.mrf.mxu0
      %v4031 = vadd.f32 0.0, %v4030
      %4032 = vmatmul.f32.gmra.mxu0 %v3873
      %v4033 = vpop.f32.mrf.mxu0
      %v4034 = vadd.f32 0.0, %v4033
      %4035 = vmatmul.f32.gmra.mxu0 %v3876
      %v4036 = vpop.f32.mrf.mxu0
      %v4037 = vadd.f32 0.0, %v4036
      %4038 = vmatmul.f32.gmra.mxu0 %v3879
      %v4039 = vpop.f32.mrf.mxu0
      %v4040 = vadd.f32 0.0, %v4039
      %4041 = vmatmul.f32.gmra.mxu0 %v3882
      %v4042 = vpop.f32.mrf.mxu0
      %v4043 = vadd.f32 0.0, %v4042
      %4044 = vmatmul.f32.gmra.mxu0 %v3885
      %v4045 = vpop.f32.mrf.mxu0
      %v4046 = vadd.f32 0.0, %v4045
      %4047 = vmatmul.f32.gmra.mxu0 %v3888
      %v4048 = vpop.f32.mrf.mxu0
      %v4049 = vadd.f32 0.0, %v4048
      %4050 = vmatmul.f32.gmra.mxu0 %v3891
      %v4051 = vpop.f32.mrf.mxu0
      %v4052 = vadd.f32 0.0, %v4051
      %4053 = vmatmul.f32.gmra.mxu0 %v3894
      %v4054 = vpop.f32.mrf.mxu0
      %v4055 = vadd.f32 0.0, %v4054
      %4056 = vmatmul.f32.gmra.mxu0 %v3897
      %v4057 = vpop.f32.mrf.mxu0
      %v4058 = vadd.f32 0.0, %v4057
      %4059 = vmatmul.f32.gmra.mxu0 %v3900
      %v4060 = vpop.f32.mrf.mxu0
      %v4061 = vadd.f32 0.0, %v4060
      %4062 = vmatmul.f32.gmra.mxu0 %v3903
      %v4063 = vpop.f32.mrf.mxu0
      %v4064 = vadd.f32 0.0, %v4063
      %4065 = vmatmul.f32.gmra.mxu0 %v3906
      %v4066 = vpop.f32.mrf.mxu0
      %v4067 = vadd.f32 0.0, %v4066
      %4068 = vmatmul.f32.gmra.mxu0 %v3909
      %v4069 = vpop.f32.mrf.mxu0
      %v4070 = vadd.f32 0.0, %v4069
      %4071 = vmatmul.f32.gmra.mxu0 %v3912
      %v4072 = vpop.f32.mrf.mxu0
      %v4073 = vadd.f32 0.0, %v4072
      %4074 = vmatmul.f32.gmra.mxu0 %v3915
      %v4075 = vpop.f32.mrf.mxu0
      %v4076 = vadd.f32 0.0, %v4075
      %4077 = vmatmul.f32.gmra.mxu0 %v3918
      %v4078 = vpop.f32.mrf.mxu0
      %v4079 = vadd.f32 0.0, %v4078
      %4080 = vmatmul.f32.gmra.mxu0 %v3921
      %v4081 = vpop.f32.mrf.mxu0
      %v4082 = vadd.f32 0.0, %v4081
      %4083 = vmatmul.f32.gmra.mxu0 %v3924
      %v4084 = vpop.f32.mrf.mxu0
      %v4085 = vadd.f32 0.0, %v4084
      %4086 = vmatmul.f32.gmra.mxu0 %v3927
      %v4087 = vpop.f32.mrf.mxu0
      %v4088 = vadd.f32 0.0, %v4087
      %4089 = vmatmul.f32.gmra.mxu0 %v3930
      %v4090 = vpop.f32.mrf.mxu0
      %v4091 = vadd.f32 0.0, %v4090
      %4092 = vmatmul.f32.gmra.mxu0 %v3933
      %v4093 = vpop.f32.mrf.mxu0
      %v4094 = vadd.f32 0.0, %v4093
      %4095 = vmatmul.f32.gmra.mxu0 %v3936
      %v4096 = vpop.f32.mrf.mxu0
      %v4097 = vadd.f32 0.0, %v4096
      %4098 = vmatmul.f32.gmra.mxu0 %v3939
      %v4099 = vpop.f32.mrf.mxu0
      %v4100 = vadd.f32 0.0, %v4099
      %4101 = vmatmul.f32.gmra.mxu0 %v3942
      %v4102 = vpop.f32.mrf.mxu0
      %v4103 = vadd.f32 0.0, %v4102
      %4104 = vmatmul.f32.gmra.mxu0 %v3945
      %v4105 = vpop.f32.mrf.mxu0
      %v4106 = vadd.f32 0.0, %v4105
      %4107 = vmatmul.f32.gmra.mxu0 %v3948
      %v4108 = vpop.f32.mrf.mxu0
      %v4109 = vadd.f32 0.0, %v4108
      %4110 = vmatmul.f32.gmra.mxu0 %v3951
      %v4111 = vpop.f32.mrf.mxu0
      %v4112 = vadd.f32 0.0, %v4111
      %4113 = vmatmul.f32.gmra.mxu0 %v3954
      %v4114 = vpop.f32.mrf.mxu0
      %v4115 = vadd.f32 0.0, %v4114
      %4116 = vmatmul.f32.gmra.mxu0 %v3957
      %v4117 = vpop.f32.mrf.mxu0
      %v4118 = vadd.f32 0.0, %v4117
      %4119 = vmatmul.f32.gmra.mxu0 %v3960
      %v4120 = vpop.f32.mrf.mxu0
      %v4121 = vadd.f32 0.0, %v4120
      %4122 = vmatmul.f32.gmra.mxu0 %v3963
      %v4123 = vpop.f32.mrf.mxu0
      %v4124 = vadd.f32 0.0, %v4123
      %4125 = vmatmul.f32.gmra.mxu0 %v3966
      %v4126 = vpop.f32.mrf.mxu0
      %v4127 = vadd.f32 0.0, %v4126
      %4128 = vmatmul.f32.gmra.mxu0 %v3969
      %v4129 = vpop.f32.mrf.mxu0
      %v4130 = vadd.f32 0.0, %v4129
      %4131 = vmatmul.f32.gmra.mxu0 %v3972
      %v4132 = vpop.f32.mrf.mxu0
      %v4133 = vadd.f32 0.0, %v4132
      %4134 = vdwg.mxu0
      %v4135 = vadd.f32 %v3635, %v3992
      %v4136 = vadd.f32 %v3638, %v3995
      %v4137 = vadd.f32 %v3641, %v3998
      %v4138 = vadd.f32 %v3644, %v4001
      %v4139 = vadd.f32 %v3647, %v4004
      %v4140 = vadd.f32 %v3650, %v4007
      %v4141 = vadd.f32 %v3653, %v4010
      %v4142 = vadd.f32 %v3656, %v4013
      %v4143 = vadd.f32 %v3659, %v4016
      %v4144 = vadd.f32 %v3662, %v4019
      %v4145 = vadd.f32 %v3665, %v4022
      %v4146 = vadd.f32 %v3668, %v4025
      %v4147 = vadd.f32 %v3671, %v4028
      %v4148 = vadd.f32 %v3674, %v4031
      %v4149 = vadd.f32 %v3677, %v4034
      %v4150 = vadd.f32 %v3680, %v4037
      %v4151 = vadd.f32 %v3683, %v4040
      %v4152 = vadd.f32 %v3686, %v4043
      %v4153 = vadd.f32 %v3689, %v4046
      %v4154 = vadd.f32 %v3692, %v4049
      %v4155 = vadd.f32 %v3695, %v4052
      %v4156 = vadd.f32 %v3698, %v4055
      %v4157 = vadd.f32 %v3701, %v4058
      %v4158 = vadd.f32 %v3704, %v4061
      %v4159 = vadd.f32 %v3707, %v4064
      %v4160 = vadd.f32 %v3710, %v4067
      %v4161 = vadd.f32 %v3713, %v4070
      %v4162 = vadd.f32 %v3716, %v4073
      %v4163 = vadd.f32 %v3719, %v4076
      %v4164 = vadd.f32 %v3722, %v4079
      %v4165 = vadd.f32 %v3725, %v4082
      %v4166 = vadd.f32 %v3728, %v4085
      %v4167 = vadd.f32 %v3731, %v4088
      %v4168 = vadd.f32 %v3734, %v4091
      %v4169 = vadd.f32 %v3737, %v4094
      %v4170 = vadd.f32 %v3740, %v4097
      %v4171 = vadd.f32 %v3743, %v4100
      %v4172 = vadd.f32 %v3746, %v4103
      %v4173 = vadd.f32 %v3749, %v4106
      %v4174 = vadd.f32 %v3752, %v4109
      %v4175 = vadd.f32 %v3755, %v4112
      %v4176 = vadd.f32 %v3758, %v4115
      %v4177 = vadd.f32 %v3761, %v4118
      %v4178 = vadd.f32 %v3764, %v4121
      %v4179 = vadd.f32 %v3767, %v4124
      %v4180 = vadd.f32 %v3770, %v4127
      %v4181 = vadd.f32 %v3773, %v4130
      %v4182 = vadd.f32 %v3776, %v4133
      %v4183 = vld [vmem:[%s5] sm:$0x1]
      %v4185 = vperm.slane %v4183, 0
      %v4187 = vadd.f32 %v4135, %v4185
      %v4188 = vadd.f32 %v4136, %v4185
      %v4189 = vadd.f32 %v4137, %v4185
      %v4190 = vadd.f32 %v4138, %v4185
      %v4191 = vadd.f32 %v4139, %v4185
      %v4192 = vadd.f32 %v4140, %v4185
      %v4193 = vadd.f32 %v4141, %v4185
      %v4194 = vadd.f32 %v4142, %v4185
      %v4195 = vadd.f32 %v4143, %v4185
      %v4196 = vadd.f32 %v4144, %v4185
      %v4197 = vadd.f32 %v4145, %v4185
      %v4198 = vadd.f32 %v4146, %v4185
      %v4199 = vadd.f32 %v4147, %v4185
      %v4200 = vadd.f32 %v4148, %v4185
      %v4201 = vadd.f32 %v4149, %v4185
      %v4202 = vadd.f32 %v4150, %v4185
      %v4203 = vadd.f32 %v4151, %v4185
      %v4204 = vadd.f32 %v4152, %v4185
      %v4205 = vadd.f32 %v4153, %v4185
      %v4206 = vadd.f32 %v4154, %v4185
      %v4207 = vadd.f32 %v4155, %v4185
      %v4208 = vadd.f32 %v4156, %v4185
      %v4209 = vadd.f32 %v4157, %v4185
      %v4210 = vadd.f32 %v4158, %v4185
      %v4211 = vadd.f32 %v4159, %v4185
      %v4212 = vadd.f32 %v4160, %v4185
      %v4213 = vadd.f32 %v4161, %v4185
      %v4214 = vadd.f32 %v4162, %v4185
      %v4215 = vadd.f32 %v4163, %v4185
      %v4216 = vadd.f32 %v4164, %v4185
      %v4217 = vadd.f32 %v4165, %v4185
      %v4218 = vadd.f32 %v4166, %v4185
      %v4219 = vadd.f32 %v4167, %v4185
      %v4220 = vadd.f32 %v4168, %v4185
      %v4221 = vadd.f32 %v4169, %v4185
      %v4222 = vadd.f32 %v4170, %v4185
      %v4223 = vadd.f32 %v4171, %v4185
      %v4224 = vadd.f32 %v4172, %v4185
      %v4225 = vadd.f32 %v4173, %v4185
      %v4226 = vadd.f32 %v4174, %v4185
      %v4227 = vadd.f32 %v4175, %v4185
      %v4228 = vadd.f32 %v4176, %v4185
      %v4229 = vadd.f32 %v4177, %v4185
      %v4230 = vadd.f32 %v4178, %v4185
      %v4231 = vadd.f32 %v4179, %v4185
      %v4232 = vadd.f32 %v4180, %v4185
      %v4233 = vadd.f32 %v4181, %v4185
      %v4234 = vadd.f32 %v4182, %v4185
      %v4235 = vld [vmem:[%s247 + $0x20] sm:$0xff]
      %v4236 = vld [vmem:[%s247 + $0x28] sm:$0xff]
      %v4237 = vld [vmem:[%s247 + $0x30] sm:$0xff]
      %v4238 = vld [vmem:[%s247 + $0x38] sm:$0xff]
      %v4239 = vld [vmem:[%s247 + $0x40] sm:$0xff]
      %v4240 = vld [vmem:[%s247 + $0x48] sm:$0xff]
      %v4241 = vld [vmem:[%s247 + $0x50] sm:$0xff]
      %v4242 = vld [vmem:[%s247 + $0x58] sm:$0xff]
      %v4243 = vld [vmem:[%s247 + $0x60] sm:$0xff]
      %v4244 = vld [vmem:[%s247 + $0x68] sm:$0xff]
      %v4245 = vld [vmem:[%s247 + $0x70] sm:$0xff]
      %v4246 = vld [vmem:[%s247 + $0x78] sm:$0xff]
      %v4247 = vld [vmem:[%s247 + $0x80] sm:$0xff]
      %v4248 = vld [vmem:[%s247 + $0x88] sm:$0xff]
      %v4249 = vld [vmem:[%s247 + $0x90] sm:$0xff]
      %v4250 = vld [vmem:[%s247 + $0x98] sm:$0xff]
      %v4251 = vld [vmem:[%s247 + $0xa0] sm:$0xff]
      %v4252 = vld [vmem:[%s247 + $0xa8] sm:$0xff]
      %v4253 = vld [vmem:[%s247 + $0xb0] sm:$0xff]
      %v4254 = vld [vmem:[%s247 + $0xb8] sm:$0xff]
      %v4255 = vld [vmem:[%s247 + $0xc0] sm:$0xff]
      %v4256 = vld [vmem:[%s247 + $0xc8] sm:$0xff]
      %v4257 = vld [vmem:[%s247 + $0xd0] sm:$0xff]
      %v4258 = vld [vmem:[%s247 + $0xd8] sm:$0xff]
      %v4259 = vld [vmem:[%s247 + $0xe0] sm:$0xff]
      %v4260 = vld [vmem:[%s247 + $0xe8] sm:$0xff]
      %v4261 = vld [vmem:[%s247 + $0xf0] sm:$0xff]
      %v4262 = vld [vmem:[%s247 + $0xf8] sm:$0xff]
      %v4263 = vld [vmem:[%s247 + $0x100] sm:$0xff]
      %v4264 = vld [vmem:[%s247 + $0x108] sm:$0xff]
      %v4265 = vld [vmem:[%s247 + $0x110] sm:$0xff]
      %v4266 = vld [vmem:[%s247 + $0x118] sm:$0xff]
      %v4267 = vld [vmem:[%s247 + $0x120] sm:$0xff]
      %v4268 = vld [vmem:[%s247 + $0x128] sm:$0xff]
      %v4269 = vld [vmem:[%s247 + $0x130] sm:$0xff]
      %v4270 = vld [vmem:[%s247 + $0x138] sm:$0xff]
      %v4271 = vld [vmem:[%s247 + $0x140] sm:$0xff]
      %v4272 = vld [vmem:[%s247 + $0x148] sm:$0xff]
      %v4273 = vld [vmem:[%s247 + $0x150] sm:$0xff]
      %v4274 = vld [vmem:[%s247 + $0x158] sm:$0xff]
      %v4275 = vld [vmem:[%s247 + $0x160] sm:$0xff]
      %v4276 = vld [vmem:[%s247 + $0x168] sm:$0xff]
      %v4277 = vld [vmem:[%s247 + $0x170] sm:$0xff]
      %v4278 = vld [vmem:[%s247 + $0x178] sm:$0xff]
      %v4279 = vld [vmem:[%s247 + $0x180] sm:$0xff]
      %v4280 = vld [vmem:[%s247 + $0x188] sm:$0xff]
      %v4281 = vld [vmem:[%s247 + $0x190] sm:$0xff]
      %v4282 = vld [vmem:[%s247 + $0x198] sm:$0xff]
      %v4283 = vadd.f32 %v4187, %v4235
      %v4284 = vadd.f32 %v4188, %v4236
      %v4285 = vadd.f32 %v4189, %v4237
      %v4286 = vadd.f32 %v4190, %v4238
      %v4287 = vadd.f32 %v4191, %v4239
      %v4288 = vadd.f32 %v4192, %v4240
      %v4289 = vadd.f32 %v4193, %v4241
      %v4290 = vadd.f32 %v4194, %v4242
      %v4291 = vadd.f32 %v4195, %v4243
      %v4292 = vadd.f32 %v4196, %v4244
      %v4293 = vadd.f32 %v4197, %v4245
      %v4294 = vadd.f32 %v4198, %v4246
      %v4295 = vadd.f32 %v4199, %v4247
      %v4296 = vadd.f32 %v4200, %v4248
      %v4297 = vadd.f32 %v4201, %v4249
      %v4298 = vadd.f32 %v4202, %v4250
      %v4299 = vadd.f32 %v4203, %v4251
      %v4300 = vadd.f32 %v4204, %v4252
      %v4301 = vadd.f32 %v4205, %v4253
      %v4302 = vadd.f32 %v4206, %v4254
      %v4303 = vadd.f32 %v4207, %v4255
      %v4304 = vadd.f32 %v4208, %v4256
      %v4305 = vadd.f32 %v4209, %v4257
      %v4306 = vadd.f32 %v4210, %v4258
      %v4307 = vadd.f32 %v4211, %v4259
      %v4308 = vadd.f32 %v4212, %v4260
      %v4309 = vadd.f32 %v4213, %v4261
      %v4310 = vadd.f32 %v4214, %v4262
      %v4311 = vadd.f32 %v4215, %v4263
      %v4312 = vadd.f32 %v4216, %v4264
      %v4313 = vadd.f32 %v4217, %v4265
      %v4314 = vadd.f32 %v4218, %v4266
      %v4315 = vadd.f32 %v4219, %v4267
      %v4316 = vadd.f32 %v4220, %v4268
      %v4317 = vadd.f32 %v4221, %v4269
      %v4318 = vadd.f32 %v4222, %v4270
      %v4319 = vadd.f32 %v4223, %v4271
      %v4320 = vadd.f32 %v4224, %v4272
      %v4321 = vadd.f32 %v4225, %v4273
      %v4322 = vadd.f32 %v4226, %v4274
      %v4323 = vadd.f32 %v4227, %v4275
      %v4324 = vadd.f32 %v4228, %v4276
      %v4325 = vadd.f32 %v4229, %v4277
      %v4326 = vadd.f32 %v4230, %v4278
      %v4327 = vadd.f32 %v4231, %v4279
      %v4328 = vadd.f32 %v4232, %v4280
      %v4329 = vadd.f32 %v4233, %v4281
      %v4330 = vadd.f32 %v4234, %v4282
      %v4331 = vmax.f32 %v4283, 0.0
      %v4332 = vmax.f32 %v4284, 0.0
      %v4333 = vmax.f32 %v4285, 0.0
      %v4334 = vmax.f32 %v4286, 0.0
      %v4335 = vmax.f32 %v4287, 0.0
      %v4336 = vmax.f32 %v4288, 0.0
      %v4337 = vmax.f32 %v4289, 0.0
      %v4338 = vmax.f32 %v4290, 0.0
      %v4339 = vmax.f32 %v4291, 0.0
      %v4340 = vmax.f32 %v4292, 0.0
      %v4341 = vmax.f32 %v4293, 0.0
      %v4342 = vmax.f32 %v4294, 0.0
      %v4343 = vmax.f32 %v4295, 0.0
      %v4344 = vmax.f32 %v4296, 0.0
      %v4345 = vmax.f32 %v4297, 0.0
      %v4346 = vmax.f32 %v4298, 0.0
      %v4347 = vmax.f32 %v4299, 0.0
      %v4348 = vmax.f32 %v4300, 0.0
      %v4349 = vmax.f32 %v4301, 0.0
      %v4350 = vmax.f32 %v4302, 0.0
      %v4351 = vmax.f32 %v4303, 0.0
      %v4352 = vmax.f32 %v4304, 0.0
      %v4353 = vmax.f32 %v4305, 0.0
      %v4354 = vmax.f32 %v4306, 0.0
      %v4355 = vmax.f32 %v4307, 0.0
      %v4356 = vmax.f32 %v4308, 0.0
      %v4357 = vmax.f32 %v4309, 0.0
      %v4358 = vmax.f32 %v4310, 0.0
      %v4359 = vmax.f32 %v4311, 0.0
      %v4360 = vmax.f32 %v4312, 0.0
      %v4361 = vmax.f32 %v4313, 0.0
      %v4362 = vmax.f32 %v4314, 0.0
      %v4363 = vmax.f32 %v4315, 0.0
      %v4364 = vmax.f32 %v4316, 0.0
      %v4365 = vmax.f32 %v4317, 0.0
      %v4366 = vmax.f32 %v4318, 0.0
      %v4367 = vmax.f32 %v4319, 0.0
      %v4368 = vmax.f32 %v4320, 0.0
      %v4369 = vmax.f32 %v4321, 0.0
      %v4370 = vmax.f32 %v4322, 0.0
      %v4371 = vmax.f32 %v4323, 0.0
      %v4372 = vmax.f32 %v4324, 0.0
      %v4373 = vmax.f32 %v4325, 0.0
      %v4374 = vmax.f32 %v4326, 0.0
      %v4375 = vmax.f32 %v4327, 0.0
      %v4376 = vmax.f32 %v4328, 0.0
      %v4377 = vmax.f32 %v4329, 0.0
      %v4378 = vmax.f32 %v4330, 0.0
      %4379 = vst.msk [vmem:[%s253] sm:$0xff] %vm255, %v4331
      %4380 = vst.msk [vmem:[%s253 + $0x8] sm:$0xff] %vm255, %v4332
      %4381 = vst.msk [vmem:[%s253 + $0x10] sm:$0xff] %vm255, %v4333
      %4382 = vst.msk [vmem:[%s253 + $0x18] sm:$0xff] %vm255, %v4334
      %4383 = vst.msk [vmem:[%s253 + $0x20] sm:$0xff] %vm255, %v4335
      %4384 = vst.msk [vmem:[%s253 + $0x28] sm:$0xff] %vm255, %v4336
      %4385 = vst.msk [vmem:[%s253 + $0x30] sm:$0xff] %vm255, %v4337
      %4386 = vst.msk [vmem:[%s253 + $0x38] sm:$0xff] %vm255, %v4338
      %4387 = vst.msk [vmem:[%s253 + $0x40] sm:$0xff] %vm255, %v4339
      %4388 = vst.msk [vmem:[%s253 + $0x48] sm:$0xff] %vm255, %v4340
      %4389 = vst.msk [vmem:[%s253 + $0x50] sm:$0xff] %vm255, %v4341
      %4390 = vst.msk [vmem:[%s253 + $0x58] sm:$0xff] %vm255, %v4342
      %4391 = vst.msk [vmem:[%s253 + $0x60] sm:$0xff] %vm255, %v4343
      %4392 = vst.msk [vmem:[%s253 + $0x68] sm:$0xff] %vm255, %v4344
      %4393 = vst.msk [vmem:[%s253 + $0x70] sm:$0xff] %vm255, %v4345
      %4394 = vst.msk [vmem:[%s253 + $0x78] sm:$0xff] %vm255, %v4346
      %4395 = vst.msk [vmem:[%s253 + $0x80] sm:$0xff] %vm255, %v4347
      %4396 = vst.msk [vmem:[%s253 + $0x88] sm:$0xff] %vm255, %v4348
      %4397 = vst.msk [vmem:[%s253 + $0x90] sm:$0xff] %vm255, %v4349
      %4398 = vst.msk [vmem:[%s253 + $0x98] sm:$0xff] %vm255, %v4350
      %4399 = vst.msk [vmem:[%s253 + $0xa0] sm:$0xff] %vm255, %v4351
      %4400 = vst.msk [vmem:[%s253 + $0xa8] sm:$0xff] %vm255, %v4352
      %4401 = vst.msk [vmem:[%s253 + $0xb0] sm:$0xff] %vm255, %v4353
      %4402 = vst.msk [vmem:[%s253 + $0xb8] sm:$0xff] %vm255, %v4354
      %4403 = vst.msk [vmem:[%s253 + $0xc0] sm:$0xff] %vm255, %v4355
      %4404 = vst.msk [vmem:[%s253 + $0xc8] sm:$0xff] %vm255, %v4356
      %4405 = vst.msk [vmem:[%s253 + $0xd0] sm:$0xff] %vm255, %v4357
      %4406 = vst.msk [vmem:[%s253 + $0xd8] sm:$0xff] %vm255, %v4358
      %4407 = vst.msk [vmem:[%s253 + $0xe0] sm:$0xff] %vm255, %v4359
      %4408 = vst.msk [vmem:[%s253 + $0xe8] sm:$0xff] %vm255, %v4360
      %4409 = vst.msk [vmem:[%s253 + $0xf0] sm:$0xff] %vm255, %v4361
      %4410 = vst.msk [vmem:[%s253 + $0xf8] sm:$0xff] %vm255, %v4362
      %4411 = vst.msk [vmem:[%s253 + $0x100] sm:$0xff] %vm255, %v4363
      %4412 = vst.msk [vmem:[%s253 + $0x108] sm:$0xff] %vm255, %v4364
      %4413 = vst.msk [vmem:[%s253 + $0x110] sm:$0xff] %vm255, %v4365
      %4414 = vst.msk [vmem:[%s253 + $0x118] sm:$0xff] %vm255, %v4366
      %4415 = vst.msk [vmem:[%s253 + $0x120] sm:$0xff] %vm255, %v4367
      %4416 = vst.msk [vmem:[%s253 + $0x128] sm:$0xff] %vm255, %v4368
      %4417 = vst.msk [vmem:[%s253 + $0x130] sm:$0xff] %vm255, %v4369
      %4418 = vst.msk [vmem:[%s253 + $0x138] sm:$0xff] %vm255, %v4370
      %4419 = vst.msk [vmem:[%s253 + $0x140] sm:$0xff] %vm255, %v4371
      %4420 = vst.msk [vmem:[%s253 + $0x148] sm:$0xff] %vm255, %v4372
      %4421 = vst.msk [vmem:[%s253 + $0x150] sm:$0xff] %vm255, %v4373
      %4422 = vst.msk [vmem:[%s253 + $0x158] sm:$0xff] %vm255, %v4374
      %4423 = vst.msk [vmem:[%s253 + $0x160] sm:$0xff] %vm255, %v4375
      %4424 = vst.msk [vmem:[%s253 + $0x168] sm:$0xff] %vm255, %v4376
      %4425 = vst.msk [vmem:[%s253 + $0x170] sm:$0xff] %vm255, %v4377
      %4426 = vst.msk [vmem:[%s253 + $0x178] sm:$0xff] %vm255, %v4378
      %s4427 = smul.u32 48, %s17
      %p4428 = scmp.lt.s32.totalorder %s4427, 95
      %s4429 = scalar_select %p4428, %s4427, 95
      %s4430 = smul.addr %s4429, 8
      %s4431 = scalar_lea.vmem %s6, %s4430
      // Predicated region
      $region45: #{tpu_custom_call.1} parent=43 // pred_check
        %p4432 = pneg %p166
      $region46: #{tpu_custom_call.1} parent=43 // pred_check_branch
        %4434 = sbr.rel (%p4432) target = $region48
      $region47: #{tpu_custom_call.1} parent=43 // pred_region
        %s4435 = smul.u32 48, %s17
      $region48: #{tpu_custom_call.1} parent=43 // pred_fallthru
        _
    $region44: #{tpu_custom_call.1} parent=5 // pred_fallthru
      _
    %p4436 = scmp.le.s32.totalorder 2, %s12
    // Predicated region
    $region49: #{tpu_custom_call.1} parent=5 // pred_check
      %p4437 = pneg %p4436
    $region50: #{tpu_custom_call.1} parent=5 // pred_check_branch
      %4439 = sbr.rel (%p4437) target = $region52
    $region51: #{tpu_custom_call.1} parent=5 // pred_region
      %s4440 = ssub.s32 %s12, 2
      // Predicated region
      $region53: #{tpu_custom_call.1} parent=51 // pred_check
        %p4441 = pneg %p172
      $region54: #{tpu_custom_call.1} parent=51 // pred_check_branch
        %4443 = sbr.rel (%p4441) target = $region56
      $region55: #{tpu_custom_call.1} parent=51 // pred_region
        %s4444 = smul.u32 48, %s18
        %p4445 = scmp.lt.s32.totalorder %s4444, 95
        %s4446 = scalar_select %p4445, %s4444, 95
        %s4447 = smul.addr %s4446, 8
        %s4448 = scalar_lea.vmem %s6, %s4447
      $region56: #{tpu_custom_call.1} parent=51 // pred_fallthru
        _
    $region52: #{tpu_custom_call.1} parent=5 // pred_fallthru
      _
  $region6: #{tpu_custom_call.1} parent=0 // loop_footer
    %s16 = sadd.s32 1, %s12
  $region7: #{tpu_custom_call.1} parent=0 // loop_footer_branch
    %11 = sbr.rel target = $region3
  $region8: #{tpu_custom_call.1} parent=0 // loop_exit
    _

// kernel: tpu_custom_call.1
$region0: #{tpu_custom_call.1}
  #allocation0 [shape = 'u32[]', space=smem, size = 0x4, offset = 0x4, fixed_abs, tag = 'smem constant byte address 0x4 - core index']
  #allocation1 [shape = 'u32[72,128]{1,0:T(1,128)}', space=vmem, size = 0x9000, scoped, tag = 'internal scratch']
  #allocation2 [shape = 'f32[448,8]{1,0:T(8,128)}', space=vmem, size = 0x38000, scoped, tag = 'scratch operand']
  #allocation3 [shape = 'f32[448,24]{1,0:T(8,128)}', space=vmem, size = 0x38000, scoped, tag = 'scratch operand']
  %s0 = inlined_call_operand.vmem [shape: f32[896,8], index: 0, kind: input, shape index: {}]
  %s1 = inlined_call_operand.vmem [shape: f32[384,8], index: 1, kind: input, shape index: {}]
  %s2 = inlined_call_operand.vmem [shape: f32[3,24,8], index: 2, kind: input, shape index: {}]
  %s3 = inlined_call_operand.vmem [shape: f32[1,8], index: 3, kind: input, shape index: {}]
  %s4 = inlined_call_operand.vmem [shape: f32[3,24,8], index: 4, kind: input, shape index: {}]
  %s5 = inlined_call_operand.vmem [shape: f32[1,8], index: 5, kind: input, shape index: {}]
  %s6 = inlined_call_operand.vmem [shape: f32[768,8], index: 6, kind: output, shape index: {}]
  %s7 = sld [smem:[#allocation0]]
  $region57: #{tpu_custom_call.1} parent=0
    _
  %s9 = ssub.s32 1, %s7
  %s10 = scalar_select 0, %s9, %s7
  loop: start=0, step=1, limit=4
  $region2: #{tpu_custom_call.1} parent=0 // loop_pre_header
    _
  $region3: #{tpu_custom_call.1} parent=0 // loop_header
    %s12 = sphi 0, %s16
    %p13 = scmp.ge.s32.totalorder %s12, 4
    %s22 = sphi 0, %s24
    %s25 = sphi 0, %s22
    %s26 = sphi 0, %s25
    %s42 = sphi 0, %s26
    %s46 = sphi 0, %s46
    %s48 = sphi 0, %s46
    %s49 = sphi 0, %s48
    %s63 = sphi 0, %s49
    %s67 = sphi 0, %s67
    %s69 = sphi 0, %s67
    %s70 = sphi 0, %s69
    %s84 = sphi 0, %s70
    %s88 = sphi 0, %s88
    %s90 = sphi 0, %s88
    %s91 = sphi 0, %s90
    %s105 = sphi 0, %s91
    %s109 = sphi 0, %s109
    %s111 = sphi 0, %s109
    %s112 = sphi 0, %s111
    %s126 = sphi 0, %s112
    %s130 = sphi 0, %s130
    %s132 = sphi 0, %s130
    %s133 = sphi 0, %s132
    %s147 = sphi 0, %s133
    %s153 = sphi 0, %s155
    %s156 = sphi 0, %s153
    %s157 = sphi 0, %s156
    %s173 = sphi 0, %s157
  $region4: #{tpu_custom_call.1} parent=0 // loop_header_branch
    %15 = sbr.rel (%p13) target = $region8
  $region5: #{tpu_custom_call.1} parent=0 // loop_body
    %s17 = ssub.s32 %s12, 1
    %s18 = ssub.s32 %s12, 2
    %s19 = sadd.s32 %s12, 1
    %s20 = ssub.s32 %s12, %s19
    %p21 = scmp.eq.s32.totalorder %s20, 0
    %s23 = sadd.s32 %s22, 1
    %s24 = scalar_select %p21, %s22, %s23
    %p27 = pneg %p21
    %p28 = scmp.eq.s32.totalorder %s12, 1
    %p29 = por %p27, %p28
    %p30 = scmp.ne.s32.totalorder %s22, %s25
    %p31 = scmp.eq.s32.totalorder %s12, 0
    %p32 = por %p30, %p31
    %p33 = scmp.ne.s32.totalorder %s22, %s25
    %p34 = scmp.eq.s32.totalorder %s17, 1
    %p35 = por %p33, %p34
    %p36 = scmp.ne.s32.totalorder %s25, %s26
    %p37 = scmp.eq.s32.totalorder %s17, 0
    %p38 = por %p36, %p37
    %p39 = scmp.ne.s32.totalorder %s25, %s26
    %p40 = scmp.eq.s32.totalorder %s18, 1
    %p41 = por %p39, %p40
    %p43 = scmp.ne.s32.totalorder %s26, %s42
    %p44 = scmp.eq.s32.totalorder %s18, 0
    %p45 = por %p43, %p44
    %s47 = sadd.s32 %s46, 1
    %p50 = scmp.eq.s32.totalorder %s12, 1
    %p51 = scmp.ne.s32.totalorder %s46, %s48
    %p52 = scmp.eq.s32.totalorder %s12, 0
    %p53 = por %p51, %p52
    %p54 = scmp.ne.s32.totalorder %s46, %s48
    %p55 = scmp.eq.s32.totalorder %s17, 1
    %p56 = por %p54, %p55
    %p57 = scmp.ne.s32.totalorder %s48, %s49
    %p58 = scmp.eq.s32.totalorder %s17, 0
    %p59 = por %p57, %p58
    %p60 = scmp.ne.s32.totalorder %s48, %s49
    %p61 = scmp.eq.s32.totalorder %s18, 1
    %p62 = por %p60, %p61
    %p64 = scmp.ne.s32.totalorder %s49, %s63
    %p65 = scmp.eq.s32.totalorder %s18, 0
    %p66 = por %p64, %p65
    %s68 = sadd.s32 %s67, 1
    %p71 = scmp.eq.s32.totalorder %s12, 1
    %p72 = scmp.ne.s32.totalorder %s67, %s69
    %p73 = scmp.eq.s32.totalorder %s12, 0
    %p74 = por %p72, %p73
    %p75 = scmp.ne.s32.totalorder %s67, %s69
    %p76 = scmp.eq.s32.totalorder %s17, 1
    %p77 = por %p75, %p76
    %p78 = scmp.ne.s32.totalorder %s69, %s70
    %p79 = scmp.eq.s32.totalorder %s17, 0
    %p80 = por %p78, %p79
    %p81 = scmp.ne.s32.totalorder %s69, %s70
    %p82 = scmp.eq.s32.totalorder %s18, 1
    %p83 = por %p81, %p82
    %p85 = scmp.ne.s32.totalorder %s70, %s84
    %p86 = scmp.eq.s32.totalorder %s18, 0
    %p87 = por %p85, %p86
    %s89 = sadd.s32 %s88, 1
    %p92 = scmp.eq.s32.totalorder %s12, 1
    %p93 = scmp.ne.s32.totalorder %s88, %s90
    %p94 = scmp.eq.s32.totalorder %s12, 0
    %p95 = por %p93, %p94
    %p96 = scmp.ne.s32.totalorder %s88, %s90
    %p97 = scmp.eq.s32.totalorder %s17, 1
    %p98 = por %p96, %p97
    %p99 = scmp.ne.s32.totalorder %s90, %s91
    %p100 = scmp.eq.s32.totalorder %s17, 0
    %p101 = por %p99, %p100
    %p102 = scmp.ne.s32.totalorder %s90, %s91
    %p103 = scmp.eq.s32.totalorder %s18, 1
    %p104 = por %p102, %p103
    %p106 = scmp.ne.s32.totalorder %s91, %s105
    %p107 = scmp.eq.s32.totalorder %s18, 0
    %p108 = por %p106, %p107
    %s110 = sadd.s32 %s109, 1
    %p113 = scmp.eq.s32.totalorder %s12, 1
    %p114 = scmp.ne.s32.totalorder %s109, %s111
    %p115 = scmp.eq.s32.totalorder %s12, 0
    %p116 = por %p114, %p115
    %p117 = scmp.ne.s32.totalorder %s109, %s111
    %p118 = scmp.eq.s32.totalorder %s17, 1
    %p119 = por %p117, %p118
    %p120 = scmp.ne.s32.totalorder %s111, %s112
    %p121 = scmp.eq.s32.totalorder %s17, 0
    %p122 = por %p120, %p121
    %p123 = scmp.ne.s32.totalorder %s111, %s112
    %p124 = scmp.eq.s32.totalorder %s18, 1
    %p125 = por %p123, %p124
    %p127 = scmp.ne.s32.totalorder %s112, %s126
    %p128 = scmp.eq.s32.totalorder %s18, 0
    %p129 = por %p127, %p128
    %s131 = sadd.s32 %s130, 1
    %p134 = scmp.eq.s32.totalorder %s12, 1
    %p135 = scmp.ne.s32.totalorder %s130, %s132
    %p136 = scmp.eq.s32.totalorder %s12, 0
    %p137 = por %p135, %p136
    %p138 = scmp.ne.s32.totalorder %s130, %s132
    %p139 = scmp.eq.s32.totalorder %s17, 1
    %p140 = por %p138, %p139
    %p141 = scmp.ne.s32.totalorder %s132, %s133
    %p142 = scmp.eq.s32.totalorder %s17, 0
    %p143 = por %p141, %p142
    %p144 = scmp.ne.s32.totalorder %s132, %s133
    %p145 = scmp.eq.s32.totalorder %s18, 1
    %p146 = por %p144, %p145
    %p148 = scmp.ne.s32.totalorder %s133, %s147
    %p149 = scmp.eq.s32.totalorder %s18, 0
    %p150 = por %p148, %p149
    %s151 = ssub.s32 %s12, %s19
    %p152 = scmp.eq.s32.totalorder %s151, 0
    %s154 = sadd.s32 %s153, 1
    %s155 = scalar_select %p152, %s153, %s154
    %p158 = pneg %p152
    %p159 = scmp.eq.s32.totalorder %s12, 1
    %p160 = por %p158, %p159
    %p161 = scmp.ne.s32.totalorder %s153, %s156
    %p162 = scmp.eq.s32.totalorder %s12, 0
    %p163 = por %p161, %p162
    %p164 = scmp.ne.s32.totalorder %s153, %s156
    %p165 = scmp.eq.s32.totalorder %s17, 1
    %p166 = por %p164, %p165
    %p167 = scmp.ne.s32.totalorder %s156, %s157
    %p168 = scmp.eq.s32.totalorder %s17, 0
    %p169 = por %p167, %p168
    %p170 = scmp.ne.s32.totalorder %s156, %s157
    %p171 = scmp.eq.s32.totalorder %s18, 1
    %p172 = por %p170, %p171
    %p174 = scmp.ne.s32.totalorder %s157, %s173
    %p175 = scmp.eq.s32.totalorder %s18, 0
    %p176 = por %p174, %p175
    %p177 = scmp.le.s32.totalorder 1, %s12
    %p178 = scmp.lt.s32.totalorder %s12, 3
    %p179 = pnand %p177, %p178
    %p180 = pneg %p179
    // Predicated region
    $region9: #{tpu_custom_call.1} parent=5 // pred_check
      _
    $region10: #{tpu_custom_call.1} parent=5 // pred_check_branch
      %182 = sbr.rel (%p179) target = $region12
    $region11: #{tpu_custom_call.1} parent=5 // pred_region
      %s183 = ssub.s32 %s12, 1
      // Predicated region
      $region13: #{tpu_custom_call.1} parent=11 // pred_check
        %p184 = pneg %p59
      $region14: #{tpu_custom_call.1} parent=11 // pred_check_branch
        %186 = sbr.rel (%p184) target = $region16
      $region15: #{tpu_custom_call.1} parent=11 // pred_region
        _
      $region16: #{tpu_custom_call.1} parent=11 // pred_fallthru
        _
      // Predicated region
      $region17: #{tpu_custom_call.1} parent=11 // pred_check
        %p187 = pneg %p80
      $region18: #{tpu_custom_call.1} parent=11 // pred_check_branch
        %189 = sbr.rel (%p187) target = $region20
      $region19: #{tpu_custom_call.1} parent=11 // pred_region
        _
      $region20: #{tpu_custom_call.1} parent=11 // pred_fallthru
        _
      // Predicated region
      $region21: #{tpu_custom_call.1} parent=11 // pred_check
        %p190 = pneg %p101
      $region22: #{tpu_custom_call.1} parent=11 // pred_check_branch
        %192 = sbr.rel (%p190) target = $region24
      $region23: #{tpu_custom_call.1} parent=11 // pred_region
        _
      $region24: #{tpu_custom_call.1} parent=11 // pred_fallthru
        _
      // Predicated region
      $region25: #{tpu_custom_call.1} parent=11 // pred_check
        %p193 = pneg %p122
      $region26: #{tpu_custom_call.1} parent=11 // pred_check_branch
        %195 = sbr.rel (%p193) target = $region28
      $region27: #{tpu_custom_call.1} parent=11 // pred_region
        _
      $region28: #{tpu_custom_call.1} parent=11 // pred_fallthru
        _
      // Predicated region
      $region29: #{tpu_custom_call.1} parent=11 // pred_check
        %p196 = pneg %p143
      $region30: #{tpu_custom_call.1} parent=11 // pred_check_branch
        %198 = sbr.rel (%p196) target = $region32
      $region31: #{tpu_custom_call.1} parent=11 // pred_region
        _
      $region32: #{tpu_custom_call.1} parent=11 // pred_fallthru
        _
    $region12: #{tpu_custom_call.1} parent=5 // pred_fallthru
      _
    %p199 = scmp.lt.s32.totalorder %s12, 2
    // Predicated region
    $region33: #{tpu_custom_call.1} parent=5 // pred_check
      %p200 = pneg %p199
    $region34: #{tpu_custom_call.1} parent=5 // pred_check_branch
      %202 = sbr.rel (%p200) target = $region36
    $region35: #{tpu_custom_call.1} parent=5 // pred_region
      // Predicated region
      $region37: #{tpu_custom_call.1} parent=35 // pred_check
        %p203 = pneg %p32
      $region38: #{tpu_custom_call.1} parent=35 // pred_check_branch
        %205 = sbr.rel (%p203) target = $region40
      $region39: #{tpu_custom_call.1} parent=35 // pred_region
        %s206 = smul.u32 56, %s12
        %p207 = scmp.lt.s32.totalorder %s206, 111
        %s208 = scalar_select %p207, %s206, 111
        %s209 = smul.addr %s208, 8
        %s210 = scalar_lea.vmem %s0, %s209
        %s211 = smul.u32 56, %s12
      $region40: #{tpu_custom_call.1} parent=35 // pred_fallthru
        _
    $region36: #{tpu_custom_call.1} parent=5 // pred_fallthru
      _
    %p212 = scmp.le.s32.totalorder 1, %s12
    %p213 = scmp.lt.s32.totalorder %s12, 3
    %p214 = pnand %p212, %p213
    %p215 = pneg %p214
    // Predicated region
    $region41: #{tpu_custom_call.1} parent=5 // pred_check
      _
    $region42: #{tpu_custom_call.1} parent=5 // pred_check_branch
      %217 = sbr.rel (%p214) target = $region44
    $region43: #{tpu_custom_call.1} parent=5 // pred_region
      %s218 = ssub.s32 %s12, 1
      %s219 = smul.u32 56, %s17
      %p220 = scmp.lt.s32.totalorder %s219, 111
      %s221 = scalar_select %p220, %s219, 111
      %s222 = smul.addr %s221, 8
      %s223 = scalar_lea.vmem %s0, %s222
      %p224 = pneg %p38
      %p225 = pneg %p35
      %p226 = pneg %p59
      %p227 = pneg %p56
      %p228 = pneg %p80
      %p229 = pneg %p77
      %p230 = pneg %p101
      %p231 = pneg %p98
      %p232 = pneg %p122
      %p233 = pneg %p119
      %p234 = pneg %p143
      %p235 = pneg %p140
      %p236 = pneg %p169
      %p237 = pneg %p166
      %s238 = smul.u32 48, %s17
      %p239 = scmp.lt.s32.totalorder %s238, 95
      %s240 = scalar_select %p239, %s238, 95
      %s241 = smul.addr %s240, 8
      %s242 = scalar_lea.vmem %s6, %s241
      %s243 = smul.u32 56, %s17
      %p244 = scmp.lt.s32.totalorder %s243, 111
      %s245 = scalar_select %p244, %s243, 111
      %s246 = smul.addr %s245, 8
      %s247 = scalar_lea.vmem %s0, %s246
      %s248 = smul.u32 56, %s17
      %s249 = smul.u32 48, %s17
      %p250 = scmp.lt.s32.totalorder %s249, 95
      %s251 = scalar_select %p250, %s249, 95
      %s252 = smul.addr %s251, 8
      %s253 = scalar_lea.vmem %s6, %s252
      %s254 = smul.u32 48, %s17
      %vm255 = vcmask 64512
      %256 = vst.msk [vmem:[#allocation2] sm:$0xff] %vm255, 0.0
      %257 = vst.msk [vmem:[#allocation2 + $0x8] sm:$0xff] %vm255, 0.0
      %258 = vst.msk [vmem:[#allocation2 + $0x10] sm:$0xff] %vm255, 0.0
      %259 = vst.msk [vmem:[#allocation2 + $0x18] sm:$0xff] %vm255, 0.0
      %260 = vst.msk [vmem:[#allocation2 + $0x1a0] sm:$0xff] %vm255, 0.0
      %261 = vst.msk [vmem:[#allocation2 + $0x1a8] sm:$0xff] %vm255, 0.0
      %262 = vst.msk [vmem:[#allocation2 + $0x1b0] sm:$0xff] %vm255, 0.0
      %263 = vst.msk [vmem:[#allocation2 + $0x1b8] sm:$0xff] %vm255, 0.0
      %v264 = vld [vmem:[%s247] sm:$0xff]
      %v265 = vld [vmem:[%s247 + $0x8] sm:$0xff]
      %v266 = vld [vmem:[%s247 + $0x10] sm:$0xff]
      %v267 = vld [vmem:[%s247 + $0x18] sm:$0xff]
      %v268 = vld [vmem:[%s247 + $0x20] sm:$0xff]
      %v269 = vld [vmem:[%s247 + $0x28] sm:$0xff]
      %v270 = vld [vmem:[%s247 + $0x30] sm:$0xff]
      %v271 = vld [vmem:[%s247 + $0x38] sm:$0xff]
      %v272 = vld [vmem:[%s247 + $0x40] sm:$0xff]
      %v273 = vld [vmem:[%s247 + $0x48] sm:$0xff]
      %v274 = vld [vmem:[%s247 + $0x50] sm:$0xff]
      %v275 = vld [vmem:[%s247 + $0x58] sm:$0xff]
      %v276 = vld [vmem:[%s247 + $0x60] sm:$0xff]
      %v277 = vld [vmem:[%s247 + $0x68] sm:$0xff]
      %v278 = vld [vmem:[%s247 + $0x70] sm:$0xff]
      %v279 = vld [vmem:[%s247 + $0x78] sm:$0xff]
      %v280 = vld [vmem:[%s247 + $0x80] sm:$0xff]
      %v281 = vld [vmem:[%s247 + $0x88] sm:$0xff]
      %v282 = vld [vmem:[%s247 + $0x90] sm:$0xff]
      %v283 = vld [vmem:[%s247 + $0x98] sm:$0xff]
      %v284 = vld [vmem:[%s247 + $0xa0] sm:$0xff]
      %v285 = vld [vmem:[%s247 + $0xa8] sm:$0xff]
      %v286 = vld [vmem:[%s247 + $0xb0] sm:$0xff]
      %v287 = vld [vmem:[%s247 + $0xb8] sm:$0xff]
      %v288 = vld [vmem:[%s247 + $0xc0] sm:$0xff]
      %v289 = vld [vmem:[%s247 + $0xc8] sm:$0xff]
      %v290 = vld [vmem:[%s247 + $0xd0] sm:$0xff]
      %v291 = vld [vmem:[%s247 + $0xd8] sm:$0xff]
      %v292 = vld [vmem:[%s247 + $0xe0] sm:$0xff]
      %v293 = vld [vmem:[%s247 + $0xe8] sm:$0xff]
      %v294 = vld [vmem:[%s247 + $0xf0] sm:$0xff]
      %v295 = vld [vmem:[%s247 + $0xf8] sm:$0xff]
      %v296 = vld [vmem:[%s247 + $0x100] sm:$0xff]
      %v297 = vld [vmem:[%s247 + $0x108] sm:$0xff]
      %v298 = vld [vmem:[%s247 + $0x110] sm:$0xff]
      %v299 = vld [vmem:[%s247 + $0x118] sm:$0xff]
      %v300 = vld [vmem:[%s247 + $0x120] sm:$0xff]
      %v301 = vld [vmem:[%s247 + $0x128] sm:$0xff]
      %v302 = vld [vmem:[%s247 + $0x130] sm:$0xff]
      %v303 = vld [vmem:[%s247 + $0x138] sm:$0xff]
      %v304 = vld [vmem:[%s247 + $0x140] sm:$0xff]
      %v305 = vld [vmem:[%s247 + $0x148] sm:$0xff]
      %v306 = vld [vmem:[%s247 + $0x150] sm:$0xff]
      %v307 = vld [vmem:[%s247 + $0x158] sm:$0xff]
      %v308 = vld [vmem:[%s247 + $0x160] sm:$0xff]
      %v309 = vld [vmem:[%s247 + $0x168] sm:$0xff]
      %v310 = vld [vmem:[%s247 + $0x170] sm:$0xff]
      %v311 = vld [vmem:[%s247 + $0x178] sm:$0xff]
      %v312 = vld [vmem:[%s247 + $0x180] sm:$0xff]
      %v313 = vld [vmem:[%s247 + $0x188] sm:$0xff]
      %v314 = vld [vmem:[%s247 + $0x190] sm:$0xff]
      %v315 = vld [vmem:[%s247 + $0x198] sm:$0xff]
      %v316 = vld [vmem:[%s247 + $0x1a0] sm:$0xff]
      %v317 = vld [vmem:[%s247 + $0x1a8] sm:$0xff]
      %v318 = vld [vmem:[%s247 + $0x1b0] sm:$0xff]
      %v319 = vld [vmem:[%s247 + $0x1b8] sm:$0xff]
      %v320 = vrot.slane %v264, 7
      %v321 = vrot.slane %v265, 7
      %v322 = vrot.slane %v266, 7
      %v323 = vrot.slane %v267, 7
      %v324 = vrot.slane %v268, 7
      %v325 = vrot.slane %v269, 7
      %v326 = vrot.slane %v270, 7
      %v327 = vrot.slane %v271, 7
      %v328 = vrot.slane %v272, 7
      %v329 = vrot.slane %v273, 7
      %v330 = vrot.slane %v274, 7
      %v331 = vrot.slane %v275, 7
      %v332 = vrot.slane %v276, 7
      %v333 = vrot.slane %v277, 7
      %v334 = vrot.slane %v278, 7
      %v335 = vrot.slane %v279, 7
      %v336 = vrot.slane %v280, 7
      %v337 = vrot.slane %v281, 7
      %v338 = vrot.slane %v282, 7
      %v339 = vrot.slane %v283, 7
      %v340 = vrot.slane %v284, 7
      %v341 = vrot.slane %v285, 7
      %v342 = vrot.slane %v286, 7
      %v343 = vrot.slane %v287, 7
      %v344 = vrot.slane %v288, 7
      %v345 = vrot.slane %v289, 7
      %v346 = vrot.slane %v290, 7
      %v347 = vrot.slane %v291, 7
      %v348 = vrot.slane %v292, 7
      %v349 = vrot.slane %v293, 7
      %v350 = vrot.slane %v294, 7
      %v351 = vrot.slane %v295, 7
      %v352 = vrot.slane %v296, 7
      %v353 = vrot.slane %v297, 7
      %v354 = vrot.slane %v298, 7
      %v355 = vrot.slane %v299, 7
      %v356 = vrot.slane %v300, 7
      %v357 = vrot.slane %v301, 7
      %v358 = vrot.slane %v302, 7
      %v359 = vrot.slane %v303, 7
      %v360 = vrot.slane %v304, 7
      %v361 = vrot.slane %v305, 7
      %v362 = vrot.slane %v306, 7
      %v363 = vrot.slane %v307, 7
      %v364 = vrot.slane %v308, 7
      %v365 = vrot.slane %v309, 7
      %v366 = vrot.slane %v310, 7
      %v367 = vrot.slane %v311, 7
      %v368 = vrot.slane %v312, 7
      %v369 = vrot.slane %v313, 7
      %v370 = vrot.slane %v314, 7
      %v371 = vrot.slane %v315, 7
      %v372 = vrot.slane %v316, 7
      %v373 = vrot.slane %v317, 7
      %v374 = vrot.slane %v318, 7
      %v375 = vrot.slane %v319, 7
      %v376 = vlaneseq
      %v377 = vshrl.u32 %v376, 7
      %vm378 = vcmp.lt.s32.totalorder %v377, 1
      %v379 = vsel %vm378, %v374, %v375
      %v380 = vsel %vm378, %v373, %v374
      %v381 = vsel %vm378, %v372, %v373
      %v382 = vsel %vm378, %v371, %v372
      %v383 = vsel %vm378, %v370, %v371
      %v384 = vsel %vm378, %v369, %v370
      %v385 = vsel %vm378, %v368, %v369
      %v386 = vsel %vm378, %v367, %v368
      %v387 = vsel %vm378, %v366, %v367
      %v388 = vsel %vm378, %v365, %v366
      %v389 = vsel %vm378, %v364, %v365
      %v390 = vsel %vm378, %v363, %v364
      %v391 = vsel %vm378, %v362, %v363
      %v392 = vsel %vm378, %v361, %v362
      %v393 = vsel %vm378, %v360, %v361
      %v394 = vsel %vm378, %v359, %v360
      %v395 = vsel %vm378, %v358, %v359
      %v396 = vsel %vm378, %v357, %v358
      %v397 = vsel %vm378, %v356, %v357
      %v398 = vsel %vm378, %v355, %v356
      %v399 = vsel %vm378, %v354, %v355
      %v400 = vsel %vm378, %v353, %v354
      %v401 = vsel %vm378, %v352, %v353
      %v402 = vsel %vm378, %v351, %v352
      %v403 = vsel %vm378, %v350, %v351
      %v404 = vsel %vm378, %v349, %v350
      %v405 = vsel %vm378, %v348, %v349
      %v406 = vsel %vm378, %v347, %v348
      %v407 = vsel %vm378, %v346, %v347
      %v408 = vsel %vm378, %v345, %v346
      %v409 = vsel %vm378, %v344, %v345
      %v410 = vsel %vm378, %v343, %v344
      %v411 = vsel %vm378, %v342, %v343
      %v412 = vsel %vm378, %v341, %v342
      %v413 = vsel %vm378, %v340, %v341
      %v414 = vsel %vm378, %v339, %v340
      %v415 = vsel %vm378, %v338, %v339
      %v416 = vsel %vm378, %v337, %v338
      %v417 = vsel %vm378, %v336, %v337
      %v418 = vsel %vm378, %v335, %v336
      %v419 = vsel %vm378, %v334, %v335
      %v420 = vsel %vm378, %v333, %v334
      %v421 = vsel %vm378, %v332, %v333
      %v422 = vsel %vm378, %v331, %v332
      %v423 = vsel %vm378, %v330, %v331
      %v424 = vsel %vm378, %v329, %v330
      %v425 = vsel %vm378, %v328, %v329
      %v426 = vsel %vm378, %v327, %v328
      %v427 = vsel %vm378, %v326, %v327
      %v428 = vsel %vm378, %v325, %v326
      %v429 = vsel %vm378, %v324, %v325
      %v430 = vsel %vm378, %v323, %v324
      %v431 = vsel %vm378, %v322, %v323
      %v432 = vsel %vm378, %v321, %v322
      %v433 = vsel %vm378, %v320, %v321
      %v434 = vsel %vm378, %v375, %v320
      %435 = vst.msk [vmem:[#allocation3] sm:$0xff] %vm255, %v434
      %436 = vst.msk [vmem:[#allocation3 + $0x8] sm:$0xff] %vm255, %v433
      %437 = vst.msk [vmem:[#allocation3 + $0x10] sm:$0xff] %vm255, %v432
      %438 = vst.msk [vmem:[#allocation3 + $0x18] sm:$0xff] %vm255, %v431
      %439 = vst.msk [vmem:[#allocation3 + $0x20] sm:$0xff] %vm255, %v430
      %440 = vst.msk [vmem:[#allocation3 + $0x28] sm:$0xff] %vm255, %v429
      %441 = vst.msk [vmem:[#allocation3 + $0x30] sm:$0xff] %vm255, %v428
      %442 = vst.msk [vmem:[#allocation3 + $0x38] sm:$0xff] %vm255, %v427
      %443 = vst.msk [vmem:[#allocation3 + $0x40] sm:$0xff] %vm255, %v426
      %444 = vst.msk [vmem:[#allocation3 + $0x48] sm:$0xff] %vm255, %v425
      %445 = vst.msk [vmem:[#allocation3 + $0x50] sm:$0xff] %vm255, %v424
      %446 = vst.msk [vmem:[#allocation3 + $0x58] sm:$0xff] %vm255, %v423
      %447 = vst.msk [vmem:[#allocation3 + $0x60] sm:$0xff] %vm255, %v422
      %448 = vst.msk [vmem:[#allocation3 + $0x68] sm:$0xff] %vm255, %v421
      %449 = vst.msk [vmem:[#allocation3 + $0x70] sm:$0xff] %vm255, %v420
      %450 = vst.msk [vmem:[#allocation3 + $0x78] sm:$0xff] %vm255, %v419
      %451 = vst.msk [vmem:[#allocation3 + $0x80] sm:$0xff] %vm255, %v418
      %452 = vst.msk [vmem:[#allocation3 + $0x88] sm:$0xff] %vm255, %v417
      %453 = vst.msk [vmem:[#allocation3 + $0x90] sm:$0xff] %vm255, %v416
      %454 = vst.msk [vmem:[#allocation3 + $0x98] sm:$0xff] %vm255, %v415
      %455 = vst.msk [vmem:[#allocation3 + $0xa0] sm:$0xff] %vm255, %v414
      %456 = vst.msk [vmem:[#allocation3 + $0xa8] sm:$0xff] %vm255, %v413
      %457 = vst.msk [vmem:[#allocation3 + $0xb0] sm:$0xff] %vm255, %v412
      %458 = vst.msk [vmem:[#allocation3 + $0xb8] sm:$0xff] %vm255, %v411
      %459 = vst.msk [vmem:[#allocation3 + $0xc0] sm:$0xff] %vm255, %v410
      %460 = vst.msk [vmem:[#allocation3 + $0xc8] sm:$0xff] %vm255, %v409
      %461 = vst.msk [vmem:[#allocation3 + $0xd0] sm:$0xff] %vm255, %v408
      %462 = vst.msk [vmem:[#allocation3 + $0xd8] sm:$0xff] %vm255, %v407
      %463 = vst.msk [vmem:[#allocation3 + $0xe0] sm:$0xff] %vm255, %v406
      %464 = vst.msk [vmem:[#allocation3 + $0xe8] sm:$0xff] %vm255, %v405
      %465 = vst.msk [vmem:[#allocation3 + $0xf0] sm:$0xff] %vm255, %v404
      %466 = vst.msk [vmem:[#allocation3 + $0xf8] sm:$0xff] %vm255, %v403
      %467 = vst.msk [vmem:[#allocation3 + $0x100] sm:$0xff] %vm255, %v402
      %468 = vst.msk [vmem:[#allocation3 + $0x108] sm:$0xff] %vm255, %v401
      %469 = vst.msk [vmem:[#allocation3 + $0x110] sm:$0xff] %vm255, %v400
      %470 = vst.msk [vmem:[#allocation3 + $0x118] sm:$0xff] %vm255, %v399
      %471 = vst.msk [vmem:[#allocation3 + $0x120] sm:$0xff] %vm255, %v398
      %472 = vst.msk [vmem:[#allocation3 + $0x128] sm:$0xff] %vm255, %v397
      %473 = vst.msk [vmem:[#allocation3 + $0x130] sm:$0xff] %vm255, %v396
      %474 = vst.msk [vmem:[#allocation3 + $0x138] sm:$0xff] %vm255, %v395
      %475 = vst.msk [vmem:[#allocation3 + $0x140] sm:$0xff] %vm255, %v394
      %476 = vst.msk [vmem:[#allocation3 + $0x148] sm:$0xff] %vm255, %v393
      %477 = vst.msk [vmem:[#allocation3 + $0x150] sm:$0xff] %vm255, %v392
      %478 = vst.msk [vmem:[#allocation3 + $0x158] sm:$0xff] %vm255, %v391
      %479 = vst.msk [vmem:[#allocation3 + $0x160] sm:$0xff] %vm255, %v390
      %480 = vst.msk [vmem:[#allocation3 + $0x168] sm:$0xff] %vm255, %v389
      %481 = vst.msk [vmem:[#allocation3 + $0x170] sm:$0xff] %vm255, %v388
      %482 = vst.msk [vmem:[#allocation3 + $0x178] sm:$0xff] %vm255, %v387
      %483 = vst.msk [vmem:[#allocation3 + $0x180] sm:$0xff] %vm255, %v386
      %484 = vst.msk [vmem:[#allocation3 + $0x188] sm:$0xff] %vm255, %v385
      %485 = vst.msk [vmem:[#allocation3 + $0x190] sm:$0xff] %vm255, %v384
      %486 = vst.msk [vmem:[#allocation3 + $0x198] sm:$0xff] %vm255, %v383
      %487 = vst.msk [vmem:[#allocation3 + $0x1a0] sm:$0xff] %vm255, %v382
      %488 = vst.msk [vmem:[#allocation3 + $0x1a8] sm:$0xff] %vm255, %v381
      %489 = vst.msk [vmem:[#allocation3 + $0x1b0] sm:$0xff] %vm255, %v380
      %490 = vst.msk [vmem:[#allocation3 + $0x1b8] sm:$0xff] %vm255, %v379
      %547 = vrot.lane.b32.xlu0 %v264, 8
      %v548 = vpop.permute.xlu0 %547
      %549 = vrot.lane.b32.xlu0 %v265, 8
      %v550 = vpop.permute.xlu0 %549
      %551 = vrot.lane.b32.xlu0 %v266, 8
      %v552 = vpop.permute.xlu0 %551
      %553 = vrot.lane.b32.xlu0 %v267, 8
      %v554 = vpop.permute.xlu0 %553
      %555 = vrot.lane.b32.xlu0 %v268, 8
      %v556 = vpop.permute.xlu0 %555
      %557 = vrot.lane.b32.xlu0 %v269, 8
      %v558 = vpop.permute.xlu0 %557
      %559 = vrot.lane.b32.xlu0 %v270, 8
      %v560 = vpop.permute.xlu0 %559
      %561 = vrot.lane.b32.xlu0 %v271, 8
      %v562 = vpop.permute.xlu0 %561
      %563 = vrot.lane.b32.xlu0 %v272, 8
      %v564 = vpop.permute.xlu0 %563
      %565 = vrot.lane.b32.xlu0 %v273, 8
      %v566 = vpop.permute.xlu0 %565
      %567 = vrot.lane.b32.xlu0 %v274, 8
      %v568 = vpop.permute.xlu0 %567
      %569 = vrot.lane.b32.xlu0 %v275, 8
      %v570 = vpop.permute.xlu0 %569
      %571 = vrot.lane.b32.xlu0 %v276, 8
      %v572 = vpop.permute.xlu0 %571
      %573 = vrot.lane.b32.xlu0 %v277, 8
      %v574 = vpop.permute.xlu0 %573
      %575 = vrot.lane.b32.xlu0 %v278, 8
      %v576 = vpop.permute.xlu0 %575
      %577 = vrot.lane.b32.xlu0 %v279, 8
      %v578 = vpop.permute.xlu0 %577
      %579 = vrot.lane.b32.xlu0 %v280, 8
      %v580 = vpop.permute.xlu0 %579
      %581 = vrot.lane.b32.xlu0 %v281, 8
      %v582 = vpop.permute.xlu0 %581
      %583 = vrot.lane.b32.xlu0 %v282, 8
      %v584 = vpop.permute.xlu0 %583
      %585 = vrot.lane.b32.xlu0 %v283, 8
      %v586 = vpop.permute.xlu0 %585
      %587 = vrot.lane.b32.xlu0 %v284, 8
      %v588 = vpop.permute.xlu0 %587
      %589 = vrot.lane.b32.xlu0 %v285, 8
      %v590 = vpop.permute.xlu0 %589
      %591 = vrot.lane.b32.xlu0 %v286, 8
      %v592 = vpop.permute.xlu0 %591
      %593 = vrot.lane.b32.xlu0 %v287, 8
      %v594 = vpop.permute.xlu0 %593
      %595 = vrot.lane.b32.xlu0 %v288, 8
      %v596 = vpop.permute.xlu0 %595
      %597 = vrot.lane.b32.xlu0 %v289, 8
      %v598 = vpop.permute.xlu0 %597
      %599 = vrot.lane.b32.xlu0 %v290, 8
      %v600 = vpop.permute.xlu0 %599
      %601 = vrot.lane.b32.xlu0 %v291, 8
      %v602 = vpop.permute.xlu0 %601
      %603 = vrot.lane.b32.xlu0 %v292, 8
      %v604 = vpop.permute.xlu0 %603
      %605 = vrot.lane.b32.xlu0 %v293, 8
      %v606 = vpop.permute.xlu0 %605
      %607 = vrot.lane.b32.xlu0 %v294, 8
      %v608 = vpop.permute.xlu0 %607
      %609 = vrot.lane.b32.xlu0 %v295, 8
      %v610 = vpop.permute.xlu0 %609
      %611 = vrot.lane.b32.xlu0 %v296, 8
      %v612 = vpop.permute.xlu0 %611
      %613 = vrot.lane.b32.xlu0 %v297, 8
      %v614 = vpop.permute.xlu0 %613
      %615 = vrot.lane.b32.xlu0 %v298, 8
      %v616 = vpop.permute.xlu0 %615
      %617 = vrot.lane.b32.xlu0 %v299, 8
      %v618 = vpop.permute.xlu0 %617
      %619 = vrot.lane.b32.xlu0 %v300, 8
      %v620 = vpop.permute.xlu0 %619
      %621 = vrot.lane.b32.xlu0 %v301, 8
      %v622 = vpop.permute.xlu0 %621
      %623 = vrot.lane.b32.xlu0 %v302, 8
      %v624 = vpop.permute.xlu0 %623
      %625 = vrot.lane.b32.xlu0 %v303, 8
      %v626 = vpop.permute.xlu0 %625
      %627 = vrot.lane.b32.xlu0 %v304, 8
      %v628 = vpop.permute.xlu0 %627
      %629 = vrot.lane.b32.xlu0 %v305, 8
      %v630 = vpop.permute.xlu0 %629
      %631 = vrot.lane.b32.xlu0 %v306, 8
      %v632 = vpop.permute.xlu0 %631
      %633 = vrot.lane.b32.xlu0 %v307, 8
      %v634 = vpop.permute.xlu0 %633
      %635 = vrot.lane.b32.xlu0 %v308, 8
      %v636 = vpop.permute.xlu0 %635
      %637 = vrot.lane.b32.xlu0 %v309, 8
      %v638 = vpop.permute.xlu0 %637
      %639 = vrot.lane.b32.xlu0 %v310, 8
      %v640 = vpop.permute.xlu0 %639
      %641 = vrot.lane.b32.xlu0 %v311, 8
      %v642 = vpop.permute.xlu0 %641
      %643 = vrot.lane.b32.xlu0 %v312, 8
      %v644 = vpop.permute.xlu0 %643
      %645 = vrot.lane.b32.xlu0 %v313, 8
      %v646 = vpop.permute.xlu0 %645
      %647 = vrot.lane.b32.xlu0 %v314, 8
      %v648 = vpop.permute.xlu0 %647
      %649 = vrot.lane.b32.xlu0 %v315, 8
      %v650 = vpop.permute.xlu0 %649
      %651 = vrot.lane.b32.xlu0 %v316, 8
      %v652 = vpop.permute.xlu0 %651
      %653 = vrot.lane.b32.xlu0 %v317, 8
      %v654 = vpop.permute.xlu0 %653
      %655 = vrot.lane.b32.xlu0 %v318, 8
      %v656 = vpop.permute.xlu0 %655
      %657 = vrot.lane.b32.xlu0 %v319, 8
      %v658 = vpop.permute.xlu0 %657
      %vm715 = vcmask 130112
      %716 = vst.msk [vmem:[#allocation3] sm:$0xff] %vm715, %v548
      %717 = vst.msk [vmem:[#allocation3 + $0x8] sm:$0xff] %vm715, %v550
      %718 = vst.msk [vmem:[#allocation3 + $0x10] sm:$0xff] %vm715, %v552
      %719 = vst.msk [vmem:[#allocation3 + $0x18] sm:$0xff] %vm715, %v554
      %720 = vst.msk [vmem:[#allocation3 + $0x20] sm:$0xff] %vm715, %v556
      %721 = vst.msk [vmem:[#allocation3 + $0x28] sm:$0xff] %vm715, %v558
      %722 = vst.msk [vmem:[#allocation3 + $0x30] sm:$0xff] %vm715, %v560
      %723 = vst.msk [vmem:[#allocation3 + $0x38] sm:$0xff] %vm715, %v562
      %724 = vst.msk [vmem:[#allocation3 + $0x40] sm:$0xff] %vm715, %v564
      %725 = vst.msk [vmem:[#allocation3 + $0x48] sm:$0xff] %vm715, %v566
      %726 = vst.msk [vmem:[#allocation3 + $0x50] sm:$0xff] %vm715, %v568
      %727 = vst.msk [vmem:[#allocation3 + $0x58] sm:$0xff] %vm715, %v570
      %728 = vst.msk [vmem:[#allocation3 + $0x60] sm:$0xff] %vm715, %v572
      %729 = vst.msk [vmem:[#allocation3 + $0x68] sm:$0xff] %vm715, %v574
      %730 = vst.msk [vmem:[#allocation3 + $0x70] sm:$0xff] %vm715, %v576
      %731 = vst.msk [vmem:[#allocation3 + $0x78] sm:$0xff] %vm715, %v578
      %732 = vst.msk [vmem:[#allocation3 + $0x80] sm:$0xff] %vm715, %v580
      %733 = vst.msk [vmem:[#allocation3 + $0x88] sm:$0xff] %vm715, %v582
      %734 = vst.msk [vmem:[#allocation3 + $0x90] sm:$0xff] %vm715, %v584
      %735 = vst.msk [vmem:[#allocation3 + $0x98] sm:$0xff] %vm715, %v586
      %736 = vst.msk [vmem:[#allocation3 + $0xa0] sm:$0xff] %vm715, %v588
      %737 = vst.msk [vmem:[#allocation3 + $0xa8] sm:$0xff] %vm715, %v590
      %738 = vst.msk [vmem:[#allocation3 + $0xb0] sm:$0xff] %vm715, %v592
      %739 = vst.msk [vmem:[#allocation3 + $0xb8] sm:$0xff] %vm715, %v594
      %740 = vst.msk [vmem:[#allocation3 + $0xc0] sm:$0xff] %vm715, %v596
      %741 = vst.msk [vmem:[#allocation3 + $0xc8] sm:$0xff] %vm715, %v598
      %742 = vst.msk [vmem:[#allocation3 + $0xd0] sm:$0xff] %vm715, %v600
      %743 = vst.msk [vmem:[#allocation3 + $0xd8] sm:$0xff] %vm715, %v602
      %744 = vst.msk [vmem:[#allocation3 + $0xe0] sm:$0xff] %vm715, %v604
      %745 = vst.msk [vmem:[#allocation3 + $0xe8] sm:$0xff] %vm715, %v606
      %746 = vst.msk [vmem:[#allocation3 + $0xf0] sm:$0xff] %vm715, %v608
      %747 = vst.msk [vmem:[#allocation3 + $0xf8] sm:$0xff] %vm715, %v610
      %748 = vst.msk [vmem:[#allocation3 + $0x100] sm:$0xff] %vm715, %v612
      %749 = vst.msk [vmem:[#allocation3 + $0x108] sm:$0xff] %vm715, %v614
      %750 = vst.msk [vmem:[#allocation3 + $0x110] sm:$0xff] %vm715, %v616
      %751 = vst.msk [vmem:[#allocation3 + $0x118] sm:$0xff] %vm715, %v618
      %752 = vst.msk [vmem:[#allocation3 + $0x120] sm:$0xff] %vm715, %v620
      %753 = vst.msk [vmem:[#allocation3 + $0x128] sm:$0xff] %vm715, %v622
      %754 = vst.msk [vmem:[#allocation3 + $0x130] sm:$0xff] %vm715, %v624
      %755 = vst.msk [vmem:[#allocation3 + $0x138] sm:$0xff] %vm715, %v626
      %756 = vst.msk [vmem:[#allocation3 + $0x140] sm:$0xff] %vm715, %v628
      %757 = vst.msk [vmem:[#allocation3 + $0x148] sm:$0xff] %vm715, %v630
      %758 = vst.msk [vmem:[#allocation3 + $0x150] sm:$0xff] %vm715, %v632
      %759 = vst.msk [vmem:[#allocation3 + $0x158] sm:$0xff] %vm715, %v634
      %760 = vst.msk [vmem:[#allocation3 + $0x160] sm:$0xff] %vm715, %v636
      %761 = vst.msk [vmem:[#allocation3 + $0x168] sm:$0xff] %vm715, %v638
      %762 = vst.msk [vmem:[#allocation3 + $0x170] sm:$0xff] %vm715, %v640
      %763 = vst.msk [vmem:[#allocation3 + $0x178] sm:$0xff] %vm715, %v642
      %764 = vst.msk [vmem:[#allocation3 + $0x180] sm:$0xff] %vm715, %v644
      %765 = vst.msk [vmem:[#allocation3 + $0x188] sm:$0xff] %vm715, %v646
      %766 = vst.msk [vmem:[#allocation3 + $0x190] sm:$0xff] %vm715, %v648
      %767 = vst.msk [vmem:[#allocation3 + $0x198] sm:$0xff] %vm715, %v650
      %768 = vst.msk [vmem:[#allocation3 + $0x1a0] sm:$0xff] %vm715, %v652
      %769 = vst.msk [vmem:[#allocation3 + $0x1a8] sm:$0xff] %vm715, %v654
      %770 = vst.msk [vmem:[#allocation3 + $0x1b0] sm:$0xff] %vm715, %v656
      %771 = vst.msk [vmem:[#allocation3 + $0x1b8] sm:$0xff] %vm715, %v658
      %v772 = vrot.slane %v264, 1
      %v773 = vrot.slane %v265, 1
      %v774 = vrot.slane %v266, 1
      %v775 = vrot.slane %v267, 1
      %v776 = vrot.slane %v268, 1
      %v777 = vrot.slane %v269, 1
      %v778 = vrot.slane %v270, 1
      %v779 = vrot.slane %v271, 1
      %v780 = vrot.slane %v272, 1
      %v781 = vrot.slane %v273, 1
      %v782 = vrot.slane %v274, 1
      %v783 = vrot.slane %v275, 1
      %v784 = vrot.slane %v276, 1
      %v785 = vrot.slane %v277, 1
      %v786 = vrot.slane %v278, 1
      %v787 = vrot.slane %v279, 1
      %v788 = vrot.slane %v280, 1
      %v789 = vrot.slane %v281, 1
      %v790 = vrot.slane %v282, 1
      %v791 = vrot.slane %v283, 1
      %v792 = vrot.slane %v284, 1
      %v793 = vrot.slane %v285, 1
      %v794 = vrot.slane %v286, 1
      %v795 = vrot.slane %v287, 1
      %v796 = vrot.slane %v288, 1
      %v797 = vrot.slane %v289, 1
      %v798 = vrot.slane %v290, 1
      %v799 = vrot.slane %v291, 1
      %v800 = vrot.slane %v292, 1
      %v801 = vrot.slane %v293, 1
      %v802 = vrot.slane %v294, 1
      %v803 = vrot.slane %v295, 1
      %v804 = vrot.slane %v296, 1
      %v805 = vrot.slane %v297, 1
      %v806 = vrot.slane %v298, 1
      %v807 = vrot.slane %v299, 1
      %v808 = vrot.slane %v300, 1
      %v809 = vrot.slane %v301, 1
      %v810 = vrot.slane %v302, 1
      %v811 = vrot.slane %v303, 1
      %v812 = vrot.slane %v304, 1
      %v813 = vrot.slane %v305, 1
      %v814 = vrot.slane %v306, 1
      %v815 = vrot.slane %v307, 1
      %v816 = vrot.slane %v308, 1
      %v817 = vrot.slane %v309, 1
      %v818 = vrot.slane %v310, 1
      %v819 = vrot.slane %v311, 1
      %v820 = vrot.slane %v312, 1
      %v821 = vrot.slane %v313, 1
      %v822 = vrot.slane %v314, 1
      %v823 = vrot.slane %v315, 1
      %v824 = vrot.slane %v316, 1
      %v825 = vrot.slane %v317, 1
      %v826 = vrot.slane %v318, 1
      %v827 = vrot.slane %v319, 1
      %vm828 = vcmp.lt.s32.totalorder %v377, 7
      %v829 = vsel %vm828, %v826, %v827
      %v830 = vsel %vm828, %v825, %v826
      %v831 = vsel %vm828, %v824, %v825
      %v832 = vsel %vm828, %v823, %v824
      %v833 = vsel %vm828, %v822, %v823
      %v834 = vsel %vm828, %v821, %v822
      %v835 = vsel %vm828, %v820, %v821
      %v836 = vsel %vm828, %v819, %v820
      %v837 = vsel %vm828, %v818, %v819
      %v838 = vsel %vm828, %v817, %v818
      %v839 = vsel %vm828, %v816, %v817
      %v840 = vsel %vm828, %v815, %v816
      %v841 = vsel %vm828, %v814, %v815
      %v842 = vsel %vm828, %v813, %v814
      %v843 = vsel %vm828, %v812, %v813
      %v844 = vsel %vm828, %v811, %v812
      %v845 = vsel %vm828, %v810, %v811
      %v846 = vsel %vm828, %v809, %v810
      %v847 = vsel %vm828, %v808, %v809
      %v848 = vsel %vm828, %v807, %v808
      %v849 = vsel %vm828, %v806, %v807
      %v850 = vsel %vm828, %v805, %v806
      %v851 = vsel %vm828, %v804, %v805
      %v852 = vsel %vm828, %v803, %v804
      %v853 = vsel %vm828, %v802, %v803
      %v854 = vsel %vm828, %v801, %v802
      %v855 = vsel %vm828, %v800, %v801
      %v856 = vsel %vm828, %v799, %v800
      %v857 = vsel %vm828, %v798, %v799
      %v858 = vsel %vm828, %v797, %v798
      %v859 = vsel %vm828, %v796, %v797
      %v860 = vsel %vm828, %v795, %v796
      %v861 = vsel %vm828, %v794, %v795
      %v862 = vsel %vm828, %v793, %v794
      %v863 = vsel %vm828, %v792, %v793
      %v864 = vsel %vm828, %v791, %v792
      %v865 = vsel %vm828, %v790, %v791
      %v866 = vsel %vm828, %v789, %v790
      %v867 = vsel %vm828, %v788, %v789
      %v868 = vsel %vm828, %v787, %v788
      %v869 = vsel %vm828, %v786, %v787
      %v870 = vsel %vm828, %v785, %v786
      %v871 = vsel %vm828, %v784, %v785
      %v872 = vsel %vm828, %v783, %v784
      %v873 = vsel %vm828, %v782, %v783
      %v874 = vsel %vm828, %v781, %v782
      %v875 = vsel %vm828, %v780, %v781
      %v876 = vsel %vm828, %v779, %v780
      %v877 = vsel %vm828, %v778, %v779
      %v878 = vsel %vm828, %v777, %v778
      %v879 = vsel %vm828, %v776, %v777
      %v880 = vsel %vm828, %v775, %v776
      %v881 = vsel %vm828, %v774, %v775
      %v882 = vsel %vm828, %v773, %v774
      %v883 = vsel %vm828, %v772, %v773
      %v884 = vsel %vm828, %v827, %v772
      %941 = vrot.lane.b32.xlu0 %v883, 16
      %v942 = vpop.permute.xlu0 %941
      %943 = vrot.lane.b32.xlu0 %v882, 16
      %v944 = vpop.permute.xlu0 %943
      %945 = vrot.lane.b32.xlu0 %v881, 16
      %v946 = vpop.permute.xlu0 %945
      %947 = vrot.lane.b32.xlu0 %v880, 16
      %v948 = vpop.permute.xlu0 %947
      %949 = vrot.lane.b32.xlu0 %v879, 16
      %v950 = vpop.permute.xlu0 %949
      %951 = vrot.lane.b32.xlu0 %v878, 16
      %v952 = vpop.permute.xlu0 %951
      %953 = vrot.lane.b32.xlu0 %v877, 16
      %v954 = vpop.permute.xlu0 %953
      %955 = vrot.lane.b32.xlu0 %v876, 16
      %v956 = vpop.permute.xlu0 %955
      %957 = vrot.lane.b32.xlu0 %v875, 16
      %v958 = vpop.permute.xlu0 %957
      %959 = vrot.lane.b32.xlu0 %v874, 16
      %v960 = vpop.permute.xlu0 %959
      %961 = vrot.lane.b32.xlu0 %v873, 16
      %v962 = vpop.permute.xlu0 %961
      %963 = vrot.lane.b32.xlu0 %v872, 16
      %v964 = vpop.permute.xlu0 %963
      %965 = vrot.lane.b32.xlu0 %v871, 16
      %v966 = vpop.permute.xlu0 %965
      %967 = vrot.lane.b32.xlu0 %v870, 16
      %v968 = vpop.permute.xlu0 %967
      %969 = vrot.lane.b32.xlu0 %v869, 16
      %v970 = vpop.permute.xlu0 %969
      %971 = vrot.lane.b32.xlu0 %v868, 16
      %v972 = vpop.permute.xlu0 %971
      %973 = vrot.lane.b32.xlu0 %v867, 16
      %v974 = vpop.permute.xlu0 %973
      %975 = vrot.lane.b32.xlu0 %v866, 16
      %v976 = vpop.permute.xlu0 %975
      %977 = vrot.lane.b32.xlu0 %v865, 16
      %v978 = vpop.permute.xlu0 %977
      %979 = vrot.lane.b32.xlu0 %v864, 16
      %v980 = vpop.permute.xlu0 %979
      %981 = vrot.lane.b32.xlu0 %v863, 16
      %v982 = vpop.permute.xlu0 %981
      %983 = vrot.lane.b32.xlu0 %v862, 16
      %v984 = vpop.permute.xlu0 %983
      %985 = vrot.lane.b32.xlu0 %v861, 16
      %v986 = vpop.permute.xlu0 %985
      %987 = vrot.lane.b32.xlu0 %v860, 16
      %v988 = vpop.permute.xlu0 %987
      %989 = vrot.lane.b32.xlu0 %v859, 16
      %v990 = vpop.permute.xlu0 %989
      %991 = vrot.lane.b32.xlu0 %v858, 16
      %v992 = vpop.permute.xlu0 %991
      %993 = vrot.lane.b32.xlu0 %v857, 16
      %v994 = vpop.permute.xlu0 %993
      %995 = vrot.lane.b32.xlu0 %v856, 16
      %v996 = vpop.permute.xlu0 %995
      %997 = vrot.lane.b32.xlu0 %v855, 16
      %v998 = vpop.permute.xlu0 %997
      %999 = vrot.lane.b32.xlu0 %v854, 16
      %v1000 = vpop.permute.xlu0 %999
      %1001 = vrot.lane.b32.xlu0 %v853, 16
      %v1002 = vpop.permute.xlu0 %1001
      %1003 = vrot.lane.b32.xlu0 %v852, 16
      %v1004 = vpop.permute.xlu0 %1003
      %1005 = vrot.lane.b32.xlu0 %v851, 16
      %v1006 = vpop.permute.xlu0 %1005
      %1007 = vrot.lane.b32.xlu0 %v850, 16
      %v1008 = vpop.permute.xlu0 %1007
      %1009 = vrot.lane.b32.xlu0 %v849, 16
      %v1010 = vpop.permute.xlu0 %1009
      %1011 = vrot.lane.b32.xlu0 %v848, 16
      %v1012 = vpop.permute.xlu0 %1011
      %1013 = vrot.lane.b32.xlu0 %v847, 16
      %v1014 = vpop.permute.xlu0 %1013
      %1015 = vrot.lane.b32.xlu0 %v846, 16
      %v1016 = vpop.permute.xlu0 %1015
      %1017 = vrot.lane.b32.xlu0 %v845, 16
      %v1018 = vpop.permute.xlu0 %1017
      %1019 = vrot.lane.b32.xlu0 %v844, 16
      %v1020 = vpop.permute.xlu0 %1019
      %1021 = vrot.lane.b32.xlu0 %v843, 16
      %v1022 = vpop.permute.xlu0 %1021
      %1023 = vrot.lane.b32.xlu0 %v842, 16
      %v1024 = vpop.permute.xlu0 %1023
      %1025 = vrot.lane.b32.xlu0 %v841, 16
      %v1026 = vpop.permute.xlu0 %1025
      %1027 = vrot.lane.b32.xlu0 %v840, 16
      %v1028 = vpop.permute.xlu0 %1027
      %1029 = vrot.lane.b32.xlu0 %v839, 16
      %v1030 = vpop.permute.xlu0 %1029
      %1031 = vrot.lane.b32.xlu0 %v838, 16
      %v1032 = vpop.permute.xlu0 %1031
      %1033 = vrot.lane.b32.xlu0 %v837, 16
      %v1034 = vpop.permute.xlu0 %1033
      %1035 = vrot.lane.b32.xlu0 %v836, 16
      %v1036 = vpop.permute.xlu0 %1035
      %1037 = vrot.lane.b32.xlu0 %v835, 16
      %v1038 = vpop.permute.xlu0 %1037
      %1039 = vrot.lane.b32.xlu0 %v834, 16
      %v1040 = vpop.permute.xlu0 %1039
      %1041 = vrot.lane.b32.xlu0 %v833, 16
      %v1042 = vpop.permute.xlu0 %1041
      %1043 = vrot.lane.b32.xlu0 %v832, 16
      %v1044 = vpop.permute.xlu0 %1043
      %1045 = vrot.lane.b32.xlu0 %v831, 16
      %v1046 = vpop.permute.xlu0 %1045
      %1047 = vrot.lane.b32.xlu0 %v830, 16
      %v1048 = vpop.permute.xlu0 %1047
      %1049 = vrot.lane.b32.xlu0 %v829, 16
      %v1050 = vpop.permute.xlu0 %1049
      %1051 = vrot.lane.b32.xlu0 %v884, 16
      %v1052 = vpop.permute.xlu0 %1051
      %vm1109 = vcmask 195712
      %1110 = vst.msk [vmem:[#allocation3] sm:$0xff] %vm1109, %v942
      %1111 = vst.msk [vmem:[#allocation3 + $0x8] sm:$0xff] %vm1109, %v944
      %1112 = vst.msk [vmem:[#allocation3 + $0x10] sm:$0xff] %vm1109, %v946
      %1113 = vst.msk [vmem:[#allocation3 + $0x18] sm:$0xff] %vm1109, %v948
      %1114 = vst.msk [vmem:[#allocation3 + $0x20] sm:$0xff] %vm1109, %v950
      %1115 = vst.msk [vmem:[#allocation3 + $0x28] sm:$0xff] %vm1109, %v952
      %1116 = vst.msk [vmem:[#allocation3 + $0x30] sm:$0xff] %vm1109, %v954
      %1117 = vst.msk [vmem:[#allocation3 + $0x38] sm:$0xff] %vm1109, %v956
      %1118 = vst.msk [vmem:[#allocation3 + $0x40] sm:$0xff] %vm1109, %v958
      %1119 = vst.msk [vmem:[#allocation3 + $0x48] sm:$0xff] %vm1109, %v960
      %1120 = vst.msk [vmem:[#allocation3 + $0x50] sm:$0xff] %vm1109, %v962
      %1121 = vst.msk [vmem:[#allocation3 + $0x58] sm:$0xff] %vm1109, %v964
      %1122 = vst.msk [vmem:[#allocation3 + $0x60] sm:$0xff] %vm1109, %v966
      %1123 = vst.msk [vmem:[#allocation3 + $0x68] sm:$0xff] %vm1109, %v968
      %1124 = vst.msk [vmem:[#allocation3 + $0x70] sm:$0xff] %vm1109, %v970
      %1125 = vst.msk [vmem:[#allocation3 + $0x78] sm:$0xff] %vm1109, %v972
      %1126 = vst.msk [vmem:[#allocation3 + $0x80] sm:$0xff] %vm1109, %v974
      %1127 = vst.msk [vmem:[#allocation3 + $0x88] sm:$0xff] %vm1109, %v976
      %1128 = vst.msk [vmem:[#allocation3 + $0x90] sm:$0xff] %vm1109, %v978
      %1129 = vst.msk [vmem:[#allocation3 + $0x98] sm:$0xff] %vm1109, %v980
      %1130 = vst.msk [vmem:[#allocation3 + $0xa0] sm:$0xff] %vm1109, %v982
      %1131 = vst.msk [vmem:[#allocation3 + $0xa8] sm:$0xff] %vm1109, %v984
      %1132 = vst.msk [vmem:[#allocation3 + $0xb0] sm:$0xff] %vm1109, %v986
      %1133 = vst.msk [vmem:[#allocation3 + $0xb8] sm:$0xff] %vm1109, %v988
      %1134 = vst.msk [vmem:[#allocation3 + $0xc0] sm:$0xff] %vm1109, %v990
      %1135 = vst.msk [vmem:[#allocation3 + $0xc8] sm:$0xff] %vm1109, %v992
      %1136 = vst.msk [vmem:[#allocation3 + $0xd0] sm:$0xff] %vm1109, %v994
      %1137 = vst.msk [vmem:[#allocation3 + $0xd8] sm:$0xff] %vm1109, %v996
      %1138 = vst.msk [vmem:[#allocation3 + $0xe0] sm:$0xff] %vm1109, %v998
      %1139 = vst.msk [vmem:[#allocation3 + $0xe8] sm:$0xff] %vm1109, %v1000
      %1140 = vst.msk [vmem:[#allocation3 + $0xf0] sm:$0xff] %vm1109, %v1002
      %1141 = vst.msk [vmem:[#allocation3 + $0xf8] sm:$0xff] %vm1109, %v1004
      %1142 = vst.msk [vmem:[#allocation3 + $0x100] sm:$0xff] %vm1109, %v1006
      %1143 = vst.msk [vmem:[#allocation3 + $0x108] sm:$0xff] %vm1109, %v1008
      %1144 = vst.msk [vmem:[#allocation3 + $0x110] sm:$0xff] %vm1109, %v1010
      %1145 = vst.msk [vmem:[#allocation3 + $0x118] sm:$0xff] %vm1109, %v1012
      %1146 = vst.msk [vmem:[#allocation3 + $0x120] sm:$0xff] %vm1109, %v1014
      %1147 = vst.msk [vmem:[#allocation3 + $0x128] sm:$0xff] %vm1109, %v1016
      %1148 = vst.msk [vmem:[#allocation3 + $0x130] sm:$0xff] %vm1109, %v1018
      %1149 = vst.msk [vmem:[#allocation3 + $0x138] sm:$0xff] %vm1109, %v1020
      %1150 = vst.msk [vmem:[#allocation3 + $0x140] sm:$0xff] %vm1109, %v1022
      %1151 = vst.msk [vmem:[#allocation3 + $0x148] sm:$0xff] %vm1109, %v1024
      %1152 = vst.msk [vmem:[#allocation3 + $0x150] sm:$0xff] %vm1109, %v1026
      %1153 = vst.msk [vmem:[#allocation3 + $0x158] sm:$0xff] %vm1109, %v1028
      %1154 = vst.msk [vmem:[#allocation3 + $0x160] sm:$0xff] %vm1109, %v1030
      %1155 = vst.msk [vmem:[#allocation3 + $0x168] sm:$0xff] %vm1109, %v1032
      %1156 = vst.msk [vmem:[#allocation3 + $0x170] sm:$0xff] %vm1109, %v1034
      %1157 = vst.msk [vmem:[#allocation3 + $0x178] sm:$0xff] %vm1109, %v1036
      %1158 = vst.msk [vmem:[#allocation3 + $0x180] sm:$0xff] %vm1109, %v1038
      %1159 = vst.msk [vmem:[#allocation3 + $0x188] sm:$0xff] %vm1109, %v1040
      %1160 = vst.msk [vmem:[#allocation3 + $0x190] sm:$0xff] %vm1109, %v1042
      %1161 = vst.msk [vmem:[#allocation3 + $0x198] sm:$0xff] %vm1109, %v1044
      %1162 = vst.msk [vmem:[#allocation3 + $0x1a0] sm:$0xff] %vm1109, %v1046
      %1163 = vst.msk [vmem:[#allocation3 + $0x1a8] sm:$0xff] %vm1109, %v1048
      %1164 = vst.msk [vmem:[#allocation3 + $0x1b0] sm:$0xff] %vm1109, %v1050
      %1165 = vst.msk [vmem:[#allocation3 + $0x1b8] sm:$0xff] %vm1109, %v1052
      %v1166 = vld [vmem:[#allocation3 + $0x8] sm:$0xff]
      %v1167 = vld [vmem:[#allocation3 + $0x10] sm:$0xff]
      %v1168 = vld [vmem:[#allocation3 + $0x18] sm:$0xff]
      %v1169 = vld [vmem:[#allocation3 + $0x20] sm:$0xff]
      %v1170 = vld [vmem:[#allocation3 + $0x28] sm:$0xff]
      %v1171 = vld [vmem:[#allocation3 + $0x30] sm:$0xff]
      %v1172 = vld [vmem:[#allocation3 + $0x38] sm:$0xff]
      %v1173 = vld [vmem:[#allocation3 + $0x40] sm:$0xff]
      %v1174 = vld [vmem:[#allocation3 + $0x48] sm:$0xff]
      %v1175 = vld [vmem:[#allocation3 + $0x50] sm:$0xff]
      %v1176 = vld [vmem:[#allocation3 + $0x58] sm:$0xff]
      %v1177 = vld [vmem:[#allocation3 + $0x60] sm:$0xff]
      %v1178 = vld [vmem:[#allocation3 + $0x68] sm:$0xff]
      %v1179 = vld [vmem:[#allocation3 + $0x70] sm:$0xff]
      %v1180 = vld [vmem:[#allocation3 + $0x78] sm:$0xff]
      %v1181 = vld [vmem:[#allocation3 + $0x80] sm:$0xff]
      %v1182 = vld [vmem:[#allocation3 + $0x88] sm:$0xff]
      %v1183 = vld [vmem:[#allocation3 + $0x90] sm:$0xff]
      %v1184 = vld [vmem:[#allocation3 + $0x98] sm:$0xff]
      %v1185 = vld [vmem:[#allocation3 + $0xa0] sm:$0xff]
      %v1186 = vld [vmem:[#allocation3 + $0xa8] sm:$0xff]
      %v1187 = vld [vmem:[#allocation3 + $0xb0] sm:$0xff]
      %v1188 = vld [vmem:[#allocation3 + $0xb8] sm:$0xff]
      %v1189 = vld [vmem:[#allocation3 + $0xc0] sm:$0xff]
      %v1190 = vld [vmem:[#allocation3 + $0xc8] sm:$0xff]
      %v1191 = vld [vmem:[#allocation3 + $0xd0] sm:$0xff]
      %v1192 = vld [vmem:[#allocation3 + $0xd8] sm:$0xff]
      %v1193 = vld [vmem:[#allocation3 + $0xe0] sm:$0xff]
      %v1194 = vld [vmem:[#allocation3 + $0xe8] sm:$0xff]
      %v1195 = vld [vmem:[#allocation3 + $0xf0] sm:$0xff]
      %v1196 = vld [vmem:[#allocation3 + $0xf8] sm:$0xff]
      %v1197 = vld [vmem:[#allocation3 + $0x100] sm:$0xff]
      %v1198 = vld [vmem:[#allocation3 + $0x108] sm:$0xff]
      %v1199 = vld [vmem:[#allocation3 + $0x110] sm:$0xff]
      %v1200 = vld [vmem:[#allocation3 + $0x118] sm:$0xff]
      %v1201 = vld [vmem:[#allocation3 + $0x120] sm:$0xff]
      %v1202 = vld [vmem:[#allocation3 + $0x128] sm:$0xff]
      %v1203 = vld [vmem:[#allocation3 + $0x130] sm:$0xff]
      %v1204 = vld [vmem:[#allocation3 + $0x138] sm:$0xff]
      %v1205 = vld [vmem:[#allocation3 + $0x140] sm:$0xff]
      %v1206 = vld [vmem:[#allocation3 + $0x148] sm:$0xff]
      %v1207 = vld [vmem:[#allocation3 + $0x150] sm:$0xff]
      %v1208 = vld [vmem:[#allocation3 + $0x158] sm:$0xff]
      %v1209 = vld [vmem:[#allocation3 + $0x160] sm:$0xff]
      %v1210 = vld [vmem:[#allocation3 + $0x168] sm:$0xff]
      %v1211 = vld [vmem:[#allocation3 + $0x170] sm:$0xff]
      %v1212 = vld [vmem:[#allocation3 + $0x178] sm:$0xff]
      %v1213 = vld [vmem:[#allocation3 + $0x180] sm:$0xff]
      %v1214 = vld [vmem:[%s2] sm:$0xff]
      %v1215 = vld [vmem:[%s2 + $0x8] sm:$0xff]
      %v1216 = vld [vmem:[%s2 + $0x10] sm:$0xff]
      %v1217 = vld [vmem:[#allocation3 + $0x188] sm:$0xff]
      %v1218 = vld [vmem:[#allocation3 + $0x190] sm:$0xff]
      %v1219 = vld [vmem:[#allocation3 + $0x198] sm:$0xff]
      %s1220 = scalar_lea.vmem %s2, 24
      %v1221 = vld [vmem:[%s1220] sm:$0xff]
      %v1222 = vld [vmem:[%s1220 + $0x8] sm:$0xff]
      %v1223 = vld [vmem:[%s1220 + $0x10] sm:$0xff]
      %vm1224 = vcmask 195584
      %v1226 = vsel %vm1224, %v1169, 0
      %v1229 = vsel %vm1224, %v1170, 0
      %v1232 = vsel %vm1224, %v1171, 0
      %v1235 = vsel %vm1224, %v1172, 0
      %v1238 = vsel %vm1224, %v1173, 0
      %v1241 = vsel %vm1224, %v1174, 0
      %v1244 = vsel %vm1224, %v1175, 0
      %v1247 = vsel %vm1224, %v1176, 0
      %v1250 = vsel %vm1224, %v1177, 0
      %v1253 = vsel %vm1224, %v1178, 0
      %v1256 = vsel %vm1224, %v1179, 0
      %v1259 = vsel %vm1224, %v1180, 0
      %v1262 = vsel %vm1224, %v1181, 0
      %v1265 = vsel %vm1224, %v1182, 0
      %v1268 = vsel %vm1224, %v1183, 0
      %v1271 = vsel %vm1224, %v1184, 0
      %v1274 = vsel %vm1224, %v1185, 0
      %v1277 = vsel %vm1224, %v1186, 0
      %v1280 = vsel %vm1224, %v1187, 0
      %v1283 = vsel %vm1224, %v1188, 0
      %v1286 = vsel %vm1224, %v1189, 0
      %v1289 = vsel %vm1224, %v1190, 0
      %v1292 = vsel %vm1224, %v1191, 0
      %v1295 = vsel %vm1224, %v1192, 0
      %v1298 = vsel %vm1224, %v1193, 0
      %v1301 = vsel %vm1224, %v1194, 0
      %v1304 = vsel %vm1224, %v1195, 0
      %v1307 = vsel %vm1224, %v1196, 0
      %v1310 = vsel %vm1224, %v1197, 0
      %v1313 = vsel %vm1224, %v1198, 0
      %v1316 = vsel %vm1224, %v1199, 0
      %v1319 = vsel %vm1224, %v1200, 0
      %v1322 = vsel %vm1224, %v1201, 0
      %v1325 = vsel %vm1224, %v1202, 0
      %v1328 = vsel %vm1224, %v1203, 0
      %v1331 = vsel %vm1224, %v1204, 0
      %v1334 = vsel %vm1224, %v1205, 0
      %v1337 = vsel %vm1224, %v1206, 0
      %v1340 = vsel %vm1224, %v1207, 0
      %v1343 = vsel %vm1224, %v1208, 0
      %v1346 = vsel %vm1224, %v1209, 0
      %v1349 = vsel %vm1224, %v1210, 0
      %v1352 = vsel %vm1224, %v1211, 0
      %v1355 = vsel %vm1224, %v1212, 0
      %v1358 = vsel %vm1224, %v1213, 0
      %v1361 = vsel %vm1224, %v1217, 0
      %v1364 = vsel %vm1224, %v1218, 0
      %v1367 = vsel %vm1224, %v1219, 0
      %1369 = vmatpush.msra.mxu0 0.0
      %1370 = vmatpush.msra.mxu0 0.0
      %1371 = vmatpush.msra.mxu0 0.0
      %1372 = vmatpush.msra.mxu0 0.0
      %1373 = vmatpush.msra.mxu0 0.0
      %1374 = vmatpush.msra.mxu0 0.0
      %1375 = vmatpush.msra.mxu0 0.0
      %1376 = vmatpush.msra.mxu0 0.0
      %1377 = vmatpush.msra.mxu0 0.0
      %1378 = vmatpush.msra.mxu0 0.0
      %1379 = vmatpush.msra.mxu0 0.0
      %1380 = vmatpush.msra.mxu0 0.0
      %1381 = vmatpush.msra.mxu0 0.0
      %1382 = vmatpush.msra.mxu0 %v1223
      %1383 = vmatpush.msra.mxu0 %v1222
      %1384 = vmatpush.msra.mxu0 %v1221
      %1385 = vmatmul.f32.gmra.mxu0 %v1226
      %v1386 = vpop.f32.mrf.mxu0
      %v1387 = vadd.f32 0.0, %v1386
      %1388 = vmatmul.f32.gmra.mxu0 %v1229
      %v1389 = vpop.f32.mrf.mxu0
      %v1390 = vadd.f32 0.0, %v1389
      %1391 = vmatmul.f32.gmra.mxu0 %v1232
      %v1392 = vpop.f32.mrf.mxu0
      %v1393 = vadd.f32 0.0, %v1392
      %1394 = vmatmul.f32.gmra.mxu0 %v1235
      %v1395 = vpop.f32.mrf.mxu0
      %v1396 = vadd.f32 0.0, %v1395
      %1397 = vmatmul.f32.gmra.mxu0 %v1238
      %v1398 = vpop.f32.mrf.mxu0
      %v1399 = vadd.f32 0.0, %v1398
      %1400 = vmatmul.f32.gmra.mxu0 %v1241
      %v1401 = vpop.f32.mrf.mxu0
      %v1402 = vadd.f32 0.0, %v1401
      %1403 = vmatmul.f32.gmra.mxu0 %v1244
      %v1404 = vpop.f32.mrf.mxu0
      %v1405 = vadd.f32 0.0, %v1404
      %1406 = vmatmul.f32.gmra.mxu0 %v1247
      %v1407 = vpop.f32.mrf.mxu0
      %v1408 = vadd.f32 0.0, %v1407
      %1409 = vmatmul.f32.gmra.mxu0 %v1250
      %v1410 = vpop.f32.mrf.mxu0
      %v1411 = vadd.f32 0.0, %v1410
      %1412 = vmatmul.f32.gmra.mxu0 %v1253
      %v1413 = vpop.f32.mrf.mxu0
      %v1414 = vadd.f32 0.0, %v1413
      %1415 = vmatmul.f32.gmra.mxu0 %v1256
      %v1416 = vpop.f32.mrf.mxu0
      %v1417 = vadd.f32 0.0, %v1416
      %1418 = vmatmul.f32.gmra.mxu0 %v1259
      %v1419 = vpop.f32.mrf.mxu0
      %v1420 = vadd.f32 0.0, %v1419
      %1421 = vmatmul.f32.gmra.mxu0 %v1262
      %v1422 = vpop.f32.mrf.mxu0
      %v1423 = vadd.f32 0.0, %v1422
      %1424 = vmatmul.f32.gmra.mxu0 %v1265
      %v1425 = vpop.f32.mrf.mxu0
      %v1426 = vadd.f32 0.0, %v1425
      %1427 = vmatmul.f32.gmra.mxu0 %v1268
      %v1428 = vpop.f32.mrf.mxu0
      %v1429 = vadd.f32 0.0, %v1428
      %1430 = vmatmul.f32.gmra.mxu0 %v1271
      %v1431 = vpop.f32.mrf.mxu0
      %v1432 = vadd.f32 0.0, %v1431
      %1433 = vmatmul.f32.gmra.mxu0 %v1274
      %v1434 = vpop.f32.mrf.mxu0
      %v1435 = vadd.f32 0.0, %v1434
      %1436 = vmatmul.f32.gmra.mxu0 %v1277
      %v1437 = vpop.f32.mrf.mxu0
      %v1438 = vadd.f32 0.0, %v1437
      %1439 = vmatmul.f32.gmra.mxu0 %v1280
      %v1440 = vpop.f32.mrf.mxu0
      %v1441 = vadd.f32 0.0, %v1440
      %1442 = vmatmul.f32.gmra.mxu0 %v1283
      %v1443 = vpop.f32.mrf.mxu0
      %v1444 = vadd.f32 0.0, %v1443
      %1445 = vmatmul.f32.gmra.mxu0 %v1286
      %v1446 = vpop.f32.mrf.mxu0
      %v1447 = vadd.f32 0.0, %v1446
      %1448 = vmatmul.f32.gmra.mxu0 %v1289
      %v1449 = vpop.f32.mrf.mxu0
      %v1450 = vadd.f32 0.0, %v1449
      %1451 = vmatmul.f32.gmra.mxu0 %v1292
      %v1452 = vpop.f32.mrf.mxu0
      %v1453 = vadd.f32 0.0, %v1452
      %1454 = vmatmul.f32.gmra.mxu0 %v1295
      %v1455 = vpop.f32.mrf.mxu0
      %v1456 = vadd.f32 0.0, %v1455
      %1457 = vmatmul.f32.gmra.mxu0 %v1298
      %v1458 = vpop.f32.mrf.mxu0
      %v1459 = vadd.f32 0.0, %v1458
      %1460 = vmatmul.f32.gmra.mxu0 %v1301
      %v1461 = vpop.f32.mrf.mxu0
      %v1462 = vadd.f32 0.0, %v1461
      %1463 = vmatmul.f32.gmra.mxu0 %v1304
      %v1464 = vpop.f32.mrf.mxu0
      %v1465 = vadd.f32 0.0, %v1464
      %1466 = vmatmul.f32.gmra.mxu0 %v1307
      %v1467 = vpop.f32.mrf.mxu0
      %v1468 = vadd.f32 0.0, %v1467
      %1469 = vmatmul.f32.gmra.mxu0 %v1310
      %v1470 = vpop.f32.mrf.mxu0
      %v1471 = vadd.f32 0.0, %v1470
      %1472 = vmatmul.f32.gmra.mxu0 %v1313
      %v1473 = vpop.f32.mrf.mxu0
      %v1474 = vadd.f32 0.0, %v1473
      %1475 = vmatmul.f32.gmra.mxu0 %v1316
      %v1476 = vpop.f32.mrf.mxu0
      %v1477 = vadd.f32 0.0, %v1476
      %1478 = vmatmul.f32.gmra.mxu0 %v1319
      %v1479 = vpop.f32.mrf.mxu0
      %v1480 = vadd.f32 0.0, %v1479
      %1481 = vmatmul.f32.gmra.mxu0 %v1322
      %v1482 = vpop.f32.mrf.mxu0
      %v1483 = vadd.f32 0.0, %v1482
      %1484 = vmatmul.f32.gmra.mxu0 %v1325
      %v1485 = vpop.f32.mrf.mxu0
      %v1486 = vadd.f32 0.0, %v1485
      %1487 = vmatmul.f32.gmra.mxu0 %v1328
      %v1488 = vpop.f32.mrf.mxu0
      %v1489 = vadd.f32 0.0, %v1488
      %1490 = vmatmul.f32.gmra.mxu0 %v1331
      %v1491 = vpop.f32.mrf.mxu0
      %v1492 = vadd.f32 0.0, %v1491
      %1493 = vmatmul.f32.gmra.mxu0 %v1334
      %v1494 = vpop.f32.mrf.mxu0
      %v1495 = vadd.f32 0.0, %v1494
      %1496 = vmatmul.f32.gmra.mxu0 %v1337
      %v1497 = vpop.f32.mrf.mxu0
      %v1498 = vadd.f32 0.0, %v1497
      %1499 = vmatmul.f32.gmra.mxu0 %v1340
      %v1500 = vpop.f32.mrf.mxu0
      %v1501 = vadd.f32 0.0, %v1500
      %1502 = vmatmul.f32.gmra.mxu0 %v1343
      %v1503 = vpop.f32.mrf.mxu0
      %v1504 = vadd.f32 0.0, %v1503
      %1505 = vmatmul.f32.gmra.mxu0 %v1346
      %v1506 = vpop.f32.mrf.mxu0
      %v1507 = vadd.f32 0.0, %v1506
      %1508 = vmatmul.f32.gmra.mxu0 %v1349
      %v1509 = vpop.f32.mrf.mxu0
      %v1510 = vadd.f32 0.0, %v1509
      %1511 = vmatmul.f32.gmra.mxu0 %v1352
      %v1512 = vpop.f32.mrf.mxu0
      %v1513 = vadd.f32 0.0, %v1512
      %1514 = vmatmul.f32.gmra.mxu0 %v1355
      %v1515 = vpop.f32.mrf.mxu0
      %v1516 = vadd.f32 0.0, %v1515
      %1517 = vmatmul.f32.gmra.mxu0 %v1358
      %v1518 = vpop.f32.mrf.mxu0
      %v1519 = vadd.f32 0.0, %v1518
      %1520 = vmatmul.f32.gmra.mxu0 %v1361
      %v1521 = vpop.f32.mrf.mxu0
      %v1522 = vadd.f32 0.0, %v1521
      %1523 = vmatmul.f32.gmra.mxu0 %v1364
      %v1524 = vpop.f32.mrf.mxu0
      %v1525 = vadd.f32 0.0, %v1524
      %1526 = vmatmul.f32.gmra.mxu0 %v1367
      %v1527 = vpop.f32.mrf.mxu0
      %v1528 = vadd.f32 0.0, %v1527
      %1529 = vdwg.mxu0
      %v1531 = vsel %vm1224, %v1166, 0
      %v1534 = vsel %vm1224, %v1167, 0
      %v1537 = vsel %vm1224, %v1168, 0
      %1539 = vmatpush.msra.mxu0 0.0
      %1540 = vmatpush.msra.mxu0 0.0
      %1541 = vmatpush.msra.mxu0 0.0
      %1542 = vmatpush.msra.mxu0 0.0
      %1543 = vmatpush.msra.mxu0 0.0
      %1544 = vmatpush.msra.mxu0 0.0
      %1545 = vmatpush.msra.mxu0 0.0
      %1546 = vmatpush.msra.mxu0 0.0
      %1547 = vmatpush.msra.mxu0 0.0
      %1548 = vmatpush.msra.mxu0 0.0
      %1549 = vmatpush.msra.mxu0 0.0
      %1550 = vmatpush.msra.mxu0 0.0
      %1551 = vmatpush.msra.mxu0 0.0
      %1552 = vmatpush.msra.mxu0 %v1216
      %1553 = vmatpush.msra.mxu0 %v1215
      %1554 = vmatpush.msra.mxu0 %v1214
      %1555 = vmatmul.f32.gmra.mxu0 %v1531
      %v1556 = vpop.f32.mrf.mxu0
      %v1557 = vadd.f32 %v1387, %v1556
      %1558 = vmatmul.f32.gmra.mxu0 %v1534
      %v1559 = vpop.f32.mrf.mxu0
      %v1560 = vadd.f32 %v1390, %v1559
      %1561 = vmatmul.f32.gmra.mxu0 %v1537
      %v1562 = vpop.f32.mrf.mxu0
      %v1563 = vadd.f32 %v1393, %v1562
      %1564 = vmatmul.f32.gmra.mxu0 %v1226
      %v1565 = vpop.f32.mrf.mxu0
      %v1566 = vadd.f32 %v1396, %v1565
      %1567 = vmatmul.f32.gmra.mxu0 %v1229
      %v1568 = vpop.f32.mrf.mxu0
      %v1569 = vadd.f32 %v1399, %v1568
      %1570 = vmatmul.f32.gmra.mxu0 %v1232
      %v1571 = vpop.f32.mrf.mxu0
      %v1572 = vadd.f32 %v1402, %v1571
      %1573 = vmatmul.f32.gmra.mxu0 %v1235
      %v1574 = vpop.f32.mrf.mxu0
      %v1575 = vadd.f32 %v1405, %v1574
      %1576 = vmatmul.f32.gmra.mxu0 %v1238
      %v1577 = vpop.f32.mrf.mxu0
      %v1578 = vadd.f32 %v1408, %v1577
      %1579 = vmatmul.f32.gmra.mxu0 %v1241
      %v1580 = vpop.f32.mrf.mxu0
      %v1581 = vadd.f32 %v1411, %v1580
      %1582 = vmatmul.f32.gmra.mxu0 %v1244
      %v1583 = vpop.f32.mrf.mxu0
      %v1584 = vadd.f32 %v1414, %v1583
      %1585 = vmatmul.f32.gmra.mxu0 %v1247
      %v1586 = vpop.f32.mrf.mxu0
      %v1587 = vadd.f32 %v1417, %v1586
      %1588 = vmatmul.f32.gmra.mxu0 %v1250
      %v1589 = vpop.f32.mrf.mxu0
      %v1590 = vadd.f32 %v1420, %v1589
      %1591 = vmatmul.f32.gmra.mxu0 %v1253
      %v1592 = vpop.f32.mrf.mxu0
      %v1593 = vadd.f32 %v1423, %v1592
      %1594 = vmatmul.f32.gmra.mxu0 %v1256
      %v1595 = vpop.f32.mrf.mxu0
      %v1596 = vadd.f32 %v1426, %v1595
      %1597 = vmatmul.f32.gmra.mxu0 %v1259
      %v1598 = vpop.f32.mrf.mxu0
      %v1599 = vadd.f32 %v1429, %v1598
      %1600 = vmatmul.f32.gmra.mxu0 %v1262
      %v1601 = vpop.f32.mrf.mxu0
      %v1602 = vadd.f32 %v1432, %v1601
      %1603 = vmatmul.f32.gmra.mxu0 %v1265
      %v1604 = vpop.f32.mrf.mxu0
      %v1605 = vadd.f32 %v1435, %v1604
      %1606 = vmatmul.f32.gmra.mxu0 %v1268
      %v1607 = vpop.f32.mrf.mxu0
      %v1608 = vadd.f32 %v1438, %v1607
      %1609 = vmatmul.f32.gmra.mxu0 %v1271
      %v1610 = vpop.f32.mrf.mxu0
      %v1611 = vadd.f32 %v1441, %v1610
      %1612 = vmatmul.f32.gmra.mxu0 %v1274
      %v1613 = vpop.f32.mrf.mxu0
      %v1614 = vadd.f32 %v1444, %v1613
      %1615 = vmatmul.f32.gmra.mxu0 %v1277
      %v1616 = vpop.f32.mrf.mxu0
      %v1617 = vadd.f32 %v1447, %v1616
      %1618 = vmatmul.f32.gmra.mxu0 %v1280
      %v1619 = vpop.f32.mrf.mxu0
      %v1620 = vadd.f32 %v1450, %v1619
      %1621 = vmatmul.f32.gmra.mxu0 %v1283
      %v1622 = vpop.f32.mrf.mxu0
      %v1623 = vadd.f32 %v1453, %v1622
      %1624 = vmatmul.f32.gmra.mxu0 %v1286
      %v1625 = vpop.f32.mrf.mxu0
      %v1626 = vadd.f32 %v1456, %v1625
      %1627 = vmatmul.f32.gmra.mxu0 %v1289
      %v1628 = vpop.f32.mrf.mxu0
      %v1629 = vadd.f32 %v1459, %v1628
      %1630 = vmatmul.f32.gmra.mxu0 %v1292
      %v1631 = vpop.f32.mrf.mxu0
      %v1632 = vadd.f32 %v1462, %v1631
      %1633 = vmatmul.f32.gmra.mxu0 %v1295
      %v1634 = vpop.f32.mrf.mxu0
      %v1635 = vadd.f32 %v1465, %v1634
      %1636 = vmatmul.f32.gmra.mxu0 %v1298
      %v1637 = vpop.f32.mrf.mxu0
      %v1638 = vadd.f32 %v1468, %v1637
      %1639 = vmatmul.f32.gmra.mxu0 %v1301
      %v1640 = vpop.f32.mrf.mxu0
      %v1641 = vadd.f32 %v1471, %v1640
      %1642 = vmatmul.f32.gmra.mxu0 %v1304
      %v1643 = vpop.f32.mrf.mxu0
      %v1644 = vadd.f32 %v1474, %v1643
      %1645 = vmatmul.f32.gmra.mxu0 %v1307
      %v1646 = vpop.f32.mrf.mxu0
      %v1647 = vadd.f32 %v1477, %v1646
      %1648 = vmatmul.f32.gmra.mxu0 %v1310
      %v1649 = vpop.f32.mrf.mxu0
      %v1650 = vadd.f32 %v1480, %v1649
      %1651 = vmatmul.f32.gmra.mxu0 %v1313
      %v1652 = vpop.f32.mrf.mxu0
      %v1653 = vadd.f32 %v1483, %v1652
      %1654 = vmatmul.f32.gmra.mxu0 %v1316
      %v1655 = vpop.f32.mrf.mxu0
      %v1656 = vadd.f32 %v1486, %v1655
      %1657 = vmatmul.f32.gmra.mxu0 %v1319
      %v1658 = vpop.f32.mrf.mxu0
      %v1659 = vadd.f32 %v1489, %v1658
      %1660 = vmatmul.f32.gmra.mxu0 %v1322
      %v1661 = vpop.f32.mrf.mxu0
      %v1662 = vadd.f32 %v1492, %v1661
      %1663 = vmatmul.f32.gmra.mxu0 %v1325
      %v1664 = vpop.f32.mrf.mxu0
      %v1665 = vadd.f32 %v1495, %v1664
      %1666 = vmatmul.f32.gmra.mxu0 %v1328
      %v1667 = vpop.f32.mrf.mxu0
      %v1668 = vadd.f32 %v1498, %v1667
      %1669 = vmatmul.f32.gmra.mxu0 %v1331
      %v1670 = vpop.f32.mrf.mxu0
      %v1671 = vadd.f32 %v1501, %v1670
      %1672 = vmatmul.f32.gmra.mxu0 %v1334
      %v1673 = vpop.f32.mrf.mxu0
      %v1674 = vadd.f32 %v1504, %v1673
      %1675 = vmatmul.f32.gmra.mxu0 %v1337
      %v1676 = vpop.f32.mrf.mxu0
      %v1677 = vadd.f32 %v1507, %v1676
      %1678 = vmatmul.f32.gmra.mxu0 %v1340
      %v1679 = vpop.f32.mrf.mxu0
      %v1680 = vadd.f32 %v1510, %v1679
      %1681 = vmatmul.f32.gmra.mxu0 %v1343
      %v1682 = vpop.f32.mrf.mxu0
      %v1683 = vadd.f32 %v1513, %v1682
      %1684 = vmatmul.f32.gmra.mxu0 %v1346
      %v1685 = vpop.f32.mrf.mxu0
      %v1686 = vadd.f32 %v1516, %v1685
      %1687 = vmatmul.f32.gmra.mxu0 %v1349
      %v1688 = vpop.f32.mrf.mxu0
      %v1689 = vadd.f32 %v1519, %v1688
      %1690 = vmatmul.f32.gmra.mxu0 %v1352
      %v1691 = vpop.f32.mrf.mxu0
      %v1692 = vadd.f32 %v1522, %v1691
      %1693 = vmatmul.f32.gmra.mxu0 %v1355
      %v1694 = vpop.f32.mrf.mxu0
      %v1695 = vadd.f32 %v1525, %v1694
      %1696 = vmatmul.f32.gmra.mxu0 %v1358
      %v1697 = vpop.f32.mrf.mxu0
      %v1698 = vadd.f32 %v1528, %v1697
      %1699 = vdwg.mxu0
      %v1700 = vld [vmem:[#allocation3 + $0x38] sm:$0xff]
      %v1701 = vld [vmem:[#allocation3 + $0x40] sm:$0xff]
      %v1702 = vld [vmem:[#allocation3 + $0x48] sm:$0xff]
      %v1703 = vld [vmem:[#allocation3 + $0x50] sm:$0xff]
      %v1704 = vld [vmem:[#allocation3 + $0x58] sm:$0xff]
      %v1705 = vld [vmem:[#allocation3 + $0x60] sm:$0xff]
      %v1706 = vld [vmem:[#allocation3 + $0x68] sm:$0xff]
      %v1707 = vld [vmem:[#allocation3 + $0x70] sm:$0xff]
      %v1708 = vld [vmem:[#allocation3 + $0x78] sm:$0xff]
      %v1709 = vld [vmem:[#allocation3 + $0x80] sm:$0xff]
      %v1710 = vld [vmem:[#allocation3 + $0x88] sm:$0xff]
      %v1711 = vld [vmem:[#allocation3 + $0x90] sm:$0xff]
      %v1712 = vld [vmem:[#allocation3 + $0x98] sm:$0xff]
      %v1713 = vld [vmem:[#allocation3 + $0xa0] sm:$0xff]
      %v1714 = vld [vmem:[#allocation3 + $0xa8] sm:$0xff]
      %v1715 = vld [vmem:[#allocation3 + $0xb0] sm:$0xff]
      %v1716 = vld [vmem:[#allocation3 + $0xb8] sm:$0xff]
      %v1717 = vld [vmem:[#allocation3 + $0xc0] sm:$0xff]
      %v1718 = vld [vmem:[#allocation3 + $0xc8] sm:$0xff]
      %v1719 = vld [vmem:[#allocation3 + $0xd0] sm:$0xff]
      %v1720 = vld [vmem:[#allocation3 + $0xd8] sm:$0xff]
      %v1721 = vld [vmem:[#allocation3 + $0xe0] sm:$0xff]
      %v1722 = vld [vmem:[#allocation3 + $0xe8] sm:$0xff]
      %v1723 = vld [vmem:[#allocation3 + $0xf0] sm:$0xff]
      %v1724 = vld [vmem:[#allocation3 + $0xf8] sm:$0xff]
      %v1725 = vld [vmem:[#allocation3 + $0x100] sm:$0xff]
      %v1726 = vld [vmem:[#allocation3 + $0x108] sm:$0xff]
      %v1727 = vld [vmem:[#allocation3 + $0x110] sm:$0xff]
      %v1728 = vld [vmem:[#allocation3 + $0x118] sm:$0xff]
      %v1729 = vld [vmem:[#allocation3 + $0x120] sm:$0xff]
      %v1730 = vld [vmem:[#allocation3 + $0x128] sm:$0xff]
      %v1731 = vld [vmem:[#allocation3 + $0x130] sm:$0xff]
      %v1732 = vld [vmem:[#allocation3 + $0x138] sm:$0xff]
      %v1733 = vld [vmem:[#allocation3 + $0x140] sm:$0xff]
      %v1734 = vld [vmem:[#allocation3 + $0x148] sm:$0xff]
      %v1735 = vld [vmem:[#allocation3 + $0x150] sm:$0xff]
      %v1736 = vld [vmem:[#allocation3 + $0x158] sm:$0xff]
      %v1737 = vld [vmem:[#allocation3 + $0x160] sm:$0xff]
      %v1738 = vld [vmem:[#allocation3 + $0x168] sm:$0xff]
      %v1739 = vld [vmem:[#allocation3 + $0x170] sm:$0xff]
      %v1740 = vld [vmem:[#allocation3 + $0x178] sm:$0xff]
      %v1741 = vld [vmem:[#allocation3 + $0x180] sm:$0xff]
      %v1742 = vld [vmem:[#allocation3 + $0x188] sm:$0xff]
      %v1743 = vld [vmem:[#allocation3 + $0x190] sm:$0xff]
      %v1744 = vld [vmem:[#allocation3 + $0x198] sm:$0xff]
      %v1745 = vld [vmem:[#allocation3 + $0x1a0] sm:$0xff]
      %v1746 = vld [vmem:[#allocation3 + $0x1a8] sm:$0xff]
      %v1747 = vld [vmem:[#allocation3 + $0x1b0] sm:$0xff]
      %s1748 = scalar_lea.vmem %s2, 48
      %v1749 = vld [vmem:[%s1748] sm:$0xff]
      %v1750 = vld [vmem:[%s1748 + $0x8] sm:$0xff]
      %v1751 = vld [vmem:[%s1748 + $0x10] sm:$0xff]
      %v1753 = vsel %vm1224, %v1700, 0
      %v1756 = vsel %vm1224, %v1701, 0
      %v1759 = vsel %vm1224, %v1702, 0
      %v1762 = vsel %vm1224, %v1703, 0
      %v1765 = vsel %vm1224, %v1704, 0
      %v1768 = vsel %vm1224, %v1705, 0
      %v1771 = vsel %vm1224, %v1706, 0
      %v1774 = vsel %vm1224, %v1707, 0
      %v1777 = vsel %vm1224, %v1708, 0
      %v1780 = vsel %vm1224, %v1709, 0
      %v1783 = vsel %vm1224, %v1710, 0
      %v1786 = vsel %vm1224, %v1711, 0
      %v1789 = vsel %vm1224, %v1712, 0
      %v1792 = vsel %vm1224, %v1713, 0
      %v1795 = vsel %vm1224, %v1714, 0
      %v1798 = vsel %vm1224, %v1715, 0
      %v1801 = vsel %vm1224, %v1716, 0
      %v1804 = vsel %vm1224, %v1717, 0
      %v1807 = vsel %vm1224, %v1718, 0
      %v1810 = vsel %vm1224, %v1719, 0
      %v1813 = vsel %vm1224, %v1720, 0
      %v1816 = vsel %vm1224, %v1721, 0
      %v1819 = vsel %vm1224, %v1722, 0
      %v1822 = vsel %vm1224, %v1723, 0
      %v1825 = vsel %vm1224, %v1724, 0
      %v1828 = vsel %vm1224, %v1725, 0
      %v1831 = vsel %vm1224, %v1726, 0
      %v1834 = vsel %vm1224, %v1727, 0
      %v1837 = vsel %vm1224, %v1728, 0
      %v1840 = vsel %vm1224, %v1729, 0
      %v1843 = vsel %vm1224, %v1730, 0
      %v1846 = vsel %vm1224, %v1731, 0
      %v1849 = vsel %vm1224, %v1732, 0
      %v1852 = vsel %vm1224, %v1733, 0
      %v1855 = vsel %vm1224, %v1734, 0
      %v1858 = vsel %vm1224, %v1735, 0
      %v1861 = vsel %vm1224, %v1736, 0
      %v1864 = vsel %vm1224, %v1737, 0
      %v1867 = vsel %vm1224, %v1738, 0
      %v1870 = vsel %vm1224, %v1739, 0
      %v1873 = vsel %vm1224, %v1740, 0
      %v1876 = vsel %vm1224, %v1741, 0
      %v1879 = vsel %vm1224, %v1742, 0
      %v1882 = vsel %vm1224, %v1743, 0
      %v1885 = vsel %vm1224, %v1744, 0
      %v1888 = vsel %vm1224, %v1745, 0
      %v1891 = vsel %vm1224, %v1746, 0
      %v1894 = vsel %vm1224, %v1747, 0
      %1896 = vmatpush.msra.mxu0 0.0
      %1897 = vmatpush.msra.mxu0 0.0
      %1898 = vmatpush.msra.mxu0 0.0
      %1899 = vmatpush.msra.mxu0 0.0
      %1900 = vmatpush.msra.mxu0 0.0
      %1901 = vmatpush.msra.mxu0 0.0
      %1902 = vmatpush.msra.mxu0 0.0
      %1903 = vmatpush.msra.mxu0 0.0
      %1904 = vmatpush.msra.mxu0 0.0
      %1905 = vmatpush.msra.mxu0 0.0
      %1906 = vmatpush.msra.mxu0 0.0
      %1907 = vmatpush.msra.mxu0 0.0
      %1908 = vmatpush.msra.mxu0 0.0
      %1909 = vmatpush.msra.mxu0 %v1751
      %1910 = vmatpush.msra.mxu0 %v1750
      %1911 = vmatpush.msra.mxu0 %v1749
      %1912 = vmatmul.f32.gmra.mxu0 %v1753
      %v1913 = vpop.f32.mrf.mxu0
      %v1914 = vadd.f32 0.0, %v1913
      %1915 = vmatmul.f32.gmra.mxu0 %v1756
      %v1916 = vpop.f32.mrf.mxu0
      %v1917 = vadd.f32 0.0, %v1916
      %1918 = vmatmul.f32.gmra.mxu0 %v1759
      %v1919 = vpop.f32.mrf.mxu0
      %v1920 = vadd.f32 0.0, %v1919
      %1921 = vmatmul.f32.gmra.mxu0 %v1762
      %v1922 = vpop.f32.mrf.mxu0
      %v1923 = vadd.f32 0.0, %v1922
      %1924 = vmatmul.f32.gmra.mxu0 %v1765
      %v1925 = vpop.f32.mrf.mxu0
      %v1926 = vadd.f32 0.0, %v1925
      %1927 = vmatmul.f32.gmra.mxu0 %v1768
      %v1928 = vpop.f32.mrf.mxu0
      %v1929 = vadd.f32 0.0, %v1928
      %1930 = vmatmul.f32.gmra.mxu0 %v1771
      %v1931 = vpop.f32.mrf.mxu0
      %v1932 = vadd.f32 0.0, %v1931
      %1933 = vmatmul.f32.gmra.mxu0 %v1774
      %v1934 = vpop.f32.mrf.mxu0
      %v1935 = vadd.f32 0.0, %v1934
      %1936 = vmatmul.f32.gmra.mxu0 %v1777
      %v1937 = vpop.f32.mrf.mxu0
      %v1938 = vadd.f32 0.0, %v1937
      %1939 = vmatmul.f32.gmra.mxu0 %v1780
      %v1940 = vpop.f32.mrf.mxu0
      %v1941 = vadd.f32 0.0, %v1940
      %1942 = vmatmul.f32.gmra.mxu0 %v1783
      %v1943 = vpop.f32.mrf.mxu0
      %v1944 = vadd.f32 0.0, %v1943
      %1945 = vmatmul.f32.gmra.mxu0 %v1786
      %v1946 = vpop.f32.mrf.mxu0
      %v1947 = vadd.f32 0.0, %v1946
      %1948 = vmatmul.f32.gmra.mxu0 %v1789
      %v1949 = vpop.f32.mrf.mxu0
      %v1950 = vadd.f32 0.0, %v1949
      %1951 = vmatmul.f32.gmra.mxu0 %v1792
      %v1952 = vpop.f32.mrf.mxu0
      %v1953 = vadd.f32 0.0, %v1952
      %1954 = vmatmul.f32.gmra.mxu0 %v1795
      %v1955 = vpop.f32.mrf.mxu0
      %v1956 = vadd.f32 0.0, %v1955
      %1957 = vmatmul.f32.gmra.mxu0 %v1798
      %v1958 = vpop.f32.mrf.mxu0
      %v1959 = vadd.f32 0.0, %v1958
      %1960 = vmatmul.f32.gmra.mxu0 %v1801
      %v1961 = vpop.f32.mrf.mxu0
      %v1962 = vadd.f32 0.0, %v1961
      %1963 = vmatmul.f32.gmra.mxu0 %v1804
      %v1964 = vpop.f32.mrf.mxu0
      %v1965 = vadd.f32 0.0, %v1964
      %1966 = vmatmul.f32.gmra.mxu0 %v1807
      %v1967 = vpop.f32.mrf.mxu0
      %v1968 = vadd.f32 0.0, %v1967
      %1969 = vmatmul.f32.gmra.mxu0 %v1810
      %v1970 = vpop.f32.mrf.mxu0
      %v1971 = vadd.f32 0.0, %v1970
      %1972 = vmatmul.f32.gmra.mxu0 %v1813
      %v1973 = vpop.f32.mrf.mxu0
      %v1974 = vadd.f32 0.0, %v1973
      %1975 = vmatmul.f32.gmra.mxu0 %v1816
      %v1976 = vpop.f32.mrf.mxu0
      %v1977 = vadd.f32 0.0, %v1976
      %1978 = vmatmul.f32.gmra.mxu0 %v1819
      %v1979 = vpop.f32.mrf.mxu0
      %v1980 = vadd.f32 0.0, %v1979
      %1981 = vmatmul.f32.gmra.mxu0 %v1822
      %v1982 = vpop.f32.mrf.mxu0
      %v1983 = vadd.f32 0.0, %v1982
      %1984 = vmatmul.f32.gmra.mxu0 %v1825
      %v1985 = vpop.f32.mrf.mxu0
      %v1986 = vadd.f32 0.0, %v1985
      %1987 = vmatmul.f32.gmra.mxu0 %v1828
      %v1988 = vpop.f32.mrf.mxu0
      %v1989 = vadd.f32 0.0, %v1988
      %1990 = vmatmul.f32.gmra.mxu0 %v1831
      %v1991 = vpop.f32.mrf.mxu0
      %v1992 = vadd.f32 0.0, %v1991
      %1993 = vmatmul.f32.gmra.mxu0 %v1834
      %v1994 = vpop.f32.mrf.mxu0
      %v1995 = vadd.f32 0.0, %v1994
      %1996 = vmatmul.f32.gmra.mxu0 %v1837
      %v1997 = vpop.f32.mrf.mxu0
      %v1998 = vadd.f32 0.0, %v1997
      %1999 = vmatmul.f32.gmra.mxu0 %v1840
      %v2000 = vpop.f32.mrf.mxu0
      %v2001 = vadd.f32 0.0, %v2000
      %2002 = vmatmul.f32.gmra.mxu0 %v1843
      %v2003 = vpop.f32.mrf.mxu0
      %v2004 = vadd.f32 0.0, %v2003
      %2005 = vmatmul.f32.gmra.mxu0 %v1846
      %v2006 = vpop.f32.mrf.mxu0
      %v2007 = vadd.f32 0.0, %v2006
      %2008 = vmatmul.f32.gmra.mxu0 %v1849
      %v2009 = vpop.f32.mrf.mxu0
      %v2010 = vadd.f32 0.0, %v2009
      %2011 = vmatmul.f32.gmra.mxu0 %v1852
      %v2012 = vpop.f32.mrf.mxu0
      %v2013 = vadd.f32 0.0, %v2012
      %2014 = vmatmul.f32.gmra.mxu0 %v1855
      %v2015 = vpop.f32.mrf.mxu0
      %v2016 = vadd.f32 0.0, %v2015
      %2017 = vmatmul.f32.gmra.mxu0 %v1858
      %v2018 = vpop.f32.mrf.mxu0
      %v2019 = vadd.f32 0.0, %v2018
      %2020 = vmatmul.f32.gmra.mxu0 %v1861
      %v2021 = vpop.f32.mrf.mxu0
      %v2022 = vadd.f32 0.0, %v2021
      %2023 = vmatmul.f32.gmra.mxu0 %v1864
      %v2024 = vpop.f32.mrf.mxu0
      %v2025 = vadd.f32 0.0, %v2024
      %2026 = vmatmul.f32.gmra.mxu0 %v1867
      %v2027 = vpop.f32.mrf.mxu0
      %v2028 = vadd.f32 0.0, %v2027
      %2029 = vmatmul.f32.gmra.mxu0 %v1870
      %v2030 = vpop.f32.mrf.mxu0
      %v2031 = vadd.f32 0.0, %v2030
      %2032 = vmatmul.f32.gmra.mxu0 %v1873
      %v2033 = vpop.f32.mrf.mxu0
      %v2034 = vadd.f32 0.0, %v2033
      %2035 = vmatmul.f32.gmra.mxu0 %v1876
      %v2036 = vpop.f32.mrf.mxu0
      %v2037 = vadd.f32 0.0, %v2036
      %2038 = vmatmul.f32.gmra.mxu0 %v1879
      %v2039 = vpop.f32.mrf.mxu0
      %v2040 = vadd.f32 0.0, %v2039
      %2041 = vmatmul.f32.gmra.mxu0 %v1882
      %v2042 = vpop.f32.mrf.mxu0
      %v2043 = vadd.f32 0.0, %v2042
      %2044 = vmatmul.f32.gmra.mxu0 %v1885
      %v2045 = vpop.f32.mrf.mxu0
      %v2046 = vadd.f32 0.0, %v2045
      %2047 = vmatmul.f32.gmra.mxu0 %v1888
      %v2048 = vpop.f32.mrf.mxu0
      %v2049 = vadd.f32 0.0, %v2048
      %2050 = vmatmul.f32.gmra.mxu0 %v1891
      %v2051 = vpop.f32.mrf.mxu0
      %v2052 = vadd.f32 0.0, %v2051
      %2053 = vmatmul.f32.gmra.mxu0 %v1894
      %v2054 = vpop.f32.mrf.mxu0
      %v2055 = vadd.f32 0.0, %v2054
      %2056 = vdwg.mxu0
      %v2057 = vadd.f32 %v1557, %v1914
      %v2058 = vadd.f32 %v1560, %v1917
      %v2059 = vadd.f32 %v1563, %v1920
      %v2060 = vadd.f32 %v1566, %v1923
      %v2061 = vadd.f32 %v1569, %v1926
      %v2062 = vadd.f32 %v1572, %v1929
      %v2063 = vadd.f32 %v1575, %v1932
      %v2064 = vadd.f32 %v1578, %v1935
      %v2065 = vadd.f32 %v1581, %v1938
      %v2066 = vadd.f32 %v1584, %v1941
      %v2067 = vadd.f32 %v1587, %v1944
      %v2068 = vadd.f32 %v1590, %v1947
      %v2069 = vadd.f32 %v1593, %v1950
      %v2070 = vadd.f32 %v1596, %v1953
      %v2071 = vadd.f32 %v1599, %v1956
      %v2072 = vadd.f32 %v1602, %v1959
      %v2073 = vadd.f32 %v1605, %v1962
      %v2074 = vadd.f32 %v1608, %v1965
      %v2075 = vadd.f32 %v1611, %v1968
      %v2076 = vadd.f32 %v1614, %v1971
      %v2077 = vadd.f32 %v1617, %v1974
      %v2078 = vadd.f32 %v1620, %v1977
      %v2079 = vadd.f32 %v1623, %v1980
      %v2080 = vadd.f32 %v1626, %v1983
      %v2081 = vadd.f32 %v1629, %v1986
      %v2082 = vadd.f32 %v1632, %v1989
      %v2083 = vadd.f32 %v1635, %v1992
      %v2084 = vadd.f32 %v1638, %v1995
      %v2085 = vadd.f32 %v1641, %v1998
      %v2086 = vadd.f32 %v1644, %v2001
      %v2087 = vadd.f32 %v1647, %v2004
      %v2088 = vadd.f32 %v1650, %v2007
      %v2089 = vadd.f32 %v1653, %v2010
      %v2090 = vadd.f32 %v1656, %v2013
      %v2091 = vadd.f32 %v1659, %v2016
      %v2092 = vadd.f32 %v1662, %v2019
      %v2093 = vadd.f32 %v1665, %v2022
      %v2094 = vadd.f32 %v1668, %v2025
      %v2095 = vadd.f32 %v1671, %v2028
      %v2096 = vadd.f32 %v1674, %v2031
      %v2097 = vadd.f32 %v1677, %v2034
      %v2098 = vadd.f32 %v1680, %v2037
      %v2099 = vadd.f32 %v1683, %v2040
      %v2100 = vadd.f32 %v1686, %v2043
      %v2101 = vadd.f32 %v1689, %v2046
      %v2102 = vadd.f32 %v1692, %v2049
      %v2103 = vadd.f32 %v1695, %v2052
      %v2104 = vadd.f32 %v1698, %v2055
      %v2105 = vld [vmem:[%s3] sm:$0x1]
      %v2107 = vperm.slane %v2105, 0
      %v2109 = vadd.f32 %v2057, %v2107
      %v2110 = vadd.f32 %v2058, %v2107
      %v2111 = vadd.f32 %v2059, %v2107
      %v2112 = vadd.f32 %v2060, %v2107
      %v2113 = vadd.f32 %v2061, %v2107
      %v2114 = vadd.f32 %v2062, %v2107
      %v2115 = vadd.f32 %v2063, %v2107
      %v2116 = vadd.f32 %v2064, %v2107
      %v2117 = vadd.f32 %v2065, %v2107
      %v2118 = vadd.f32 %v2066, %v2107
      %v2119 = vadd.f32 %v2067, %v2107
      %v2120 = vadd.f32 %v2068, %v2107
      %v2121 = vadd.f32 %v2069, %v2107
      %v2122 = vadd.f32 %v2070, %v2107
      %v2123 = vadd.f32 %v2071, %v2107
      %v2124 = vadd.f32 %v2072, %v2107
      %v2125 = vadd.f32 %v2073, %v2107
      %v2126 = vadd.f32 %v2074, %v2107
      %v2127 = vadd.f32 %v2075, %v2107
      %v2128 = vadd.f32 %v2076, %v2107
      %v2129 = vadd.f32 %v2077, %v2107
      %v2130 = vadd.f32 %v2078, %v2107
      %v2131 = vadd.f32 %v2079, %v2107
      %v2132 = vadd.f32 %v2080, %v2107
      %v2133 = vadd.f32 %v2081, %v2107
      %v2134 = vadd.f32 %v2082, %v2107
      %v2135 = vadd.f32 %v2083, %v2107
      %v2136 = vadd.f32 %v2084, %v2107
      %v2137 = vadd.f32 %v2085, %v2107
      %v2138 = vadd.f32 %v2086, %v2107
      %v2139 = vadd.f32 %v2087, %v2107
      %v2140 = vadd.f32 %v2088, %v2107
      %v2141 = vadd.f32 %v2089, %v2107
      %v2142 = vadd.f32 %v2090, %v2107
      %v2143 = vadd.f32 %v2091, %v2107
      %v2144 = vadd.f32 %v2092, %v2107
      %v2145 = vadd.f32 %v2093, %v2107
      %v2146 = vadd.f32 %v2094, %v2107
      %v2147 = vadd.f32 %v2095, %v2107
      %v2148 = vadd.f32 %v2096, %v2107
      %v2149 = vadd.f32 %v2097, %v2107
      %v2150 = vadd.f32 %v2098, %v2107
      %v2151 = vadd.f32 %v2099, %v2107
      %v2152 = vadd.f32 %v2100, %v2107
      %v2153 = vadd.f32 %v2101, %v2107
      %v2154 = vadd.f32 %v2102, %v2107
      %v2155 = vadd.f32 %v2103, %v2107
      %v2156 = vadd.f32 %v2104, %v2107
      %v2157 = vmax.f32 %v2109, 0.0
      %v2158 = vmax.f32 %v2110, 0.0
      %v2159 = vmax.f32 %v2111, 0.0
      %v2160 = vmax.f32 %v2112, 0.0
      %v2161 = vmax.f32 %v2113, 0.0
      %v2162 = vmax.f32 %v2114, 0.0
      %v2163 = vmax.f32 %v2115, 0.0
      %v2164 = vmax.f32 %v2116, 0.0
      %v2165 = vmax.f32 %v2117, 0.0
      %v2166 = vmax.f32 %v2118, 0.0
      %v2167 = vmax.f32 %v2119, 0.0
      %v2168 = vmax.f32 %v2120, 0.0
      %v2169 = vmax.f32 %v2121, 0.0
      %v2170 = vmax.f32 %v2122, 0.0
      %v2171 = vmax.f32 %v2123, 0.0
      %v2172 = vmax.f32 %v2124, 0.0
      %v2173 = vmax.f32 %v2125, 0.0
      %v2174 = vmax.f32 %v2126, 0.0
      %v2175 = vmax.f32 %v2127, 0.0
      %v2176 = vmax.f32 %v2128, 0.0
      %v2177 = vmax.f32 %v2129, 0.0
      %v2178 = vmax.f32 %v2130, 0.0
      %v2179 = vmax.f32 %v2131, 0.0
      %v2180 = vmax.f32 %v2132, 0.0
      %v2181 = vmax.f32 %v2133, 0.0
      %v2182 = vmax.f32 %v2134, 0.0
      %v2183 = vmax.f32 %v2135, 0.0
      %v2184 = vmax.f32 %v2136, 0.0
      %v2185 = vmax.f32 %v2137, 0.0
      %v2186 = vmax.f32 %v2138, 0.0
      %v2187 = vmax.f32 %v2139, 0.0
      %v2188 = vmax.f32 %v2140, 0.0
      %v2189 = vmax.f32 %v2141, 0.0
      %v2190 = vmax.f32 %v2142, 0.0
      %v2191 = vmax.f32 %v2143, 0.0
      %v2192 = vmax.f32 %v2144, 0.0
      %v2193 = vmax.f32 %v2145, 0.0
      %v2194 = vmax.f32 %v2146, 0.0
      %v2195 = vmax.f32 %v2147, 0.0
      %v2196 = vmax.f32 %v2148, 0.0
      %v2197 = vmax.f32 %v2149, 0.0
      %v2198 = vmax.f32 %v2150, 0.0
      %v2199 = vmax.f32 %v2151, 0.0
      %v2200 = vmax.f32 %v2152, 0.0
      %v2201 = vmax.f32 %v2153, 0.0
      %v2202 = vmax.f32 %v2154, 0.0
      %v2203 = vmax.f32 %v2155, 0.0
      %v2204 = vmax.f32 %v2156, 0.0
      %v2205 = vld [vmem:[%s1] sm:$0xff]
      %v2206 = vld [vmem:[%s1 + $0x8] sm:$0xff]
      %v2207 = vld [vmem:[%s1 + $0x10] sm:$0xff]
      %v2208 = vld [vmem:[%s1 + $0x18] sm:$0xff]
      %v2209 = vld [vmem:[%s1 + $0x20] sm:$0xff]
      %v2210 = vld [vmem:[%s1 + $0x28] sm:$0xff]
      %v2211 = vld [vmem:[%s1 + $0x30] sm:$0xff]
      %v2212 = vld [vmem:[%s1 + $0x38] sm:$0xff]
      %v2213 = vld [vmem:[%s1 + $0x40] sm:$0xff]
      %v2214 = vld [vmem:[%s1 + $0x48] sm:$0xff]
      %v2215 = vld [vmem:[%s1 + $0x50] sm:$0xff]
      %v2216 = vld [vmem:[%s1 + $0x58] sm:$0xff]
      %v2217 = vld [vmem:[%s1 + $0x60] sm:$0xff]
      %v2218 = vld [vmem:[%s1 + $0x68] sm:$0xff]
      %v2219 = vld [vmem:[%s1 + $0x70] sm:$0xff]
      %v2220 = vld [vmem:[%s1 + $0x78] sm:$0xff]
      %v2221 = vld [vmem:[%s1 + $0x80] sm:$0xff]
      %v2222 = vld [vmem:[%s1 + $0x88] sm:$0xff]
      %v2223 = vld [vmem:[%s1 + $0x90] sm:$0xff]
      %v2224 = vld [vmem:[%s1 + $0x98] sm:$0xff]
      %v2225 = vld [vmem:[%s1 + $0xa0] sm:$0xff]
      %v2226 = vld [vmem:[%s1 + $0xa8] sm:$0xff]
      %v2227 = vld [vmem:[%s1 + $0xb0] sm:$0xff]
      %v2228 = vld [vmem:[%s1 + $0xb8] sm:$0xff]
      %v2229 = vld [vmem:[%s1 + $0xc0] sm:$0xff]
      %v2230 = vld [vmem:[%s1 + $0xc8] sm:$0xff]
      %v2231 = vld [vmem:[%s1 + $0xd0] sm:$0xff]
      %v2232 = vld [vmem:[%s1 + $0xd8] sm:$0xff]
      %v2233 = vld [vmem:[%s1 + $0xe0] sm:$0xff]
      %v2234 = vld [vmem:[%s1 + $0xe8] sm:$0xff]
      %v2235 = vld [vmem:[%s1 + $0xf0] sm:$0xff]
      %v2236 = vld [vmem:[%s1 + $0xf8] sm:$0xff]
      %v2237 = vld [vmem:[%s1 + $0x100] sm:$0xff]
      %v2238 = vld [vmem:[%s1 + $0x108] sm:$0xff]
      %v2239 = vld [vmem:[%s1 + $0x110] sm:$0xff]
      %v2240 = vld [vmem:[%s1 + $0x118] sm:$0xff]
      %v2241 = vld [vmem:[%s1 + $0x120] sm:$0xff]
      %v2242 = vld [vmem:[%s1 + $0x128] sm:$0xff]
      %v2243 = vld [vmem:[%s1 + $0x130] sm:$0xff]
      %v2244 = vld [vmem:[%s1 + $0x138] sm:$0xff]
      %v2245 = vld [vmem:[%s1 + $0x140] sm:$0xff]
      %v2246 = vld [vmem:[%s1 + $0x148] sm:$0xff]
      %v2247 = vld [vmem:[%s1 + $0x150] sm:$0xff]
      %v2248 = vld [vmem:[%s1 + $0x158] sm:$0xff]
      %v2249 = vld [vmem:[%s1 + $0x160] sm:$0xff]
      %v2250 = vld [vmem:[%s1 + $0x168] sm:$0xff]
      %v2251 = vld [vmem:[%s1 + $0x170] sm:$0xff]
      %v2252 = vld [vmem:[%s1 + $0x178] sm:$0xff]
      %v2253 = vmul.f32 %v2157, %v2205
      %v2254 = vmul.f32 %v2158, %v2206
      %v2255 = vmul.f32 %v2159, %v2207
      %v2256 = vmul.f32 %v2160, %v2208
      %v2257 = vmul.f32 %v2161, %v2209
      %v2258 = vmul.f32 %v2162, %v2210
      %v2259 = vmul.f32 %v2163, %v2211
      %v2260 = vmul.f32 %v2164, %v2212
      %v2261 = vmul.f32 %v2165, %v2213
      %v2262 = vmul.f32 %v2166, %v2214
      %v2263 = vmul.f32 %v2167, %v2215
      %v2264 = vmul.f32 %v2168, %v2216
      %v2265 = vmul.f32 %v2169, %v2217
      %v2266 = vmul.f32 %v2170, %v2218
      %v2267 = vmul.f32 %v2171, %v2219
      %v2268 = vmul.f32 %v2172, %v2220
      %v2269 = vmul.f32 %v2173, %v2221
      %v2270 = vmul.f32 %v2174, %v2222
      %v2271 = vmul.f32 %v2175, %v2223
      %v2272 = vmul.f32 %v2176, %v2224
      %v2273 = vmul.f32 %v2177, %v2225
      %v2274 = vmul.f32 %v2178, %v2226
      %v2275 = vmul.f32 %v2179, %v2227
      %v2276 = vmul.f32 %v2180, %v2228
      %v2277 = vmul.f32 %v2181, %v2229
      %v2278 = vmul.f32 %v2182, %v2230
      %v2279 = vmul.f32 %v2183, %v2231
      %v2280 = vmul.f32 %v2184, %v2232
      %v2281 = vmul.f32 %v2185, %v2233
      %v2282 = vmul.f32 %v2186, %v2234
      %v2283 = vmul.f32 %v2187, %v2235
      %v2284 = vmul.f32 %v2188, %v2236
      %v2285 = vmul.f32 %v2189, %v2237
      %v2286 = vmul.f32 %v2190, %v2238
      %v2287 = vmul.f32 %v2191, %v2239
      %v2288 = vmul.f32 %v2192, %v2240
      %v2289 = vmul.f32 %v2193, %v2241
      %v2290 = vmul.f32 %v2194, %v2242
      %v2291 = vmul.f32 %v2195, %v2243
      %v2292 = vmul.f32 %v2196, %v2244
      %v2293 = vmul.f32 %v2197, %v2245
      %v2294 = vmul.f32 %v2198, %v2246
      %v2295 = vmul.f32 %v2199, %v2247
      %v2296 = vmul.f32 %v2200, %v2248
      %v2297 = vmul.f32 %v2201, %v2249
      %v2298 = vmul.f32 %v2202, %v2250
      %v2299 = vmul.f32 %v2203, %v2251
      %v2300 = vmul.f32 %v2204, %v2252
      %2301 = vst.msk [vmem:[#allocation2 + $0x20] sm:$0xff] %vm255, %v2253
      %2302 = vst.msk [vmem:[#allocation2 + $0x28] sm:$0xff] %vm255, %v2254
      %2303 = vst.msk [vmem:[#allocation2 + $0x30] sm:$0xff] %vm255, %v2255
      %2304 = vst.msk [vmem:[#allocation2 + $0x38] sm:$0xff] %vm255, %v2256
      %2305 = vst.msk [vmem:[#allocation2 + $0x40] sm:$0xff] %vm255, %v2257
      %2306 = vst.msk [vmem:[#allocation2 + $0x48] sm:$0xff] %vm255, %v2258
      %2307 = vst.msk [vmem:[#allocation2 + $0x50] sm:$0xff] %vm255, %v2259
      %2308 = vst.msk [vmem:[#allocation2 + $0x58] sm:$0xff] %vm255, %v2260
      %2309 = vst.msk [vmem:[#allocation2 + $0x60] sm:$0xff] %vm255, %v2261
      %2310 = vst.msk [vmem:[#allocation2 + $0x68] sm:$0xff] %vm255, %v2262
      %2311 = vst.msk [vmem:[#allocation2 + $0x70] sm:$0xff] %vm255, %v2263
      %2312 = vst.msk [vmem:[#allocation2 + $0x78] sm:$0xff] %vm255, %v2264
      %2313 = vst.msk [vmem:[#allocation2 + $0x80] sm:$0xff] %vm255, %v2265
      %2314 = vst.msk [vmem:[#allocation2 + $0x88] sm:$0xff] %vm255, %v2266
      %2315 = vst.msk [vmem:[#allocation2 + $0x90] sm:$0xff] %vm255, %v2267
      %2316 = vst.msk [vmem:[#allocation2 + $0x98] sm:$0xff] %vm255, %v2268
      %2317 = vst.msk [vmem:[#allocation2 + $0xa0] sm:$0xff] %vm255, %v2269
      %2318 = vst.msk [vmem:[#allocation2 + $0xa8] sm:$0xff] %vm255, %v2270
      %2319 = vst.msk [vmem:[#allocation2 + $0xb0] sm:$0xff] %vm255, %v2271
      %2320 = vst.msk [vmem:[#allocation2 + $0xb8] sm:$0xff] %vm255, %v2272
      %2321 = vst.msk [vmem:[#allocation2 + $0xc0] sm:$0xff] %vm255, %v2273
      %2322 = vst.msk [vmem:[#allocation2 + $0xc8] sm:$0xff] %vm255, %v2274
      %2323 = vst.msk [vmem:[#allocation2 + $0xd0] sm:$0xff] %vm255, %v2275
      %2324 = vst.msk [vmem:[#allocation2 + $0xd8] sm:$0xff] %vm255, %v2276
      %2325 = vst.msk [vmem:[#allocation2 + $0xe0] sm:$0xff] %vm255, %v2277
      %2326 = vst.msk [vmem:[#allocation2 + $0xe8] sm:$0xff] %vm255, %v2278
      %2327 = vst.msk [vmem:[#allocation2 + $0xf0] sm:$0xff] %vm255, %v2279
      %2328 = vst.msk [vmem:[#allocation2 + $0xf8] sm:$0xff] %vm255, %v2280
      %2329 = vst.msk [vmem:[#allocation2 + $0x100] sm:$0xff] %vm255, %v2281
      %2330 = vst.msk [vmem:[#allocation2 + $0x108] sm:$0xff] %vm255, %v2282
      %2331 = vst.msk [vmem:[#allocation2 + $0x110] sm:$0xff] %vm255, %v2283
      %2332 = vst.msk [vmem:[#allocation2 + $0x118] sm:$0xff] %vm255, %v2284
      %2333 = vst.msk [vmem:[#allocation2 + $0x120] sm:$0xff] %vm255, %v2285
      %2334 = vst.msk [vmem:[#allocation2 + $0x128] sm:$0xff] %vm255, %v2286
      %2335 = vst.msk [vmem:[#allocation2 + $0x130] sm:$0xff] %vm255, %v2287
      %2336 = vst.msk [vmem:[#allocation2 + $0x138] sm:$0xff] %vm255, %v2288
      %2337 = vst.msk [vmem:[#allocation2 + $0x140] sm:$0xff] %vm255, %v2289
      %2338 = vst.msk [vmem:[#allocation2 + $0x148] sm:$0xff] %vm255, %v2290
      %2339 = vst.msk [vmem:[#allocation2 + $0x150] sm:$0xff] %vm255, %v2291
      %2340 = vst.msk [vmem:[#allocation2 + $0x158] sm:$0xff] %vm255, %v2292
      %2341 = vst.msk [vmem:[#allocation2 + $0x160] sm:$0xff] %vm255, %v2293
      %2342 = vst.msk [vmem:[#allocation2 + $0x168] sm:$0xff] %vm255, %v2294
      %2343 = vst.msk [vmem:[#allocation2 + $0x170] sm:$0xff] %vm255, %v2295
      %2344 = vst.msk [vmem:[#allocation2 + $0x178] sm:$0xff] %vm255, %v2296
      %2345 = vst.msk [vmem:[#allocation2 + $0x180] sm:$0xff] %vm255, %v2297
      %2346 = vst.msk [vmem:[#allocation2 + $0x188] sm:$0xff] %vm255, %v2298
      %2347 = vst.msk [vmem:[#allocation2 + $0x190] sm:$0xff] %vm255, %v2299
      %2348 = vst.msk [vmem:[#allocation2 + $0x198] sm:$0xff] %vm255, %v2300
      %v2349 = vld [vmem:[#allocation2] sm:$0xff]
      %v2350 = vld [vmem:[#allocation2 + $0x8] sm:$0xff]
      %v2351 = vld [vmem:[#allocation2 + $0x10] sm:$0xff]
      %v2352 = vld [vmem:[#allocation2 + $0x18] sm:$0xff]
      %v2353 = vld [vmem:[#allocation2 + $0x20] sm:$0xff]
      %v2354 = vld [vmem:[#allocation2 + $0x28] sm:$0xff]
      %v2355 = vld [vmem:[#allocation2 + $0x30] sm:$0xff]
      %v2356 = vld [vmem:[#allocation2 + $0x38] sm:$0xff]
      %v2357 = vld [vmem:[#allocation2 + $0x40] sm:$0xff]
      %v2358 = vld [vmem:[#allocation2 + $0x48] sm:$0xff]
      %v2359 = vld [vmem:[#allocation2 + $0x50] sm:$0xff]
      %v2360 = vld [vmem:[#allocation2 + $0x58] sm:$0xff]
      %v2361 = vld [vmem:[#allocation2 + $0x60] sm:$0xff]
      %v2362 = vld [vmem:[#allocation2 + $0x68] sm:$0xff]
      %v2363 = vld [vmem:[#allocation2 + $0x70] sm:$0xff]
      %v2364 = vld [vmem:[#allocation2 + $0x78] sm:$0xff]
      %v2365 = vld [vmem:[#allocation2 + $0x80] sm:$0xff]
      %v2366 = vld [vmem:[#allocation2 + $0x88] sm:$0xff]
      %v2367 = vld [vmem:[#allocation2 + $0x90] sm:$0xff]
      %v2368 = vld [vmem:[#allocation2 + $0x98] sm:$0xff]
      %v2369 = vld [vmem:[#allocation2 + $0xa0] sm:$0xff]
      %v2370 = vld [vmem:[#allocation2 + $0xa8] sm:$0xff]
      %v2371 = vld [vmem:[#allocation2 + $0xb0] sm:$0xff]
      %v2372 = vld [vmem:[#allocation2 + $0xb8] sm:$0xff]
      %v2373 = vld [vmem:[#allocation2 + $0xc0] sm:$0xff]
      %v2374 = vld [vmem:[#allocation2 + $0xc8] sm:$0xff]
      %v2375 = vld [vmem:[#allocation2 + $0xd0] sm:$0xff]
      %v2376 = vld [vmem:[#allocation2 + $0xd8] sm:$0xff]
      %v2377 = vld [vmem:[#allocation2 + $0xe0] sm:$0xff]
      %v2378 = vld [vmem:[#allocation2 + $0xe8] sm:$0xff]
      %v2379 = vld [vmem:[#allocation2 + $0xf0] sm:$0xff]
      %v2380 = vld [vmem:[#allocation2 + $0xf8] sm:$0xff]
      %v2381 = vld [vmem:[#allocation2 + $0x100] sm:$0xff]
      %v2382 = vld [vmem:[#allocation2 + $0x108] sm:$0xff]
      %v2383 = vld [vmem:[#allocation2 + $0x110] sm:$0xff]
      %v2384 = vld [vmem:[#allocation2 + $0x118] sm:$0xff]
      %v2385 = vld [vmem:[#allocation2 + $0x120] sm:$0xff]
      %v2386 = vld [vmem:[#allocation2 + $0x128] sm:$0xff]
      %v2387 = vld [vmem:[#allocation2 + $0x130] sm:$0xff]
      %v2388 = vld [vmem:[#allocation2 + $0x138] sm:$0xff]
      %v2389 = vld [vmem:[#allocation2 + $0x140] sm:$0xff]
      %v2390 = vld [vmem:[#allocation2 + $0x148] sm:$0xff]
      %v2391 = vld [vmem:[#allocation2 + $0x150] sm:$0xff]
      %v2392 = vld [vmem:[#allocation2 + $0x158] sm:$0xff]
      %v2393 = vld [vmem:[#allocation2 + $0x160] sm:$0xff]
      %v2394 = vld [vmem:[#allocation2 + $0x168] sm:$0xff]
      %v2395 = vld [vmem:[#allocation2 + $0x170] sm:$0xff]
      %v2396 = vld [vmem:[#allocation2 + $0x178] sm:$0xff]
      %v2397 = vld [vmem:[#allocation2 + $0x180] sm:$0xff]
      %v2398 = vld [vmem:[#allocation2 + $0x188] sm:$0xff]
      %v2399 = vld [vmem:[#allocation2 + $0x190] sm:$0xff]
      %v2400 = vld [vmem:[#allocation2 + $0x198] sm:$0xff]
      %v2401 = vld [vmem:[#allocation2 + $0x1a0] sm:$0xff]
      %v2402 = vld [vmem:[#allocation2 + $0x1a8] sm:$0xff]
      %v2403 = vld [vmem:[#allocation2 + $0x1b0] sm:$0xff]
      %v2404 = vld [vmem:[#allocation2 + $0x1b8] sm:$0xff]
      %v2405 = vrot.slane %v2349, 7
      %v2406 = vrot.slane %v2350, 7
      %v2407 = vrot.slane %v2351, 7
      %v2408 = vrot.slane %v2352, 7
      %v2409 = vrot.slane %v2353, 7
      %v2410 = vrot.slane %v2354, 7
      %v2411 = vrot.slane %v2355, 7
      %v2412 = vrot.slane %v2356, 7
      %v2413 = vrot.slane %v2357, 7
      %v2414 = vrot.slane %v2358, 7
      %v2415 = vrot.slane %v2359, 7
      %v2416 = vrot.slane %v2360, 7
      %v2417 = vrot.slane %v2361, 7
      %v2418 = vrot.slane %v2362, 7
      %v2419 = vrot.slane %v2363, 7
      %v2420 = vrot.slane %v2364, 7
      %v2421 = vrot.slane %v2365, 7
      %v2422 = vrot.slane %v2366, 7
      %v2423 = vrot.slane %v2367, 7
      %v2424 = vrot.slane %v2368, 7
      %v2425 = vrot.slane %v2369, 7
      %v2426 = vrot.slane %v2370, 7
      %v2427 = vrot.slane %v2371, 7
      %v2428 = vrot.slane %v2372, 7
      %v2429 = vrot.slane %v2373, 7
      %v2430 = vrot.slane %v2374, 7
      %v2431 = vrot.slane %v2375, 7
      %v2432 = vrot.slane %v2376, 7
      %v2433 = vrot.slane %v2377, 7
      %v2434 = vrot.slane %v2378, 7
      %v2435 = vrot.slane %v2379, 7
      %v2436 = vrot.slane %v2380, 7
      %v2437 = vrot.slane %v2381, 7
      %v2438 = vrot.slane %v2382, 7
      %v2439 = vrot.slane %v2383, 7
      %v2440 = vrot.slane %v2384, 7
      %v2441 = vrot.slane %v2385, 7
      %v2442 = vrot.slane %v2386, 7
      %v2443 = vrot.slane %v2387, 7
      %v2444 = vrot.slane %v2388, 7
      %v2445 = vrot.slane %v2389, 7
      %v2446 = vrot.slane %v2390, 7
      %v2447 = vrot.slane %v2391, 7
      %v2448 = vrot.slane %v2392, 7
      %v2449 = vrot.slane %v2393, 7
      %v2450 = vrot.slane %v2394, 7
      %v2451 = vrot.slane %v2395, 7
      %v2452 = vrot.slane %v2396, 7
      %v2453 = vrot.slane %v2397, 7
      %v2454 = vrot.slane %v2398, 7
      %v2455 = vrot.slane %v2399, 7
      %v2456 = vrot.slane %v2400, 7
      %v2457 = vrot.slane %v2401, 7
      %v2458 = vrot.slane %v2402, 7
      %v2459 = vrot.slane %v2403, 7
      %v2460 = vrot.slane %v2404, 7
      %v2461 = vsel %vm378, %v2459, %v2460
      %v2462 = vsel %vm378, %v2458, %v2459
      %v2463 = vsel %vm378, %v2457, %v2458
      %v2464 = vsel %vm378, %v2456, %v2457
      %v2465 = vsel %vm378, %v2455, %v2456
      %v2466 = vsel %vm378, %v2454, %v2455
      %v2467 = vsel %vm378, %v2453, %v2454
      %v2468 = vsel %vm378, %v2452, %v2453
      %v2469 = vsel %vm378, %v2451, %v2452
      %v2470 = vsel %vm378, %v2450, %v2451
      %v2471 = vsel %vm378, %v2449, %v2450
      %v2472 = vsel %vm378, %v2448, %v2449
      %v2473 = vsel %vm378, %v2447, %v2448
      %v2474 = vsel %vm378, %v2446, %v2447
      %v2475 = vsel %vm378, %v2445, %v2446
      %v2476 = vsel %vm378, %v2444, %v2445
      %v2477 = vsel %vm378, %v2443, %v2444
      %v2478 = vsel %vm378, %v2442, %v2443
      %v2479 = vsel %vm378, %v2441, %v2442
      %v2480 = vsel %vm378, %v2440, %v2441
      %v2481 = vsel %vm378, %v2439, %v2440
      %v2482 = vsel %vm378, %v2438, %v2439
      %v2483 = vsel %vm378, %v2437, %v2438
      %v2484 = vsel %vm378, %v2436, %v2437
      %v2485 = vsel %vm378, %v2435, %v2436
      %v2486 = vsel %vm378, %v2434, %v2435
      %v2487 = vsel %vm378, %v2433, %v2434
      %v2488 = vsel %vm378, %v2432, %v2433
      %v2489 = vsel %vm378, %v2431, %v2432
      %v2490 = vsel %vm378, %v2430, %v2431
      %v2491 = vsel %vm378, %v2429, %v2430
      %v2492 = vsel %vm378, %v2428, %v2429
      %v2493 = vsel %vm378, %v2427, %v2428
      %v2494 = vsel %vm378, %v2426, %v2427
      %v2495 = vsel %vm378, %v2425, %v2426
      %v2496 = vsel %vm378, %v2424, %v2425
      %v2497 = vsel %vm378, %v2423, %v2424
      %v2498 = vsel %vm378, %v2422, %v2423
      %v2499 = vsel %vm378, %v2421, %v2422
      %v2500 = vsel %vm378, %v2420, %v2421
      %v2501 = vsel %vm378, %v2419, %v2420
      %v2502 = vsel %vm378, %v2418, %v2419
      %v2503 = vsel %vm378, %v2417, %v2418
      %v2504 = vsel %vm378, %v2416, %v2417
      %v2505 = vsel %vm378, %v2415, %v2416
      %v2506 = vsel %vm378, %v2414, %v2415
      %v2507 = vsel %vm378, %v2413, %v2414
      %v2508 = vsel %vm378, %v2412, %v2413
      %v2509 = vsel %vm378, %v2411, %v2412
      %v2510 = vsel %vm378, %v2410, %v2411
      %v2511 = vsel %vm378, %v2409, %v2410
      %v2512 = vsel %vm378, %v2408, %v2409
      %v2513 = vsel %vm378, %v2407, %v2408
      %v2514 = vsel %vm378, %v2406, %v2407
      %v2515 = vsel %vm378, %v2405, %v2406
      %v2516 = vsel %vm378, %v2460, %v2405
      %2517 = vst.msk [vmem:[#allocation3] sm:$0xff] %vm255, %v2516
      %2518 = vst.msk [vmem:[#allocation3 + $0x8] sm:$0xff] %vm255, %v2515
      %2519 = vst.msk [vmem:[#allocation3 + $0x10] sm:$0xff] %vm255, %v2514
      %2520 = vst.msk [vmem:[#allocation3 + $0x18] sm:$0xff] %vm255, %v2513
      %2521 = vst.msk [vmem:[#allocation3 + $0x20] sm:$0xff] %vm255, %v2512
      %2522 = vst.msk [vmem:[#allocation3 + $0x28] sm:$0xff] %vm255, %v2511
      %2523 = vst.msk [vmem:[#allocation3 + $0x30] sm:$0xff] %vm255, %v2510
      %2524 = vst.msk [vmem:[#allocation3 + $0x38] sm:$0xff] %vm255, %v2509
      %2525 = vst.msk [vmem:[#allocation3 + $0x40] sm:$0xff] %vm255, %v2508
      %2526 = vst.msk [vmem:[#allocation3 + $0x48] sm:$0xff] %vm255, %v2507
      %2527 = vst.msk [vmem:[#allocation3 + $0x50] sm:$0xff] %vm255, %v2506
      %2528 = vst.msk [vmem:[#allocation3 + $0x58] sm:$0xff] %vm255, %v2505
      %2529 = vst.msk [vmem:[#allocation3 + $0x60] sm:$0xff] %vm255, %v2504
      %2530 = vst.msk [vmem:[#allocation3 + $0x68] sm:$0xff] %vm255, %v2503
      %2531 = vst.msk [vmem:[#allocation3 + $0x70] sm:$0xff] %vm255, %v2502
      %2532 = vst.msk [vmem:[#allocation3 + $0x78] sm:$0xff] %vm255, %v2501
      %2533 = vst.msk [vmem:[#allocation3 + $0x80] sm:$0xff] %vm255, %v2500
      %2534 = vst.msk [vmem:[#allocation3 + $0x88] sm:$0xff] %vm255, %v2499
      %2535 = vst.msk [vmem:[#allocation3 + $0x90] sm:$0xff] %vm255, %v2498
      %2536 = vst.msk [vmem:[#allocation3 + $0x98] sm:$0xff] %vm255, %v2497
      %2537 = vst.msk [vmem:[#allocation3 + $0xa0] sm:$0xff] %vm255, %v2496
      %2538 = vst.msk [vmem:[#allocation3 + $0xa8] sm:$0xff] %vm255, %v2495
      %2539 = vst.msk [vmem:[#allocation3 + $0xb0] sm:$0xff] %vm255, %v2494
      %2540 = vst.msk [vmem:[#allocation3 + $0xb8] sm:$0xff] %vm255, %v2493
      %2541 = vst.msk [vmem:[#allocation3 + $0xc0] sm:$0xff] %vm255, %v2492
      %2542 = vst.msk [vmem:[#allocation3 + $0xc8] sm:$0xff] %vm255, %v2491
      %2543 = vst.msk [vmem:[#allocation3 + $0xd0] sm:$0xff] %vm255, %v2490
      %2544 = vst.msk [vmem:[#allocation3 + $0xd8] sm:$0xff] %vm255, %v2489
      %2545 = vst.msk [vmem:[#allocation3 + $0xe0] sm:$0xff] %vm255, %v2488
      %2546 = vst.msk [vmem:[#allocation3 + $0xe8] sm:$0xff] %vm255, %v2487
      %2547 = vst.msk [vmem:[#allocation3 + $0xf0] sm:$0xff] %vm255, %v2486
      %2548 = vst.msk [vmem:[#allocation3 + $0xf8] sm:$0xff] %vm255, %v2485
      %2549 = vst.msk [vmem:[#allocation3 + $0x100] sm:$0xff] %vm255, %v2484
      %2550 = vst.msk [vmem:[#allocation3 + $0x108] sm:$0xff] %vm255, %v2483
      %2551 = vst.msk [vmem:[#allocation3 + $0x110] sm:$0xff] %vm255, %v2482
      %2552 = vst.msk [vmem:[#allocation3 + $0x118] sm:$0xff] %vm255, %v2481
      %2553 = vst.msk [vmem:[#allocation3 + $0x120] sm:$0xff] %vm255, %v2480
      %2554 = vst.msk [vmem:[#allocation3 + $0x128] sm:$0xff] %vm255, %v2479
      %2555 = vst.msk [vmem:[#allocation3 + $0x130] sm:$0xff] %vm255, %v2478
      %2556 = vst.msk [vmem:[#allocation3 + $0x138] sm:$0xff] %vm255, %v2477
      %2557 = vst.msk [vmem:[#allocation3 + $0x140] sm:$0xff] %vm255, %v2476
      %2558 = vst.msk [vmem:[#allocation3 + $0x148] sm:$0xff] %vm255, %v2475
      %2559 = vst.msk [vmem:[#allocation3 + $0x150] sm:$0xff] %vm255, %v2474
      %2560 = vst.msk [vmem:[#allocation3 + $0x158] sm:$0xff] %vm255, %v2473
      %2561 = vst.msk [vmem:[#allocation3 + $0x160] sm:$0xff] %vm255, %v2472
      %2562 = vst.msk [vmem:[#allocation3 + $0x168] sm:$0xff] %vm255, %v2471
      %2563 = vst.msk [vmem:[#allocation3 + $0x170] sm:$0xff] %vm255, %v2470
      %2564 = vst.msk [vmem:[#allocation3 + $0x178] sm:$0xff] %vm255, %v2469
      %2565 = vst.msk [vmem:[#allocation3 + $0x180] sm:$0xff] %vm255, %v2468
      %2566 = vst.msk [vmem:[#allocation3 + $0x188] sm:$0xff] %vm255, %v2467
      %2567 = vst.msk [vmem:[#allocation3 + $0x190] sm:$0xff] %vm255, %v2466
      %2568 = vst.msk [vmem:[#allocation3 + $0x198] sm:$0xff] %vm255, %v2465
      %2569 = vst.msk [vmem:[#allocation3 + $0x1a0] sm:$0xff] %vm255, %v2464
      %2570 = vst.msk [vmem:[#allocation3 + $0x1a8] sm:$0xff] %vm255, %v2463
      %2571 = vst.msk [vmem:[#allocation3 + $0x1b0] sm:$0xff] %vm255, %v2462
      %2572 = vst.msk [vmem:[#allocation3 + $0x1b8] sm:$0xff] %vm255, %v2461
      %2629 = vrot.lane.b32.xlu0 %v2349, 8
      %v2630 = vpop.permute.xlu0 %2629
      %2631 = vrot.lane.b32.xlu0 %v2350, 8
      %v2632 = vpop.permute.xlu0 %2631
      %2633 = vrot.lane.b32.xlu0 %v2351, 8
      %v2634 = vpop.permute.xlu0 %2633
      %2635 = vrot.lane.b32.xlu0 %v2352, 8
      %v2636 = vpop.permute.xlu0 %2635
      %2637 = vrot.lane.b32.xlu0 %v2353, 8
      %v2638 = vpop.permute.xlu0 %2637
      %2639 = vrot.lane.b32.xlu0 %v2354, 8
      %v2640 = vpop.permute.xlu0 %2639
      %2641 = vrot.lane.b32.xlu0 %v2355, 8
      %v2642 = vpop.permute.xlu0 %2641
      %2643 = vrot.lane.b32.xlu0 %v2356, 8
      %v2644 = vpop.permute.xlu0 %2643
      %2645 = vrot.lane.b32.xlu0 %v2357, 8
      %v2646 = vpop.permute.xlu0 %2645
      %2647 = vrot.lane.b32.xlu0 %v2358, 8
      %v2648 = vpop.permute.xlu0 %2647
      %2649 = vrot.lane.b32.xlu0 %v2359, 8
      %v2650 = vpop.permute.xlu0 %2649
      %2651 = vrot.lane.b32.xlu0 %v2360, 8
      %v2652 = vpop.permute.xlu0 %2651
      %2653 = vrot.lane.b32.xlu0 %v2361, 8
      %v2654 = vpop.permute.xlu0 %2653
      %2655 = vrot.lane.b32.xlu0 %v2362, 8
      %v2656 = vpop.permute.xlu0 %2655
      %2657 = vrot.lane.b32.xlu0 %v2363, 8
      %v2658 = vpop.permute.xlu0 %2657
      %2659 = vrot.lane.b32.xlu0 %v2364, 8
      %v2660 = vpop.permute.xlu0 %2659
      %2661 = vrot.lane.b32.xlu0 %v2365, 8
      %v2662 = vpop.permute.xlu0 %2661
      %2663 = vrot.lane.b32.xlu0 %v2366, 8
      %v2664 = vpop.permute.xlu0 %2663
      %2665 = vrot.lane.b32.xlu0 %v2367, 8
      %v2666 = vpop.permute.xlu0 %2665
      %2667 = vrot.lane.b32.xlu0 %v2368, 8
      %v2668 = vpop.permute.xlu0 %2667
      %2669 = vrot.lane.b32.xlu0 %v2369, 8
      %v2670 = vpop.permute.xlu0 %2669
      %2671 = vrot.lane.b32.xlu0 %v2370, 8
      %v2672 = vpop.permute.xlu0 %2671
      %2673 = vrot.lane.b32.xlu0 %v2371, 8
      %v2674 = vpop.permute.xlu0 %2673
      %2675 = vrot.lane.b32.xlu0 %v2372, 8
      %v2676 = vpop.permute.xlu0 %2675
      %2677 = vrot.lane.b32.xlu0 %v2373, 8
      %v2678 = vpop.permute.xlu0 %2677
      %2679 = vrot.lane.b32.xlu0 %v2374, 8
      %v2680 = vpop.permute.xlu0 %2679
      %2681 = vrot.lane.b32.xlu0 %v2375, 8
      %v2682 = vpop.permute.xlu0 %2681
      %2683 = vrot.lane.b32.xlu0 %v2376, 8
      %v2684 = vpop.permute.xlu0 %2683
      %2685 = vrot.lane.b32.xlu0 %v2377, 8
      %v2686 = vpop.permute.xlu0 %2685
      %2687 = vrot.lane.b32.xlu0 %v2378, 8
      %v2688 = vpop.permute.xlu0 %2687
      %2689 = vrot.lane.b32.xlu0 %v2379, 8
      %v2690 = vpop.permute.xlu0 %2689
      %2691 = vrot.lane.b32.xlu0 %v2380, 8
      %v2692 = vpop.permute.xlu0 %2691
      %2693 = vrot.lane.b32.xlu0 %v2381, 8
      %v2694 = vpop.permute.xlu0 %2693
      %2695 = vrot.lane.b32.xlu0 %v2382, 8
      %v2696 = vpop.permute.xlu0 %2695
      %2697 = vrot.lane.b32.xlu0 %v2383, 8
      %v2698 = vpop.permute.xlu0 %2697
      %2699 = vrot.lane.b32.xlu0 %v2384, 8
      %v2700 = vpop.permute.xlu0 %2699
      %2701 = vrot.lane.b32.xlu0 %v2385, 8
      %v2702 = vpop.permute.xlu0 %2701
      %2703 = vrot.lane.b32.xlu0 %v2386, 8
      %v2704 = vpop.permute.xlu0 %2703
      %2705 = vrot.lane.b32.xlu0 %v2387, 8
      %v2706 = vpop.permute.xlu0 %2705
      %2707 = vrot.lane.b32.xlu0 %v2388, 8
      %v2708 = vpop.permute.xlu0 %2707
      %2709 = vrot.lane.b32.xlu0 %v2389, 8
      %v2710 = vpop.permute.xlu0 %2709
      %2711 = vrot.lane.b32.xlu0 %v2390, 8
      %v2712 = vpop.permute.xlu0 %2711
      %2713 = vrot.lane.b32.xlu0 %v2391, 8
      %v2714 = vpop.permute.xlu0 %2713
      %2715 = vrot.lane.b32.xlu0 %v2392, 8
      %v2716 = vpop.permute.xlu0 %2715
      %2717 = vrot.lane.b32.xlu0 %v2393, 8
      %v2718 = vpop.permute.xlu0 %2717
      %2719 = vrot.lane.b32.xlu0 %v2394, 8
      %v2720 = vpop.permute.xlu0 %2719
      %2721 = vrot.lane.b32.xlu0 %v2395, 8
      %v2722 = vpop.permute.xlu0 %2721
      %2723 = vrot.lane.b32.xlu0 %v2396, 8
      %v2724 = vpop.permute.xlu0 %2723
      %2725 = vrot.lane.b32.xlu0 %v2397, 8
      %v2726 = vpop.permute.xlu0 %2725
      %2727 = vrot.lane.b32.xlu0 %v2398, 8
      %v2728 = vpop.permute.xlu0 %2727
      %2729 = vrot.lane.b32.xlu0 %v2399, 8
      %v2730 = vpop.permute.xlu0 %2729
      %2731 = vrot.lane.b32.xlu0 %v2400, 8
      %v2732 = vpop.permute.xlu0 %2731
      %2733 = vrot.lane.b32.xlu0 %v2401, 8
      %v2734 = vpop.permute.xlu0 %2733
      %2735 = vrot.lane.b32.xlu0 %v2402, 8
      %v2736 = vpop.permute.xlu0 %2735
      %2737 = vrot.lane.b32.xlu0 %v2403, 8
      %v2738 = vpop.permute.xlu0 %2737
      %2739 = vrot.lane.b32.xlu0 %v2404, 8
      %v2740 = vpop.permute.xlu0 %2739
      %2797 = vst.msk [vmem:[#allocation3] sm:$0xff] %vm715, %v2630
      %2798 = vst.msk [vmem:[#allocation3 + $0x8] sm:$0xff] %vm715, %v2632
      %2799 = vst.msk [vmem:[#allocation3 + $0x10] sm:$0xff] %vm715, %v2634
      %2800 = vst.msk [vmem:[#allocation3 + $0x18] sm:$0xff] %vm715, %v2636
      %2801 = vst.msk [vmem:[#allocation3 + $0x20] sm:$0xff] %vm715, %v2638
      %2802 = vst.msk [vmem:[#allocation3 + $0x28] sm:$0xff] %vm715, %v2640
      %2803 = vst.msk [vmem:[#allocation3 + $0x30] sm:$0xff] %vm715, %v2642
      %2804 = vst.msk [vmem:[#allocation3 + $0x38] sm:$0xff] %vm715, %v2644
      %2805 = vst.msk [vmem:[#allocation3 + $0x40] sm:$0xff] %vm715, %v2646
      %2806 = vst.msk [vmem:[#allocation3 + $0x48] sm:$0xff] %vm715, %v2648
      %2807 = vst.msk [vmem:[#allocation3 + $0x50] sm:$0xff] %vm715, %v2650
      %2808 = vst.msk [vmem:[#allocation3 + $0x58] sm:$0xff] %vm715, %v2652
      %2809 = vst.msk [vmem:[#allocation3 + $0x60] sm:$0xff] %vm715, %v2654
      %2810 = vst.msk [vmem:[#allocation3 + $0x68] sm:$0xff] %vm715, %v2656
      %2811 = vst.msk [vmem:[#allocation3 + $0x70] sm:$0xff] %vm715, %v2658
      %2812 = vst.msk [vmem:[#allocation3 + $0x78] sm:$0xff] %vm715, %v2660
      %2813 = vst.msk [vmem:[#allocation3 + $0x80] sm:$0xff] %vm715, %v2662
      %2814 = vst.msk [vmem:[#allocation3 + $0x88] sm:$0xff] %vm715, %v2664
      %2815 = vst.msk [vmem:[#allocation3 + $0x90] sm:$0xff] %vm715, %v2666
      %2816 = vst.msk [vmem:[#allocation3 + $0x98] sm:$0xff] %vm715, %v2668
      %2817 = vst.msk [vmem:[#allocation3 + $0xa0] sm:$0xff] %vm715, %v2670
      %2818 = vst.msk [vmem:[#allocation3 + $0xa8] sm:$0xff] %vm715, %v2672
      %2819 = vst.msk [vmem:[#allocation3 + $0xb0] sm:$0xff] %vm715, %v2674
      %2820 = vst.msk [vmem:[#allocation3 + $0xb8] sm:$0xff] %vm715, %v2676
      %2821 = vst.msk [vmem:[#allocation3 + $0xc0] sm:$0xff] %vm715, %v2678
      %2822 = vst.msk [vmem:[#allocation3 + $0xc8] sm:$0xff] %vm715, %v2680
      %2823 = vst.msk [vmem:[#allocation3 + $0xd0] sm:$0xff] %vm715, %v2682
      %2824 = vst.msk [vmem:[#allocation3 + $0xd8] sm:$0xff] %vm715, %v2684
      %2825 = vst.msk [vmem:[#allocation3 + $0xe0] sm:$0xff] %vm715, %v2686
      %2826 = vst.msk [vmem:[#allocation3 + $0xe8] sm:$0xff] %vm715, %v2688
      %2827 = vst.msk [vmem:[#allocation3 + $0xf0] sm:$0xff] %vm715, %v2690
      %2828 = vst.msk [vmem:[#allocation3 + $0xf8] sm:$0xff] %vm715, %v2692
      %2829 = vst.msk [vmem:[#allocation3 + $0x100] sm:$0xff] %vm715, %v2694
      %2830 = vst.msk [vmem:[#allocation3 + $0x108] sm:$0xff] %vm715, %v2696
      %2831 = vst.msk [vmem:[#allocation3 + $0x110] sm:$0xff] %vm715, %v2698
      %2832 = vst.msk [vmem:[#allocation3 + $0x118] sm:$0xff] %vm715, %v2700
      %2833 = vst.msk [vmem:[#allocation3 + $0x120] sm:$0xff] %vm715, %v2702
      %2834 = vst.msk [vmem:[#allocation3 + $0x128] sm:$0xff] %vm715, %v2704
      %2835 = vst.msk [vmem:[#allocation3 + $0x130] sm:$0xff] %vm715, %v2706
      %2836 = vst.msk [vmem:[#allocation3 + $0x138] sm:$0xff] %vm715, %v2708
      %2837 = vst.msk [vmem:[#allocation3 + $0x140] sm:$0xff] %vm715, %v2710
      %2838 = vst.msk [vmem:[#allocation3 + $0x148] sm:$0xff] %vm715, %v2712
      %2839 = vst.msk [vmem:[#allocation3 + $0x150] sm:$0xff] %vm715, %v2714
      %2840 = vst.msk [vmem:[#allocation3 + $0x158] sm:$0xff] %vm715, %v2716
      %2841 = vst.msk [vmem:[#allocation3 + $0x160] sm:$0xff] %vm715, %v2718
      %2842 = vst.msk [vmem:[#allocation3 + $0x168] sm:$0xff] %vm715, %v2720
      %2843 = vst.msk [vmem:[#allocation3 + $0x170] sm:$0xff] %vm715, %v2722
      %2844 = vst.msk [vmem:[#allocation3 + $0x178] sm:$0xff] %vm715, %v2724
      %2845 = vst.msk [vmem:[#allocation3 + $0x180] sm:$0xff] %vm715, %v2726
      %2846 = vst.msk [vmem:[#allocation3 + $0x188] sm:$0xff] %vm715, %v2728
      %2847 = vst.msk [vmem:[#allocation3 + $0x190] sm:$0xff] %vm715, %v2730
      %2848 = vst.msk [vmem:[#allocation3 + $0x198] sm:$0xff] %vm715, %v2732
      %2849 = vst.msk [vmem:[#allocation3 + $0x1a0] sm:$0xff] %vm715, %v2734
      %2850 = vst.msk [vmem:[#allocation3 + $0x1a8] sm:$0xff] %vm715, %v2736
      %2851 = vst.msk [vmem:[#allocation3 + $0x1b0] sm:$0xff] %vm715, %v2738
      %2852 = vst.msk [vmem:[#allocation3 + $0x1b8] sm:$0xff] %vm715, %v2740
      %v2853 = vrot.slane %v2349, 1
      %v2854 = vrot.slane %v2350, 1
      %v2855 = vrot.slane %v2351, 1
      %v2856 = vrot.slane %v2352, 1
      %v2857 = vrot.slane %v2353, 1
      %v2858 = vrot.slane %v2354, 1
      %v2859 = vrot.slane %v2355, 1
      %v2860 = vrot.slane %v2356, 1
      %v2861 = vrot.slane %v2357, 1
      %v2862 = vrot.slane %v2358, 1
      %v2863 = vrot.slane %v2359, 1
      %v2864 = vrot.slane %v2360, 1
      %v2865 = vrot.slane %v2361, 1
      %v2866 = vrot.slane %v2362, 1
      %v2867 = vrot.slane %v2363, 1
      %v2868 = vrot.slane %v2364, 1
      %v2869 = vrot.slane %v2365, 1
      %v2870 = vrot.slane %v2366, 1
      %v2871 = vrot.slane %v2367, 1
      %v2872 = vrot.slane %v2368, 1
      %v2873 = vrot.slane %v2369, 1
      %v2874 = vrot.slane %v2370, 1
      %v2875 = vrot.slane %v2371, 1
      %v2876 = vrot.slane %v2372, 1
      %v2877 = vrot.slane %v2373, 1
      %v2878 = vrot.slane %v2374, 1
      %v2879 = vrot.slane %v2375, 1
      %v2880 = vrot.slane %v2376, 1
      %v2881 = vrot.slane %v2377, 1
      %v2882 = vrot.slane %v2378, 1
      %v2883 = vrot.slane %v2379, 1
      %v2884 = vrot.slane %v2380, 1
      %v2885 = vrot.slane %v2381, 1
      %v2886 = vrot.slane %v2382, 1
      %v2887 = vrot.slane %v2383, 1
      %v2888 = vrot.slane %v2384, 1
      %v2889 = vrot.slane %v2385, 1
      %v2890 = vrot.slane %v2386, 1
      %v2891 = vrot.slane %v2387, 1
      %v2892 = vrot.slane %v2388, 1
      %v2893 = vrot.slane %v2389, 1
      %v2894 = vrot.slane %v2390, 1
      %v2895 = vrot.slane %v2391, 1
      %v2896 = vrot.slane %v2392, 1
      %v2897 = vrot.slane %v2393, 1
      %v2898 = vrot.slane %v2394, 1
      %v2899 = vrot.slane %v2395, 1
      %v2900 = vrot.slane %v2396, 1
      %v2901 = vrot.slane %v2397, 1
      %v2902 = vrot.slane %v2398, 1
      %v2903 = vrot.slane %v2399, 1
      %v2904 = vrot.slane %v2400, 1
      %v2905 = vrot.slane %v2401, 1
      %v2906 = vrot.slane %v2402, 1
      %v2907 = vrot.slane %v2403, 1
      %v2908 = vrot.slane %v2404, 1
      %v2909 = vsel %vm828, %v2907, %v2908
      %v2910 = vsel %vm828, %v2906, %v2907
      %v2911 = vsel %vm828, %v2905, %v2906
      %v2912 = vsel %vm828, %v2904, %v2905
      %v2913 = vsel %vm828, %v2903, %v2904
      %v2914 = vsel %vm828, %v2902, %v2903
      %v2915 = vsel %vm828, %v2901, %v2902
      %v2916 = vsel %vm828, %v2900, %v2901
      %v2917 = vsel %vm828, %v2899, %v2900
      %v2918 = vsel %vm828, %v2898, %v2899
      %v2919 = vsel %vm828, %v2897, %v2898
      %v2920 = vsel %vm828, %v2896, %v2897
      %v2921 = vsel %vm828, %v2895, %v2896
      %v2922 = vsel %vm828, %v2894, %v2895
      %v2923 = vsel %vm828, %v2893, %v2894
      %v2924 = vsel %vm828, %v2892, %v2893
      %v2925 = vsel %vm828, %v2891, %v2892
      %v2926 = vsel %vm828, %v2890, %v2891
      %v2927 = vsel %vm828, %v2889, %v2890
      %v2928 = vsel %vm828, %v2888, %v2889
      %v2929 = vsel %vm828, %v2887, %v2888
      %v2930 = vsel %vm828, %v2886, %v2887
      %v2931 = vsel %vm828, %v2885, %v2886
      %v2932 = vsel %vm828, %v2884, %v2885
      %v2933 = vsel %vm828, %v2883, %v2884
      %v2934 = vsel %vm828, %v2882, %v2883
      %v2935 = vsel %vm828, %v2881, %v2882
      %v2936 = vsel %vm828, %v2880, %v2881
      %v2937 = vsel %vm828, %v2879, %v2880
      %v2938 = vsel %vm828, %v2878, %v2879
      %v2939 = vsel %vm828, %v2877, %v2878
      %v2940 = vsel %vm828, %v2876, %v2877
      %v2941 = vsel %vm828, %v2875, %v2876
      %v2942 = vsel %vm828, %v2874, %v2875
      %v2943 = vsel %vm828, %v2873, %v2874
      %v2944 = vsel %vm828, %v2872, %v2873
      %v2945 = vsel %vm828, %v2871, %v2872
      %v2946 = vsel %vm828, %v2870, %v2871
      %v2947 = vsel %vm828, %v2869, %v2870
      %v2948 = vsel %vm828, %v2868, %v2869
      %v2949 = vsel %vm828, %v2867, %v2868
      %v2950 = vsel %vm828, %v2866, %v2867
      %v2951 = vsel %vm828, %v2865, %v2866
      %v2952 = vsel %vm828, %v2864, %v2865
      %v2953 = vsel %vm828, %v2863, %v2864
      %v2954 = vsel %vm828, %v2862, %v2863
      %v2955 = vsel %vm828, %v2861, %v2862
      %v2956 = vsel %vm828, %v2860, %v2861
      %v2957 = vsel %vm828, %v2859, %v2860
      %v2958 = vsel %vm828, %v2858, %v2859
      %v2959 = vsel %vm828, %v2857, %v2858
      %v2960 = vsel %vm828, %v2856, %v2857
      %v2961 = vsel %vm828, %v2855, %v2856
      %v2962 = vsel %vm828, %v2854, %v2855
      %v2963 = vsel %vm828, %v2853, %v2854
      %v2964 = vsel %vm828, %v2908, %v2853
      %3021 = vrot.lane.b32.xlu0 %v2963, 16
      %v3022 = vpop.permute.xlu0 %3021
      %3023 = vrot.lane.b32.xlu0 %v2962, 16
      %v3024 = vpop.permute.xlu0 %3023
      %3025 = vrot.lane.b32.xlu0 %v2961, 16
      %v3026 = vpop.permute.xlu0 %3025
      %3027 = vrot.lane.b32.xlu0 %v2960, 16
      %v3028 = vpop.permute.xlu0 %3027
      %3029 = vrot.lane.b32.xlu0 %v2959, 16
      %v3030 = vpop.permute.xlu0 %3029
      %3031 = vrot.lane.b32.xlu0 %v2958, 16
      %v3032 = vpop.permute.xlu0 %3031
      %3033 = vrot.lane.b32.xlu0 %v2957, 16
      %v3034 = vpop.permute.xlu0 %3033
      %3035 = vrot.lane.b32.xlu0 %v2956, 16
      %v3036 = vpop.permute.xlu0 %3035
      %3037 = vrot.lane.b32.xlu0 %v2955, 16
      %v3038 = vpop.permute.xlu0 %3037
      %3039 = vrot.lane.b32.xlu0 %v2954, 16
      %v3040 = vpop.permute.xlu0 %3039
      %3041 = vrot.lane.b32.xlu0 %v2953, 16
      %v3042 = vpop.permute.xlu0 %3041
      %3043 = vrot.lane.b32.xlu0 %v2952, 16
      %v3044 = vpop.permute.xlu0 %3043
      %3045 = vrot.lane.b32.xlu0 %v2951, 16
      %v3046 = vpop.permute.xlu0 %3045
      %3047 = vrot.lane.b32.xlu0 %v2950, 16
      %v3048 = vpop.permute.xlu0 %3047
      %3049 = vrot.lane.b32.xlu0 %v2949, 16
      %v3050 = vpop.permute.xlu0 %3049
      %3051 = vrot.lane.b32.xlu0 %v2948, 16
      %v3052 = vpop.permute.xlu0 %3051
      %3053 = vrot.lane.b32.xlu0 %v2947, 16
      %v3054 = vpop.permute.xlu0 %3053
      %3055 = vrot.lane.b32.xlu0 %v2946, 16
      %v3056 = vpop.permute.xlu0 %3055
      %3057 = vrot.lane.b32.xlu0 %v2945, 16
      %v3058 = vpop.permute.xlu0 %3057
      %3059 = vrot.lane.b32.xlu0 %v2944, 16
      %v3060 = vpop.permute.xlu0 %3059
      %3061 = vrot.lane.b32.xlu0 %v2943, 16
      %v3062 = vpop.permute.xlu0 %3061
      %3063 = vrot.lane.b32.xlu0 %v2942, 16
      %v3064 = vpop.permute.xlu0 %3063
      %3065 = vrot.lane.b32.xlu0 %v2941, 16
      %v3066 = vpop.permute.xlu0 %3065
      %3067 = vrot.lane.b32.xlu0 %v2940, 16
      %v3068 = vpop.permute.xlu0 %3067
      %3069 = vrot.lane.b32.xlu0 %v2939, 16
      %v3070 = vpop.permute.xlu0 %3069
      %3071 = vrot.lane.b32.xlu0 %v2938, 16
      %v3072 = vpop.permute.xlu0 %3071
      %3073 = vrot.lane.b32.xlu0 %v2937, 16
      %v3074 = vpop.permute.xlu0 %3073
      %3075 = vrot.lane.b32.xlu0 %v2936, 16
      %v3076 = vpop.permute.xlu0 %3075
      %3077 = vrot.lane.b32.xlu0 %v2935, 16
      %v3078 = vpop.permute.xlu0 %3077
      %3079 = vrot.lane.b32.xlu0 %v2934, 16
      %v3080 = vpop.permute.xlu0 %3079
      %3081 = vrot.lane.b32.xlu0 %v2933, 16
      %v3082 = vpop.permute.xlu0 %3081
      %3083 = vrot.lane.b32.xlu0 %v2932, 16
      %v3084 = vpop.permute.xlu0 %3083
      %3085 = vrot.lane.b32.xlu0 %v2931, 16
      %v3086 = vpop.permute.xlu0 %3085
      %3087 = vrot.lane.b32.xlu0 %v2930, 16
      %v3088 = vpop.permute.xlu0 %3087
      %3089 = vrot.lane.b32.xlu0 %v2929, 16
      %v3090 = vpop.permute.xlu0 %3089
      %3091 = vrot.lane.b32.xlu0 %v2928, 16
      %v3092 = vpop.permute.xlu0 %3091
      %3093 = vrot.lane.b32.xlu0 %v2927, 16
      %v3094 = vpop.permute.xlu0 %3093
      %3095 = vrot.lane.b32.xlu0 %v2926, 16
      %v3096 = vpop.permute.xlu0 %3095
      %3097 = vrot.lane.b32.xlu0 %v2925, 16
      %v3098 = vpop.permute.xlu0 %3097
      %3099 = vrot.lane.b32.xlu0 %v2924, 16
      %v3100 = vpop.permute.xlu0 %3099
      %3101 = vrot.lane.b32.xlu0 %v2923, 16
      %v3102 = vpop.permute.xlu0 %3101
      %3103 = vrot.lane.b32.xlu0 %v2922, 16
      %v3104 = vpop.permute.xlu0 %3103
      %3105 = vrot.lane.b32.xlu0 %v2921, 16
      %v3106 = vpop.permute.xlu0 %3105
      %3107 = vrot.lane.b32.xlu0 %v2920, 16
      %v3108 = vpop.permute.xlu0 %3107
      %3109 = vrot.lane.b32.xlu0 %v2919, 16
      %v3110 = vpop.permute.xlu0 %3109
      %3111 = vrot.lane.b32.xlu0 %v2918, 16
      %v3112 = vpop.permute.xlu0 %3111
      %3113 = vrot.lane.b32.xlu0 %v2917, 16
      %v3114 = vpop.permute.xlu0 %3113
      %3115 = vrot.lane.b32.xlu0 %v2916, 16
      %v3116 = vpop.permute.xlu0 %3115
      %3117 = vrot.lane.b32.xlu0 %v2915, 16
      %v3118 = vpop.permute.xlu0 %3117
      %3119 = vrot.lane.b32.xlu0 %v2914, 16
      %v3120 = vpop.permute.xlu0 %3119
      %3121 = vrot.lane.b32.xlu0 %v2913, 16
      %v3122 = vpop.permute.xlu0 %3121
      %3123 = vrot.lane.b32.xlu0 %v2912, 16
      %v3124 = vpop.permute.xlu0 %3123
      %3125 = vrot.lane.b32.xlu0 %v2911, 16
      %v3126 = vpop.permute.xlu0 %3125
      %3127 = vrot.lane.b32.xlu0 %v2910, 16
      %v3128 = vpop.permute.xlu0 %3127
      %3129 = vrot.lane.b32.xlu0 %v2909, 16
      %v3130 = vpop.permute.xlu0 %3129
      %3131 = vrot.lane.b32.xlu0 %v2964, 16
      %v3132 = vpop.permute.xlu0 %3131
      %3189 = vst.msk [vmem:[#allocation3] sm:$0xff] %vm1109, %v3022
      %3190 = vst.msk [vmem:[#allocation3 + $0x8] sm:$0xff] %vm1109, %v3024
      %3191 = vst.msk [vmem:[#allocation3 + $0x10] sm:$0xff] %vm1109, %v3026
      %3192 = vst.msk [vmem:[#allocation3 + $0x18] sm:$0xff] %vm1109, %v3028
      %3193 = vst.msk [vmem:[#allocation3 + $0x20] sm:$0xff] %vm1109, %v3030
      %3194 = vst.msk [vmem:[#allocation3 + $0x28] sm:$0xff] %vm1109, %v3032
      %3195 = vst.msk [vmem:[#allocation3 + $0x30] sm:$0xff] %vm1109, %v3034
      %3196 = vst.msk [vmem:[#allocation3 + $0x38] sm:$0xff] %vm1109, %v3036
      %3197 = vst.msk [vmem:[#allocation3 + $0x40] sm:$0xff] %vm1109, %v3038
      %3198 = vst.msk [vmem:[#allocation3 + $0x48] sm:$0xff] %vm1109, %v3040
      %3199 = vst.msk [vmem:[#allocation3 + $0x50] sm:$0xff] %vm1109, %v3042
      %3200 = vst.msk [vmem:[#allocation3 + $0x58] sm:$0xff] %vm1109, %v3044
      %3201 = vst.msk [vmem:[#allocation3 + $0x60] sm:$0xff] %vm1109, %v3046
      %3202 = vst.msk [vmem:[#allocation3 + $0x68] sm:$0xff] %vm1109, %v3048
      %3203 = vst.msk [vmem:[#allocation3 + $0x70] sm:$0xff] %vm1109, %v3050
      %3204 = vst.msk [vmem:[#allocation3 + $0x78] sm:$0xff] %vm1109, %v3052
      %3205 = vst.msk [vmem:[#allocation3 + $0x80] sm:$0xff] %vm1109, %v3054
      %3206 = vst.msk [vmem:[#allocation3 + $0x88] sm:$0xff] %vm1109, %v3056
      %3207 = vst.msk [vmem:[#allocation3 + $0x90] sm:$0xff] %vm1109, %v3058
      %3208 = vst.msk [vmem:[#allocation3 + $0x98] sm:$0xff] %vm1109, %v3060
      %3209 = vst.msk [vmem:[#allocation3 + $0xa0] sm:$0xff] %vm1109, %v3062
      %3210 = vst.msk [vmem:[#allocation3 + $0xa8] sm:$0xff] %vm1109, %v3064
      %3211 = vst.msk [vmem:[#allocation3 + $0xb0] sm:$0xff] %vm1109, %v3066
      %3212 = vst.msk [vmem:[#allocation3 + $0xb8] sm:$0xff] %vm1109, %v3068
      %3213 = vst.msk [vmem:[#allocation3 + $0xc0] sm:$0xff] %vm1109, %v3070
      %3214 = vst.msk [vmem:[#allocation3 + $0xc8] sm:$0xff] %vm1109, %v3072
      %3215 = vst.msk [vmem:[#allocation3 + $0xd0] sm:$0xff] %vm1109, %v3074
      %3216 = vst.msk [vmem:[#allocation3 + $0xd8] sm:$0xff] %vm1109, %v3076
      %3217 = vst.msk [vmem:[#allocation3 + $0xe0] sm:$0xff] %vm1109, %v3078
      %3218 = vst.msk [vmem:[#allocation3 + $0xe8] sm:$0xff] %vm1109, %v3080
      %3219 = vst.msk [vmem:[#allocation3 + $0xf0] sm:$0xff] %vm1109, %v3082
      %3220 = vst.msk [vmem:[#allocation3 + $0xf8] sm:$0xff] %vm1109, %v3084
      %3221 = vst.msk [vmem:[#allocation3 + $0x100] sm:$0xff] %vm1109, %v3086
      %3222 = vst.msk [vmem:[#allocation3 + $0x108] sm:$0xff] %vm1109, %v3088
      %3223 = vst.msk [vmem:[#allocation3 + $0x110] sm:$0xff] %vm1109, %v3090
      %3224 = vst.msk [vmem:[#allocation3 + $0x118] sm:$0xff] %vm1109, %v3092
      %3225 = vst.msk [vmem:[#allocation3 + $0x120] sm:$0xff] %vm1109, %v3094
      %3226 = vst.msk [vmem:[#allocation3 + $0x128] sm:$0xff] %vm1109, %v3096
      %3227 = vst.msk [vmem:[#allocation3 + $0x130] sm:$0xff] %vm1109, %v3098
      %3228 = vst.msk [vmem:[#allocation3 + $0x138] sm:$0xff] %vm1109, %v3100
      %3229 = vst.msk [vmem:[#allocation3 + $0x140] sm:$0xff] %vm1109, %v3102
      %3230 = vst.msk [vmem:[#allocation3 + $0x148] sm:$0xff] %vm1109, %v3104
      %3231 = vst.msk [vmem:[#allocation3 + $0x150] sm:$0xff] %vm1109, %v3106
      %3232 = vst.msk [vmem:[#allocation3 + $0x158] sm:$0xff] %vm1109, %v3108
      %3233 = vst.msk [vmem:[#allocation3 + $0x160] sm:$0xff] %vm1109, %v3110
      %3234 = vst.msk [vmem:[#allocation3 + $0x168] sm:$0xff] %vm1109, %v3112
      %3235 = vst.msk [vmem:[#allocation3 + $0x170] sm:$0xff] %vm1109, %v3114
      %3236 = vst.msk [vmem:[#allocation3 + $0x178] sm:$0xff] %vm1109, %v3116
      %3237 = vst.msk [vmem:[#allocation3 + $0x180] sm:$0xff] %vm1109, %v3118
      %3238 = vst.msk [vmem:[#allocation3 + $0x188] sm:$0xff] %vm1109, %v3120
      %3239 = vst.msk [vmem:[#allocation3 + $0x190] sm:$0xff] %vm1109, %v3122
      %3240 = vst.msk [vmem:[#allocation3 + $0x198] sm:$0xff] %vm1109, %v3124
      %3241 = vst.msk [vmem:[#allocation3 + $0x1a0] sm:$0xff] %vm1109, %v3126
      %3242 = vst.msk [vmem:[#allocation3 + $0x1a8] sm:$0xff] %vm1109, %v3128
      %3243 = vst.msk [vmem:[#allocation3 + $0x1b0] sm:$0xff] %vm1109, %v3130
      %3244 = vst.msk [vmem:[#allocation3 + $0x1b8] sm:$0xff] %vm1109, %v3132
      %v3245 = vld [vmem:[#allocation3 + $0x8] sm:$0xff]
      %v3246 = vld [vmem:[#allocation3 + $0x10] sm:$0xff]
      %v3247 = vld [vmem:[#allocation3 + $0x18] sm:$0xff]
      %v3248 = vld [vmem:[#allocation3 + $0x20] sm:$0xff]
      %v3249 = vld [vmem:[#allocation3 + $0x28] sm:$0xff]
      %v3250 = vld [vmem:[#allocation3 + $0x30] sm:$0xff]
      %v3251 = vld [vmem:[#allocation3 + $0x38] sm:$0xff]
      %v3252 = vld [vmem:[#allocation3 + $0x40] sm:$0xff]
      %v3253 = vld [vmem:[#allocation3 + $0x48] sm:$0xff]
      %v3254 = vld [vmem:[#allocation3 + $0x50] sm:$0xff]
      %v3255 = vld [vmem:[#allocation3 + $0x58] sm:$0xff]
      %v3256 = vld [vmem:[#allocation3 + $0x60] sm:$0xff]
      %v3257 = vld [vmem:[#allocation3 + $0x68] sm:$0xff]
      %v3258 = vld [vmem:[#allocation3 + $0x70] sm:$0xff]
      %v3259 = vld [vmem:[#allocation3 + $0x78] sm:$0xff]
      %v3260 = vld [vmem:[#allocation3 + $0x80] sm:$0xff]
      %v3261 = vld [vmem:[#allocation3 + $0x88] sm:$0xff]
      %v3262 = vld [vmem:[#allocation3 + $0x90] sm:$0xff]
      %v3263 = vld [vmem:[#allocation3 + $0x98] sm:$0xff]
      %v3264 = vld [vmem:[#allocation3 + $0xa0] sm:$0xff]
      %v3265 = vld [vmem:[#allocation3 + $0xa8] sm:$0xff]
      %v3266 = vld [vmem:[#allocation3 + $0xb0] sm:$0xff]
      %v3267 = vld [vmem:[#allocation3 + $0xb8] sm:$0xff]
      %v3268 = vld [vmem:[#allocation3 + $0xc0] sm:$0xff]
      %v3269 = vld [vmem:[#allocation3 + $0xc8] sm:$0xff]
      %v3270 = vld [vmem:[#allocation3 + $0xd0] sm:$0xff]
      %v3271 = vld [vmem:[#allocation3 + $0xd8] sm:$0xff]
      %v3272 = vld [vmem:[#allocation3 + $0xe0] sm:$0xff]
      %v3273 = vld [vmem:[#allocation3 + $0xe8] sm:$0xff]
      %v3274 = vld [vmem:[#allocation3 + $0xf0] sm:$0xff]
      %v3275 = vld [vmem:[#allocation3 + $0xf8] sm:$0xff]
      %v3276 = vld [vmem:[#allocation3 + $0x100] sm:$0xff]
      %v3277 = vld [vmem:[#allocation3 + $0x108] sm:$0xff]
      %v3278 = vld [vmem:[#allocation3 + $0x110] sm:$0xff]
      %v3279 = vld [vmem:[#allocation3 + $0x118] sm:$0xff]
      %v3280 = vld [vmem:[#allocation3 + $0x120] sm:$0xff]
      %v3281 = vld [vmem:[#allocation3 + $0x128] sm:$0xff]
      %v3282 = vld [vmem:[#allocation3 + $0x130] sm:$0xff]
      %v3283 = vld [vmem:[#allocation3 + $0x138] sm:$0xff]
      %v3284 = vld [vmem:[#allocation3 + $0x140] sm:$0xff]
      %v3285 = vld [vmem:[#allocation3 + $0x148] sm:$0xff]
      %v3286 = vld [vmem:[#allocation3 + $0x150] sm:$0xff]
      %v3287 = vld [vmem:[#allocation3 + $0x158] sm:$0xff]
      %v3288 = vld [vmem:[#allocation3 + $0x160] sm:$0xff]
      %v3289 = vld [vmem:[#allocation3 + $0x168] sm:$0xff]
      %v3290 = vld [vmem:[#allocation3 + $0x170] sm:$0xff]
      %v3291 = vld [vmem:[#allocation3 + $0x178] sm:$0xff]
      %v3292 = vld [vmem:[#allocation3 + $0x180] sm:$0xff]
      %v3293 = vld [vmem:[%s4] sm:$0xff]
      %v3294 = vld [vmem:[%s4 + $0x8] sm:$0xff]
      %v3295 = vld [vmem:[%s4 + $0x10] sm:$0xff]
      %v3296 = vld [vmem:[#allocation3 + $0x188] sm:$0xff]
      %v3297 = vld [vmem:[#allocation3 + $0x190] sm:$0xff]
      %v3298 = vld [vmem:[#allocation3 + $0x198] sm:$0xff]
      %s3299 = scalar_lea.vmem %s4, 24
      %v3300 = vld [vmem:[%s3299] sm:$0xff]
      %v3301 = vld [vmem:[%s3299 + $0x8] sm:$0xff]
      %v3302 = vld [vmem:[%s3299 + $0x10] sm:$0xff]
      %v3304 = vsel %vm1224, %v3248, 0
      %v3307 = vsel %vm1224, %v3249, 0
      %v3310 = vsel %vm1224, %v3250, 0
      %v3313 = vsel %vm1224, %v3251, 0
      %v3316 = vsel %vm1224, %v3252, 0
      %v3319 = vsel %vm1224, %v3253, 0
      %v3322 = vsel %vm1224, %v3254, 0
      %v3325 = vsel %vm1224, %v3255, 0
      %v3328 = vsel %vm1224, %v3256, 0
      %v3331 = vsel %vm1224, %v3257, 0
      %v3334 = vsel %vm1224, %v3258, 0
      %v3337 = vsel %vm1224, %v3259, 0
      %v3340 = vsel %vm1224, %v3260, 0
      %v3343 = vsel %vm1224, %v3261, 0
      %v3346 = vsel %vm1224, %v3262, 0
      %v3349 = vsel %vm1224, %v3263, 0
      %v3352 = vsel %vm1224, %v3264, 0
      %v3355 = vsel %vm1224, %v3265, 0
      %v3358 = vsel %vm1224, %v3266, 0
      %v3361 = vsel %vm1224, %v3267, 0
      %v3364 = vsel %vm1224, %v3268, 0
      %v3367 = vsel %vm1224, %v3269, 0
      %v3370 = vsel %vm1224, %v3270, 0
      %v3373 = vsel %vm1224, %v3271, 0
      %v3376 = vsel %vm1224, %v3272, 0
      %v3379 = vsel %vm1224, %v3273, 0
      %v3382 = vsel %vm1224, %v3274, 0
      %v3385 = vsel %vm1224, %v3275, 0
      %v3388 = vsel %vm1224, %v3276, 0
      %v3391 = vsel %vm1224, %v3277, 0
      %v3394 = vsel %vm1224, %v3278, 0
      %v3397 = vsel %vm1224, %v3279, 0
      %v3400 = vsel %vm1224, %v3280, 0
      %v3403 = vsel %vm1224, %v3281, 0
      %v3406 = vsel %vm1224, %v3282, 0
      %v3409 = vsel %vm1224, %v3283, 0
      %v3412 = vsel %vm1224, %v3284, 0
      %v3415 = vsel %vm1224, %v3285, 0
      %v3418 = vsel %vm1224, %v3286, 0
      %v3421 = vsel %vm1224, %v3287, 0
      %v3424 = vsel %vm1224, %v3288, 0
      %v3427 = vsel %vm1224, %v3289, 0
      %v3430 = vsel %vm1224, %v3290, 0
      %v3433 = vsel %vm1224, %v3291, 0
      %v3436 = vsel %vm1224, %v3292, 0
      %v3439 = vsel %vm1224, %v3296, 0
      %v3442 = vsel %vm1224, %v3297, 0
      %v3445 = vsel %vm1224, %v3298, 0
      %3447 = vmatpush.msra.mxu0 0.0
      %3448 = vmatpush.msra.mxu0 0.0
      %3449 = vmatpush.msra.mxu0 0.0
      %3450 = vmatpush.msra.mxu0 0.0
      %3451 = vmatpush.msra.mxu0 0.0
      %3452 = vmatpush.msra.mxu0 0.0
      %3453 = vmatpush.msra.mxu0 0.0
      %3454 = vmatpush.msra.mxu0 0.0
      %3455 = vmatpush.msra.mxu0 0.0
      %3456 = vmatpush.msra.mxu0 0.0
      %3457 = vmatpush.msra.mxu0 0.0
      %3458 = vmatpush.msra.mxu0 0.0
      %3459 = vmatpush.msra.mxu0 0.0
      %3460 = vmatpush.msra.mxu0 %v3302
      %3461 = vmatpush.msra.mxu0 %v3301
      %3462 = vmatpush.msra.mxu0 %v3300
      %3463 = vmatmul.f32.gmra.mxu0 %v3304
      %v3464 = vpop.f32.mrf.mxu0
      %v3465 = vadd.f32 0.0, %v3464
      %3466 = vmatmul.f32.gmra.mxu0 %v3307
      %v3467 = vpop.f32.mrf.mxu0
      %v3468 = vadd.f32 0.0, %v3467
      %3469 = vmatmul.f32.gmra.mxu0 %v3310
      %v3470 = vpop.f32.mrf.mxu0
      %v3471 = vadd.f32 0.0, %v3470
      %3472 = vmatmul.f32.gmra.mxu0 %v3313
      %v3473 = vpop.f32.mrf.mxu0
      %v3474 = vadd.f32 0.0, %v3473
      %3475 = vmatmul.f32.gmra.mxu0 %v3316
      %v3476 = vpop.f32.mrf.mxu0
      %v3477 = vadd.f32 0.0, %v3476
      %3478 = vmatmul.f32.gmra.mxu0 %v3319
      %v3479 = vpop.f32.mrf.mxu0
      %v3480 = vadd.f32 0.0, %v3479
      %3481 = vmatmul.f32.gmra.mxu0 %v3322
      %v3482 = vpop.f32.mrf.mxu0
      %v3483 = vadd.f32 0.0, %v3482
      %3484 = vmatmul.f32.gmra.mxu0 %v3325
      %v3485 = vpop.f32.mrf.mxu0
      %v3486 = vadd.f32 0.0, %v3485
      %3487 = vmatmul.f32.gmra.mxu0 %v3328
      %v3488 = vpop.f32.mrf.mxu0
      %v3489 = vadd.f32 0.0, %v3488
      %3490 = vmatmul.f32.gmra.mxu0 %v3331
      %v3491 = vpop.f32.mrf.mxu0
      %v3492 = vadd.f32 0.0, %v3491
      %3493 = vmatmul.f32.gmra.mxu0 %v3334
      %v3494 = vpop.f32.mrf.mxu0
      %v3495 = vadd.f32 0.0, %v3494
      %3496 = vmatmul.f32.gmra.mxu0 %v3337
      %v3497 = vpop.f32.mrf.mxu0
      %v3498 = vadd.f32 0.0, %v3497
      %3499 = vmatmul.f32.gmra.mxu0 %v3340
      %v3500 = vpop.f32.mrf.mxu0
      %v3501 = vadd.f32 0.0, %v3500
      %3502 = vmatmul.f32.gmra.mxu0 %v3343
      %v3503 = vpop.f32.mrf.mxu0
      %v3504 = vadd.f32 0.0, %v3503
      %3505 = vmatmul.f32.gmra.mxu0 %v3346
      %v3506 = vpop.f32.mrf.mxu0
      %v3507 = vadd.f32 0.0, %v3506
      %3508 = vmatmul.f32.gmra.mxu0 %v3349
      %v3509 = vpop.f32.mrf.mxu0
      %v3510 = vadd.f32 0.0, %v3509
      %3511 = vmatmul.f32.gmra.mxu0 %v3352
      %v3512 = vpop.f32.mrf.mxu0
      %v3513 = vadd.f32 0.0, %v3512
      %3514 = vmatmul.f32.gmra.mxu0 %v3355
      %v3515 = vpop.f32.mrf.mxu0
      %v3516 = vadd.f32 0.0, %v3515
      %3517 = vmatmul.f32.gmra.mxu0 %v3358
      %v3518 = vpop.f32.mrf.mxu0
      %v3519 = vadd.f32 0.0, %v3518
      %3520 = vmatmul.f32.gmra.mxu0 %v3361
      %v3521 = vpop.f32.mrf.mxu0
      %v3522 = vadd.f32 0.0, %v3521
      %3523 = vmatmul.f32.gmra.mxu0 %v3364
      %v3524 = vpop.f32.mrf.mxu0
      %v3525 = vadd.f32 0.0, %v3524
      %3526 = vmatmul.f32.gmra.mxu0 %v3367
      %v3527 = vpop.f32.mrf.mxu0
      %v3528 = vadd.f32 0.0, %v3527
      %3529 = vmatmul.f32.gmra.mxu0 %v3370
      %v3530 = vpop.f32.mrf.mxu0
      %v3531 = vadd.f32 0.0, %v3530
      %3532 = vmatmul.f32.gmra.mxu0 %v3373
      %v3533 = vpop.f32.mrf.mxu0
      %v3534 = vadd.f32 0.0, %v3533
      %3535 = vmatmul.f32.gmra.mxu0 %v3376
      %v3536 = vpop.f32.mrf.mxu0
      %v3537 = vadd.f32 0.0, %v3536
      %3538 = vmatmul.f32.gmra.mxu0 %v3379
      %v3539 = vpop.f32.mrf.mxu0
      %v3540 = vadd.f32 0.0, %v3539
      %3541 = vmatmul.f32.gmra.mxu0 %v3382
      %v3542 = vpop.f32.mrf.mxu0
      %v3543 = vadd.f32 0.0, %v3542
      %3544 = vmatmul.f32.gmra.mxu0 %v3385
      %v3545 = vpop.f32.mrf.mxu0
      %v3546 = vadd.f32 0.0, %v3545
      %3547 = vmatmul.f32.gmra.mxu0 %v3388
      %v3548 = vpop.f32.mrf.mxu0
      %v3549 = vadd.f32 0.0, %v3548
      %3550 = vmatmul.f32.gmra.mxu0 %v3391
      %v3551 = vpop.f32.mrf.mxu0
      %v3552 = vadd.f32 0.0, %v3551
      %3553 = vmatmul.f32.gmra.mxu0 %v3394
      %v3554 = vpop.f32.mrf.mxu0
      %v3555 = vadd.f32 0.0, %v3554
      %3556 = vmatmul.f32.gmra.mxu0 %v3397
      %v3557 = vpop.f32.mrf.mxu0
      %v3558 = vadd.f32 0.0, %v3557
      %3559 = vmatmul.f32.gmra.mxu0 %v3400
      %v3560 = vpop.f32.mrf.mxu0
      %v3561 = vadd.f32 0.0, %v3560
      %3562 = vmatmul.f32.gmra.mxu0 %v3403
      %v3563 = vpop.f32.mrf.mxu0
      %v3564 = vadd.f32 0.0, %v3563
      %3565 = vmatmul.f32.gmra.mxu0 %v3406
      %v3566 = vpop.f32.mrf.mxu0
      %v3567 = vadd.f32 0.0, %v3566
      %3568 = vmatmul.f32.gmra.mxu0 %v3409
      %v3569 = vpop.f32.mrf.mxu0
      %v3570 = vadd.f32 0.0, %v3569
      %3571 = vmatmul.f32.gmra.mxu0 %v3412
      %v3572 = vpop.f32.mrf.mxu0
      %v3573 = vadd.f32 0.0, %v3572
      %3574 = vmatmul.f32.gmra.mxu0 %v3415
      %v3575 = vpop.f32.mrf.mxu0
      %v3576 = vadd.f32 0.0, %v3575
      %3577 = vmatmul.f32.gmra.mxu0 %v3418
      %v3578 = vpop.f32.mrf.mxu0
      %v3579 = vadd.f32 0.0, %v3578
      %3580 = vmatmul.f32.gmra.mxu0 %v3421
      %v3581 = vpop.f32.mrf.mxu0
      %v3582 = vadd.f32 0.0, %v3581
      %3583 = vmatmul.f32.gmra.mxu0 %v3424
      %v3584 = vpop.f32.mrf.mxu0
      %v3585 = vadd.f32 0.0, %v3584
      %3586 = vmatmul.f32.gmra.mxu0 %v3427
      %v3587 = vpop.f32.mrf.mxu0
      %v3588 = vadd.f32 0.0, %v3587
      %3589 = vmatmul.f32.gmra.mxu0 %v3430
      %v3590 = vpop.f32.mrf.mxu0
      %v3591 = vadd.f32 0.0, %v3590
      %3592 = vmatmul.f32.gmra.mxu0 %v3433
      %v3593 = vpop.f32.mrf.mxu0
      %v3594 = vadd.f32 0.0, %v3593
      %3595 = vmatmul.f32.gmra.mxu0 %v3436
      %v3596 = vpop.f32.mrf.mxu0
      %v3597 = vadd.f32 0.0, %v3596
      %3598 = vmatmul.f32.gmra.mxu0 %v3439
      %v3599 = vpop.f32.mrf.mxu0
      %v3600 = vadd.f32 0.0, %v3599
      %3601 = vmatmul.f32.gmra.mxu0 %v3442
      %v3602 = vpop.f32.mrf.mxu0
      %v3603 = vadd.f32 0.0, %v3602
      %3604 = vmatmul.f32.gmra.mxu0 %v3445
      %v3605 = vpop.f32.mrf.mxu0
      %v3606 = vadd.f32 0.0, %v3605
      %3607 = vdwg.mxu0
      %v3609 = vsel %vm1224, %v3245, 0
      %v3612 = vsel %vm1224, %v3246, 0
      %v3615 = vsel %vm1224, %v3247, 0
      %3617 = vmatpush.msra.mxu0 0.0
      %3618 = vmatpush.msra.mxu0 0.0
      %3619 = vmatpush.msra.mxu0 0.0
      %3620 = vmatpush.msra.mxu0 0.0
      %3621 = vmatpush.msra.mxu0 0.0
      %3622 = vmatpush.msra.mxu0 0.0
      %3623 = vmatpush.msra.mxu0 0.0
      %3624 = vmatpush.msra.mxu0 0.0
      %3625 = vmatpush.msra.mxu0 0.0
      %3626 = vmatpush.msra.mxu0 0.0
      %3627 = vmatpush.msra.mxu0 0.0
      %3628 = vmatpush.msra.mxu0 0.0
      %3629 = vmatpush.msra.mxu0 0.0
      %3630 = vmatpush.msra.mxu0 %v3295
      %3631 = vmatpush.msra.mxu0 %v3294
      %3632 = vmatpush.msra.mxu0 %v3293
      %3633 = vmatmul.f32.gmra.mxu0 %v3609
      %v3634 = vpop.f32.mrf.mxu0
      %v3635 = vadd.f32 %v3465, %v3634
      %3636 = vmatmul.f32.gmra.mxu0 %v3612
      %v3637 = vpop.f32.mrf.mxu0
      %v3638 = vadd.f32 %v3468, %v3637
      %3639 = vmatmul.f32.gmra.mxu0 %v3615
      %v3640 = vpop.f32.mrf.mxu0
      %v3641 = vadd.f32 %v3471, %v3640
      %3642 = vmatmul.f32.gmra.mxu0 %v3304
      %v3643 = vpop.f32.mrf.mxu0
      %v3644 = vadd.f32 %v3474, %v3643
      %3645 = vmatmul.f32.gmra.mxu0 %v3307
      %v3646 = vpop.f32.mrf.mxu0
      %v3647 = vadd.f32 %v3477, %v3646
      %3648 = vmatmul.f32.gmra.mxu0 %v3310
      %v3649 = vpop.f32.mrf.mxu0
      %v3650 = vadd.f32 %v3480, %v3649
      %3651 = vmatmul.f32.gmra.mxu0 %v3313
      %v3652 = vpop.f32.mrf.mxu0
      %v3653 = vadd.f32 %v3483, %v3652
      %3654 = vmatmul.f32.gmra.mxu0 %v3316
      %v3655 = vpop.f32.mrf.mxu0
      %v3656 = vadd.f32 %v3486, %v3655
      %3657 = vmatmul.f32.gmra.mxu0 %v3319
      %v3658 = vpop.f32.mrf.mxu0
      %v3659 = vadd.f32 %v3489, %v3658
      %3660 = vmatmul.f32.gmra.mxu0 %v3322
      %v3661 = vpop.f32.mrf.mxu0
      %v3662 = vadd.f32 %v3492, %v3661
      %3663 = vmatmul.f32.gmra.mxu0 %v3325
      %v3664 = vpop.f32.mrf.mxu0
      %v3665 = vadd.f32 %v3495, %v3664
      %3666 = vmatmul.f32.gmra.mxu0 %v3328
      %v3667 = vpop.f32.mrf.mxu0
      %v3668 = vadd.f32 %v3498, %v3667
      %3669 = vmatmul.f32.gmra.mxu0 %v3331
      %v3670 = vpop.f32.mrf.mxu0
      %v3671 = vadd.f32 %v3501, %v3670
      %3672 = vmatmul.f32.gmra.mxu0 %v3334
      %v3673 = vpop.f32.mrf.mxu0
      %v3674 = vadd.f32 %v3504, %v3673
      %3675 = vmatmul.f32.gmra.mxu0 %v3337
      %v3676 = vpop.f32.mrf.mxu0
      %v3677 = vadd.f32 %v3507, %v3676
      %3678 = vmatmul.f32.gmra.mxu0 %v3340
      %v3679 = vpop.f32.mrf.mxu0
      %v3680 = vadd.f32 %v3510, %v3679
      %3681 = vmatmul.f32.gmra.mxu0 %v3343
      %v3682 = vpop.f32.mrf.mxu0
      %v3683 = vadd.f32 %v3513, %v3682
      %3684 = vmatmul.f32.gmra.mxu0 %v3346
      %v3685 = vpop.f32.mrf.mxu0
      %v3686 = vadd.f32 %v3516, %v3685
      %3687 = vmatmul.f32.gmra.mxu0 %v3349
      %v3688 = vpop.f32.mrf.mxu0
      %v3689 = vadd.f32 %v3519, %v3688
      %3690 = vmatmul.f32.gmra.mxu0 %v3352
      %v3691 = vpop.f32.mrf.mxu0
      %v3692 = vadd.f32 %v3522, %v3691
      %3693 = vmatmul.f32.gmra.mxu0 %v3355
      %v3694 = vpop.f32.mrf.mxu0
      %v3695 = vadd.f32 %v3525, %v3694
      %3696 = vmatmul.f32.gmra.mxu0 %v3358
      %v3697 = vpop.f32.mrf.mxu0
      %v3698 = vadd.f32 %v3528, %v3697
      %3699 = vmatmul.f32.gmra.mxu0 %v3361
      %v3700 = vpop.f32.mrf.mxu0
      %v3701 = vadd.f32 %v3531, %v3700
      %3702 = vmatmul.f32.gmra.mxu0 %v3364
      %v3703 = vpop.f32.mrf.mxu0
      %v3704 = vadd.f32 %v3534, %v3703
      %3705 = vmatmul.f32.gmra.mxu0 %v3367
      %v3706 = vpop.f32.mrf.mxu0
      %v3707 = vadd.f32 %v3537, %v3706
      %3708 = vmatmul.f32.gmra.mxu0 %v3370
      %v3709 = vpop.f32.mrf.mxu0
      %v3710 = vadd.f32 %v3540, %v3709
      %3711 = vmatmul.f32.gmra.mxu0 %v3373
      %v3712 = vpop.f32.mrf.mxu0
      %v3713 = vadd.f32 %v3543, %v3712
      %3714 = vmatmul.f32.gmra.mxu0 %v3376
      %v3715 = vpop.f32.mrf.mxu0
      %v3716 = vadd.f32 %v3546, %v3715
      %3717 = vmatmul.f32.gmra.mxu0 %v3379
      %v3718 = vpop.f32.mrf.mxu0
      %v3719 = vadd.f32 %v3549, %v3718
      %3720 = vmatmul.f32.gmra.mxu0 %v3382
      %v3721 = vpop.f32.mrf.mxu0
      %v3722 = vadd.f32 %v3552, %v3721
      %3723 = vmatmul.f32.gmra.mxu0 %v3385
      %v3724 = vpop.f32.mrf.mxu0
      %v3725 = vadd.f32 %v3555, %v3724
      %3726 = vmatmul.f32.gmra.mxu0 %v3388
      %v3727 = vpop.f32.mrf.mxu0
      %v3728 = vadd.f32 %v3558, %v3727
      %3729 = vmatmul.f32.gmra.mxu0 %v3391
      %v3730 = vpop.f32.mrf.mxu0
      %v3731 = vadd.f32 %v3561, %v3730
      %3732 = vmatmul.f32.gmra.mxu0 %v3394
      %v3733 = vpop.f32.mrf.mxu0
      %v3734 = vadd.f32 %v3564, %v3733
      %3735 = vmatmul.f32.gmra.mxu0 %v3397
      %v3736 = vpop.f32.mrf.mxu0
      %v3737 = vadd.f32 %v3567, %v3736
      %3738 = vmatmul.f32.gmra.mxu0 %v3400
      %v3739 = vpop.f32.mrf.mxu0
      %v3740 = vadd.f32 %v3570, %v3739
      %3741 = vmatmul.f32.gmra.mxu0 %v3403
      %v3742 = vpop.f32.mrf.mxu0
      %v3743 = vadd.f32 %v3573, %v3742
      %3744 = vmatmul.f32.gmra.mxu0 %v3406
      %v3745 = vpop.f32.mrf.mxu0
      %v3746 = vadd.f32 %v3576, %v3745
      %3747 = vmatmul.f32.gmra.mxu0 %v3409
      %v3748 = vpop.f32.mrf.mxu0
      %v3749 = vadd.f32 %v3579, %v3748
      %3750 = vmatmul.f32.gmra.mxu0 %v3412
      %v3751 = vpop.f32.mrf.mxu0
      %v3752 = vadd.f32 %v3582, %v3751
      %3753 = vmatmul.f32.gmra.mxu0 %v3415
      %v3754 = vpop.f32.mrf.mxu0
      %v3755 = vadd.f32 %v3585, %v3754
      %3756 = vmatmul.f32.gmra.mxu0 %v3418
      %v3757 = vpop.f32.mrf.mxu0
      %v3758 = vadd.f32 %v3588, %v3757
      %3759 = vmatmul.f32.gmra.mxu0 %v3421
      %v3760 = vpop.f32.mrf.mxu0
      %v3761 = vadd.f32 %v3591, %v3760
      %3762 = vmatmul.f32.gmra.mxu0 %v3424
      %v3763 = vpop.f32.mrf.mxu0
      %v3764 = vadd.f32 %v3594, %v3763
      %3765 = vmatmul.f32.gmra.mxu0 %v3427
      %v3766 = vpop.f32.mrf.mxu0
      %v3767 = vadd.f32 %v3597, %v3766
      %3768 = vmatmul.f32.gmra.mxu0 %v3430
      %v3769 = vpop.f32.mrf.mxu0
      %v3770 = vadd.f32 %v3600, %v3769
      %3771 = vmatmul.f32.gmra.mxu0 %v3433
      %v3772 = vpop.f32.mrf.mxu0
      %v3773 = vadd.f32 %v3603, %v3772
      %3774 = vmatmul.f32.gmra.mxu0 %v3436
      %v3775 = vpop.f32.mrf.mxu0
      %v3776 = vadd.f32 %v3606, %v3775
      %3777 = vdwg.mxu0
      %v3778 = vld [vmem:[#allocation3 + $0x38] sm:$0xff]
      %v3779 = vld [vmem:[#allocation3 + $0x40] sm:$0xff]
      %v3780 = vld [vmem:[#allocation3 + $0x48] sm:$0xff]
      %v3781 = vld [vmem:[#allocation3 + $0x50] sm:$0xff]
      %v3782 = vld [vmem:[#allocation3 + $0x58] sm:$0xff]
      %v3783 = vld [vmem:[#allocation3 + $0x60] sm:$0xff]
      %v3784 = vld [vmem:[#allocation3 + $0x68] sm:$0xff]
      %v3785 = vld [vmem:[#allocation3 + $0x70] sm:$0xff]
      %v3786 = vld [vmem:[#allocation3 + $0x78] sm:$0xff]
      %v3787 = vld [vmem:[#allocation3 + $0x80] sm:$0xff]
      %v3788 = vld [vmem:[#allocation3 + $0x88] sm:$0xff]
      %v3789 = vld [vmem:[#allocation3 + $0x90] sm:$0xff]
      %v3790 = vld [vmem:[#allocation3 + $0x98] sm:$0xff]
      %v3791 = vld [vmem:[#allocation3 + $0xa0] sm:$0xff]
      %v3792 = vld [vmem:[#allocation3 + $0xa8] sm:$0xff]
      %v3793 = vld [vmem:[#allocation3 + $0xb0] sm:$0xff]
      %v3794 = vld [vmem:[#allocation3 + $0xb8] sm:$0xff]
      %v3795 = vld [vmem:[#allocation3 + $0xc0] sm:$0xff]
      %v3796 = vld [vmem:[#allocation3 + $0xc8] sm:$0xff]
      %v3797 = vld [vmem:[#allocation3 + $0xd0] sm:$0xff]
      %v3798 = vld [vmem:[#allocation3 + $0xd8] sm:$0xff]
      %v3799 = vld [vmem:[#allocation3 + $0xe0] sm:$0xff]
      %v3800 = vld [vmem:[#allocation3 + $0xe8] sm:$0xff]
      %v3801 = vld [vmem:[#allocation3 + $0xf0] sm:$0xff]
      %v3802 = vld [vmem:[#allocation3 + $0xf8] sm:$0xff]
      %v3803 = vld [vmem:[#allocation3 + $0x100] sm:$0xff]
      %v3804 = vld [vmem:[#allocation3 + $0x108] sm:$0xff]
      %v3805 = vld [vmem:[#allocation3 + $0x110] sm:$0xff]
      %v3806 = vld [vmem:[#allocation3 + $0x118] sm:$0xff]
      %v3807 = vld [vmem:[#allocation3 + $0x120] sm:$0xff]
      %v3808 = vld [vmem:[#allocation3 + $0x128] sm:$0xff]
      %v3809 = vld [vmem:[#allocation3 + $0x130] sm:$0xff]
      %v3810 = vld [vmem:[#allocation3 + $0x138] sm:$0xff]
      %v3811 = vld [vmem:[#allocation3 + $0x140] sm:$0xff]
      %v3812 = vld [vmem:[#allocation3 + $0x148] sm:$0xff]
      %v3813 = vld [vmem:[#allocation3 + $0x150] sm:$0xff]
      %v3814 = vld [vmem:[#allocation3 + $0x158] sm:$0xff]
      %v3815 = vld [vmem:[#allocation3 + $0x160] sm:$0xff]
      %v3816 = vld [vmem:[#allocation3 + $0x168] sm:$0xff]
      %v3817 = vld [vmem:[#allocation3 + $0x170] sm:$0xff]
      %v3818 = vld [vmem:[#allocation3 + $0x178] sm:$0xff]
      %v3819 = vld [vmem:[#allocation3 + $0x180] sm:$0xff]
      %v3820 = vld [vmem:[#allocation3 + $0x188] sm:$0xff]
      %v3821 = vld [vmem:[#allocation3 + $0x190] sm:$0xff]
      %v3822 = vld [vmem:[#allocation3 + $0x198] sm:$0xff]
      %v3823 = vld [vmem:[#allocation3 + $0x1a0] sm:$0xff]
      %v3824 = vld [vmem:[#allocation3 + $0x1a8] sm:$0xff]
      %v3825 = vld [vmem:[#allocation3 + $0x1b0] sm:$0xff]
      %s3826 = scalar_lea.vmem %s4, 48
      %v3827 = vld [vmem:[%s3826] sm:$0xff]
      %v3828 = vld [vmem:[%s3826 + $0x8] sm:$0xff]
      %v3829 = vld [vmem:[%s3826 + $0x10] sm:$0xff]
      %v3831 = vsel %vm1224, %v3778, 0
      %v3834 = vsel %vm1224, %v3779, 0
      %v3837 = vsel %vm1224, %v3780, 0
      %v3840 = vsel %vm1224, %v3781, 0
      %v3843 = vsel %vm1224, %v3782, 0
      %v3846 = vsel %vm1224, %v3783, 0
      %v3849 = vsel %vm1224, %v3784, 0
      %v3852 = vsel %vm1224, %v3785, 0
      %v3855 = vsel %vm1224, %v3786, 0
      %v3858 = vsel %vm1224, %v3787, 0
      %v3861 = vsel %vm1224, %v3788, 0
      %v3864 = vsel %vm1224, %v3789, 0
      %v3867 = vsel %vm1224, %v3790, 0
      %v3870 = vsel %vm1224, %v3791, 0
      %v3873 = vsel %vm1224, %v3792, 0
      %v3876 = vsel %vm1224, %v3793, 0
      %v3879 = vsel %vm1224, %v3794, 0
      %v3882 = vsel %vm1224, %v3795, 0
      %v3885 = vsel %vm1224, %v3796, 0
      %v3888 = vsel %vm1224, %v3797, 0
      %v3891 = vsel %vm1224, %v3798, 0
      %v3894 = vsel %vm1224, %v3799, 0
      %v3897 = vsel %vm1224, %v3800, 0
      %v3900 = vsel %vm1224, %v3801, 0
      %v3903 = vsel %vm1224, %v3802, 0
      %v3906 = vsel %vm1224, %v3803, 0
      %v3909 = vsel %vm1224, %v3804, 0
      %v3912 = vsel %vm1224, %v3805, 0
      %v3915 = vsel %vm1224, %v3806, 0
      %v3918 = vsel %vm1224, %v3807, 0
      %v3921 = vsel %vm1224, %v3808, 0
      %v3924 = vsel %vm1224, %v3809, 0
      %v3927 = vsel %vm1224, %v3810, 0
      %v3930 = vsel %vm1224, %v3811, 0
      %v3933 = vsel %vm1224, %v3812, 0
      %v3936 = vsel %vm1224, %v3813, 0
      %v3939 = vsel %vm1224, %v3814, 0
      %v3942 = vsel %vm1224, %v3815, 0
      %v3945 = vsel %vm1224, %v3816, 0
      %v3948 = vsel %vm1224, %v3817, 0
      %v3951 = vsel %vm1224, %v3818, 0
      %v3954 = vsel %vm1224, %v3819, 0
      %v3957 = vsel %vm1224, %v3820, 0
      %v3960 = vsel %vm1224, %v3821, 0
      %v3963 = vsel %vm1224, %v3822, 0
      %v3966 = vsel %vm1224, %v3823, 0
      %v3969 = vsel %vm1224, %v3824, 0
      %v3972 = vsel %vm1224, %v3825, 0
      %3974 = vmatpush.msra.mxu0 0.0
      %3975 = vmatpush.msra.mxu0 0.0
      %3976 = vmatpush.msra.mxu0 0.0
      %3977 = vmatpush.msra.mxu0 0.0
      %3978 = vmatpush.msra.mxu0 0.0
      %3979 = vmatpush.msra.mxu0 0.0
      %3980 = vmatpush.msra.mxu0 0.0
      %3981 = vmatpush.msra.mxu0 0.0
      %3982 = vmatpush.msra.mxu0 0.0
      %3983 = vmatpush.msra.mxu0 0.0
      %3984 = vmatpush.msra.mxu0 0.0
      %3985 = vmatpush.msra.mxu0 0.0
      %3986 = vmatpush.msra.mxu0 0.0
      %3987 = vmatpush.msra.mxu0 %v3829
      %3988 = vmatpush.msra.mxu0 %v3828
      %3989 = vmatpush.msra.mxu0 %v3827
      %3990 = vmatmul.f32.gmra.mxu0 %v3831
      %v3991 = vpop.f32.mrf.mxu0
      %v3992 = vadd.f32 0.0, %v3991
      %3993 = vmatmul.f32.gmra.mxu0 %v3834
      %v3994 = vpop.f32.mrf.mxu0
      %v3995 = vadd.f32 0.0, %v3994
      %3996 = vmatmul.f32.gmra.mxu0 %v3837
      %v3997 = vpop.f32.mrf.mxu0
      %v3998 = vadd.f32 0.0, %v3997
      %3999 = vmatmul.f32.gmra.mxu0 %v3840
      %v4000 = vpop.f32.mrf.mxu0
      %v4001 = vadd.f32 0.0, %v4000
      %4002 = vmatmul.f32.gmra.mxu0 %v3843
      %v4003 = vpop.f32.mrf.mxu0
      %v4004 = vadd.f32 0.0, %v4003
      %4005 = vmatmul.f32.gmra.mxu0 %v3846
      %v4006 = vpop.f32.mrf.mxu0
      %v4007 = vadd.f32 0.0, %v4006
      %4008 = vmatmul.f32.gmra.mxu0 %v3849
      %v4009 = vpop.f32.mrf.mxu0
      %v4010 = vadd.f32 0.0, %v4009
      %4011 = vmatmul.f32.gmra.mxu0 %v3852
      %v4012 = vpop.f32.mrf.mxu0
      %v4013 = vadd.f32 0.0, %v4012
      %4014 = vmatmul.f32.gmra.mxu0 %v3855
      %v4015 = vpop.f32.mrf.mxu0
      %v4016 = vadd.f32 0.0, %v4015
      %4017 = vmatmul.f32.gmra.mxu0 %v3858
      %v4018 = vpop.f32.mrf.mxu0
      %v4019 = vadd.f32 0.0, %v4018
      %4020 = vmatmul.f32.gmra.mxu0 %v3861
      %v4021 = vpop.f32.mrf.mxu0
      %v4022 = vadd.f32 0.0, %v4021
      %4023 = vmatmul.f32.gmra.mxu0 %v3864
      %v4024 = vpop.f32.mrf.mxu0
      %v4025 = vadd.f32 0.0, %v4024
      %4026 = vmatmul.f32.gmra.mxu0 %v3867
      %v4027 = vpop.f32.mrf.mxu0
      %v4028 = vadd.f32 0.0, %v4027
      %4029 = vmatmul.f32.gmra.mxu0 %v3870
      %v4030 = vpop.f32.mrf.mxu0
      %v4031 = vadd.f32 0.0, %v4030
      %4032 = vmatmul.f32.gmra.mxu0 %v3873
      %v4033 = vpop.f32.mrf.mxu0
      %v4034 = vadd.f32 0.0, %v4033
      %4035 = vmatmul.f32.gmra.mxu0 %v3876
      %v4036 = vpop.f32.mrf.mxu0
      %v4037 = vadd.f32 0.0, %v4036
      %4038 = vmatmul.f32.gmra.mxu0 %v3879
      %v4039 = vpop.f32.mrf.mxu0
      %v4040 = vadd.f32 0.0, %v4039
      %4041 = vmatmul.f32.gmra.mxu0 %v3882
      %v4042 = vpop.f32.mrf.mxu0
      %v4043 = vadd.f32 0.0, %v4042
      %4044 = vmatmul.f32.gmra.mxu0 %v3885
      %v4045 = vpop.f32.mrf.mxu0
      %v4046 = vadd.f32 0.0, %v4045
      %4047 = vmatmul.f32.gmra.mxu0 %v3888
      %v4048 = vpop.f32.mrf.mxu0
      %v4049 = vadd.f32 0.0, %v4048
      %4050 = vmatmul.f32.gmra.mxu0 %v3891
      %v4051 = vpop.f32.mrf.mxu0
      %v4052 = vadd.f32 0.0, %v4051
      %4053 = vmatmul.f32.gmra.mxu0 %v3894
      %v4054 = vpop.f32.mrf.mxu0
      %v4055 = vadd.f32 0.0, %v4054
      %4056 = vmatmul.f32.gmra.mxu0 %v3897
      %v4057 = vpop.f32.mrf.mxu0
      %v4058 = vadd.f32 0.0, %v4057
      %4059 = vmatmul.f32.gmra.mxu0 %v3900
      %v4060 = vpop.f32.mrf.mxu0
      %v4061 = vadd.f32 0.0, %v4060
      %4062 = vmatmul.f32.gmra.mxu0 %v3903
      %v4063 = vpop.f32.mrf.mxu0
      %v4064 = vadd.f32 0.0, %v4063
      %4065 = vmatmul.f32.gmra.mxu0 %v3906
      %v4066 = vpop.f32.mrf.mxu0
      %v4067 = vadd.f32 0.0, %v4066
      %4068 = vmatmul.f32.gmra.mxu0 %v3909
      %v4069 = vpop.f32.mrf.mxu0
      %v4070 = vadd.f32 0.0, %v4069
      %4071 = vmatmul.f32.gmra.mxu0 %v3912
      %v4072 = vpop.f32.mrf.mxu0
      %v4073 = vadd.f32 0.0, %v4072
      %4074 = vmatmul.f32.gmra.mxu0 %v3915
      %v4075 = vpop.f32.mrf.mxu0
      %v4076 = vadd.f32 0.0, %v4075
      %4077 = vmatmul.f32.gmra.mxu0 %v3918
      %v4078 = vpop.f32.mrf.mxu0
      %v4079 = vadd.f32 0.0, %v4078
      %4080 = vmatmul.f32.gmra.mxu0 %v3921
      %v4081 = vpop.f32.mrf.mxu0
      %v4082 = vadd.f32 0.0, %v4081
      %4083 = vmatmul.f32.gmra.mxu0 %v3924
      %v4084 = vpop.f32.mrf.mxu0
      %v4085 = vadd.f32 0.0, %v4084
      %4086 = vmatmul.f32.gmra.mxu0 %v3927
      %v4087 = vpop.f32.mrf.mxu0
      %v4088 = vadd.f32 0.0, %v4087
      %4089 = vmatmul.f32.gmra.mxu0 %v3930
      %v4090 = vpop.f32.mrf.mxu0
      %v4091 = vadd.f32 0.0, %v4090
      %4092 = vmatmul.f32.gmra.mxu0 %v3933
      %v4093 = vpop.f32.mrf.mxu0
      %v4094 = vadd.f32 0.0, %v4093
      %4095 = vmatmul.f32.gmra.mxu0 %v3936
      %v4096 = vpop.f32.mrf.mxu0
      %v4097 = vadd.f32 0.0, %v4096
      %4098 = vmatmul.f32.gmra.mxu0 %v3939
      %v4099 = vpop.f32.mrf.mxu0
      %v4100 = vadd.f32 0.0, %v4099
      %4101 = vmatmul.f32.gmra.mxu0 %v3942
      %v4102 = vpop.f32.mrf.mxu0
      %v4103 = vadd.f32 0.0, %v4102
      %4104 = vmatmul.f32.gmra.mxu0 %v3945
      %v4105 = vpop.f32.mrf.mxu0
      %v4106 = vadd.f32 0.0, %v4105
      %4107 = vmatmul.f32.gmra.mxu0 %v3948
      %v4108 = vpop.f32.mrf.mxu0
      %v4109 = vadd.f32 0.0, %v4108
      %4110 = vmatmul.f32.gmra.mxu0 %v3951
      %v4111 = vpop.f32.mrf.mxu0
      %v4112 = vadd.f32 0.0, %v4111
      %4113 = vmatmul.f32.gmra.mxu0 %v3954
      %v4114 = vpop.f32.mrf.mxu0
      %v4115 = vadd.f32 0.0, %v4114
      %4116 = vmatmul.f32.gmra.mxu0 %v3957
      %v4117 = vpop.f32.mrf.mxu0
      %v4118 = vadd.f32 0.0, %v4117
      %4119 = vmatmul.f32.gmra.mxu0 %v3960
      %v4120 = vpop.f32.mrf.mxu0
      %v4121 = vadd.f32 0.0, %v4120
      %4122 = vmatmul.f32.gmra.mxu0 %v3963
      %v4123 = vpop.f32.mrf.mxu0
      %v4124 = vadd.f32 0.0, %v4123
      %4125 = vmatmul.f32.gmra.mxu0 %v3966
      %v4126 = vpop.f32.mrf.mxu0
      %v4127 = vadd.f32 0.0, %v4126
      %4128 = vmatmul.f32.gmra.mxu0 %v3969
      %v4129 = vpop.f32.mrf.mxu0
      %v4130 = vadd.f32 0.0, %v4129
      %4131 = vmatmul.f32.gmra.mxu0 %v3972
      %v4132 = vpop.f32.mrf.mxu0
      %v4133 = vadd.f32 0.0, %v4132
      %4134 = vdwg.mxu0
      %v4135 = vadd.f32 %v3635, %v3992
      %v4136 = vadd.f32 %v3638, %v3995
      %v4137 = vadd.f32 %v3641, %v3998
      %v4138 = vadd.f32 %v3644, %v4001
      %v4139 = vadd.f32 %v3647, %v4004
      %v4140 = vadd.f32 %v3650, %v4007
      %v4141 = vadd.f32 %v3653, %v4010
      %v4142 = vadd.f32 %v3656, %v4013
      %v4143 = vadd.f32 %v3659, %v4016
      %v4144 = vadd.f32 %v3662, %v4019
      %v4145 = vadd.f32 %v3665, %v4022
      %v4146 = vadd.f32 %v3668, %v4025
      %v4147 = vadd.f32 %v3671, %v4028
      %v4148 = vadd.f32 %v3674, %v4031
      %v4149 = vadd.f32 %v3677, %v4034
      %v4150 = vadd.f32 %v3680, %v4037
      %v4151 = vadd.f32 %v3683, %v4040
      %v4152 = vadd.f32 %v3686, %v4043
      %v4153 = vadd.f32 %v3689, %v4046
      %v4154 = vadd.f32 %v3692, %v4049
      %v4155 = vadd.f32 %v3695, %v4052
      %v4156 = vadd.f32 %v3698, %v4055
      %v4157 = vadd.f32 %v3701, %v4058
      %v4158 = vadd.f32 %v3704, %v4061
      %v4159 = vadd.f32 %v3707, %v4064
      %v4160 = vadd.f32 %v3710, %v4067
      %v4161 = vadd.f32 %v3713, %v4070
      %v4162 = vadd.f32 %v3716, %v4073
      %v4163 = vadd.f32 %v3719, %v4076
      %v4164 = vadd.f32 %v3722, %v4079
      %v4165 = vadd.f32 %v3725, %v4082
      %v4166 = vadd.f32 %v3728, %v4085
      %v4167 = vadd.f32 %v3731, %v4088
      %v4168 = vadd.f32 %v3734, %v4091
      %v4169 = vadd.f32 %v3737, %v4094
      %v4170 = vadd.f32 %v3740, %v4097
      %v4171 = vadd.f32 %v3743, %v4100
      %v4172 = vadd.f32 %v3746, %v4103
      %v4173 = vadd.f32 %v3749, %v4106
      %v4174 = vadd.f32 %v3752, %v4109
      %v4175 = vadd.f32 %v3755, %v4112
      %v4176 = vadd.f32 %v3758, %v4115
      %v4177 = vadd.f32 %v3761, %v4118
      %v4178 = vadd.f32 %v3764, %v4121
      %v4179 = vadd.f32 %v3767, %v4124
      %v4180 = vadd.f32 %v3770, %v4127
      %v4181 = vadd.f32 %v3773, %v4130
      %v4182 = vadd.f32 %v3776, %v4133
      %v4183 = vld [vmem:[%s5] sm:$0x1]
      %v4185 = vperm.slane %v4183, 0
      %v4187 = vadd.f32 %v4135, %v4185
      %v4188 = vadd.f32 %v4136, %v4185
      %v4189 = vadd.f32 %v4137, %v4185
      %v4190 = vadd.f32 %v4138, %v4185
      %v4191 = vadd.f32 %v4139, %v4185
      %v4192 = vadd.f32 %v4140, %v4185
      %v4193 = vadd.f32 %v4141, %v4185
      %v4194 = vadd.f32 %v4142, %v4185
      %v4195 = vadd.f32 %v4143, %v4185
      %v4196 = vadd.f32 %v4144, %v4185
      %v4197 = vadd.f32 %v4145, %v4185
      %v4198 = vadd.f32 %v4146, %v4185
      %v4199 = vadd.f32 %v4147, %v4185
      %v4200 = vadd.f32 %v4148, %v4185
      %v4201 = vadd.f32 %v4149, %v4185
      %v4202 = vadd.f32 %v4150, %v4185
      %v4203 = vadd.f32 %v4151, %v4185
      %v4204 = vadd.f32 %v4152, %v4185
      %v4205 = vadd.f32 %v4153, %v4185
      %v4206 = vadd.f32 %v4154, %v4185
      %v4207 = vadd.f32 %v4155, %v4185
      %v4208 = vadd.f32 %v4156, %v4185
      %v4209 = vadd.f32 %v4157, %v4185
      %v4210 = vadd.f32 %v4158, %v4185
      %v4211 = vadd.f32 %v4159, %v4185
      %v4212 = vadd.f32 %v4160, %v4185
      %v4213 = vadd.f32 %v4161, %v4185
      %v4214 = vadd.f32 %v4162, %v4185
      %v4215 = vadd.f32 %v4163, %v4185
      %v4216 = vadd.f32 %v4164, %v4185
      %v4217 = vadd.f32 %v4165, %v4185
      %v4218 = vadd.f32 %v4166, %v4185
      %v4219 = vadd.f32 %v4167, %v4185
      %v4220 = vadd.f32 %v4168, %v4185
      %v4221 = vadd.f32 %v4169, %v4185
      %v4222 = vadd.f32 %v4170, %v4185
      %v4223 = vadd.f32 %v4171, %v4185
      %v4224 = vadd.f32 %v4172, %v4185
      %v4225 = vadd.f32 %v4173, %v4185
      %v4226 = vadd.f32 %v4174, %v4185
      %v4227 = vadd.f32 %v4175, %v4185
      %v4228 = vadd.f32 %v4176, %v4185
      %v4229 = vadd.f32 %v4177, %v4185
      %v4230 = vadd.f32 %v4178, %v4185
      %v4231 = vadd.f32 %v4179, %v4185
      %v4232 = vadd.f32 %v4180, %v4185
      %v4233 = vadd.f32 %v4181, %v4185
      %v4234 = vadd.f32 %v4182, %v4185
      %v4235 = vld [vmem:[%s247 + $0x20] sm:$0xff]
      %v4236 = vld [vmem:[%s247 + $0x28] sm:$0xff]
      %v4237 = vld [vmem:[%s247 + $0x30] sm:$0xff]
      %v4238 = vld [vmem:[%s247 + $0x38] sm:$0xff]
      %v4239 = vld [vmem:[%s247 + $0x40] sm:$0xff]
      %v4240 = vld [vmem:[%s247 + $0x48] sm:$0xff]
      %v4241 = vld [vmem:[%s247 + $0x50] sm:$0xff]
      %v4242 = vld [vmem:[%s247 + $0x58] sm:$0xff]
      %v4243 = vld [vmem:[%s247 + $0x60] sm:$0xff]
      %v4244 = vld [vmem:[%s247 + $0x68] sm:$0xff]
      %v4245 = vld [vmem:[%s247 + $0x70] sm:$0xff]
      %v4246 = vld [vmem:[%s247 + $0x78] sm:$0xff]
      %v4247 = vld [vmem:[%s247 + $0x80] sm:$0xff]
      %v4248 = vld [vmem:[%s247 + $0x88] sm:$0xff]
      %v4249 = vld [vmem:[%s247 + $0x90] sm:$0xff]
      %v4250 = vld [vmem:[%s247 + $0x98] sm:$0xff]
      %v4251 = vld [vmem:[%s247 + $0xa0] sm:$0xff]
      %v4252 = vld [vmem:[%s247 + $0xa8] sm:$0xff]
      %v4253 = vld [vmem:[%s247 + $0xb0] sm:$0xff]
      %v4254 = vld [vmem:[%s247 + $0xb8] sm:$0xff]
      %v4255 = vld [vmem:[%s247 + $0xc0] sm:$0xff]
      %v4256 = vld [vmem:[%s247 + $0xc8] sm:$0xff]
      %v4257 = vld [vmem:[%s247 + $0xd0] sm:$0xff]
      %v4258 = vld [vmem:[%s247 + $0xd8] sm:$0xff]
      %v4259 = vld [vmem:[%s247 + $0xe0] sm:$0xff]
      %v4260 = vld [vmem:[%s247 + $0xe8] sm:$0xff]
      %v4261 = vld [vmem:[%s247 + $0xf0] sm:$0xff]
      %v4262 = vld [vmem:[%s247 + $0xf8] sm:$0xff]
      %v4263 = vld [vmem:[%s247 + $0x100] sm:$0xff]
      %v4264 = vld [vmem:[%s247 + $0x108] sm:$0xff]
      %v4265 = vld [vmem:[%s247 + $0x110] sm:$0xff]
      %v4266 = vld [vmem:[%s247 + $0x118] sm:$0xff]
      %v4267 = vld [vmem:[%s247 + $0x120] sm:$0xff]
      %v4268 = vld [vmem:[%s247 + $0x128] sm:$0xff]
      %v4269 = vld [vmem:[%s247 + $0x130] sm:$0xff]
      %v4270 = vld [vmem:[%s247 + $0x138] sm:$0xff]
      %v4271 = vld [vmem:[%s247 + $0x140] sm:$0xff]
      %v4272 = vld [vmem:[%s247 + $0x148] sm:$0xff]
      %v4273 = vld [vmem:[%s247 + $0x150] sm:$0xff]
      %v4274 = vld [vmem:[%s247 + $0x158] sm:$0xff]
      %v4275 = vld [vmem:[%s247 + $0x160] sm:$0xff]
      %v4276 = vld [vmem:[%s247 + $0x168] sm:$0xff]
      %v4277 = vld [vmem:[%s247 + $0x170] sm:$0xff]
      %v4278 = vld [vmem:[%s247 + $0x178] sm:$0xff]
      %v4279 = vld [vmem:[%s247 + $0x180] sm:$0xff]
      %v4280 = vld [vmem:[%s247 + $0x188] sm:$0xff]
      %v4281 = vld [vmem:[%s247 + $0x190] sm:$0xff]
      %v4282 = vld [vmem:[%s247 + $0x198] sm:$0xff]
      %v4283 = vadd.f32 %v4187, %v4235
      %v4284 = vadd.f32 %v4188, %v4236
      %v4285 = vadd.f32 %v4189, %v4237
      %v4286 = vadd.f32 %v4190, %v4238
      %v4287 = vadd.f32 %v4191, %v4239
      %v4288 = vadd.f32 %v4192, %v4240
      %v4289 = vadd.f32 %v4193, %v4241
      %v4290 = vadd.f32 %v4194, %v4242
      %v4291 = vadd.f32 %v4195, %v4243
      %v4292 = vadd.f32 %v4196, %v4244
      %v4293 = vadd.f32 %v4197, %v4245
      %v4294 = vadd.f32 %v4198, %v4246
      %v4295 = vadd.f32 %v4199, %v4247
      %v4296 = vadd.f32 %v4200, %v4248
      %v4297 = vadd.f32 %v4201, %v4249
      %v4298 = vadd.f32 %v4202, %v4250
      %v4299 = vadd.f32 %v4203, %v4251
      %v4300 = vadd.f32 %v4204, %v4252
      %v4301 = vadd.f32 %v4205, %v4253
      %v4302 = vadd.f32 %v4206, %v4254
      %v4303 = vadd.f32 %v4207, %v4255
      %v4304 = vadd.f32 %v4208, %v4256
      %v4305 = vadd.f32 %v4209, %v4257
      %v4306 = vadd.f32 %v4210, %v4258
      %v4307 = vadd.f32 %v4211, %v4259
      %v4308 = vadd.f32 %v4212, %v4260
      %v4309 = vadd.f32 %v4213, %v4261
      %v4310 = vadd.f32 %v4214, %v4262
      %v4311 = vadd.f32 %v4215, %v4263
      %v4312 = vadd.f32 %v4216, %v4264
      %v4313 = vadd.f32 %v4217, %v4265
      %v4314 = vadd.f32 %v4218, %v4266
      %v4315 = vadd.f32 %v4219, %v4267
      %v4316 = vadd.f32 %v4220, %v4268
      %v4317 = vadd.f32 %v4221, %v4269
      %v4318 = vadd.f32 %v4222, %v4270
      %v4319 = vadd.f32 %v4223, %v4271
      %v4320 = vadd.f32 %v4224, %v4272
      %v4321 = vadd.f32 %v4225, %v4273
      %v4322 = vadd.f32 %v4226, %v4274
      %v4323 = vadd.f32 %v4227, %v4275
      %v4324 = vadd.f32 %v4228, %v4276
      %v4325 = vadd.f32 %v4229, %v4277
      %v4326 = vadd.f32 %v4230, %v4278
      %v4327 = vadd.f32 %v4231, %v4279
      %v4328 = vadd.f32 %v4232, %v4280
      %v4329 = vadd.f32 %v4233, %v4281
      %v4330 = vadd.f32 %v4234, %v4282
      %v4331 = vmax.f32 %v4283, 0.0
      %v4332 = vmax.f32 %v4284, 0.0
      %v4333 = vmax.f32 %v4285, 0.0
      %v4334 = vmax.f32 %v4286, 0.0
      %v4335 = vmax.f32 %v4287, 0.0
      %v4336 = vmax.f32 %v4288, 0.0
      %v4337 = vmax.f32 %v4289, 0.0
      %v4338 = vmax.f32 %v4290, 0.0
      %v4339 = vmax.f32 %v4291, 0.0
      %v4340 = vmax.f32 %v4292, 0.0
      %v4341 = vmax.f32 %v4293, 0.0
      %v4342 = vmax.f32 %v4294, 0.0
      %v4343 = vmax.f32 %v4295, 0.0
      %v4344 = vmax.f32 %v4296, 0.0
      %v4345 = vmax.f32 %v4297, 0.0
      %v4346 = vmax.f32 %v4298, 0.0
      %v4347 = vmax.f32 %v4299, 0.0
      %v4348 = vmax.f32 %v4300, 0.0
      %v4349 = vmax.f32 %v4301, 0.0
      %v4350 = vmax.f32 %v4302, 0.0
      %v4351 = vmax.f32 %v4303, 0.0
      %v4352 = vmax.f32 %v4304, 0.0
      %v4353 = vmax.f32 %v4305, 0.0
      %v4354 = vmax.f32 %v4306, 0.0
      %v4355 = vmax.f32 %v4307, 0.0
      %v4356 = vmax.f32 %v4308, 0.0
      %v4357 = vmax.f32 %v4309, 0.0
      %v4358 = vmax.f32 %v4310, 0.0
      %v4359 = vmax.f32 %v4311, 0.0
      %v4360 = vmax.f32 %v4312, 0.0
      %v4361 = vmax.f32 %v4313, 0.0
      %v4362 = vmax.f32 %v4314, 0.0
      %v4363 = vmax.f32 %v4315, 0.0
      %v4364 = vmax.f32 %v4316, 0.0
      %v4365 = vmax.f32 %v4317, 0.0
      %v4366 = vmax.f32 %v4318, 0.0
      %v4367 = vmax.f32 %v4319, 0.0
      %v4368 = vmax.f32 %v4320, 0.0
      %v4369 = vmax.f32 %v4321, 0.0
      %v4370 = vmax.f32 %v4322, 0.0
      %v4371 = vmax.f32 %v4323, 0.0
      %v4372 = vmax.f32 %v4324, 0.0
      %v4373 = vmax.f32 %v4325, 0.0
      %v4374 = vmax.f32 %v4326, 0.0
      %v4375 = vmax.f32 %v4327, 0.0
      %v4376 = vmax.f32 %v4328, 0.0
      %v4377 = vmax.f32 %v4329, 0.0
      %v4378 = vmax.f32 %v4330, 0.0
      %4379 = vst.msk [vmem:[%s253] sm:$0xff] %vm255, %v4331
      %4380 = vst.msk [vmem:[%s253 + $0x8] sm:$0xff] %vm255, %v4332
      %4381 = vst.msk [vmem:[%s253 + $0x10] sm:$0xff] %vm255, %v4333
      %4382 = vst.msk [vmem:[%s253 + $0x18] sm:$0xff] %vm255, %v4334
      %4383 = vst.msk [vmem:[%s253 + $0x20] sm:$0xff] %vm255, %v4335
      %4384 = vst.msk [vmem:[%s253 + $0x28] sm:$0xff] %vm255, %v4336
      %4385 = vst.msk [vmem:[%s253 + $0x30] sm:$0xff] %vm255, %v4337
      %4386 = vst.msk [vmem:[%s253 + $0x38] sm:$0xff] %vm255, %v4338
      %4387 = vst.msk [vmem:[%s253 + $0x40] sm:$0xff] %vm255, %v4339
      %4388 = vst.msk [vmem:[%s253 + $0x48] sm:$0xff] %vm255, %v4340
      %4389 = vst.msk [vmem:[%s253 + $0x50] sm:$0xff] %vm255, %v4341
      %4390 = vst.msk [vmem:[%s253 + $0x58] sm:$0xff] %vm255, %v4342
      %4391 = vst.msk [vmem:[%s253 + $0x60] sm:$0xff] %vm255, %v4343
      %4392 = vst.msk [vmem:[%s253 + $0x68] sm:$0xff] %vm255, %v4344
      %4393 = vst.msk [vmem:[%s253 + $0x70] sm:$0xff] %vm255, %v4345
      %4394 = vst.msk [vmem:[%s253 + $0x78] sm:$0xff] %vm255, %v4346
      %4395 = vst.msk [vmem:[%s253 + $0x80] sm:$0xff] %vm255, %v4347
      %4396 = vst.msk [vmem:[%s253 + $0x88] sm:$0xff] %vm255, %v4348
      %4397 = vst.msk [vmem:[%s253 + $0x90] sm:$0xff] %vm255, %v4349
      %4398 = vst.msk [vmem:[%s253 + $0x98] sm:$0xff] %vm255, %v4350
      %4399 = vst.msk [vmem:[%s253 + $0xa0] sm:$0xff] %vm255, %v4351
      %4400 = vst.msk [vmem:[%s253 + $0xa8] sm:$0xff] %vm255, %v4352
      %4401 = vst.msk [vmem:[%s253 + $0xb0] sm:$0xff] %vm255, %v4353
      %4402 = vst.msk [vmem:[%s253 + $0xb8] sm:$0xff] %vm255, %v4354
      %4403 = vst.msk [vmem:[%s253 + $0xc0] sm:$0xff] %vm255, %v4355
      %4404 = vst.msk [vmem:[%s253 + $0xc8] sm:$0xff] %vm255, %v4356
      %4405 = vst.msk [vmem:[%s253 + $0xd0] sm:$0xff] %vm255, %v4357
      %4406 = vst.msk [vmem:[%s253 + $0xd8] sm:$0xff] %vm255, %v4358
      %4407 = vst.msk [vmem:[%s253 + $0xe0] sm:$0xff] %vm255, %v4359
      %4408 = vst.msk [vmem:[%s253 + $0xe8] sm:$0xff] %vm255, %v4360
      %4409 = vst.msk [vmem:[%s253 + $0xf0] sm:$0xff] %vm255, %v4361
      %4410 = vst.msk [vmem:[%s253 + $0xf8] sm:$0xff] %vm255, %v4362
      %4411 = vst.msk [vmem:[%s253 + $0x100] sm:$0xff] %vm255, %v4363
      %4412 = vst.msk [vmem:[%s253 + $0x108] sm:$0xff] %vm255, %v4364
      %4413 = vst.msk [vmem:[%s253 + $0x110] sm:$0xff] %vm255, %v4365
      %4414 = vst.msk [vmem:[%s253 + $0x118] sm:$0xff] %vm255, %v4366
      %4415 = vst.msk [vmem:[%s253 + $0x120] sm:$0xff] %vm255, %v4367
      %4416 = vst.msk [vmem:[%s253 + $0x128] sm:$0xff] %vm255, %v4368
      %4417 = vst.msk [vmem:[%s253 + $0x130] sm:$0xff] %vm255, %v4369
      %4418 = vst.msk [vmem:[%s253 + $0x138] sm:$0xff] %vm255, %v4370
      %4419 = vst.msk [vmem:[%s253 + $0x140] sm:$0xff] %vm255, %v4371
      %4420 = vst.msk [vmem:[%s253 + $0x148] sm:$0xff] %vm255, %v4372
      %4421 = vst.msk [vmem:[%s253 + $0x150] sm:$0xff] %vm255, %v4373
      %4422 = vst.msk [vmem:[%s253 + $0x158] sm:$0xff] %vm255, %v4374
      %4423 = vst.msk [vmem:[%s253 + $0x160] sm:$0xff] %vm255, %v4375
      %4424 = vst.msk [vmem:[%s253 + $0x168] sm:$0xff] %vm255, %v4376
      %4425 = vst.msk [vmem:[%s253 + $0x170] sm:$0xff] %vm255, %v4377
      %4426 = vst.msk [vmem:[%s253 + $0x178] sm:$0xff] %vm255, %v4378
      %s4427 = smul.u32 48, %s17
      %p4428 = scmp.lt.s32.totalorder %s4427, 95
      %s4429 = scalar_select %p4428, %s4427, 95
      %s4430 = smul.addr %s4429, 8
      %s4431 = scalar_lea.vmem %s6, %s4430
      // Predicated region
      $region45: #{tpu_custom_call.1} parent=43 // pred_check
        %p4432 = pneg %p166
      $region46: #{tpu_custom_call.1} parent=43 // pred_check_branch
        %4434 = sbr.rel (%p4432) target = $region48
      $region47: #{tpu_custom_call.1} parent=43 // pred_region
        %s4435 = smul.u32 48, %s17
      $region48: #{tpu_custom_call.1} parent=43 // pred_fallthru
        _
    $region44: #{tpu_custom_call.1} parent=5 // pred_fallthru
      _
    %p4436 = scmp.le.s32.totalorder 2, %s12
    // Predicated region
    $region49: #{tpu_custom_call.1} parent=5 // pred_check
      %p4437 = pneg %p4436
    $region50: #{tpu_custom_call.1} parent=5 // pred_check_branch
      %4439 = sbr.rel (%p4437) target = $region52
    $region51: #{tpu_custom_call.1} parent=5 // pred_region
      %s4440 = ssub.s32 %s12, 2
      // Predicated region
      $region53: #{tpu_custom_call.1} parent=51 // pred_check
        %p4441 = pneg %p172
      $region54: #{tpu_custom_call.1} parent=51 // pred_check_branch
        %4443 = sbr.rel (%p4441) target = $region56
      $region55: #{tpu_custom_call.1} parent=51 // pred_region
        %s4444 = smul.u32 48, %s18
        %p4445 = scmp.lt.s32.totalorder %s4444, 95
        %s4446 = scalar_select %p4445, %s4444, 95
        %s4447 = smul.addr %s4446, 8
        %s4448 = scalar_lea.vmem %s6, %s4447
      $region56: #{tpu_custom_call.1} parent=51 // pred_fallthru
        _
    $region52: #{tpu_custom_call.1} parent=5 // pred_fallthru
      _
  $region6: #{tpu_custom_call.1} parent=0 // loop_footer
    %s16 = sadd.s32 1, %s12
  $region7: #{tpu_custom_call.1} parent=0 // loop_footer_branch
    %11 = sbr.rel target = $region3
  $region8: #{tpu_custom_call.1} parent=0 // loop_exit
    _

</llo_original>
